<compile_context>
chip_gen: v6e
topology: v6e:2x2x1
jax: 0.10.0
libtpu: 0.0.40
codegen_flags: <defaults>
</compile_context>

<pallas_src>
import math

import jax
import jax.numpy as jnp
from jax.experimental import pallas as pl
from jax.experimental.pallas import tpu as pltpu

NUM_STEPS = 20  # hard-coded `for i in range(20)` in the PyTorch module


def _caption_decoder_kernel(feat_ref, xseq_ref, wvf_ref, wv_ref, bv_ref,
                            wcf_ref, wc_ref, bc_ref, out_ref):
    """Full 20-step two-cell recurrence for one (padded) batch.

    feat_ref : (B, K, D)      image features
    xseq_ref : (T-1, B, D)    decoder inputs for steps 1..T-1 (time-major); step 0 is mean(feat)
    wvf_ref  : (D, 4H)        rnn_v input weights for the mean-feature slot (transposed)
    wv_ref   : (D+2H, 4H)     fused rnn_v weights, rows = [x_t | hidden_c | hidden_v]
    bv_ref   : (1, 4H)        b_ih_v + b_hh_v
    wcf_ref  : (D, 4H)        rnn_c input weights for the features_hat slot (transposed)
    wc_ref   : (2H, 4H)       fused rnn_c weights, rows = [hidden_v | hidden_c]
    bc_ref   : (1, 4H)        b_ih_c + b_hh_c
    out_ref  : (T, B, H)      hidden_c per step (time-major)
    """
    T, B, H = out_ref.shape
    f32 = jnp.float32

    feat_mean = jnp.mean(feat_ref[...], axis=1)                       # (B, D)

    # Loop-invariant gate contributions.  Softmax(dim=2) over the size-1 attention
    # axis makes att == 1 exactly, so features_hat == feat_mean at every step and
    # both cells see a constant feature term -> fold it into effective biases once.
    bias_v = jnp.dot(feat_mean, wvf_ref[...], preferred_element_type=f32) + bv_ref[...]
    bias_c = jnp.dot(feat_mean, wcf_ref[...], preferred_element_type=f32) + bc_ref[...]

    w_v = wv_ref[...]
    w_c = wc_ref[...]

    def lstm_cell(gates, c_prev):
        # PyTorch LSTMCell gate order: i, f, g, o.
        # With num_hid a multiple of 128 these slices become free lane views.
        i_g = jax.nn.sigmoid(gates[:, 0 * H:1 * H])
        f_g = jax.nn.sigmoid(gates[:, 1 * H:2 * H])
        g_g = jnp.tanh(gates[:, 2 * H:3 * H])
        o_g = jax.nn.sigmoid(gates[:, 3 * H:4 * H])
        c_new = f_g * c_prev + i_g * g_g
        h_new = o_g * jnp.tanh(c_new)
        return h_new, c_new

    h_v = jnp.zeros((B, H), f32)
    c_v = jnp.zeros((B, H), f32)
    h_c = jnp.zeros((B, H), f32)
    c_c = jnp.zeros((B, H), f32)

    for t in range(T):  # static unroll: T == 20 is fixed by the module
        x_t = feat_mean if t == 0 else xseq_ref[t - 1]                # (B, D)
        gates_v = jnp.dot(jnp.concatenate([x_t, h_c, h_v], axis=1), w_v,
                          preferred_element_type=f32) + bias_v        # (B, 4H)
        h_v, c_v = lstm_cell(gates_v, c_v)
        gates_c = jnp.dot(jnp.concatenate([h_v, h_c], axis=1), w_c,
                          preferred_element_type=f32) + bias_c        # (B, 4H)
        h_c, c_c = lstm_cell(gates_c, c_c)
        out_ref[t] = h_c.astype(out_ref.dtype)


def caption_decoder_pallas(feat, xseq, wvf, wv, bv, wcf, wc, bc):
    """feat: (Bp,K,D), xseq: (T-1,Bp,D) -> (T,Bp,H) with T = NUM_STEPS."""
    Bp, K, D = feat.shape
    Tm1 = xseq.shape[0]
    H4 = wv.shape[1]
    H = H4 // 4
    T = Tm1 + 1
    grid_spec = pltpu.PrefetchScalarGridSpec(
        num_scalar_prefetch=0,
        grid=(1,),  # whole sequence in a single kernel invocation
        in_specs=[
            pl.BlockSpec((Bp, K, D), lambda i: (0, 0, 0)),
            pl.BlockSpec((Tm1, Bp, D), lambda i: (0, 0, 0)),
            pl.BlockSpec((D, H4), lambda i: (0, 0)),
            pl.BlockSpec((D + 2 * H, H4), lambda i: (0, 0)),
            pl.BlockSpec((1, H4), lambda i: (0, 0)),
            pl.BlockSpec((D, H4), lambda i: (0, 0)),
            pl.BlockSpec((2 * H, H4), lambda i: (0, 0)),
            pl.BlockSpec((1, H4), lambda i: (0, 0)),
        ],
        out_specs=pl.BlockSpec((T, Bp, H), lambda i: (0, 0, 0)),
    )
    return pl.pallas_call(
        _caption_decoder_kernel,
        out_shape=jax.ShapeDtypeStruct((T, Bp, H), jnp.float32),
        grid_spec=grid_spec,
        compiler_params=pltpu.CompilerParams(
            dimension_semantics=("arbitrary",),
            # raise this when num_hid / #regions grow (default scoped limit is 16-32 MiB)
            vmem_limit_bytes=32 * 1024 * 1024,
        ),
    )(feat, xseq, wvf, wv, bv, wcf, wc, bc)


class CaptionDecoderRNN:
    """JAX/Pallas port of the PyTorch CaptionDecoderRNN forward pass."""

    def __init__(self, in_dim, num_hid, v_dim, key, rnn_type='LSTM'):
        assert rnn_type == 'LSTM', "only the LSTM variant is implemented"
        # The reference forward concatenates mean(features) with xx along dim=1 and
        # feeds cat([features_hat, hidden_v]) (width v_dim+num_hid) into an LSTMCell
        # declared with input size num_hid+in_dim -> it only runs when v_dim == in_dim.
        assert in_dim == v_dim, "reference forward requires in_dim == v_dim"
        self.in_dim, self.num_hid, self.v_dim = in_dim, num_hid, v_dim
        D, H = in_dim, num_hid
        kb = 1.0 / math.sqrt(H)
        keys = jax.random.split(key, 14)

        def u(k, shape, bound):
            return jax.random.uniform(k, shape, jnp.float32, -bound, bound)

        # rnn_v = LSTMCell(in_dim + num_hid + v_dim, num_hid); runtime input order is
        # cat([mean(features), hidden_c, x_t]) -> columns [0:D | D:D+H | D+H:2D+H].
        self.w_ih_v = u(keys[0], (4 * H, 2 * D + H), kb)
        self.w_hh_v = u(keys[1], (4 * H, H), kb)
        self.b_ih_v = u(keys[2], (4 * H,), kb)
        self.b_hh_v = u(keys[3], (4 * H,), kb)
        # rnn_c = LSTMCell(num_hid + in_dim, num_hid); runtime input order is
        # cat([features_hat, hidden_v]) -> columns [0:D | D:D+H].
        self.w_ih_c = u(keys[4], (4 * H, D + H), kb)
        self.w_hh_c = u(keys[5], (4 * H, H), kb)
        self.b_ih_c = u(keys[6], (4 * H,), kb)
        self.b_hh_c = u(keys[7], (4 * H,), kb)
        # Attention head (v_a, h_a, a).  Softmax(dim=2) over the size-1 attention axis
        # is identically 1, so these never affect the output; they are kept only so the
        # pure-JAX reference can evaluate the literal PyTorch math end-to-end.
        kv = 1.0 / math.sqrt(v_dim)
        self.w_va = u(keys[8], (H, v_dim), kv)
        self.b_va = u(keys[9], (H,), kv)
        self.w_ha = u(keys[10], (H, H), kb)
        self.b_ha = u(keys[11], (H,), kb)
        self.w_a = u(keys[12], (1, H), kb)
        self.b_a = u(keys[13], (1,), kb)

        # --- pre-fused weights for the Pallas kernel (layout glue only) -----------
        # TODO(synk): cast these to bfloat16 for large num_hid (keep state math in f32).
        w_v_feat = self.w_ih_v[:, :D]            # mean(features) slot
        w_v_hc = self.w_ih_v[:, D:D + H]         # hidden_c slot
        w_v_x = self.w_ih_v[:, D + H:]           # x_t slot
        self.k_wv_feat = jnp.transpose(w_v_feat)                                   # (D, 4H)
        self.k_wv = jnp.concatenate(
            [jnp.transpose(w_v_x), jnp.transpose(w_v_hc), jnp.transpose(self.w_hh_v)],
            axis=0)                                                                # (D+2H, 4H)
        self.k_bv = (self.b_ih_v + self.b_hh_v).reshape(1, 4 * H)
        w_c_feat = self.w_ih_c[:, :D]            # features_hat slot
        w_c_hv = self.w_ih_c[:, D:]              # hidden_v slot
        self.k_wc_feat = jnp.transpose(w_c_feat)                                   # (D, 4H)
        self.k_wc = jnp.concatenate(
            [jnp.transpose(w_c_hv), jnp.transpose(self.w_hh_c)], axis=0)           # (2H, 4H)
        self.k_bc = (self.b_ih_c + self.b_hh_c).reshape(1, 4 * H)

    def forward(self, xx, features):
        """xx: (B, T_xx>=19, in_dim), features: (B, K, v_dim) -> (B, 20, num_hid)."""
        B = xx.shape[0]
        # Pad batch to the 8-sublane grain (perf); padded rows are discarded.
        Bp = ((B + 7) // 8) * 8
        pad = Bp - B
        feat_p = jnp.pad(features.astype(jnp.float32), ((0, pad), (0, 0), (0, 0)))
        xx_p = jnp.pad(xx.astype(jnp.float32), ((0, pad), (0, 0), (0, 0)))
        # Steps 1..19 of the decoder input come from xx; step 0 is mean(features),
        # which the kernel builds in VMEM.  Time-major for the in-kernel loop.
        xseq = jnp.transpose(xx_p[:, :NUM_STEPS - 1, :], (1, 0, 2))   # (19, Bp, D)
        out_tbh = caption_decoder_pallas(
            feat_p, xseq, self.k_wv_feat, self.k_wv, self.k_bv,
            self.k_wc_feat, self.k_wc, self.k_bc)
        return jnp.transpose(out_tbh, (1, 0, 2))[:B]                  # (B, 20, num_hid)


# ----------------------------- pure-JAX reference ------------------------------
def _lstm_cell_ref(inp, h, c, w_ih, w_hh, b_ih, b_hh, H):
    gates = inp @ w_ih.T + b_ih + h @ w_hh.T + b_hh
    i_g = jax.nn.sigmoid(gates[:, 0 * H:1 * H])
    f_g = jax.nn.sigmoid(gates[:, 1 * H:2 * H])
    g_g = jnp.tanh(gates[:, 2 * H:3 * H])
    o_g = jax.nn.sigmoid(gates[:, 3 * H:4 * H])
    c_new = f_g * c + i_g * g_g
    h_new = o_g * jnp.tanh(c_new)
    return h_new, c_new


def _reference_forward(m, xx, features):
    """Literal transcription of the PyTorch forward (including the dead attention)."""
    B, K, Dv = features.shape
    H = m.num_hid
    x = jnp.concatenate([jnp.mean(features, axis=1, keepdims=True), xx], axis=1)
    h_v = jnp.zeros((B, H), jnp.float32)
    c_v = jnp.zeros((B, H), jnp.float32)
    h_c = jnp.zeros((B, H), jnp.float32)
    c_c = jnp.zeros((B, H), jnp.float32)
    outs = []
    for i in range(NUM_STEPS):
        inp = jnp.concatenate([jnp.mean(features, axis=1), h_c, x[:, i, :]], axis=1)
        h_v, c_v = _lstm_cell_ref(inp, h_v, c_v, m.w_ih_v, m.w_hh_v, m.b_ih_v, m.b_hh_v, H)
        va = features @ m.w_va.T + m.b_va
        ha = h_v @ m.w_ha.T + m.b_ha
        ha = jnp.repeat(ha[:, None, :], K, axis=1)
        att = jnp.tanh(va + ha) @ m.w_a.T + m.b_a                     # (B, K, 1)
        att = jax.nn.softmax(att, axis=2)                             # == 1 (size-1 axis)
        features_hat = jnp.mean(features * jnp.tile(att, (1, 1, Dv)), axis=1)
        inp_c = jnp.concatenate([features_hat, h_v], axis=1)
        h_c, c_c = _lstm_cell_ref(inp_c, h_c, c_c, m.w_ih_c, m.w_hh_c, m.b_ih_c, m.b_hh_c, H)
        outs.append(h_c)
    return jnp.stack(outs, axis=1)                                    # (B, 20, H)


if __name__ == "__main__":
    # Small shapes consistent with the module: batch=2, in_dim=v_dim=32, num_hid=32,
    # 36 image regions (hard-coded repeat(1,36,1)), caption length 20 (loop uses 19).
    B, D, H, K = 2, 32, 32, 36
    T_xx = NUM_STEPS

    key = jax.random.PRNGKey(0)
    k_xx, k_feat, k_params = jax.random.split(key, 3)
    xx = jax.random.normal(k_xx, (B, T_xx, D), jnp.float32)
    features = jax.random.normal(k_feat, (B, K, D), jnp.float32)

    model = CaptionDecoderRNN(D, H, D, k_params)

    out = model.forward(xx, features)
    out = jax.block_until_ready(out)
    assert out.shape == (B, NUM_STEPS, H), out.shape

    ref = _reference_forward(model, xx, features)
    max_err = float(jnp.max(jnp.abs(out - ref)))
    assert jnp.allclose(out, ref, atol=1e-4, rtol=1e-4), f"mismatch vs reference (max|err|={max_err})"

    print("KERNEL_OK")
</pallas_src>

<mosaic_0001>
module attributes {stable_mosaic.version = 11 : i64} {
  func.func @_caption_decoder_kernel(%arg0: i32, %arg1: memref<8x36x32xf32, #tpu.memory_space<vmem>>, %arg2: memref<19x8x32xf32, #tpu.memory_space<vmem>>, %arg3: memref<32x128xf32, #tpu.memory_space<vmem>>, %arg4: memref<96x128xf32, #tpu.memory_space<vmem>>, %arg5: memref<1x128xf32, #tpu.memory_space<vmem>>, %arg6: memref<32x128xf32, #tpu.memory_space<vmem>>, %arg7: memref<64x128xf32, #tpu.memory_space<vmem>>, %arg8: memref<1x128xf32, #tpu.memory_space<vmem>>, %arg9: memref<20x8x32xf32, #tpu.memory_space<vmem>>) attributes {dimension_semantics = [#tpu.dimension_semantics<arbitrary>], iteration_bounds = array<i64: 1>, scalar_prefetch = 0 : i64, scratch_operands = 0 : i64, tpu.core_type = #tpu.core_type<tc>, window_params = [{pipeline_mode = #tpu.pipeline_mode<synchronous>, transform_indices = @transform_0, window_bounds = array<i64: 8, 36, 32>}, {pipeline_mode = #tpu.pipeline_mode<synchronous>, transform_indices = @transform_1, window_bounds = array<i64: 19, 8, 32>}, {pipeline_mode = #tpu.pipeline_mode<synchronous>, transform_indices = @transform_2, window_bounds = array<i64: 32, 128>}, {pipeline_mode = #tpu.pipeline_mode<synchronous>, transform_indices = @transform_3, window_bounds = array<i64: 96, 128>}, {pipeline_mode = #tpu.pipeline_mode<synchronous>, transform_indices = @transform_4, window_bounds = array<i64: 1, 128>}, {pipeline_mode = #tpu.pipeline_mode<synchronous>, transform_indices = @transform_5, window_bounds = array<i64: 32, 128>}, {pipeline_mode = #tpu.pipeline_mode<synchronous>, transform_indices = @transform_6, window_bounds = array<i64: 64, 128>}, {pipeline_mode = #tpu.pipeline_mode<synchronous>, transform_indices = @transform_7, window_bounds = array<i64: 1, 128>}, {pipeline_mode = #tpu.pipeline_mode<synchronous>, transform_indices = @transform_8, window_bounds = array<i64: 20, 8, 32>}]} {
    %c0 = arith.constant 0 : index
    %c0_0 = arith.constant 0 : index
    %c0_1 = arith.constant 0 : index
    %0 = vector.load %arg1[%c0, %c0_0, %c0_1] : memref<8x36x32xf32, #tpu.memory_space<vmem>>, vector<8x36x32xf32>
    %cst = arith.constant dense<0.000000e+00> : vector<8x32xf32>
    %1 = vector.multi_reduction <add>, %0, %cst [1] : vector<8x36x32xf32> to vector<8x32xf32>
    %cst_2 = arith.constant 3.600000e+01 : f32
    %2 = vector.broadcast %cst_2 : f32 to vector<8x32xf32>
    %3 = arith.divf %1, %2 : vector<8x32xf32>
    %c0_3 = arith.constant 0 : index
    %c0_4 = arith.constant 0 : index
    %4 = vector.load %arg3[%c0_3, %c0_4] : memref<32x128xf32, #tpu.memory_space<vmem>>, vector<32x128xf32>
    %cst_5 = arith.constant dense<0.000000e+00> : vector<8x128xf32>
    %5 = tpu.matmul %3, %4, %cst_5 {dimension_numbers = #tpu.dot_dimension_numbers<[1], [0], [0], [1], [0, 0, 1, 1], [], []>} : vector<8x32xf32>, vector<32x128xf32>, vector<8x128xf32> -> vector<8x128xf32>
    %c0_6 = arith.constant 0 : index
    %c0_7 = arith.constant 0 : index
    %6 = vector.load %arg5[%c0_6, %c0_7] : memref<1x128xf32, #tpu.memory_space<vmem>>, vector<1x128xf32>
    %7 = vector.broadcast %6 : vector<1x128xf32> to vector<8x128xf32>
    %8 = arith.addf %5, %7 : vector<8x128xf32>
    %c0_8 = arith.constant 0 : index
    %c0_9 = arith.constant 0 : index
    %9 = vector.load %arg6[%c0_8, %c0_9] : memref<32x128xf32, #tpu.memory_space<vmem>>, vector<32x128xf32>
    %cst_10 = arith.constant dense<0.000000e+00> : vector<8x128xf32>
    %10 = tpu.matmul %3, %9, %cst_10 {dimension_numbers = #tpu.dot_dimension_numbers<[1], [0], [0], [1], [0, 0, 1, 1], [], []>} : vector<8x32xf32>, vector<32x128xf32>, vector<8x128xf32> -> vector<8x128xf32>
    %c0_11 = arith.constant 0 : index
    %c0_12 = arith.constant 0 : index
    %11 = vector.load %arg8[%c0_11, %c0_12] : memref<1x128xf32, #tpu.memory_space<vmem>>, vector<1x128xf32>
    %12 = vector.broadcast %11 : vector<1x128xf32> to vector<8x128xf32>
    %13 = arith.addf %10, %12 : vector<8x128xf32>
    %c0_13 = arith.constant 0 : index
    %c0_14 = arith.constant 0 : index
    %14 = vector.load %arg4[%c0_13, %c0_14] : memref<96x128xf32, #tpu.memory_space<vmem>>, vector<96x128xf32>
    %c0_15 = arith.constant 0 : index
    %c0_16 = arith.constant 0 : index
    %15 = vector.load %arg7[%c0_15, %c0_16] : memref<64x128xf32, #tpu.memory_space<vmem>>, vector<64x128xf32>
    %cst_17 = arith.constant 0.000000e+00 : f32
    %16 = vector.broadcast %cst_17 : f32 to vector<8x32xf32>
    %cst_18 = arith.constant 0.000000e+00 : f32
    %17 = vector.broadcast %cst_18 : f32 to vector<8x32xf32>
    %cst_19 = arith.constant 0.000000e+00 : f32
    %18 = vector.broadcast %cst_19 : f32 to vector<8x32xf32>
    %cst_20 = arith.constant 0.000000e+00 : f32
    %19 = vector.broadcast %cst_20 : f32 to vector<8x32xf32>
    %20 = tpu.concatenate %3, %18, %16 in 1 : vector<8x32xf32>, vector<8x32xf32>, vector<8x32xf32> -> vector<8x96xf32>
    %cst_21 = arith.constant dense<0.000000e+00> : vector<8x128xf32>
    %21 = tpu.matmul %20, %14, %cst_21 {dimension_numbers = #tpu.dot_dimension_numbers<[1], [0], [0], [1], [0, 0, 1, 1], [], []>} : vector<8x96xf32>, vector<96x128xf32>, vector<8x128xf32> -> vector<8x128xf32>
    %22 = arith.addf %21, %8 : vector<8x128xf32>
    %23 = vector.extract_strided_slice %22 {offsets = [0, 0], sizes = [8, 32], strides = [1, 1]} : vector<8x128xf32> to vector<8x32xf32>
    %24 = arith.negf %23 : vector<8x32xf32>
    %25 = math.exp %24 : vector<8x32xf32>
    %cst_22 = arith.constant 1.000000e+00 : f32
    %26 = vector.broadcast %cst_22 : f32 to vector<8x32xf32>
    %27 = arith.addf %26, %25 : vector<8x32xf32>
    %28 = arith.divf %26, %27 : vector<8x32xf32>
    %29 = vector.extract_strided_slice %22 {offsets = [0, 32], sizes = [8, 32], strides = [1, 1]} : vector<8x128xf32> to vector<8x32xf32>
    %30 = arith.negf %29 : vector<8x32xf32>
    %31 = math.exp %30 : vector<8x32xf32>
    %cst_23 = arith.constant 1.000000e+00 : f32
    %32 = vector.broadcast %cst_23 : f32 to vector<8x32xf32>
    %33 = arith.addf %32, %31 : vector<8x32xf32>
    %34 = arith.divf %32, %33 : vector<8x32xf32>
    %35 = vector.extract_strided_slice %22 {offsets = [0, 64], sizes = [8, 32], strides = [1, 1]} : vector<8x128xf32> to vector<8x32xf32>
    %36 = math.tanh %35 : vector<8x32xf32>
    %37 = vector.extract_strided_slice %22 {offsets = [0, 96], sizes = [8, 32], strides = [1, 1]} : vector<8x128xf32> to vector<8x32xf32>
    %38 = arith.negf %37 : vector<8x32xf32>
    %39 = math.exp %38 : vector<8x32xf32>
    %cst_24 = arith.constant 1.000000e+00 : f32
    %40 = vector.broadcast %cst_24 : f32 to vector<8x32xf32>
    %41 = arith.addf %40, %39 : vector<8x32xf32>
    %42 = arith.divf %40, %41 : vector<8x32xf32>
    %43 = arith.mulf %34, %17 : vector<8x32xf32>
    %44 = arith.mulf %28, %36 : vector<8x32xf32>
    %45 = arith.addf %43, %44 : vector<8x32xf32>
    %46 = math.tanh %45 : vector<8x32xf32>
    %47 = arith.mulf %42, %46 : vector<8x32xf32>
    %48 = tpu.concatenate %47, %18 in 1 : vector<8x32xf32>, vector<8x32xf32> -> vector<8x64xf32>
    %cst_25 = arith.constant dense<0.000000e+00> : vector<8x128xf32>
    %49 = tpu.matmul %48, %15, %cst_25 {dimension_numbers = #tpu.dot_dimension_numbers<[1], [0], [0], [1], [0, 0, 1, 1], [], []>} : vector<8x64xf32>, vector<64x128xf32>, vector<8x128xf32> -> vector<8x128xf32>
    %50 = arith.addf %49, %13 : vector<8x128xf32>
    %51 = vector.extract_strided_slice %50 {offsets = [0, 0], sizes = [8, 32], strides = [1, 1]} : vector<8x128xf32> to vector<8x32xf32>
    %52 = arith.negf %51 : vector<8x32xf32>
    %53 = math.exp %52 : vector<8x32xf32>
    %cst_26 = arith.constant 1.000000e+00 : f32
    %54 = vector.broadcast %cst_26 : f32 to vector<8x32xf32>
    %55 = arith.addf %54, %53 : vector<8x32xf32>
    %56 = arith.divf %54, %55 : vector<8x32xf32>
    %57 = vector.extract_strided_slice %50 {offsets = [0, 32], sizes = [8, 32], strides = [1, 1]} : vector<8x128xf32> to vector<8x32xf32>
    %58 = arith.negf %57 : vector<8x32xf32>
    %59 = math.exp %58 : vector<8x32xf32>
    %cst_27 = arith.constant 1.000000e+00 : f32
    %60 = vector.broadcast %cst_27 : f32 to vector<8x32xf32>
    %61 = arith.addf %60, %59 : vector<8x32xf32>
    %62 = arith.divf %60, %61 : vector<8x32xf32>
    %63 = vector.extract_strided_slice %50 {offsets = [0, 64], sizes = [8, 32], strides = [1, 1]} : vector<8x128xf32> to vector<8x32xf32>
    %64 = math.tanh %63 : vector<8x32xf32>
    %65 = vector.extract_strided_slice %50 {offsets = [0, 96], sizes = [8, 32], strides = [1, 1]} : vector<8x128xf32> to vector<8x32xf32>
    %66 = arith.negf %65 : vector<8x32xf32>
    %67 = math.exp %66 : vector<8x32xf32>
    %cst_28 = arith.constant 1.000000e+00 : f32
    %68 = vector.broadcast %cst_28 : f32 to vector<8x32xf32>
    %69 = arith.addf %68, %67 : vector<8x32xf32>
    %70 = arith.divf %68, %69 : vector<8x32xf32>
    %71 = arith.mulf %62, %19 : vector<8x32xf32>
    %72 = arith.mulf %56, %64 : vector<8x32xf32>
    %73 = arith.addf %71, %72 : vector<8x32xf32>
    %74 = math.tanh %73 : vector<8x32xf32>
    %75 = arith.mulf %70, %74 : vector<8x32xf32>
    %c0_29 = arith.constant 0 : index
    %c0_30 = arith.constant 0 : index
    %c0_31 = arith.constant 0 : index
    %76 = vector.load %arg9[%c0_29, %c0_30, %c0_31] : memref<20x8x32xf32, #tpu.memory_space<vmem>>, vector<1x8x32xf32>
    %77 = vector.shape_cast %76 : vector<1x8x32xf32> to vector<8x32xf32>
    %78 = vector.shape_cast %75 : vector<8x32xf32> to vector<1x8x32xf32>
    tpu.vector_store %arg9[%c0_29, %c0_30, %c0_31], %78 {strides = array<i32>} : memref<20x8x32xf32, #tpu.memory_space<vmem>>, vector<1x8x32xf32>,
    %c0_32 = arith.constant 0 : index
    %c0_33 = arith.constant 0 : index
    %c0_34 = arith.constant 0 : index
    %79 = vector.load %arg2[%c0_32, %c0_33, %c0_34] : memref<19x8x32xf32, #tpu.memory_space<vmem>>, vector<1x8x32xf32>
    %80 = vector.shape_cast %79 : vector<1x8x32xf32> to vector<8x32xf32>
    %81 = tpu.concatenate %80, %75, %47 in 1 : vector<8x32xf32>, vector<8x32xf32>, vector<8x32xf32> -> vector<8x96xf32>
    %cst_35 = arith.constant dense<0.000000e+00> : vector<8x128xf32>
    %82 = tpu.matmul %81, %14, %cst_35 {dimension_numbers = #tpu.dot_dimension_numbers<[1], [0], [0], [1], [0, 0, 1, 1], [], []>} : vector<8x96xf32>, vector<96x128xf32>, vector<8x128xf32> -> vector<8x128xf32>
    %83 = arith.addf %82, %8 : vector<8x128xf32>
    %84 = vector.extract_strided_slice %83 {offsets = [0, 0], sizes = [8, 32], strides = [1, 1]} : vector<8x128xf32> to vector<8x32xf32>
    %85 = arith.negf %84 : vector<8x32xf32>
    %86 = math.exp %85 : vector<8x32xf32>
    %cst_36 = arith.constant 1.000000e+00 : f32
    %87 = vector.broadcast %cst_36 : f32 to vector<8x32xf32>
    %88 = arith.addf %87, %86 : vector<8x32xf32>
    %89 = arith.divf %87, %88 : vector<8x32xf32>
    %90 = vector.extract_strided_slice %83 {offsets = [0, 32], sizes = [8, 32], strides = [1, 1]} : vector<8x128xf32> to vector<8x32xf32>
    %91 = arith.negf %90 : vector<8x32xf32>
    %92 = math.exp %91 : vector<8x32xf32>
    %cst_37 = arith.constant 1.000000e+00 : f32
    %93 = vector.broadcast %cst_37 : f32 to vector<8x32xf32>
    %94 = arith.addf %93, %92 : vector<8x32xf32>
    %95 = arith.divf %93, %94 : vector<8x32xf32>
    %96 = vector.extract_strided_slice %83 {offsets = [0, 64], sizes = [8, 32], strides = [1, 1]} : vector<8x128xf32> to vector<8x32xf32>
    %97 = math.tanh %96 : vector<8x32xf32>
    %98 = vector.extract_strided_slice %83 {offsets = [0, 96], sizes = [8, 32], strides = [1, 1]} : vector<8x128xf32> to vector<8x32xf32>
    %99 = arith.negf %98 : vector<8x32xf32>
    %100 = math.exp %99 : vector<8x32xf32>
    %cst_38 = arith.constant 1.000000e+00 : f32
    %101 = vector.broadcast %cst_38 : f32 to vector<8x32xf32>
    %102 = arith.addf %101, %100 : vector<8x32xf32>
    %103 = arith.divf %101, %102 : vector<8x32xf32>
    %104 = arith.mulf %95, %45 : vector<8x32xf32>
    %105 = arith.mulf %89, %97 : vector<8x32xf32>
    %106 = arith.addf %104, %105 : vector<8x32xf32>
    %107 = math.tanh %106 : vector<8x32xf32>
    %108 = arith.mulf %103, %107 : vector<8x32xf32>
    %109 = tpu.concatenate %108, %75 in 1 : vector<8x32xf32>, vector<8x32xf32> -> vector<8x64xf32>
    %cst_39 = arith.constant dense<0.000000e+00> : vector<8x128xf32>
    %110 = tpu.matmul %109, %15, %cst_39 {dimension_numbers = #tpu.dot_dimension_numbers<[1], [0], [0], [1], [0, 0, 1, 1], [], []>} : vector<8x64xf32>, vector<64x128xf32>, vector<8x128xf32> -> vector<8x128xf32>
    %111 = arith.addf %110, %13 : vector<8x128xf32>
    %112 = vector.extract_strided_slice %111 {offsets = [0, 0], sizes = [8, 32], strides = [1, 1]} : vector<8x128xf32> to vector<8x32xf32>
    %113 = arith.negf %112 : vector<8x32xf32>
    %114 = math.exp %113 : vector<8x32xf32>
    %cst_40 = arith.constant 1.000000e+00 : f32
    %115 = vector.broadcast %cst_40 : f32 to vector<8x32xf32>
    %116 = arith.addf %115, %114 : vector<8x32xf32>
    %117 = arith.divf %115, %116 : vector<8x32xf32>
    %118 = vector.extract_strided_slice %111 {offsets = [0, 32], sizes = [8, 32], strides = [1, 1]} : vector<8x128xf32> to vector<8x32xf32>
    %119 = arith.negf %118 : vector<8x32xf32>
    %120 = math.exp %119 : vector<8x32xf32>
    %cst_41 = arith.constant 1.000000e+00 : f32
    %121 = vector.broadcast %cst_41 : f32 to vector<8x32xf32>
    %122 = arith.addf %121, %120 : vector<8x32xf32>
    %123 = arith.divf %121, %122 : vector<8x32xf32>
    %124 = vector.extract_strided_slice %111 {offsets = [0, 64], sizes = [8, 32], strides = [1, 1]} : vector<8x128xf32> to vector<8x32xf32>
    %125 = math.tanh %124 : vector<8x32xf32>
    %126 = vector.extract_strided_slice %111 {offsets = [0, 96], sizes = [8, 32], strides = [1, 1]} : vector<8x128xf32> to vector<8x32xf32>
    %127 = arith.negf %126 : vector<8x32xf32>
    %128 = math.exp %127 : vector<8x32xf32>
    %cst_42 = arith.constant 1.000000e+00 : f32
    %129 = vector.broadcast %cst_42 : f32 to vector<8x32xf32>
    %130 = arith.addf %129, %128 : vector<8x32xf32>
    %131 = arith.divf %129, %130 : vector<8x32xf32>
    %132 = arith.mulf %123, %73 : vector<8x32xf32>
    %133 = arith.mulf %117, %125 : vector<8x32xf32>
    %134 = arith.addf %132, %133 : vector<8x32xf32>
    %135 = math.tanh %134 : vector<8x32xf32>
    %136 = arith.mulf %131, %135 : vector<8x32xf32>
    %c1 = arith.constant 1 : index
    %c0_43 = arith.constant 0 : index
    %c0_44 = arith.constant 0 : index
    %137 = vector.load %arg9[%c1, %c0_43, %c0_44] : memref<20x8x32xf32, #tpu.memory_space<vmem>>, vector<1x8x32xf32>
    %138 = vector.shape_cast %137 : vector<1x8x32xf32> to vector<8x32xf32>
    %139 = vector.shape_cast %136 : vector<8x32xf32> to vector<1x8x32xf32>
    tpu.vector_store %arg9[%c1, %c0_43, %c0_44], %139 {strides = array<i32>} : memref<20x8x32xf32, #tpu.memory_space<vmem>>, vector<1x8x32xf32>,
    %c1_45 = arith.constant 1 : index
    %c0_46 = arith.constant 0 : index
    %c0_47 = arith.constant 0 : index
    %140 = vector.load %arg2[%c1_45, %c0_46, %c0_47] : memref<19x8x32xf32, #tpu.memory_space<vmem>>, vector<1x8x32xf32>
    %141 = vector.shape_cast %140 : vector<1x8x32xf32> to vector<8x32xf32>
    %142 = tpu.concatenate %141, %136, %108 in 1 : vector<8x32xf32>, vector<8x32xf32>, vector<8x32xf32> -> vector<8x96xf32>
    %cst_48 = arith.constant dense<0.000000e+00> : vector<8x128xf32>
    %143 = tpu.matmul %142, %14, %cst_48 {dimension_numbers = #tpu.dot_dimension_numbers<[1], [0], [0], [1], [0, 0, 1, 1], [], []>} : vector<8x96xf32>, vector<96x128xf32>, vector<8x128xf32> -> vector<8x128xf32>
    %144 = arith.addf %143, %8 : vector<8x128xf32>
    %145 = vector.extract_strided_slice %144 {offsets = [0, 0], sizes = [8, 32], strides = [1, 1]} : vector<8x128xf32> to vector<8x32xf32>
    %146 = arith.negf %145 : vector<8x32xf32>
    %147 = math.exp %146 : vector<8x32xf32>
    %cst_49 = arith.constant 1.000000e+00 : f32
    %148 = vector.broadcast %cst_49 : f32 to vector<8x32xf32>
    %149 = arith.addf %148, %147 : vector<8x32xf32>
    %150 = arith.divf %148, %149 : vector<8x32xf32>
    %151 = vector.extract_strided_slice %144 {offsets = [0, 32], sizes = [8, 32], strides = [1, 1]} : vector<8x128xf32> to vector<8x32xf32>
    %152 = arith.negf %151 : vector<8x32xf32>
    %153 = math.exp %152 : vector<8x32xf32>
    %cst_50 = arith.constant 1.000000e+00 : f32
    %154 = vector.broadcast %cst_50 : f32 to vector<8x32xf32>
    %155 = arith.addf %154, %153 : vector<8x32xf32>
    %156 = arith.divf %154, %155 : vector<8x32xf32>
    %157 = vector.extract_strided_slice %144 {offsets = [0, 64], sizes = [8, 32], strides = [1, 1]} : vector<8x128xf32> to vector<8x32xf32>
    %158 = math.tanh %157 : vector<8x32xf32>
    %159 = vector.extract_strided_slice %144 {offsets = [0, 96], sizes = [8, 32], strides = [1, 1]} : vector<8x128xf32> to vector<8x32xf32>
    %160 = arith.negf %159 : vector<8x32xf32>
    %161 = math.exp %160 : vector<8x32xf32>
    %cst_51 = arith.constant 1.000000e+00 : f32
    %162 = vector.broadcast %cst_51 : f32 to vector<8x32xf32>
    %163 = arith.addf %162, %161 : vector<8x32xf32>
    %164 = arith.divf %162, %163 : vector<8x32xf32>
    %165 = arith.mulf %156, %106 : vector<8x32xf32>
    %166 = arith.mulf %150, %158 : vector<8x32xf32>
    %167 = arith.addf %165, %166 : vector<8x32xf32>
    %168 = math.tanh %167 : vector<8x32xf32>
    %169 = arith.mulf %164, %168 : vector<8x32xf32>
    %170 = tpu.concatenate %169, %136 in 1 : vector<8x32xf32>, vector<8x32xf32> -> vector<8x64xf32>
    %cst_52 = arith.constant dense<0.000000e+00> : vector<8x128xf32>
    %171 = tpu.matmul %170, %15, %cst_52 {dimension_numbers = #tpu.dot_dimension_numbers<[1], [0], [0], [1], [0, 0, 1, 1], [], []>} : vector<8x64xf32>, vector<64x128xf32>, vector<8x128xf32> -> vector<8x128xf32>
    %172 = arith.addf %171, %13 : vector<8x128xf32>
    %173 = vector.extract_strided_slice %172 {offsets = [0, 0], sizes = [8, 32], strides = [1, 1]} : vector<8x128xf32> to vector<8x32xf32>
    %174 = arith.negf %173 : vector<8x32xf32>
    %175 = math.exp %174 : vector<8x32xf32>
    %cst_53 = arith.constant 1.000000e+00 : f32
    %176 = vector.broadcast %cst_53 : f32 to vector<8x32xf32>
    %177 = arith.addf %176, %175 : vector<8x32xf32>
    %178 = arith.divf %176, %177 : vector<8x32xf32>
    %179 = vector.extract_strided_slice %172 {offsets = [0, 32], sizes = [8, 32], strides = [1, 1]} : vector<8x128xf32> to vector<8x32xf32>
    %180 = arith.negf %179 : vector<8x32xf32>
    %181 = math.exp %180 : vector<8x32xf32>
    %cst_54 = arith.constant 1.000000e+00 : f32
    %182 = vector.broadcast %cst_54 : f32 to vector<8x32xf32>
    %183 = arith.addf %182, %181 : vector<8x32xf32>
    %184 = arith.divf %182, %183 : vector<8x32xf32>
    %185 = vector.extract_strided_slice %172 {offsets = [0, 64], sizes = [8, 32], strides = [1, 1]} : vector<8x128xf32> to vector<8x32xf32>
    %186 = math.tanh %185 : vector<8x32xf32>
    %187 = vector.extract_strided_slice %172 {offsets = [0, 96], sizes = [8, 32], strides = [1, 1]} : vector<8x128xf32> to vector<8x32xf32>
    %188 = arith.negf %187 : vector<8x32xf32>
    %189 = math.exp %188 : vector<8x32xf32>
    %cst_55 = arith.constant 1.000000e+00 : f32
    %190 = vector.broadcast %cst_55 : f32 to vector<8x32xf32>
    %191 = arith.addf %190, %189 : vector<8x32xf32>
    %192 = arith.divf %190, %191 : vector<8x32xf32>
    %193 = arith.mulf %184, %134 : vector<8x32xf32>
    %194 = arith.mulf %178, %186 : vector<8x32xf32>
    %195 = arith.addf %193, %194 : vector<8x32xf32>
    %196 = math.tanh %195 : vector<8x32xf32>
    %197 = arith.mulf %192, %196 : vector<8x32xf32>
    %c2 = arith.constant 2 : index
    %c0_56 = arith.constant 0 : index
    %c0_57 = arith.constant 0 : index
    %198 = vector.load %arg9[%c2, %c0_56, %c0_57] : memref<20x8x32xf32, #tpu.memory_space<vmem>>, vector<1x8x32xf32>
    %199 = vector.shape_cast %198 : vector<1x8x32xf32> to vector<8x32xf32>
    %200 = vector.shape_cast %197 : vector<8x32xf32> to vector<1x8x32xf32>
    tpu.vector_store %arg9[%c2, %c0_56, %c0_57], %200 {strides = array<i32>} : memref<20x8x32xf32, #tpu.memory_space<vmem>>, vector<1x8x32xf32>,
    %c2_58 = arith.constant 2 : index
    %c0_59 = arith.constant 0 : index
    %c0_60 = arith.constant 0 : index
    %201 = vector.load %arg2[%c2_58, %c0_59, %c0_60] : memref<19x8x32xf32, #tpu.memory_space<vmem>>, vector<1x8x32xf32>
    %202 = vector.shape_cast %201 : vector<1x8x32xf32> to vector<8x32xf32>
    %203 = tpu.concatenate %202, %197, %169 in 1 : vector<8x32xf32>, vector<8x32xf32>, vector<8x32xf32> -> vector<8x96xf32>
    %cst_61 = arith.constant dense<0.000000e+00> : vector<8x128xf32>
    %204 = tpu.matmul %203, %14, %cst_61 {dimension_numbers = #tpu.dot_dimension_numbers<[1], [0], [0], [1], [0, 0, 1, 1], [], []>} : vector<8x96xf32>, vector<96x128xf32>, vector<8x128xf32> -> vector<8x128xf32>
    %205 = arith.addf %204, %8 : vector<8x128xf32>
    %206 = vector.extract_strided_slice %205 {offsets = [0, 0], sizes = [8, 32], strides = [1, 1]} : vector<8x128xf32> to vector<8x32xf32>
    %207 = arith.negf %206 : vector<8x32xf32>
    %208 = math.exp %207 : vector<8x32xf32>
    %cst_62 = arith.constant 1.000000e+00 : f32
    %209 = vector.broadcast %cst_62 : f32 to vector<8x32xf32>
    %210 = arith.addf %209, %208 : vector<8x32xf32>
    %211 = arith.divf %209, %210 : vector<8x32xf32>
    %212 = vector.extract_strided_slice %205 {offsets = [0, 32], sizes = [8, 32], strides = [1, 1]} : vector<8x128xf32> to vector<8x32xf32>
    %213 = arith.negf %212 : vector<8x32xf32>
    %214 = math.exp %213 : vector<8x32xf32>
    %cst_63 = arith.constant 1.000000e+00 : f32
    %215 = vector.broadcast %cst_63 : f32 to vector<8x32xf32>
    %216 = arith.addf %215, %214 : vector<8x32xf32>
    %217 = arith.divf %215, %216 : vector<8x32xf32>
    %218 = vector.extract_strided_slice %205 {offsets = [0, 64], sizes = [8, 32], strides = [1, 1]} : vector<8x128xf32> to vector<8x32xf32>
    %219 = math.tanh %218 : vector<8x32xf32>
    %220 = vector.extract_strided_slice %205 {offsets = [0, 96], sizes = [8, 32], strides = [1, 1]} : vector<8x128xf32> to vector<8x32xf32>
    %221 = arith.negf %220 : vector<8x32xf32>
    %222 = math.exp %221 : vector<8x32xf32>
    %cst_64 = arith.constant 1.000000e+00 : f32
    %223 = vector.broadcast %cst_64 : f32 to vector<8x32xf32>
    %224 = arith.addf %223, %222 : vector<8x32xf32>
    %225 = arith.divf %223, %224 : vector<8x32xf32>
    %226 = arith.mulf %217, %167 : vector<8x32xf32>
    %227 = arith.mulf %211, %219 : vector<8x32xf32>
    %228 = arith.addf %226, %227 : vector<8x32xf32>
    %229 = math.tanh %228 : vector<8x32xf32>
    %230 = arith.mulf %225, %229 : vector<8x32xf32>
    %231 = tpu.concatenate %230, %197 in 1 : vector<8x32xf32>, vector<8x32xf32> -> vector<8x64xf32>
    %cst_65 = arith.constant dense<0.000000e+00> : vector<8x128xf32>
    %232 = tpu.matmul %231, %15, %cst_65 {dimension_numbers = #tpu.dot_dimension_numbers<[1], [0], [0], [1], [0, 0, 1, 1], [], []>} : vector<8x64xf32>, vector<64x128xf32>, vector<8x128xf32> -> vector<8x128xf32>
    %233 = arith.addf %232, %13 : vector<8x128xf32>
    %234 = vector.extract_strided_slice %233 {offsets = [0, 0], sizes = [8, 32], strides = [1, 1]} : vector<8x128xf32> to vector<8x32xf32>
    %235 = arith.negf %234 : vector<8x32xf32>
    %236 = math.exp %235 : vector<8x32xf32>
    %cst_66 = arith.constant 1.000000e+00 : f32
    %237 = vector.broadcast %cst_66 : f32 to vector<8x32xf32>
    %238 = arith.addf %237, %236 : vector<8x32xf32>
    %239 = arith.divf %237, %238 : vector<8x32xf32>
    %240 = vector.extract_strided_slice %233 {offsets = [0, 32], sizes = [8, 32], strides = [1, 1]} : vector<8x128xf32> to vector<8x32xf32>
    %241 = arith.negf %240 : vector<8x32xf32>
    %242 = math.exp %241 : vector<8x32xf32>
    %cst_67 = arith.constant 1.000000e+00 : f32
    %243 = vector.broadcast %cst_67 : f32 to vector<8x32xf32>
    %244 = arith.addf %243, %242 : vector<8x32xf32>
    %245 = arith.divf %243, %244 : vector<8x32xf32>
    %246 = vector.extract_strided_slice %233 {offsets = [0, 64], sizes = [8, 32], strides = [1, 1]} : vector<8x128xf32> to vector<8x32xf32>
    %247 = math.tanh %246 : vector<8x32xf32>
    %248 = vector.extract_strided_slice %233 {offsets = [0, 96], sizes = [8, 32], strides = [1, 1]} : vector<8x128xf32> to vector<8x32xf32>
    %249 = arith.negf %248 : vector<8x32xf32>
    %250 = math.exp %249 : vector<8x32xf32>
    %cst_68 = arith.constant 1.000000e+00 : f32
    %251 = vector.broadcast %cst_68 : f32 to vector<8x32xf32>
    %252 = arith.addf %251, %250 : vector<8x32xf32>
    %253 = arith.divf %251, %252 : vector<8x32xf32>
    %254 = arith.mulf %245, %195 : vector<8x32xf32>
    %255 = arith.mulf %239, %247 : vector<8x32xf32>
    %256 = arith.addf %254, %255 : vector<8x32xf32>
    %257 = math.tanh %256 : vector<8x32xf32>
    %258 = arith.mulf %253, %257 : vector<8x32xf32>
    %c3 = arith.constant 3 : index
    %c0_69 = arith.constant 0 : index
    %c0_70 = arith.constant 0 : index
    %259 = vector.load %arg9[%c3, %c0_69, %c0_70] : memref<20x8x32xf32, #tpu.memory_space<vmem>>, vector<1x8x32xf32>
    %260 = vector.shape_cast %259 : vector<1x8x32xf32> to vector<8x32xf32>
    %261 = vector.shape_cast %258 : vector<8x32xf32> to vector<1x8x32xf32>
    tpu.vector_store %arg9[%c3, %c0_69, %c0_70], %261 {strides = array<i32>} : memref<20x8x32xf32, #tpu.memory_space<vmem>>, vector<1x8x32xf32>,
    %c3_71 = arith.constant 3 : index
    %c0_72 = arith.constant 0 : index
    %c0_73 = arith.constant 0 : index
    %262 = vector.load %arg2[%c3_71, %c0_72, %c0_73] : memref<19x8x32xf32, #tpu.memory_space<vmem>>, vector<1x8x32xf32>
    %263 = vector.shape_cast %262 : vector<1x8x32xf32> to vector<8x32xf32>
    %264 = tpu.concatenate %263, %258, %230 in 1 : vector<8x32xf32>, vector<8x32xf32>, vector<8x32xf32> -> vector<8x96xf32>
    %cst_74 = arith.constant dense<0.000000e+00> : vector<8x128xf32>
    %265 = tpu.matmul %264, %14, %cst_74 {dimension_numbers = #tpu.dot_dimension_numbers<[1], [0], [0], [1], [0, 0, 1, 1], [], []>} : vector<8x96xf32>, vector<96x128xf32>, vector<8x128xf32> -> vector<8x128xf32>
    %266 = arith.addf %265, %8 : vector<8x128xf32>
    %267 = vector.extract_strided_slice %266 {offsets = [0, 0], sizes = [8, 32], strides = [1, 1]} : vector<8x128xf32> to vector<8x32xf32>
    %268 = arith.negf %267 : vector<8x32xf32>
    %269 = math.exp %268 : vector<8x32xf32>
    %cst_75 = arith.constant 1.000000e+00 : f32
    %270 = vector.broadcast %cst_75 : f32 to vector<8x32xf32>
    %271 = arith.addf %270, %269 : vector<8x32xf32>
    %272 = arith.divf %270, %271 : vector<8x32xf32>
    %273 = vector.extract_strided_slice %266 {offsets = [0, 32], sizes = [8, 32], strides = [1, 1]} : vector<8x128xf32> to vector<8x32xf32>
    %274 = arith.negf %273 : vector<8x32xf32>
    %275 = math.exp %274 : vector<8x32xf32>
    %cst_76 = arith.constant 1.000000e+00 : f32
    %276 = vector.broadcast %cst_76 : f32 to vector<8x32xf32>
    %277 = arith.addf %276, %275 : vector<8x32xf32>
    %278 = arith.divf %276, %277 : vector<8x32xf32>
    %279 = vector.extract_strided_slice %266 {offsets = [0, 64], sizes = [8, 32], strides = [1, 1]} : vector<8x128xf32> to vector<8x32xf32>
    %280 = math.tanh %279 : vector<8x32xf32>
    %281 = vector.extract_strided_slice %266 {offsets = [0, 96], sizes = [8, 32], strides = [1, 1]} : vector<8x128xf32> to vector<8x32xf32>
    %282 = arith.negf %281 : vector<8x32xf32>
    %283 = math.exp %282 : vector<8x32xf32>
    %cst_77 = arith.constant 1.000000e+00 : f32
    %284 = vector.broadcast %cst_77 : f32 to vector<8x32xf32>
    %285 = arith.addf %284, %283 : vector<8x32xf32>
    %286 = arith.divf %284, %285 : vector<8x32xf32>
    %287 = arith.mulf %278, %228 : vector<8x32xf32>
    %288 = arith.mulf %272, %280 : vector<8x32xf32>
    %289 = arith.addf %287, %288 : vector<8x32xf32>
    %290 = math.tanh %289 : vector<8x32xf32>
    %291 = arith.mulf %286, %290 : vector<8x32xf32>
    %292 = tpu.concatenate %291, %258 in 1 : vector<8x32xf32>, vector<8x32xf32> -> vector<8x64xf32>
    %cst_78 = arith.constant dense<0.000000e+00> : vector<8x128xf32>
    %293 = tpu.matmul %292, %15, %cst_78 {dimension_numbers = #tpu.dot_dimension_numbers<[1], [0], [0], [1], [0, 0, 1, 1], [], []>} : vector<8x64xf32>, vector<64x128xf32>, vector<8x128xf32> -> vector<8x128xf32>
    %294 = arith.addf %293, %13 : vector<8x128xf32>
    %295 = vector.extract_strided_slice %294 {offsets = [0, 0], sizes = [8, 32], strides = [1, 1]} : vector<8x128xf32> to vector<8x32xf32>
    %296 = arith.negf %295 : vector<8x32xf32>
    %297 = math.exp %296 : vector<8x32xf32>
    %cst_79 = arith.constant 1.000000e+00 : f32
    %298 = vector.broadcast %cst_79 : f32 to vector<8x32xf32>
    %299 = arith.addf %298, %297 : vector<8x32xf32>
    %300 = arith.divf %298, %299 : vector<8x32xf32>
    %301 = vector.extract_strided_slice %294 {offsets = [0, 32], sizes = [8, 32], strides = [1, 1]} : vector<8x128xf32> to vector<8x32xf32>
    %302 = arith.negf %301 : vector<8x32xf32>
    %303 = math.exp %302 : vector<8x32xf32>
    %cst_80 = arith.constant 1.000000e+00 : f32
    %304 = vector.broadcast %cst_80 : f32 to vector<8x32xf32>
    %305 = arith.addf %304, %303 : vector<8x32xf32>
    %306 = arith.divf %304, %305 : vector<8x32xf32>
    %307 = vector.extract_strided_slice %294 {offsets = [0, 64], sizes = [8, 32], strides = [1, 1]} : vector<8x128xf32> to vector<8x32xf32>
    %308 = math.tanh %307 : vector<8x32xf32>
    %309 = vector.extract_strided_slice %294 {offsets = [0, 96], sizes = [8, 32], strides = [1, 1]} : vector<8x128xf32> to vector<8x32xf32>
    %310 = arith.negf %309 : vector<8x32xf32>
    %311 = math.exp %310 : vector<8x32xf32>
    %cst_81 = arith.constant 1.000000e+00 : f32
    %312 = vector.broadcast %cst_81 : f32 to vector<8x32xf32>
    %313 = arith.addf %312, %311 : vector<8x32xf32>
    %314 = arith.divf %312, %313 : vector<8x32xf32>
    %315 = arith.mulf %306, %256 : vector<8x32xf32>
    %316 = arith.mulf %300, %308 : vector<8x32xf32>
    %317 = arith.addf %315, %316 : vector<8x32xf32>
    %318 = math.tanh %317 : vector<8x32xf32>
    %319 = arith.mulf %314, %318 : vector<8x32xf32>
    %c4 = arith.constant 4 : index
    %c0_82 = arith.constant 0 : index
    %c0_83 = arith.constant 0 : index
    %320 = vector.load %arg9[%c4, %c0_82, %c0_83] : memref<20x8x32xf32, #tpu.memory_space<vmem>>, vector<1x8x32xf32>
    %321 = vector.shape_cast %320 : vector<1x8x32xf32> to vector<8x32xf32>
    %322 = vector.shape_cast %319 : vector<8x32xf32> to vector<1x8x32xf32>
    tpu.vector_store %arg9[%c4, %c0_82, %c0_83], %322 {strides = array<i32>} : memref<20x8x32xf32, #tpu.memory_space<vmem>>, vector<1x8x32xf32>,
    %c4_84 = arith.constant 4 : index
    %c0_85 = arith.constant 0 : index
    %c0_86 = arith.constant 0 : index
    %323 = vector.load %arg2[%c4_84, %c0_85, %c0_86] : memref<19x8x32xf32, #tpu.memory_space<vmem>>, vector<1x8x32xf32>
    %324 = vector.shape_cast %323 : vector<1x8x32xf32> to vector<8x32xf32>
    %325 = tpu.concatenate %324, %319, %291 in 1 : vector<8x32xf32>, vector<8x32xf32>, vector<8x32xf32> -> vector<8x96xf32>
    %cst_87 = arith.constant dense<0.000000e+00> : vector<8x128xf32>
    %326 = tpu.matmul %325, %14, %cst_87 {dimension_numbers = #tpu.dot_dimension_numbers<[1], [0], [0], [1], [0, 0, 1, 1], [], []>} : vector<8x96xf32>, vector<96x128xf32>, vector<8x128xf32> -> vector<8x128xf32>
    %327 = arith.addf %326, %8 : vector<8x128xf32>
    %328 = vector.extract_strided_slice %327 {offsets = [0, 0], sizes = [8, 32], strides = [1, 1]} : vector<8x128xf32> to vector<8x32xf32>
    %329 = arith.negf %328 : vector<8x32xf32>
    %330 = math.exp %329 : vector<8x32xf32>
    %cst_88 = arith.constant 1.000000e+00 : f32
    %331 = vector.broadcast %cst_88 : f32 to vector<8x32xf32>
    %332 = arith.addf %331, %330 : vector<8x32xf32>
    %333 = arith.divf %331, %332 : vector<8x32xf32>
    %334 = vector.extract_strided_slice %327 {offsets = [0, 32], sizes = [8, 32], strides = [1, 1]} : vector<8x128xf32> to vector<8x32xf32>
    %335 = arith.negf %334 : vector<8x32xf32>
    %336 = math.exp %335 : vector<8x32xf32>
    %cst_89 = arith.constant 1.000000e+00 : f32
    %337 = vector.broadcast %cst_89 : f32 to vector<8x32xf32>
    %338 = arith.addf %337, %336 : vector<8x32xf32>
    %339 = arith.divf %337, %338 : vector<8x32xf32>
    %340 = vector.extract_strided_slice %327 {offsets = [0, 64], sizes = [8, 32], strides = [1, 1]} : vector<8x128xf32> to vector<8x32xf32>
    %341 = math.tanh %340 : vector<8x32xf32>
    %342 = vector.extract_strided_slice %327 {offsets = [0, 96], sizes = [8, 32], strides = [1, 1]} : vector<8x128xf32> to vector<8x32xf32>
    %343 = arith.negf %342 : vector<8x32xf32>
    %344 = math.exp %343 : vector<8x32xf32>
    %cst_90 = arith.constant 1.000000e+00 : f32
    %345 = vector.broadcast %cst_90 : f32 to vector<8x32xf32>
    %346 = arith.addf %345, %344 : vector<8x32xf32>
    %347 = arith.divf %345, %346 : vector<8x32xf32>
    %348 = arith.mulf %339, %289 : vector<8x32xf32>
    %349 = arith.mulf %333, %341 : vector<8x32xf32>
    %350 = arith.addf %348, %349 : vector<8x32xf32>
    %351 = math.tanh %350 : vector<8x32xf32>
    %352 = arith.mulf %347, %351 : vector<8x32xf32>
    %353 = tpu.concatenate %352, %319 in 1 : vector<8x32xf32>, vector<8x32xf32> -> vector<8x64xf32>
    %cst_91 = arith.constant dense<0.000000e+00> : vector<8x128xf32>
    %354 = tpu.matmul %353, %15, %cst_91 {dimension_numbers = #tpu.dot_dimension_numbers<[1], [0], [0], [1], [0, 0, 1, 1], [], []>} : vector<8x64xf32>, vector<64x128xf32>, vector<8x128xf32> -> vector<8x128xf32>
    %355 = arith.addf %354, %13 : vector<8x128xf32>
    %356 = vector.extract_strided_slice %355 {offsets = [0, 0], sizes = [8, 32], strides = [1, 1]} : vector<8x128xf32> to vector<8x32xf32>
    %357 = arith.negf %356 : vector<8x32xf32>
    %358 = math.exp %357 : vector<8x32xf32>
    %cst_92 = arith.constant 1.000000e+00 : f32
    %359 = vector.broadcast %cst_92 : f32 to vector<8x32xf32>
    %360 = arith.addf %359, %358 : vector<8x32xf32>
    %361 = arith.divf %359, %360 : vector<8x32xf32>
    %362 = vector.extract_strided_slice %355 {offsets = [0, 32], sizes = [8, 32], strides = [1, 1]} : vector<8x128xf32> to vector<8x32xf32>
    %363 = arith.negf %362 : vector<8x32xf32>
    %364 = math.exp %363 : vector<8x32xf32>
    %cst_93 = arith.constant 1.000000e+00 : f32
    %365 = vector.broadcast %cst_93 : f32 to vector<8x32xf32>
    %366 = arith.addf %365, %364 : vector<8x32xf32>
    %367 = arith.divf %365, %366 : vector<8x32xf32>
    %368 = vector.extract_strided_slice %355 {offsets = [0, 64], sizes = [8, 32], strides = [1, 1]} : vector<8x128xf32> to vector<8x32xf32>
    %369 = math.tanh %368 : vector<8x32xf32>
    %370 = vector.extract_strided_slice %355 {offsets = [0, 96], sizes = [8, 32], strides = [1, 1]} : vector<8x128xf32> to vector<8x32xf32>
    %371 = arith.negf %370 : vector<8x32xf32>
    %372 = math.exp %371 : vector<8x32xf32>
    %cst_94 = arith.constant 1.000000e+00 : f32
    %373 = vector.broadcast %cst_94 : f32 to vector<8x32xf32>
    %374 = arith.addf %373, %372 : vector<8x32xf32>
    %375 = arith.divf %373, %374 : vector<8x32xf32>
    %376 = arith.mulf %367, %317 : vector<8x32xf32>
    %377 = arith.mulf %361, %369 : vector<8x32xf32>
    %378 = arith.addf %376, %377 : vector<8x32xf32>
    %379 = math.tanh %378 : vector<8x32xf32>
    %380 = arith.mulf %375, %379 : vector<8x32xf32>
    %c5 = arith.constant 5 : index
    %c0_95 = arith.constant 0 : index
    %c0_96 = arith.constant 0 : index
    %381 = vector.load %arg9[%c5, %c0_95, %c0_96] : memref<20x8x32xf32, #tpu.memory_space<vmem>>, vector<1x8x32xf32>
    %382 = vector.shape_cast %381 : vector<1x8x32xf32> to vector<8x32xf32>
    %383 = vector.shape_cast %380 : vector<8x32xf32> to vector<1x8x32xf32>
    tpu.vector_store %arg9[%c5, %c0_95, %c0_96], %383 {strides = array<i32>} : memref<20x8x32xf32, #tpu.memory_space<vmem>>, vector<1x8x32xf32>,
    %c5_97 = arith.constant 5 : index
    %c0_98 = arith.constant 0 : index
    %c0_99 = arith.constant 0 : index
    %384 = vector.load %arg2[%c5_97, %c0_98, %c0_99] : memref<19x8x32xf32, #tpu.memory_space<vmem>>, vector<1x8x32xf32>
    %385 = vector.shape_cast %384 : vector<1x8x32xf32> to vector<8x32xf32>
    %386 = tpu.concatenate %385, %380, %352 in 1 : vector<8x32xf32>, vector<8x32xf32>, vector<8x32xf32> -> vector<8x96xf32>
    %cst_100 = arith.constant dense<0.000000e+00> : vector<8x128xf32>
    %387 = tpu.matmul %386, %14, %cst_100 {dimension_numbers = #tpu.dot_dimension_numbers<[1], [0], [0], [1], [0, 0, 1, 1], [], []>} : vector<8x96xf32>, vector<96x128xf32>, vector<8x128xf32> -> vector<8x128xf32>
    %388 = arith.addf %387, %8 : vector<8x128xf32>
    %389 = vector.extract_strided_slice %388 {offsets = [0, 0], sizes = [8, 32], strides = [1, 1]} : vector<8x128xf32> to vector<8x32xf32>
    %390 = arith.negf %389 : vector<8x32xf32>
    %391 = math.exp %390 : vector<8x32xf32>
    %cst_101 = arith.constant 1.000000e+00 : f32
    %392 = vector.broadcast %cst_101 : f32 to vector<8x32xf32>
    %393 = arith.addf %392, %391 : vector<8x32xf32>
    %394 = arith.divf %392, %393 : vector<8x32xf32>
    %395 = vector.extract_strided_slice %388 {offsets = [0, 32], sizes = [8, 32], strides = [1, 1]} : vector<8x128xf32> to vector<8x32xf32>
    %396 = arith.negf %395 : vector<8x32xf32>
    %397 = math.exp %396 : vector<8x32xf32>
    %cst_102 = arith.constant 1.000000e+00 : f32
    %398 = vector.broadcast %cst_102 : f32 to vector<8x32xf32>
    %399 = arith.addf %398, %397 : vector<8x32xf32>
    %400 = arith.divf %398, %399 : vector<8x32xf32>
    %401 = vector.extract_strided_slice %388 {offsets = [0, 64], sizes = [8, 32], strides = [1, 1]} : vector<8x128xf32> to vector<8x32xf32>
    %402 = math.tanh %401 : vector<8x32xf32>
    %403 = vector.extract_strided_slice %388 {offsets = [0, 96], sizes = [8, 32], strides = [1, 1]} : vector<8x128xf32> to vector<8x32xf32>
    %404 = arith.negf %403 : vector<8x32xf32>
    %405 = math.exp %404 : vector<8x32xf32>
    %cst_103 = arith.constant 1.000000e+00 : f32
    %406 = vector.broadcast %cst_103 : f32 to vector<8x32xf32>
    %407 = arith.addf %406, %405 : vector<8x32xf32>
    %408 = arith.divf %406, %407 : vector<8x32xf32>
    %409 = arith.mulf %400, %350 : vector<8x32xf32>
    %410 = arith.mulf %394, %402 : vector<8x32xf32>
    %411 = arith.addf %409, %410 : vector<8x32xf32>
    %412 = math.tanh %411 : vector<8x32xf32>
    %413 = arith.mulf %408, %412 : vector<8x32xf32>
    %414 = tpu.concatenate %413, %380 in 1 : vector<8x32xf32>, vector<8x32xf32> -> vector<8x64xf32>
    %cst_104 = arith.constant dense<0.000000e+00> : vector<8x128xf32>
    %415 = tpu.matmul %414, %15, %cst_104 {dimension_numbers = #tpu.dot_dimension_numbers<[1], [0], [0], [1], [0, 0, 1, 1], [], []>} : vector<8x64xf32>, vector<64x128xf32>, vector<8x128xf32> -> vector<8x128xf32>
    %416 = arith.addf %415, %13 : vector<8x128xf32>
    %417 = vector.extract_strided_slice %416 {offsets = [0, 0], sizes = [8, 32], strides = [1, 1]} : vector<8x128xf32> to vector<8x32xf32>
    %418 = arith.negf %417 : vector<8x32xf32>
    %419 = math.exp %418 : vector<8x32xf32>
    %cst_105 = arith.constant 1.000000e+00 : f32
    %420 = vector.broadcast %cst_105 : f32 to vector<8x32xf32>
    %421 = arith.addf %420, %419 : vector<8x32xf32>
    %422 = arith.divf %420, %421 : vector<8x32xf32>
    %423 = vector.extract_strided_slice %416 {offsets = [0, 32], sizes = [8, 32], strides = [1, 1]} : vector<8x128xf32> to vector<8x32xf32>
    %424 = arith.negf %423 : vector<8x32xf32>
    %425 = math.exp %424 : vector<8x32xf32>
    %cst_106 = arith.constant 1.000000e+00 : f32
    %426 = vector.broadcast %cst_106 : f32 to vector<8x32xf32>
    %427 = arith.addf %426, %425 : vector<8x32xf32>
    %428 = arith.divf %426, %427 : vector<8x32xf32>
    %429 = vector.extract_strided_slice %416 {offsets = [0, 64], sizes = [8, 32], strides = [1, 1]} : vector<8x128xf32> to vector<8x32xf32>
    %430 = math.tanh %429 : vector<8x32xf32>
    %431 = vector.extract_strided_slice %416 {offsets = [0, 96], sizes = [8, 32], strides = [1, 1]} : vector<8x128xf32> to vector<8x32xf32>
    %432 = arith.negf %431 : vector<8x32xf32>
    %433 = math.exp %432 : vector<8x32xf32>
    %cst_107 = arith.constant 1.000000e+00 : f32
    %434 = vector.broadcast %cst_107 : f32 to vector<8x32xf32>
    %435 = arith.addf %434, %433 : vector<8x32xf32>
    %436 = arith.divf %434, %435 : vector<8x32xf32>
    %437 = arith.mulf %428, %378 : vector<8x32xf32>
    %438 = arith.mulf %422, %430 : vector<8x32xf32>
    %439 = arith.addf %437, %438 : vector<8x32xf32>
    %440 = math.tanh %439 : vector<8x32xf32>
    %441 = arith.mulf %436, %440 : vector<8x32xf32>
    %c6 = arith.constant 6 : index
    %c0_108 = arith.constant 0 : index
    %c0_109 = arith.constant 0 : index
    %442 = vector.load %arg9[%c6, %c0_108, %c0_109] : memref<20x8x32xf32, #tpu.memory_space<vmem>>, vector<1x8x32xf32>
    %443 = vector.shape_cast %442 : vector<1x8x32xf32> to vector<8x32xf32>
    %444 = vector.shape_cast %441 : vector<8x32xf32> to vector<1x8x32xf32>
    tpu.vector_store %arg9[%c6, %c0_108, %c0_109], %444 {strides = array<i32>} : memref<20x8x32xf32, #tpu.memory_space<vmem>>, vector<1x8x32xf32>,
    %c6_110 = arith.constant 6 : index
    %c0_111 = arith.constant 0 : index
    %c0_112 = arith.constant 0 : index
    %445 = vector.load %arg2[%c6_110, %c0_111, %c0_112] : memref<19x8x32xf32, #tpu.memory_space<vmem>>, vector<1x8x32xf32>
    %446 = vector.shape_cast %445 : vector<1x8x32xf32> to vector<8x32xf32>
    %447 = tpu.concatenate %446, %441, %413 in 1 : vector<8x32xf32>, vector<8x32xf32>, vector<8x32xf32> -> vector<8x96xf32>
    %cst_113 = arith.constant dense<0.000000e+00> : vector<8x128xf32>
    %448 = tpu.matmul %447, %14, %cst_113 {dimension_numbers = #tpu.dot_dimension_numbers<[1], [0], [0], [1], [0, 0, 1, 1], [], []>} : vector<8x96xf32>, vector<96x128xf32>, vector<8x128xf32> -> vector<8x128xf32>
    %449 = arith.addf %448, %8 : vector<8x128xf32>
    %450 = vector.extract_strided_slice %449 {offsets = [0, 0], sizes = [8, 32], strides = [1, 1]} : vector<8x128xf32> to vector<8x32xf32>
    %451 = arith.negf %450 : vector<8x32xf32>
    %452 = math.exp %451 : vector<8x32xf32>
    %cst_114 = arith.constant 1.000000e+00 : f32
    %453 = vector.broadcast %cst_114 : f32 to vector<8x32xf32>
    %454 = arith.addf %453, %452 : vector<8x32xf32>
    %455 = arith.divf %453, %454 : vector<8x32xf32>
    %456 = vector.extract_strided_slice %449 {offsets = [0, 32], sizes = [8, 32], strides = [1, 1]} : vector<8x128xf32> to vector<8x32xf32>
    %457 = arith.negf %456 : vector<8x32xf32>
    %458 = math.exp %457 : vector<8x32xf32>
    %cst_115 = arith.constant 1.000000e+00 : f32
    %459 = vector.broadcast %cst_115 : f32 to vector<8x32xf32>
    %460 = arith.addf %459, %458 : vector<8x32xf32>
    %461 = arith.divf %459, %460 : vector<8x32xf32>
    %462 = vector.extract_strided_slice %449 {offsets = [0, 64], sizes = [8, 32], strides = [1, 1]} : vector<8x128xf32> to vector<8x32xf32>
    %463 = math.tanh %462 : vector<8x32xf32>
    %464 = vector.extract_strided_slice %449 {offsets = [0, 96], sizes = [8, 32], strides = [1, 1]} : vector<8x128xf32> to vector<8x32xf32>
    %465 = arith.negf %464 : vector<8x32xf32>
    %466 = math.exp %465 : vector<8x32xf32>
    %cst_116 = arith.constant 1.000000e+00 : f32
    %467 = vector.broadcast %cst_116 : f32 to vector<8x32xf32>
    %468 = arith.addf %467, %466 : vector<8x32xf32>
    %469 = arith.divf %467, %468 : vector<8x32xf32>
    %470 = arith.mulf %461, %411 : vector<8x32xf32>
    %471 = arith.mulf %455, %463 : vector<8x32xf32>
    %472 = arith.addf %470, %471 : vector<8x32xf32>
    %473 = math.tanh %472 : vector<8x32xf32>
    %474 = arith.mulf %469, %473 : vector<8x32xf32>
    %475 = tpu.concatenate %474, %441 in 1 : vector<8x32xf32>, vector<8x32xf32> -> vector<8x64xf32>
    %cst_117 = arith.constant dense<0.000000e+00> : vector<8x128xf32>
    %476 = tpu.matmul %475, %15, %cst_117 {dimension_numbers = #tpu.dot_dimension_numbers<[1], [0], [0], [1], [0, 0, 1, 1], [], []>} : vector<8x64xf32>, vector<64x128xf32>, vector<8x128xf32> -> vector<8x128xf32>
    %477 = arith.addf %476, %13 : vector<8x128xf32>
    %478 = vector.extract_strided_slice %477 {offsets = [0, 0], sizes = [8, 32], strides = [1, 1]} : vector<8x128xf32> to vector<8x32xf32>
    %479 = arith.negf %478 : vector<8x32xf32>
    %480 = math.exp %479 : vector<8x32xf32>
    %cst_118 = arith.constant 1.000000e+00 : f32
    %481 = vector.broadcast %cst_118 : f32 to vector<8x32xf32>
    %482 = arith.addf %481, %480 : vector<8x32xf32>
    %483 = arith.divf %481, %482 : vector<8x32xf32>
    %484 = vector.extract_strided_slice %477 {offsets = [0, 32], sizes = [8, 32], strides = [1, 1]} : vector<8x128xf32> to vector<8x32xf32>
    %485 = arith.negf %484 : vector<8x32xf32>
    %486 = math.exp %485 : vector<8x32xf32>
    %cst_119 = arith.constant 1.000000e+00 : f32
    %487 = vector.broadcast %cst_119 : f32 to vector<8x32xf32>
    %488 = arith.addf %487, %486 : vector<8x32xf32>
    %489 = arith.divf %487, %488 : vector<8x32xf32>
    %490 = vector.extract_strided_slice %477 {offsets = [0, 64], sizes = [8, 32], strides = [1, 1]} : vector<8x128xf32> to vector<8x32xf32>
    %491 = math.tanh %490 : vector<8x32xf32>
    %492 = vector.extract_strided_slice %477 {offsets = [0, 96], sizes = [8, 32], strides = [1, 1]} : vector<8x128xf32> to vector<8x32xf32>
    %493 = arith.negf %492 : vector<8x32xf32>
    %494 = math.exp %493 : vector<8x32xf32>
    %cst_120 = arith.constant 1.000000e+00 : f32
    %495 = vector.broadcast %cst_120 : f32 to vector<8x32xf32>
    %496 = arith.addf %495, %494 : vector<8x32xf32>
    %497 = arith.divf %495, %496 : vector<8x32xf32>
    %498 = arith.mulf %489, %439 : vector<8x32xf32>
    %499 = arith.mulf %483, %491 : vector<8x32xf32>
    %500 = arith.addf %498, %499 : vector<8x32xf32>
    %501 = math.tanh %500 : vector<8x32xf32>
    %502 = arith.mulf %497, %501 : vector<8x32xf32>
    %c7 = arith.constant 7 : index
    %c0_121 = arith.constant 0 : index
    %c0_122 = arith.constant 0 : index
    %503 = vector.load %arg9[%c7, %c0_121, %c0_122] : memref<20x8x32xf32, #tpu.memory_space<vmem>>, vector<1x8x32xf32>
    %504 = vector.shape_cast %503 : vector<1x8x32xf32> to vector<8x32xf32>
    %505 = vector.shape_cast %502 : vector<8x32xf32> to vector<1x8x32xf32>
    tpu.vector_store %arg9[%c7, %c0_121, %c0_122], %505 {strides = array<i32>} : memref<20x8x32xf32, #tpu.memory_space<vmem>>, vector<1x8x32xf32>,
    %c7_123 = arith.constant 7 : index
    %c0_124 = arith.constant 0 : index
    %c0_125 = arith.constant 0 : index
    %506 = vector.load %arg2[%c7_123, %c0_124, %c0_125] : memref<19x8x32xf32, #tpu.memory_space<vmem>>, vector<1x8x32xf32>
    %507 = vector.shape_cast %506 : vector<1x8x32xf32> to vector<8x32xf32>
    %508 = tpu.concatenate %507, %502, %474 in 1 : vector<8x32xf32>, vector<8x32xf32>, vector<8x32xf32> -> vector<8x96xf32>
    %cst_126 = arith.constant dense<0.000000e+00> : vector<8x128xf32>
    %509 = tpu.matmul %508, %14, %cst_126 {dimension_numbers = #tpu.dot_dimension_numbers<[1], [0], [0], [1], [0, 0, 1, 1], [], []>} : vector<8x96xf32>, vector<96x128xf32>, vector<8x128xf32> -> vector<8x128xf32>
    %510 = arith.addf %509, %8 : vector<8x128xf32>
    %511 = vector.extract_strided_slice %510 {offsets = [0, 0], sizes = [8, 32], strides = [1, 1]} : vector<8x128xf32> to vector<8x32xf32>
    %512 = arith.negf %511 : vector<8x32xf32>
    %513 = math.exp %512 : vector<8x32xf32>
    %cst_127 = arith.constant 1.000000e+00 : f32
    %514 = vector.broadcast %cst_127 : f32 to vector<8x32xf32>
    %515 = arith.addf %514, %513 : vector<8x32xf32>
    %516 = arith.divf %514, %515 : vector<8x32xf32>
    %517 = vector.extract_strided_slice %510 {offsets = [0, 32], sizes = [8, 32], strides = [1, 1]} : vector<8x128xf32> to vector<8x32xf32>
    %518 = arith.negf %517 : vector<8x32xf32>
    %519 = math.exp %518 : vector<8x32xf32>
    %cst_128 = arith.constant 1.000000e+00 : f32
    %520 = vector.broadcast %cst_128 : f32 to vector<8x32xf32>
    %521 = arith.addf %520, %519 : vector<8x32xf32>
    %522 = arith.divf %520, %521 : vector<8x32xf32>
    %523 = vector.extract_strided_slice %510 {offsets = [0, 64], sizes = [8, 32], strides = [1, 1]} : vector<8x128xf32> to vector<8x32xf32>
    %524 = math.tanh %523 : vector<8x32xf32>
    %525 = vector.extract_strided_slice %510 {offsets = [0, 96], sizes = [8, 32], strides = [1, 1]} : vector<8x128xf32> to vector<8x32xf32>
    %526 = arith.negf %525 : vector<8x32xf32>
    %527 = math.exp %526 : vector<8x32xf32>
    %cst_129 = arith.constant 1.000000e+00 : f32
    %528 = vector.broadcast %cst_129 : f32 to vector<8x32xf32>
    %529 = arith.addf %528, %527 : vector<8x32xf32>
    %530 = arith.divf %528, %529 : vector<8x32xf32>
    %531 = arith.mulf %522, %472 : vector<8x32xf32>
    %532 = arith.mulf %516, %524 : vector<8x32xf32>
    %533 = arith.addf %531, %532 : vector<8x32xf32>
    %534 = math.tanh %533 : vector<8x32xf32>
    %535 = arith.mulf %530, %534 : vector<8x32xf32>
    %536 = tpu.concatenate %535, %502 in 1 : vector<8x32xf32>, vector<8x32xf32> -> vector<8x64xf32>
    %cst_130 = arith.constant dense<0.000000e+00> : vector<8x128xf32>
    %537 = tpu.matmul %536, %15, %cst_130 {dimension_numbers = #tpu.dot_dimension_numbers<[1], [0], [0], [1], [0, 0, 1, 1], [], []>} : vector<8x64xf32>, vector<64x128xf32>, vector<8x128xf32> -> vector<8x128xf32>
    %538 = arith.addf %537, %13 : vector<8x128xf32>
    %539 = vector.extract_strided_slice %538 {offsets = [0, 0], sizes = [8, 32], strides = [1, 1]} : vector<8x128xf32> to vector<8x32xf32>
    %540 = arith.negf %539 : vector<8x32xf32>
    %541 = math.exp %540 : vector<8x32xf32>
    %cst_131 = arith.constant 1.000000e+00 : f32
    %542 = vector.broadcast %cst_131 : f32 to vector<8x32xf32>
    %543 = arith.addf %542, %541 : vector<8x32xf32>
    %544 = arith.divf %542, %543 : vector<8x32xf32>
    %545 = vector.extract_strided_slice %538 {offsets = [0, 32], sizes = [8, 32], strides = [1, 1]} : vector<8x128xf32> to vector<8x32xf32>
    %546 = arith.negf %545 : vector<8x32xf32>
    %547 = math.exp %546 : vector<8x32xf32>
    %cst_132 = arith.constant 1.000000e+00 : f32
    %548 = vector.broadcast %cst_132 : f32 to vector<8x32xf32>
    %549 = arith.addf %548, %547 : vector<8x32xf32>
    %550 = arith.divf %548, %549 : vector<8x32xf32>
    %551 = vector.extract_strided_slice %538 {offsets = [0, 64], sizes = [8, 32], strides = [1, 1]} : vector<8x128xf32> to vector<8x32xf32>
    %552 = math.tanh %551 : vector<8x32xf32>
    %553 = vector.extract_strided_slice %538 {offsets = [0, 96], sizes = [8, 32], strides = [1, 1]} : vector<8x128xf32> to vector<8x32xf32>
    %554 = arith.negf %553 : vector<8x32xf32>
    %555 = math.exp %554 : vector<8x32xf32>
    %cst_133 = arith.constant 1.000000e+00 : f32
    %556 = vector.broadcast %cst_133 : f32 to vector<8x32xf32>
    %557 = arith.addf %556, %555 : vector<8x32xf32>
    %558 = arith.divf %556, %557 : vector<8x32xf32>
    %559 = arith.mulf %550, %500 : vector<8x32xf32>
    %560 = arith.mulf %544, %552 : vector<8x32xf32>
    %561 = arith.addf %559, %560 : vector<8x32xf32>
    %562 = math.tanh %561 : vector<8x32xf32>
    %563 = arith.mulf %558, %562 : vector<8x32xf32>
    %c8 = arith.constant 8 : index
    %c0_134 = arith.constant 0 : index
    %c0_135 = arith.constant 0 : index
    %564 = vector.load %arg9[%c8, %c0_134, %c0_135] : memref<20x8x32xf32, #tpu.memory_space<vmem>>, vector<1x8x32xf32>
    %565 = vector.shape_cast %564 : vector<1x8x32xf32> to vector<8x32xf32>
    %566 = vector.shape_cast %563 : vector<8x32xf32> to vector<1x8x32xf32>
    tpu.vector_store %arg9[%c8, %c0_134, %c0_135], %566 {strides = array<i32>} : memref<20x8x32xf32, #tpu.memory_space<vmem>>, vector<1x8x32xf32>,
    %c8_136 = arith.constant 8 : index
    %c0_137 = arith.constant 0 : index
    %c0_138 = arith.constant 0 : index
    %567 = vector.load %arg2[%c8_136, %c0_137, %c0_138] : memref<19x8x32xf32, #tpu.memory_space<vmem>>, vector<1x8x32xf32>
    %568 = vector.shape_cast %567 : vector<1x8x32xf32> to vector<8x32xf32>
    %569 = tpu.concatenate %568, %563, %535 in 1 : vector<8x32xf32>, vector<8x32xf32>, vector<8x32xf32> -> vector<8x96xf32>
    %cst_139 = arith.constant dense<0.000000e+00> : vector<8x128xf32>
    %570 = tpu.matmul %569, %14, %cst_139 {dimension_numbers = #tpu.dot_dimension_numbers<[1], [0], [0], [1], [0, 0, 1, 1], [], []>} : vector<8x96xf32>, vector<96x128xf32>, vector<8x128xf32> -> vector<8x128xf32>
    %571 = arith.addf %570, %8 : vector<8x128xf32>
    %572 = vector.extract_strided_slice %571 {offsets = [0, 0], sizes = [8, 32], strides = [1, 1]} : vector<8x128xf32> to vector<8x32xf32>
    %573 = arith.negf %572 : vector<8x32xf32>
    %574 = math.exp %573 : vector<8x32xf32>
    %cst_140 = arith.constant 1.000000e+00 : f32
    %575 = vector.broadcast %cst_140 : f32 to vector<8x32xf32>
    %576 = arith.addf %575, %574 : vector<8x32xf32>
    %577 = arith.divf %575, %576 : vector<8x32xf32>
    %578 = vector.extract_strided_slice %571 {offsets = [0, 32], sizes = [8, 32], strides = [1, 1]} : vector<8x128xf32> to vector<8x32xf32>
    %579 = arith.negf %578 : vector<8x32xf32>
    %580 = math.exp %579 : vector<8x32xf32>
    %cst_141 = arith.constant 1.000000e+00 : f32
    %581 = vector.broadcast %cst_141 : f32 to vector<8x32xf32>
    %582 = arith.addf %581, %580 : vector<8x32xf32>
    %583 = arith.divf %581, %582 : vector<8x32xf32>
    %584 = vector.extract_strided_slice %571 {offsets = [0, 64], sizes = [8, 32], strides = [1, 1]} : vector<8x128xf32> to vector<8x32xf32>
    %585 = math.tanh %584 : vector<8x32xf32>
    %586 = vector.extract_strided_slice %571 {offsets = [0, 96], sizes = [8, 32], strides = [1, 1]} : vector<8x128xf32> to vector<8x32xf32>
    %587 = arith.negf %586 : vector<8x32xf32>
    %588 = math.exp %587 : vector<8x32xf32>
    %cst_142 = arith.constant 1.000000e+00 : f32
    %589 = vector.broadcast %cst_142 : f32 to vector<8x32xf32>
    %590 = arith.addf %589, %588 : vector<8x32xf32>
    %591 = arith.divf %589, %590 : vector<8x32xf32>
    %592 = arith.mulf %583, %533 : vector<8x32xf32>
    %593 = arith.mulf %577, %585 : vector<8x32xf32>
    %594 = arith.addf %592, %593 : vector<8x32xf32>
    %595 = math.tanh %594 : vector<8x32xf32>
    %596 = arith.mulf %591, %595 : vector<8x32xf32>
    %597 = tpu.concatenate %596, %563 in 1 : vector<8x32xf32>, vector<8x32xf32> -> vector<8x64xf32>
    %cst_143 = arith.constant dense<0.000000e+00> : vector<8x128xf32>
    %598 = tpu.matmul %597, %15, %cst_143 {dimension_numbers = #tpu.dot_dimension_numbers<[1], [0], [0], [1], [0, 0, 1, 1], [], []>} : vector<8x64xf32>, vector<64x128xf32>, vector<8x128xf32> -> vector<8x128xf32>
    %599 = arith.addf %598, %13 : vector<8x128xf32>
    %600 = vector.extract_strided_slice %599 {offsets = [0, 0], sizes = [8, 32], strides = [1, 1]} : vector<8x128xf32> to vector<8x32xf32>
    %601 = arith.negf %600 : vector<8x32xf32>
    %602 = math.exp %601 : vector<8x32xf32>
    %cst_144 = arith.constant 1.000000e+00 : f32
    %603 = vector.broadcast %cst_144 : f32 to vector<8x32xf32>
    %604 = arith.addf %603, %602 : vector<8x32xf32>
    %605 = arith.divf %603, %604 : vector<8x32xf32>
    %606 = vector.extract_strided_slice %599 {offsets = [0, 32], sizes = [8, 32], strides = [1, 1]} : vector<8x128xf32> to vector<8x32xf32>
    %607 = arith.negf %606 : vector<8x32xf32>
    %608 = math.exp %607 : vector<8x32xf32>
    %cst_145 = arith.constant 1.000000e+00 : f32
    %609 = vector.broadcast %cst_145 : f32 to vector<8x32xf32>
    %610 = arith.addf %609, %608 : vector<8x32xf32>
    %611 = arith.divf %609, %610 : vector<8x32xf32>
    %612 = vector.extract_strided_slice %599 {offsets = [0, 64], sizes = [8, 32], strides = [1, 1]} : vector<8x128xf32> to vector<8x32xf32>
    %613 = math.tanh %612 : vector<8x32xf32>
    %614 = vector.extract_strided_slice %599 {offsets = [0, 96], sizes = [8, 32], strides = [1, 1]} : vector<8x128xf32> to vector<8x32xf32>
    %615 = arith.negf %614 : vector<8x32xf32>
    %616 = math.exp %615 : vector<8x32xf32>
    %cst_146 = arith.constant 1.000000e+00 : f32
    %617 = vector.broadcast %cst_146 : f32 to vector<8x32xf32>
    %618 = arith.addf %617, %616 : vector<8x32xf32>
    %619 = arith.divf %617, %618 : vector<8x32xf32>
    %620 = arith.mulf %611, %561 : vector<8x32xf32>
    %621 = arith.mulf %605, %613 : vector<8x32xf32>
    %622 = arith.addf %620, %621 : vector<8x32xf32>
    %623 = math.tanh %622 : vector<8x32xf32>
    %624 = arith.mulf %619, %623 : vector<8x32xf32>
    %c9 = arith.constant 9 : index
    %c0_147 = arith.constant 0 : index
    %c0_148 = arith.constant 0 : index
    %625 = vector.load %arg9[%c9, %c0_147, %c0_148] : memref<20x8x32xf32, #tpu.memory_space<vmem>>, vector<1x8x32xf32>
    %626 = vector.shape_cast %625 : vector<1x8x32xf32> to vector<8x32xf32>
    %627 = vector.shape_cast %624 : vector<8x32xf32> to vector<1x8x32xf32>
    tpu.vector_store %arg9[%c9, %c0_147, %c0_148], %627 {strides = array<i32>} : memref<20x8x32xf32, #tpu.memory_space<vmem>>, vector<1x8x32xf32>,
    %c9_149 = arith.constant 9 : index
    %c0_150 = arith.constant 0 : index
    %c0_151 = arith.constant 0 : index
    %628 = vector.load %arg2[%c9_149, %c0_150, %c0_151] : memref<19x8x32xf32, #tpu.memory_space<vmem>>, vector<1x8x32xf32>
    %629 = vector.shape_cast %628 : vector<1x8x32xf32> to vector<8x32xf32>
    %630 = tpu.concatenate %629, %624, %596 in 1 : vector<8x32xf32>, vector<8x32xf32>, vector<8x32xf32> -> vector<8x96xf32>
    %cst_152 = arith.constant dense<0.000000e+00> : vector<8x128xf32>
    %631 = tpu.matmul %630, %14, %cst_152 {dimension_numbers = #tpu.dot_dimension_numbers<[1], [0], [0], [1], [0, 0, 1, 1], [], []>} : vector<8x96xf32>, vector<96x128xf32>, vector<8x128xf32> -> vector<8x128xf32>
    %632 = arith.addf %631, %8 : vector<8x128xf32>
    %633 = vector.extract_strided_slice %632 {offsets = [0, 0], sizes = [8, 32], strides = [1, 1]} : vector<8x128xf32> to vector<8x32xf32>
    %634 = arith.negf %633 : vector<8x32xf32>
    %635 = math.exp %634 : vector<8x32xf32>
    %cst_153 = arith.constant 1.000000e+00 : f32
    %636 = vector.broadcast %cst_153 : f32 to vector<8x32xf32>
    %637 = arith.addf %636, %635 : vector<8x32xf32>
    %638 = arith.divf %636, %637 : vector<8x32xf32>
    %639 = vector.extract_strided_slice %632 {offsets = [0, 32], sizes = [8, 32], strides = [1, 1]} : vector<8x128xf32> to vector<8x32xf32>
    %640 = arith.negf %639 : vector<8x32xf32>
    %641 = math.exp %640 : vector<8x32xf32>
    %cst_154 = arith.constant 1.000000e+00 : f32
    %642 = vector.broadcast %cst_154 : f32 to vector<8x32xf32>
    %643 = arith.addf %642, %641 : vector<8x32xf32>
    %644 = arith.divf %642, %643 : vector<8x32xf32>
    %645 = vector.extract_strided_slice %632 {offsets = [0, 64], sizes = [8, 32], strides = [1, 1]} : vector<8x128xf32> to vector<8x32xf32>
    %646 = math.tanh %645 : vector<8x32xf32>
    %647 = vector.extract_strided_slice %632 {offsets = [0, 96], sizes = [8, 32], strides = [1, 1]} : vector<8x128xf32> to vector<8x32xf32>
    %648 = arith.negf %647 : vector<8x32xf32>
    %649 = math.exp %648 : vector<8x32xf32>
    %cst_155 = arith.constant 1.000000e+00 : f32
    %650 = vector.broadcast %cst_155 : f32 to vector<8x32xf32>
    %651 = arith.addf %650, %649 : vector<8x32xf32>
    %652 = arith.divf %650, %651 : vector<8x32xf32>
    %653 = arith.mulf %644, %594 : vector<8x32xf32>
    %654 = arith.mulf %638, %646 : vector<8x32xf32>
    %655 = arith.addf %653, %654 : vector<8x32xf32>
    %656 = math.tanh %655 : vector<8x32xf32>
    %657 = arith.mulf %652, %656 : vector<8x32xf32>
    %658 = tpu.concatenate %657, %624 in 1 : vector<8x32xf32>, vector<8x32xf32> -> vector<8x64xf32>
    %cst_156 = arith.constant dense<0.000000e+00> : vector<8x128xf32>
    %659 = tpu.matmul %658, %15, %cst_156 {dimension_numbers = #tpu.dot_dimension_numbers<[1], [0], [0], [1], [0, 0, 1, 1], [], []>} : vector<8x64xf32>, vector<64x128xf32>, vector<8x128xf32> -> vector<8x128xf32>
    %660 = arith.addf %659, %13 : vector<8x128xf32>
    %661 = vector.extract_strided_slice %660 {offsets = [0, 0], sizes = [8, 32], strides = [1, 1]} : vector<8x128xf32> to vector<8x32xf32>
    %662 = arith.negf %661 : vector<8x32xf32>
    %663 = math.exp %662 : vector<8x32xf32>
    %cst_157 = arith.constant 1.000000e+00 : f32
    %664 = vector.broadcast %cst_157 : f32 to vector<8x32xf32>
    %665 = arith.addf %664, %663 : vector<8x32xf32>
    %666 = arith.divf %664, %665 : vector<8x32xf32>
    %667 = vector.extract_strided_slice %660 {offsets = [0, 32], sizes = [8, 32], strides = [1, 1]} : vector<8x128xf32> to vector<8x32xf32>
    %668 = arith.negf %667 : vector<8x32xf32>
    %669 = math.exp %668 : vector<8x32xf32>
    %cst_158 = arith.constant 1.000000e+00 : f32
    %670 = vector.broadcast %cst_158 : f32 to vector<8x32xf32>
    %671 = arith.addf %670, %669 : vector<8x32xf32>
    %672 = arith.divf %670, %671 : vector<8x32xf32>
    %673 = vector.extract_strided_slice %660 {offsets = [0, 64], sizes = [8, 32], strides = [1, 1]} : vector<8x128xf32> to vector<8x32xf32>
    %674 = math.tanh %673 : vector<8x32xf32>
    %675 = vector.extract_strided_slice %660 {offsets = [0, 96], sizes = [8, 32], strides = [1, 1]} : vector<8x128xf32> to vector<8x32xf32>
    %676 = arith.negf %675 : vector<8x32xf32>
    %677 = math.exp %676 : vector<8x32xf32>
    %cst_159 = arith.constant 1.000000e+00 : f32
    %678 = vector.broadcast %cst_159 : f32 to vector<8x32xf32>
    %679 = arith.addf %678, %677 : vector<8x32xf32>
    %680 = arith.divf %678, %679 : vector<8x32xf32>
    %681 = arith.mulf %672, %622 : vector<8x32xf32>
    %682 = arith.mulf %666, %674 : vector<8x32xf32>
    %683 = arith.addf %681, %682 : vector<8x32xf32>
    %684 = math.tanh %683 : vector<8x32xf32>
    %685 = arith.mulf %680, %684 : vector<8x32xf32>
    %c10 = arith.constant 10 : index
    %c0_160 = arith.constant 0 : index
    %c0_161 = arith.constant 0 : index
    %686 = vector.load %arg9[%c10, %c0_160, %c0_161] : memref<20x8x32xf32, #tpu.memory_space<vmem>>, vector<1x8x32xf32>
    %687 = vector.shape_cast %686 : vector<1x8x32xf32> to vector<8x32xf32>
    %688 = vector.shape_cast %685 : vector<8x32xf32> to vector<1x8x32xf32>
    tpu.vector_store %arg9[%c10, %c0_160, %c0_161], %688 {strides = array<i32>} : memref<20x8x32xf32, #tpu.memory_space<vmem>>, vector<1x8x32xf32>,
    %c10_162 = arith.constant 10 : index
    %c0_163 = arith.constant 0 : index
    %c0_164 = arith.constant 0 : index
    %689 = vector.load %arg2[%c10_162, %c0_163, %c0_164] : memref<19x8x32xf32, #tpu.memory_space<vmem>>, vector<1x8x32xf32>
    %690 = vector.shape_cast %689 : vector<1x8x32xf32> to vector<8x32xf32>
    %691 = tpu.concatenate %690, %685, %657 in 1 : vector<8x32xf32>, vector<8x32xf32>, vector<8x32xf32> -> vector<8x96xf32>
    %cst_165 = arith.constant dense<0.000000e+00> : vector<8x128xf32>
    %692 = tpu.matmul %691, %14, %cst_165 {dimension_numbers = #tpu.dot_dimension_numbers<[1], [0], [0], [1], [0, 0, 1, 1], [], []>} : vector<8x96xf32>, vector<96x128xf32>, vector<8x128xf32> -> vector<8x128xf32>
    %693 = arith.addf %692, %8 : vector<8x128xf32>
    %694 = vector.extract_strided_slice %693 {offsets = [0, 0], sizes = [8, 32], strides = [1, 1]} : vector<8x128xf32> to vector<8x32xf32>
    %695 = arith.negf %694 : vector<8x32xf32>
    %696 = math.exp %695 : vector<8x32xf32>
    %cst_166 = arith.constant 1.000000e+00 : f32
    %697 = vector.broadcast %cst_166 : f32 to vector<8x32xf32>
    %698 = arith.addf %697, %696 : vector<8x32xf32>
    %699 = arith.divf %697, %698 : vector<8x32xf32>
    %700 = vector.extract_strided_slice %693 {offsets = [0, 32], sizes = [8, 32], strides = [1, 1]} : vector<8x128xf32> to vector<8x32xf32>
    %701 = arith.negf %700 : vector<8x32xf32>
    %702 = math.exp %701 : vector<8x32xf32>
    %cst_167 = arith.constant 1.000000e+00 : f32
    %703 = vector.broadcast %cst_167 : f32 to vector<8x32xf32>
    %704 = arith.addf %703, %702 : vector<8x32xf32>
    %705 = arith.divf %703, %704 : vector<8x32xf32>
    %706 = vector.extract_strided_slice %693 {offsets = [0, 64], sizes = [8, 32], strides = [1, 1]} : vector<8x128xf32> to vector<8x32xf32>
    %707 = math.tanh %706 : vector<8x32xf32>
    %708 = vector.extract_strided_slice %693 {offsets = [0, 96], sizes = [8, 32], strides = [1, 1]} : vector<8x128xf32> to vector<8x32xf32>
    %709 = arith.negf %708 : vector<8x32xf32>
    %710 = math.exp %709 : vector<8x32xf32>
    %cst_168 = arith.constant 1.000000e+00 : f32
    %711 = vector.broadcast %cst_168 : f32 to vector<8x32xf32>
    %712 = arith.addf %711, %710 : vector<8x32xf32>
    %713 = arith.divf %711, %712 : vector<8x32xf32>
    %714 = arith.mulf %705, %655 : vector<8x32xf32>
    %715 = arith.mulf %699, %707 : vector<8x32xf32>
    %716 = arith.addf %714, %715 : vector<8x32xf32>
    %717 = math.tanh %716 : vector<8x32xf32>
    %718 = arith.mulf %713, %717 : vector<8x32xf32>
    %719 = tpu.concatenate %718, %685 in 1 : vector<8x32xf32>, vector<8x32xf32> -> vector<8x64xf32>
    %cst_169 = arith.constant dense<0.000000e+00> : vector<8x128xf32>
    %720 = tpu.matmul %719, %15, %cst_169 {dimension_numbers = #tpu.dot_dimension_numbers<[1], [0], [0], [1], [0, 0, 1, 1], [], []>} : vector<8x64xf32>, vector<64x128xf32>, vector<8x128xf32> -> vector<8x128xf32>
    %721 = arith.addf %720, %13 : vector<8x128xf32>
    %722 = vector.extract_strided_slice %721 {offsets = [0, 0], sizes = [8, 32], strides = [1, 1]} : vector<8x128xf32> to vector<8x32xf32>
    %723 = arith.negf %722 : vector<8x32xf32>
    %724 = math.exp %723 : vector<8x32xf32>
    %cst_170 = arith.constant 1.000000e+00 : f32
    %725 = vector.broadcast %cst_170 : f32 to vector<8x32xf32>
    %726 = arith.addf %725, %724 : vector<8x32xf32>
    %727 = arith.divf %725, %726 : vector<8x32xf32>
    %728 = vector.extract_strided_slice %721 {offsets = [0, 32], sizes = [8, 32], strides = [1, 1]} : vector<8x128xf32> to vector<8x32xf32>
    %729 = arith.negf %728 : vector<8x32xf32>
    %730 = math.exp %729 : vector<8x32xf32>
    %cst_171 = arith.constant 1.000000e+00 : f32
    %731 = vector.broadcast %cst_171 : f32 to vector<8x32xf32>
    %732 = arith.addf %731, %730 : vector<8x32xf32>
    %733 = arith.divf %731, %732 : vector<8x32xf32>
    %734 = vector.extract_strided_slice %721 {offsets = [0, 64], sizes = [8, 32], strides = [1, 1]} : vector<8x128xf32> to vector<8x32xf32>
    %735 = math.tanh %734 : vector<8x32xf32>
    %736 = vector.extract_strided_slice %721 {offsets = [0, 96], sizes = [8, 32], strides = [1, 1]} : vector<8x128xf32> to vector<8x32xf32>
    %737 = arith.negf %736 : vector<8x32xf32>
    %738 = math.exp %737 : vector<8x32xf32>
    %cst_172 = arith.constant 1.000000e+00 : f32
    %739 = vector.broadcast %cst_172 : f32 to vector<8x32xf32>
    %740 = arith.addf %739, %738 : vector<8x32xf32>
    %741 = arith.divf %739, %740 : vector<8x32xf32>
    %742 = arith.mulf %733, %683 : vector<8x32xf32>
    %743 = arith.mulf %727, %735 : vector<8x32xf32>
    %744 = arith.addf %742, %743 : vector<8x32xf32>
    %745 = math.tanh %744 : vector<8x32xf32>
    %746 = arith.mulf %741, %745 : vector<8x32xf32>
    %c11 = arith.constant 11 : index
    %c0_173 = arith.constant 0 : index
    %c0_174 = arith.constant 0 : index
    %747 = vector.load %arg9[%c11, %c0_173, %c0_174] : memref<20x8x32xf32, #tpu.memory_space<vmem>>, vector<1x8x32xf32>
    %748 = vector.shape_cast %747 : vector<1x8x32xf32> to vector<8x32xf32>
    %749 = vector.shape_cast %746 : vector<8x32xf32> to vector<1x8x32xf32>
    tpu.vector_store %arg9[%c11, %c0_173, %c0_174], %749 {strides = array<i32>} : memref<20x8x32xf32, #tpu.memory_space<vmem>>, vector<1x8x32xf32>,
    %c11_175 = arith.constant 11 : index
    %c0_176 = arith.constant 0 : index
    %c0_177 = arith.constant 0 : index
    %750 = vector.load %arg2[%c11_175, %c0_176, %c0_177] : memref<19x8x32xf32, #tpu.memory_space<vmem>>, vector<1x8x32xf32>
    %751 = vector.shape_cast %750 : vector<1x8x32xf32> to vector<8x32xf32>
    %752 = tpu.concatenate %751, %746, %718 in 1 : vector<8x32xf32>, vector<8x32xf32>, vector<8x32xf32> -> vector<8x96xf32>
    %cst_178 = arith.constant dense<0.000000e+00> : vector<8x128xf32>
    %753 = tpu.matmul %752, %14, %cst_178 {dimension_numbers = #tpu.dot_dimension_numbers<[1], [0], [0], [1], [0, 0, 1, 1], [], []>} : vector<8x96xf32>, vector<96x128xf32>, vector<8x128xf32> -> vector<8x128xf32>
    %754 = arith.addf %753, %8 : vector<8x128xf32>
    %755 = vector.extract_strided_slice %754 {offsets = [0, 0], sizes = [8, 32], strides = [1, 1]} : vector<8x128xf32> to vector<8x32xf32>
    %756 = arith.negf %755 : vector<8x32xf32>
    %757 = math.exp %756 : vector<8x32xf32>
    %cst_179 = arith.constant 1.000000e+00 : f32
    %758 = vector.broadcast %cst_179 : f32 to vector<8x32xf32>
    %759 = arith.addf %758, %757 : vector<8x32xf32>
    %760 = arith.divf %758, %759 : vector<8x32xf32>
    %761 = vector.extract_strided_slice %754 {offsets = [0, 32], sizes = [8, 32], strides = [1, 1]} : vector<8x128xf32> to vector<8x32xf32>
    %762 = arith.negf %761 : vector<8x32xf32>
    %763 = math.exp %762 : vector<8x32xf32>
    %cst_180 = arith.constant 1.000000e+00 : f32
    %764 = vector.broadcast %cst_180 : f32 to vector<8x32xf32>
    %765 = arith.addf %764, %763 : vector<8x32xf32>
    %766 = arith.divf %764, %765 : vector<8x32xf32>
    %767 = vector.extract_strided_slice %754 {offsets = [0, 64], sizes = [8, 32], strides = [1, 1]} : vector<8x128xf32> to vector<8x32xf32>
    %768 = math.tanh %767 : vector<8x32xf32>
    %769 = vector.extract_strided_slice %754 {offsets = [0, 96], sizes = [8, 32], strides = [1, 1]} : vector<8x128xf32> to vector<8x32xf32>
    %770 = arith.negf %769 : vector<8x32xf32>
    %771 = math.exp %770 : vector<8x32xf32>
    %cst_181 = arith.constant 1.000000e+00 : f32
    %772 = vector.broadcast %cst_181 : f32 to vector<8x32xf32>
    %773 = arith.addf %772, %771 : vector<8x32xf32>
    %774 = arith.divf %772, %773 : vector<8x32xf32>
    %775 = arith.mulf %766, %716 : vector<8x32xf32>
    %776 = arith.mulf %760, %768 : vector<8x32xf32>
    %777 = arith.addf %775, %776 : vector<8x32xf32>
    %778 = math.tanh %777 : vector<8x32xf32>
    %779 = arith.mulf %774, %778 : vector<8x32xf32>
    %780 = tpu.concatenate %779, %746 in 1 : vector<8x32xf32>, vector<8x32xf32> -> vector<8x64xf32>
    %cst_182 = arith.constant dense<0.000000e+00> : vector<8x128xf32>
    %781 = tpu.matmul %780, %15, %cst_182 {dimension_numbers = #tpu.dot_dimension_numbers<[1], [0], [0], [1], [0, 0, 1, 1], [], []>} : vector<8x64xf32>, vector<64x128xf32>, vector<8x128xf32> -> vector<8x128xf32>
    %782 = arith.addf %781, %13 : vector<8x128xf32>
    %783 = vector.extract_strided_slice %782 {offsets = [0, 0], sizes = [8, 32], strides = [1, 1]} : vector<8x128xf32> to vector<8x32xf32>
    %784 = arith.negf %783 : vector<8x32xf32>
    %785 = math.exp %784 : vector<8x32xf32>
    %cst_183 = arith.constant 1.000000e+00 : f32
    %786 = vector.broadcast %cst_183 : f32 to vector<8x32xf32>
    %787 = arith.addf %786, %785 : vector<8x32xf32>
    %788 = arith.divf %786, %787 : vector<8x32xf32>
    %789 = vector.extract_strided_slice %782 {offsets = [0, 32], sizes = [8, 32], strides = [1, 1]} : vector<8x128xf32> to vector<8x32xf32>
    %790 = arith.negf %789 : vector<8x32xf32>
    %791 = math.exp %790 : vector<8x32xf32>
    %cst_184 = arith.constant 1.000000e+00 : f32
    %792 = vector.broadcast %cst_184 : f32 to vector<8x32xf32>
    %793 = arith.addf %792, %791 : vector<8x32xf32>
    %794 = arith.divf %792, %793 : vector<8x32xf32>
    %795 = vector.extract_strided_slice %782 {offsets = [0, 64], sizes = [8, 32], strides = [1, 1]} : vector<8x128xf32> to vector<8x32xf32>
    %796 = math.tanh %795 : vector<8x32xf32>
    %797 = vector.extract_strided_slice %782 {offsets = [0, 96], sizes = [8, 32], strides = [1, 1]} : vector<8x128xf32> to vector<8x32xf32>
    %798 = arith.negf %797 : vector<8x32xf32>
    %799 = math.exp %798 : vector<8x32xf32>
    %cst_185 = arith.constant 1.000000e+00 : f32
    %800 = vector.broadcast %cst_185 : f32 to vector<8x32xf32>
    %801 = arith.addf %800, %799 : vector<8x32xf32>
    %802 = arith.divf %800, %801 : vector<8x32xf32>
    %803 = arith.mulf %794, %744 : vector<8x32xf32>
    %804 = arith.mulf %788, %796 : vector<8x32xf32>
    %805 = arith.addf %803, %804 : vector<8x32xf32>
    %806 = math.tanh %805 : vector<8x32xf32>
    %807 = arith.mulf %802, %806 : vector<8x32xf32>
    %c12 = arith.constant 12 : index
    %c0_186 = arith.constant 0 : index
    %c0_187 = arith.constant 0 : index
    %808 = vector.load %arg9[%c12, %c0_186, %c0_187] : memref<20x8x32xf32, #tpu.memory_space<vmem>>, vector<1x8x32xf32>
    %809 = vector.shape_cast %808 : vector<1x8x32xf32> to vector<8x32xf32>
    %810 = vector.shape_cast %807 : vector<8x32xf32> to vector<1x8x32xf32>
    tpu.vector_store %arg9[%c12, %c0_186, %c0_187], %810 {strides = array<i32>} : memref<20x8x32xf32, #tpu.memory_space<vmem>>, vector<1x8x32xf32>,
    %c12_188 = arith.constant 12 : index
    %c0_189 = arith.constant 0 : index
    %c0_190 = arith.constant 0 : index
    %811 = vector.load %arg2[%c12_188, %c0_189, %c0_190] : memref<19x8x32xf32, #tpu.memory_space<vmem>>, vector<1x8x32xf32>
    %812 = vector.shape_cast %811 : vector<1x8x32xf32> to vector<8x32xf32>
    %813 = tpu.concatenate %812, %807, %779 in 1 : vector<8x32xf32>, vector<8x32xf32>, vector<8x32xf32> -> vector<8x96xf32>
    %cst_191 = arith.constant dense<0.000000e+00> : vector<8x128xf32>
    %814 = tpu.matmul %813, %14, %cst_191 {dimension_numbers = #tpu.dot_dimension_numbers<[1], [0], [0], [1], [0, 0, 1, 1], [], []>} : vector<8x96xf32>, vector<96x128xf32>, vector<8x128xf32> -> vector<8x128xf32>
    %815 = arith.addf %814, %8 : vector<8x128xf32>
    %816 = vector.extract_strided_slice %815 {offsets = [0, 0], sizes = [8, 32], strides = [1, 1]} : vector<8x128xf32> to vector<8x32xf32>
    %817 = arith.negf %816 : vector<8x32xf32>
    %818 = math.exp %817 : vector<8x32xf32>
    %cst_192 = arith.constant 1.000000e+00 : f32
    %819 = vector.broadcast %cst_192 : f32 to vector<8x32xf32>
    %820 = arith.addf %819, %818 : vector<8x32xf32>
    %821 = arith.divf %819, %820 : vector<8x32xf32>
    %822 = vector.extract_strided_slice %815 {offsets = [0, 32], sizes = [8, 32], strides = [1, 1]} : vector<8x128xf32> to vector<8x32xf32>
    %823 = arith.negf %822 : vector<8x32xf32>
    %824 = math.exp %823 : vector<8x32xf32>
    %cst_193 = arith.constant 1.000000e+00 : f32
    %825 = vector.broadcast %cst_193 : f32 to vector<8x32xf32>
    %826 = arith.addf %825, %824 : vector<8x32xf32>
    %827 = arith.divf %825, %826 : vector<8x32xf32>
    %828 = vector.extract_strided_slice %815 {offsets = [0, 64], sizes = [8, 32], strides = [1, 1]} : vector<8x128xf32> to vector<8x32xf32>
    %829 = math.tanh %828 : vector<8x32xf32>
    %830 = vector.extract_strided_slice %815 {offsets = [0, 96], sizes = [8, 32], strides = [1, 1]} : vector<8x128xf32> to vector<8x32xf32>
    %831 = arith.negf %830 : vector<8x32xf32>
    %832 = math.exp %831 : vector<8x32xf32>
    %cst_194 = arith.constant 1.000000e+00 : f32
    %833 = vector.broadcast %cst_194 : f32 to vector<8x32xf32>
    %834 = arith.addf %833, %832 : vector<8x32xf32>
    %835 = arith.divf %833, %834 : vector<8x32xf32>
    %836 = arith.mulf %827, %777 : vector<8x32xf32>
    %837 = arith.mulf %821, %829 : vector<8x32xf32>
    %838 = arith.addf %836, %837 : vector<8x32xf32>
    %839 = math.tanh %838 : vector<8x32xf32>
    %840 = arith.mulf %835, %839 : vector<8x32xf32>
    %841 = tpu.concatenate %840, %807 in 1 : vector<8x32xf32>, vector<8x32xf32> -> vector<8x64xf32>
    %cst_195 = arith.constant dense<0.000000e+00> : vector<8x128xf32>
    %842 = tpu.matmul %841, %15, %cst_195 {dimension_numbers = #tpu.dot_dimension_numbers<[1], [0], [0], [1], [0, 0, 1, 1], [], []>} : vector<8x64xf32>, vector<64x128xf32>, vector<8x128xf32> -> vector<8x128xf32>
    %843 = arith.addf %842, %13 : vector<8x128xf32>
    %844 = vector.extract_strided_slice %843 {offsets = [0, 0], sizes = [8, 32], strides = [1, 1]} : vector<8x128xf32> to vector<8x32xf32>
    %845 = arith.negf %844 : vector<8x32xf32>
    %846 = math.exp %845 : vector<8x32xf32>
    %cst_196 = arith.constant 1.000000e+00 : f32
    %847 = vector.broadcast %cst_196 : f32 to vector<8x32xf32>
    %848 = arith.addf %847, %846 : vector<8x32xf32>
    %849 = arith.divf %847, %848 : vector<8x32xf32>
    %850 = vector.extract_strided_slice %843 {offsets = [0, 32], sizes = [8, 32], strides = [1, 1]} : vector<8x128xf32> to vector<8x32xf32>
    %851 = arith.negf %850 : vector<8x32xf32>
    %852 = math.exp %851 : vector<8x32xf32>
    %cst_197 = arith.constant 1.000000e+00 : f32
    %853 = vector.broadcast %cst_197 : f32 to vector<8x32xf32>
    %854 = arith.addf %853, %852 : vector<8x32xf32>
    %855 = arith.divf %853, %854 : vector<8x32xf32>
    %856 = vector.extract_strided_slice %843 {offsets = [0, 64], sizes = [8, 32], strides = [1, 1]} : vector<8x128xf32> to vector<8x32xf32>
    %857 = math.tanh %856 : vector<8x32xf32>
    %858 = vector.extract_strided_slice %843 {offsets = [0, 96], sizes = [8, 32], strides = [1, 1]} : vector<8x128xf32> to vector<8x32xf32>
    %859 = arith.negf %858 : vector<8x32xf32>
    %860 = math.exp %859 : vector<8x32xf32>
    %cst_198 = arith.constant 1.000000e+00 : f32
    %861 = vector.broadcast %cst_198 : f32 to vector<8x32xf32>
    %862 = arith.addf %861, %860 : vector<8x32xf32>
    %863 = arith.divf %861, %862 : vector<8x32xf32>
    %864 = arith.mulf %855, %805 : vector<8x32xf32>
    %865 = arith.mulf %849, %857 : vector<8x32xf32>
    %866 = arith.addf %864, %865 : vector<8x32xf32>
    %867 = math.tanh %866 : vector<8x32xf32>
    %868 = arith.mulf %863, %867 : vector<8x32xf32>
    %c13 = arith.constant 13 : index
    %c0_199 = arith.constant 0 : index
    %c0_200 = arith.constant 0 : index
    %869 = vector.load %arg9[%c13, %c0_199, %c0_200] : memref<20x8x32xf32, #tpu.memory_space<vmem>>, vector<1x8x32xf32>
    %870 = vector.shape_cast %869 : vector<1x8x32xf32> to vector<8x32xf32>
    %871 = vector.shape_cast %868 : vector<8x32xf32> to vector<1x8x32xf32>
    tpu.vector_store %arg9[%c13, %c0_199, %c0_200], %871 {strides = array<i32>} : memref<20x8x32xf32, #tpu.memory_space<vmem>>, vector<1x8x32xf32>,
    %c13_201 = arith.constant 13 : index
    %c0_202 = arith.constant 0 : index
    %c0_203 = arith.constant 0 : index
    %872 = vector.load %arg2[%c13_201, %c0_202, %c0_203] : memref<19x8x32xf32, #tpu.memory_space<vmem>>, vector<1x8x32xf32>
    %873 = vector.shape_cast %872 : vector<1x8x32xf32> to vector<8x32xf32>
    %874 = tpu.concatenate %873, %868, %840 in 1 : vector<8x32xf32>, vector<8x32xf32>, vector<8x32xf32> -> vector<8x96xf32>
    %cst_204 = arith.constant dense<0.000000e+00> : vector<8x128xf32>
    %875 = tpu.matmul %874, %14, %cst_204 {dimension_numbers = #tpu.dot_dimension_numbers<[1], [0], [0], [1], [0, 0, 1, 1], [], []>} : vector<8x96xf32>, vector<96x128xf32>, vector<8x128xf32> -> vector<8x128xf32>
    %876 = arith.addf %875, %8 : vector<8x128xf32>
    %877 = vector.extract_strided_slice %876 {offsets = [0, 0], sizes = [8, 32], strides = [1, 1]} : vector<8x128xf32> to vector<8x32xf32>
    %878 = arith.negf %877 : vector<8x32xf32>
    %879 = math.exp %878 : vector<8x32xf32>
    %cst_205 = arith.constant 1.000000e+00 : f32
    %880 = vector.broadcast %cst_205 : f32 to vector<8x32xf32>
    %881 = arith.addf %880, %879 : vector<8x32xf32>
    %882 = arith.divf %880, %881 : vector<8x32xf32>
    %883 = vector.extract_strided_slice %876 {offsets = [0, 32], sizes = [8, 32], strides = [1, 1]} : vector<8x128xf32> to vector<8x32xf32>
    %884 = arith.negf %883 : vector<8x32xf32>
    %885 = math.exp %884 : vector<8x32xf32>
    %cst_206 = arith.constant 1.000000e+00 : f32
    %886 = vector.broadcast %cst_206 : f32 to vector<8x32xf32>
    %887 = arith.addf %886, %885 : vector<8x32xf32>
    %888 = arith.divf %886, %887 : vector<8x32xf32>
    %889 = vector.extract_strided_slice %876 {offsets = [0, 64], sizes = [8, 32], strides = [1, 1]} : vector<8x128xf32> to vector<8x32xf32>
    %890 = math.tanh %889 : vector<8x32xf32>
    %891 = vector.extract_strided_slice %876 {offsets = [0, 96], sizes = [8, 32], strides = [1, 1]} : vector<8x128xf32> to vector<8x32xf32>
    %892 = arith.negf %891 : vector<8x32xf32>
    %893 = math.exp %892 : vector<8x32xf32>
    %cst_207 = arith.constant 1.000000e+00 : f32
    %894 = vector.broadcast %cst_207 : f32 to vector<8x32xf32>
    %895 = arith.addf %894, %893 : vector<8x32xf32>
    %896 = arith.divf %894, %895 : vector<8x32xf32>
    %897 = arith.mulf %888, %838 : vector<8x32xf32>
    %898 = arith.mulf %882, %890 : vector<8x32xf32>
    %899 = arith.addf %897, %898 : vector<8x32xf32>
    %900 = math.tanh %899 : vector<8x32xf32>
    %901 = arith.mulf %896, %900 : vector<8x32xf32>
    %902 = tpu.concatenate %901, %868 in 1 : vector<8x32xf32>, vector<8x32xf32> -> vector<8x64xf32>
    %cst_208 = arith.constant dense<0.000000e+00> : vector<8x128xf32>
    %903 = tpu.matmul %902, %15, %cst_208 {dimension_numbers = #tpu.dot_dimension_numbers<[1], [0], [0], [1], [0, 0, 1, 1], [], []>} : vector<8x64xf32>, vector<64x128xf32>, vector<8x128xf32> -> vector<8x128xf32>
    %904 = arith.addf %903, %13 : vector<8x128xf32>
    %905 = vector.extract_strided_slice %904 {offsets = [0, 0], sizes = [8, 32], strides = [1, 1]} : vector<8x128xf32> to vector<8x32xf32>
    %906 = arith.negf %905 : vector<8x32xf32>
    %907 = math.exp %906 : vector<8x32xf32>
    %cst_209 = arith.constant 1.000000e+00 : f32
    %908 = vector.broadcast %cst_209 : f32 to vector<8x32xf32>
    %909 = arith.addf %908, %907 : vector<8x32xf32>
    %910 = arith.divf %908, %909 : vector<8x32xf32>
    %911 = vector.extract_strided_slice %904 {offsets = [0, 32], sizes = [8, 32], strides = [1, 1]} : vector<8x128xf32> to vector<8x32xf32>
    %912 = arith.negf %911 : vector<8x32xf32>
    %913 = math.exp %912 : vector<8x32xf32>
    %cst_210 = arith.constant 1.000000e+00 : f32
    %914 = vector.broadcast %cst_210 : f32 to vector<8x32xf32>
    %915 = arith.addf %914, %913 : vector<8x32xf32>
    %916 = arith.divf %914, %915 : vector<8x32xf32>
    %917 = vector.extract_strided_slice %904 {offsets = [0, 64], sizes = [8, 32], strides = [1, 1]} : vector<8x128xf32> to vector<8x32xf32>
    %918 = math.tanh %917 : vector<8x32xf32>
    %919 = vector.extract_strided_slice %904 {offsets = [0, 96], sizes = [8, 32], strides = [1, 1]} : vector<8x128xf32> to vector<8x32xf32>
    %920 = arith.negf %919 : vector<8x32xf32>
    %921 = math.exp %920 : vector<8x32xf32>
    %cst_211 = arith.constant 1.000000e+00 : f32
    %922 = vector.broadcast %cst_211 : f32 to vector<8x32xf32>
    %923 = arith.addf %922, %921 : vector<8x32xf32>
    %924 = arith.divf %922, %923 : vector<8x32xf32>
    %925 = arith.mulf %916, %866 : vector<8x32xf32>
    %926 = arith.mulf %910, %918 : vector<8x32xf32>
    %927 = arith.addf %925, %926 : vector<8x32xf32>
    %928 = math.tanh %927 : vector<8x32xf32>
    %929 = arith.mulf %924, %928 : vector<8x32xf32>
    %c14 = arith.constant 14 : index
    %c0_212 = arith.constant 0 : index
    %c0_213 = arith.constant 0 : index
    %930 = vector.load %arg9[%c14, %c0_212, %c0_213] : memref<20x8x32xf32, #tpu.memory_space<vmem>>, vector<1x8x32xf32>
    %931 = vector.shape_cast %930 : vector<1x8x32xf32> to vector<8x32xf32>
    %932 = vector.shape_cast %929 : vector<8x32xf32> to vector<1x8x32xf32>
    tpu.vector_store %arg9[%c14, %c0_212, %c0_213], %932 {strides = array<i32>} : memref<20x8x32xf32, #tpu.memory_space<vmem>>, vector<1x8x32xf32>,
    %c14_214 = arith.constant 14 : index
    %c0_215 = arith.constant 0 : index
    %c0_216 = arith.constant 0 : index
    %933 = vector.load %arg2[%c14_214, %c0_215, %c0_216] : memref<19x8x32xf32, #tpu.memory_space<vmem>>, vector<1x8x32xf32>
    %934 = vector.shape_cast %933 : vector<1x8x32xf32> to vector<8x32xf32>
    %935 = tpu.concatenate %934, %929, %901 in 1 : vector<8x32xf32>, vector<8x32xf32>, vector<8x32xf32> -> vector<8x96xf32>
    %cst_217 = arith.constant dense<0.000000e+00> : vector<8x128xf32>
    %936 = tpu.matmul %935, %14, %cst_217 {dimension_numbers = #tpu.dot_dimension_numbers<[1], [0], [0], [1], [0, 0, 1, 1], [], []>} : vector<8x96xf32>, vector<96x128xf32>, vector<8x128xf32> -> vector<8x128xf32>
    %937 = arith.addf %936, %8 : vector<8x128xf32>
    %938 = vector.extract_strided_slice %937 {offsets = [0, 0], sizes = [8, 32], strides = [1, 1]} : vector<8x128xf32> to vector<8x32xf32>
    %939 = arith.negf %938 : vector<8x32xf32>
    %940 = math.exp %939 : vector<8x32xf32>
    %cst_218 = arith.constant 1.000000e+00 : f32
    %941 = vector.broadcast %cst_218 : f32 to vector<8x32xf32>
    %942 = arith.addf %941, %940 : vector<8x32xf32>
    %943 = arith.divf %941, %942 : vector<8x32xf32>
    %944 = vector.extract_strided_slice %937 {offsets = [0, 32], sizes = [8, 32], strides = [1, 1]} : vector<8x128xf32> to vector<8x32xf32>
    %945 = arith.negf %944 : vector<8x32xf32>
    %946 = math.exp %945 : vector<8x32xf32>
    %cst_219 = arith.constant 1.000000e+00 : f32
    %947 = vector.broadcast %cst_219 : f32 to vector<8x32xf32>
    %948 = arith.addf %947, %946 : vector<8x32xf32>
    %949 = arith.divf %947, %948 : vector<8x32xf32>
    %950 = vector.extract_strided_slice %937 {offsets = [0, 64], sizes = [8, 32], strides = [1, 1]} : vector<8x128xf32> to vector<8x32xf32>
    %951 = math.tanh %950 : vector<8x32xf32>
    %952 = vector.extract_strided_slice %937 {offsets = [0, 96], sizes = [8, 32], strides = [1, 1]} : vector<8x128xf32> to vector<8x32xf32>
    %953 = arith.negf %952 : vector<8x32xf32>
    %954 = math.exp %953 : vector<8x32xf32>
    %cst_220 = arith.constant 1.000000e+00 : f32
    %955 = vector.broadcast %cst_220 : f32 to vector<8x32xf32>
    %956 = arith.addf %955, %954 : vector<8x32xf32>
    %957 = arith.divf %955, %956 : vector<8x32xf32>
    %958 = arith.mulf %949, %899 : vector<8x32xf32>
    %959 = arith.mulf %943, %951 : vector<8x32xf32>
    %960 = arith.addf %958, %959 : vector<8x32xf32>
    %961 = math.tanh %960 : vector<8x32xf32>
    %962 = arith.mulf %957, %961 : vector<8x32xf32>
    %963 = tpu.concatenate %962, %929 in 1 : vector<8x32xf32>, vector<8x32xf32> -> vector<8x64xf32>
    %cst_221 = arith.constant dense<0.000000e+00> : vector<8x128xf32>
    %964 = tpu.matmul %963, %15, %cst_221 {dimension_numbers = #tpu.dot_dimension_numbers<[1], [0], [0], [1], [0, 0, 1, 1], [], []>} : vector<8x64xf32>, vector<64x128xf32>, vector<8x128xf32> -> vector<8x128xf32>
    %965 = arith.addf %964, %13 : vector<8x128xf32>
    %966 = vector.extract_strided_slice %965 {offsets = [0, 0], sizes = [8, 32], strides = [1, 1]} : vector<8x128xf32> to vector<8x32xf32>
    %967 = arith.negf %966 : vector<8x32xf32>
    %968 = math.exp %967 : vector<8x32xf32>
    %cst_222 = arith.constant 1.000000e+00 : f32
    %969 = vector.broadcast %cst_222 : f32 to vector<8x32xf32>
    %970 = arith.addf %969, %968 : vector<8x32xf32>
    %971 = arith.divf %969, %970 : vector<8x32xf32>
    %972 = vector.extract_strided_slice %965 {offsets = [0, 32], sizes = [8, 32], strides = [1, 1]} : vector<8x128xf32> to vector<8x32xf32>
    %973 = arith.negf %972 : vector<8x32xf32>
    %974 = math.exp %973 : vector<8x32xf32>
    %cst_223 = arith.constant 1.000000e+00 : f32
    %975 = vector.broadcast %cst_223 : f32 to vector<8x32xf32>
    %976 = arith.addf %975, %974 : vector<8x32xf32>
    %977 = arith.divf %975, %976 : vector<8x32xf32>
    %978 = vector.extract_strided_slice %965 {offsets = [0, 64], sizes = [8, 32], strides = [1, 1]} : vector<8x128xf32> to vector<8x32xf32>
    %979 = math.tanh %978 : vector<8x32xf32>
    %980 = vector.extract_strided_slice %965 {offsets = [0, 96], sizes = [8, 32], strides = [1, 1]} : vector<8x128xf32> to vector<8x32xf32>
    %981 = arith.negf %980 : vector<8x32xf32>
    %982 = math.exp %981 : vector<8x32xf32>
    %cst_224 = arith.constant 1.000000e+00 : f32
    %983 = vector.broadcast %cst_224 : f32 to vector<8x32xf32>
    %984 = arith.addf %983, %982 : vector<8x32xf32>
    %985 = arith.divf %983, %984 : vector<8x32xf32>
    %986 = arith.mulf %977, %927 : vector<8x32xf32>
    %987 = arith.mulf %971, %979 : vector<8x32xf32>
    %988 = arith.addf %986, %987 : vector<8x32xf32>
    %989 = math.tanh %988 : vector<8x32xf32>
    %990 = arith.mulf %985, %989 : vector<8x32xf32>
    %c15 = arith.constant 15 : index
    %c0_225 = arith.constant 0 : index
    %c0_226 = arith.constant 0 : index
    %991 = vector.load %arg9[%c15, %c0_225, %c0_226] : memref<20x8x32xf32, #tpu.memory_space<vmem>>, vector<1x8x32xf32>
    %992 = vector.shape_cast %991 : vector<1x8x32xf32> to vector<8x32xf32>
    %993 = vector.shape_cast %990 : vector<8x32xf32> to vector<1x8x32xf32>
    tpu.vector_store %arg9[%c15, %c0_225, %c0_226], %993 {strides = array<i32>} : memref<20x8x32xf32, #tpu.memory_space<vmem>>, vector<1x8x32xf32>,
    %c15_227 = arith.constant 15 : index
    %c0_228 = arith.constant 0 : index
    %c0_229 = arith.constant 0 : index
    %994 = vector.load %arg2[%c15_227, %c0_228, %c0_229] : memref<19x8x32xf32, #tpu.memory_space<vmem>>, vector<1x8x32xf32>
    %995 = vector.shape_cast %994 : vector<1x8x32xf32> to vector<8x32xf32>
    %996 = tpu.concatenate %995, %990, %962 in 1 : vector<8x32xf32>, vector<8x32xf32>, vector<8x32xf32> -> vector<8x96xf32>
    %cst_230 = arith.constant dense<0.000000e+00> : vector<8x128xf32>
    %997 = tpu.matmul %996, %14, %cst_230 {dimension_numbers = #tpu.dot_dimension_numbers<[1], [0], [0], [1], [0, 0, 1, 1], [], []>} : vector<8x96xf32>, vector<96x128xf32>, vector<8x128xf32> -> vector<8x128xf32>
    %998 = arith.addf %997, %8 : vector<8x128xf32>
    %999 = vector.extract_strided_slice %998 {offsets = [0, 0], sizes = [8, 32], strides = [1, 1]} : vector<8x128xf32> to vector<8x32xf32>
    %1000 = arith.negf %999 : vector<8x32xf32>
    %1001 = math.exp %1000 : vector<8x32xf32>
    %cst_231 = arith.constant 1.000000e+00 : f32
    %1002 = vector.broadcast %cst_231 : f32 to vector<8x32xf32>
    %1003 = arith.addf %1002, %1001 : vector<8x32xf32>
    %1004 = arith.divf %1002, %1003 : vector<8x32xf32>
    %1005 = vector.extract_strided_slice %998 {offsets = [0, 32], sizes = [8, 32], strides = [1, 1]} : vector<8x128xf32> to vector<8x32xf32>
    %1006 = arith.negf %1005 : vector<8x32xf32>
    %1007 = math.exp %1006 : vector<8x32xf32>
    %cst_232 = arith.constant 1.000000e+00 : f32
    %1008 = vector.broadcast %cst_232 : f32 to vector<8x32xf32>
    %1009 = arith.addf %1008, %1007 : vector<8x32xf32>
    %1010 = arith.divf %1008, %1009 : vector<8x32xf32>
    %1011 = vector.extract_strided_slice %998 {offsets = [0, 64], sizes = [8, 32], strides = [1, 1]} : vector<8x128xf32> to vector<8x32xf32>
    %1012 = math.tanh %1011 : vector<8x32xf32>
    %1013 = vector.extract_strided_slice %998 {offsets = [0, 96], sizes = [8, 32], strides = [1, 1]} : vector<8x128xf32> to vector<8x32xf32>
    %1014 = arith.negf %1013 : vector<8x32xf32>
    %1015 = math.exp %1014 : vector<8x32xf32>
    %cst_233 = arith.constant 1.000000e+00 : f32
    %1016 = vector.broadcast %cst_233 : f32 to vector<8x32xf32>
    %1017 = arith.addf %1016, %1015 : vector<8x32xf32>
    %1018 = arith.divf %1016, %1017 : vector<8x32xf32>
    %1019 = arith.mulf %1010, %960 : vector<8x32xf32>
    %1020 = arith.mulf %1004, %1012 : vector<8x32xf32>
    %1021 = arith.addf %1019, %1020 : vector<8x32xf32>
    %1022 = math.tanh %1021 : vector<8x32xf32>
    %1023 = arith.mulf %1018, %1022 : vector<8x32xf32>
    %1024 = tpu.concatenate %1023, %990 in 1 : vector<8x32xf32>, vector<8x32xf32> -> vector<8x64xf32>
    %cst_234 = arith.constant dense<0.000000e+00> : vector<8x128xf32>
    %1025 = tpu.matmul %1024, %15, %cst_234 {dimension_numbers = #tpu.dot_dimension_numbers<[1], [0], [0], [1], [0, 0, 1, 1], [], []>} : vector<8x64xf32>, vector<64x128xf32>, vector<8x128xf32> -> vector<8x128xf32>
    %1026 = arith.addf %1025, %13 : vector<8x128xf32>
    %1027 = vector.extract_strided_slice %1026 {offsets = [0, 0], sizes = [8, 32], strides = [1, 1]} : vector<8x128xf32> to vector<8x32xf32>
    %1028 = arith.negf %1027 : vector<8x32xf32>
    %1029 = math.exp %1028 : vector<8x32xf32>
    %cst_235 = arith.constant 1.000000e+00 : f32
    %1030 = vector.broadcast %cst_235 : f32 to vector<8x32xf32>
    %1031 = arith.addf %1030, %1029 : vector<8x32xf32>
    %1032 = arith.divf %1030, %1031 : vector<8x32xf32>
    %1033 = vector.extract_strided_slice %1026 {offsets = [0, 32], sizes = [8, 32], strides = [1, 1]} : vector<8x128xf32> to vector<8x32xf32>
    %1034 = arith.negf %1033 : vector<8x32xf32>
    %1035 = math.exp %1034 : vector<8x32xf32>
    %cst_236 = arith.constant 1.000000e+00 : f32
    %1036 = vector.broadcast %cst_236 : f32 to vector<8x32xf32>
    %1037 = arith.addf %1036, %1035 : vector<8x32xf32>
    %1038 = arith.divf %1036, %1037 : vector<8x32xf32>
    %1039 = vector.extract_strided_slice %1026 {offsets = [0, 64], sizes = [8, 32], strides = [1, 1]} : vector<8x128xf32> to vector<8x32xf32>
    %1040 = math.tanh %1039 : vector<8x32xf32>
    %1041 = vector.extract_strided_slice %1026 {offsets = [0, 96], sizes = [8, 32], strides = [1, 1]} : vector<8x128xf32> to vector<8x32xf32>
    %1042 = arith.negf %1041 : vector<8x32xf32>
    %1043 = math.exp %1042 : vector<8x32xf32>
    %cst_237 = arith.constant 1.000000e+00 : f32
    %1044 = vector.broadcast %cst_237 : f32 to vector<8x32xf32>
    %1045 = arith.addf %1044, %1043 : vector<8x32xf32>
    %1046 = arith.divf %1044, %1045 : vector<8x32xf32>
    %1047 = arith.mulf %1038, %988 : vector<8x32xf32>
    %1048 = arith.mulf %1032, %1040 : vector<8x32xf32>
    %1049 = arith.addf %1047, %1048 : vector<8x32xf32>
    %1050 = math.tanh %1049 : vector<8x32xf32>
    %1051 = arith.mulf %1046, %1050 : vector<8x32xf32>
    %c16 = arith.constant 16 : index
    %c0_238 = arith.constant 0 : index
    %c0_239 = arith.constant 0 : index
    %1052 = vector.load %arg9[%c16, %c0_238, %c0_239] : memref<20x8x32xf32, #tpu.memory_space<vmem>>, vector<1x8x32xf32>
    %1053 = vector.shape_cast %1052 : vector<1x8x32xf32> to vector<8x32xf32>
    %1054 = vector.shape_cast %1051 : vector<8x32xf32> to vector<1x8x32xf32>
    tpu.vector_store %arg9[%c16, %c0_238, %c0_239], %1054 {strides = array<i32>} : memref<20x8x32xf32, #tpu.memory_space<vmem>>, vector<1x8x32xf32>,
    %c16_240 = arith.constant 16 : index
    %c0_241 = arith.constant 0 : index
    %c0_242 = arith.constant 0 : index
    %1055 = vector.load %arg2[%c16_240, %c0_241, %c0_242] : memref<19x8x32xf32, #tpu.memory_space<vmem>>, vector<1x8x32xf32>
    %1056 = vector.shape_cast %1055 : vector<1x8x32xf32> to vector<8x32xf32>
    %1057 = tpu.concatenate %1056, %1051, %1023 in 1 : vector<8x32xf32>, vector<8x32xf32>, vector<8x32xf32> -> vector<8x96xf32>
    %cst_243 = arith.constant dense<0.000000e+00> : vector<8x128xf32>
    %1058 = tpu.matmul %1057, %14, %cst_243 {dimension_numbers = #tpu.dot_dimension_numbers<[1], [0], [0], [1], [0, 0, 1, 1], [], []>} : vector<8x96xf32>, vector<96x128xf32>, vector<8x128xf32> -> vector<8x128xf32>
    %1059 = arith.addf %1058, %8 : vector<8x128xf32>
    %1060 = vector.extract_strided_slice %1059 {offsets = [0, 0], sizes = [8, 32], strides = [1, 1]} : vector<8x128xf32> to vector<8x32xf32>
    %1061 = arith.negf %1060 : vector<8x32xf32>
    %1062 = math.exp %1061 : vector<8x32xf32>
    %cst_244 = arith.constant 1.000000e+00 : f32
    %1063 = vector.broadcast %cst_244 : f32 to vector<8x32xf32>
    %1064 = arith.addf %1063, %1062 : vector<8x32xf32>
    %1065 = arith.divf %1063, %1064 : vector<8x32xf32>
    %1066 = vector.extract_strided_slice %1059 {offsets = [0, 32], sizes = [8, 32], strides = [1, 1]} : vector<8x128xf32> to vector<8x32xf32>
    %1067 = arith.negf %1066 : vector<8x32xf32>
    %1068 = math.exp %1067 : vector<8x32xf32>
    %cst_245 = arith.constant 1.000000e+00 : f32
    %1069 = vector.broadcast %cst_245 : f32 to vector<8x32xf32>
    %1070 = arith.addf %1069, %1068 : vector<8x32xf32>
    %1071 = arith.divf %1069, %1070 : vector<8x32xf32>
    %1072 = vector.extract_strided_slice %1059 {offsets = [0, 64], sizes = [8, 32], strides = [1, 1]} : vector<8x128xf32> to vector<8x32xf32>
    %1073 = math.tanh %1072 : vector<8x32xf32>
    %1074 = vector.extract_strided_slice %1059 {offsets = [0, 96], sizes = [8, 32], strides = [1, 1]} : vector<8x128xf32> to vector<8x32xf32>
    %1075 = arith.negf %1074 : vector<8x32xf32>
    %1076 = math.exp %1075 : vector<8x32xf32>
    %cst_246 = arith.constant 1.000000e+00 : f32
    %1077 = vector.broadcast %cst_246 : f32 to vector<8x32xf32>
    %1078 = arith.addf %1077, %1076 : vector<8x32xf32>
    %1079 = arith.divf %1077, %1078 : vector<8x32xf32>
    %1080 = arith.mulf %1071, %1021 : vector<8x32xf32>
    %1081 = arith.mulf %1065, %1073 : vector<8x32xf32>
    %1082 = arith.addf %1080, %1081 : vector<8x32xf32>
    %1083 = math.tanh %1082 : vector<8x32xf32>
    %1084 = arith.mulf %1079, %1083 : vector<8x32xf32>
    %1085 = tpu.concatenate %1084, %1051 in 1 : vector<8x32xf32>, vector<8x32xf32> -> vector<8x64xf32>
    %cst_247 = arith.constant dense<0.000000e+00> : vector<8x128xf32>
    %1086 = tpu.matmul %1085, %15, %cst_247 {dimension_numbers = #tpu.dot_dimension_numbers<[1], [0], [0], [1], [0, 0, 1, 1], [], []>} : vector<8x64xf32>, vector<64x128xf32>, vector<8x128xf32> -> vector<8x128xf32>
    %1087 = arith.addf %1086, %13 : vector<8x128xf32>
    %1088 = vector.extract_strided_slice %1087 {offsets = [0, 0], sizes = [8, 32], strides = [1, 1]} : vector<8x128xf32> to vector<8x32xf32>
    %1089 = arith.negf %1088 : vector<8x32xf32>
    %1090 = math.exp %1089 : vector<8x32xf32>
    %cst_248 = arith.constant 1.000000e+00 : f32
    %1091 = vector.broadcast %cst_248 : f32 to vector<8x32xf32>
    %1092 = arith.addf %1091, %1090 : vector<8x32xf32>
    %1093 = arith.divf %1091, %1092 : vector<8x32xf32>
    %1094 = vector.extract_strided_slice %1087 {offsets = [0, 32], sizes = [8, 32], strides = [1, 1]} : vector<8x128xf32> to vector<8x32xf32>
    %1095 = arith.negf %1094 : vector<8x32xf32>
    %1096 = math.exp %1095 : vector<8x32xf32>
    %cst_249 = arith.constant 1.000000e+00 : f32
    %1097 = vector.broadcast %cst_249 : f32 to vector<8x32xf32>
    %1098 = arith.addf %1097, %1096 : vector<8x32xf32>
    %1099 = arith.divf %1097, %1098 : vector<8x32xf32>
    %1100 = vector.extract_strided_slice %1087 {offsets = [0, 64], sizes = [8, 32], strides = [1, 1]} : vector<8x128xf32> to vector<8x32xf32>
    %1101 = math.tanh %1100 : vector<8x32xf32>
    %1102 = vector.extract_strided_slice %1087 {offsets = [0, 96], sizes = [8, 32], strides = [1, 1]} : vector<8x128xf32> to vector<8x32xf32>
    %1103 = arith.negf %1102 : vector<8x32xf32>
    %1104 = math.exp %1103 : vector<8x32xf32>
    %cst_250 = arith.constant 1.000000e+00 : f32
    %1105 = vector.broadcast %cst_250 : f32 to vector<8x32xf32>
    %1106 = arith.addf %1105, %1104 : vector<8x32xf32>
    %1107 = arith.divf %1105, %1106 : vector<8x32xf32>
    %1108 = arith.mulf %1099, %1049 : vector<8x32xf32>
    %1109 = arith.mulf %1093, %1101 : vector<8x32xf32>
    %1110 = arith.addf %1108, %1109 : vector<8x32xf32>
    %1111 = math.tanh %1110 : vector<8x32xf32>
    %1112 = arith.mulf %1107, %1111 : vector<8x32xf32>
    %c17 = arith.constant 17 : index
    %c0_251 = arith.constant 0 : index
    %c0_252 = arith.constant 0 : index
    %1113 = vector.load %arg9[%c17, %c0_251, %c0_252] : memref<20x8x32xf32, #tpu.memory_space<vmem>>, vector<1x8x32xf32>
    %1114 = vector.shape_cast %1113 : vector<1x8x32xf32> to vector<8x32xf32>
    %1115 = vector.shape_cast %1112 : vector<8x32xf32> to vector<1x8x32xf32>
    tpu.vector_store %arg9[%c17, %c0_251, %c0_252], %1115 {strides = array<i32>} : memref<20x8x32xf32, #tpu.memory_space<vmem>>, vector<1x8x32xf32>,
    %c17_253 = arith.constant 17 : index
    %c0_254 = arith.constant 0 : index
    %c0_255 = arith.constant 0 : index
    %1116 = vector.load %arg2[%c17_253, %c0_254, %c0_255] : memref<19x8x32xf32, #tpu.memory_space<vmem>>, vector<1x8x32xf32>
    %1117 = vector.shape_cast %1116 : vector<1x8x32xf32> to vector<8x32xf32>
    %1118 = tpu.concatenate %1117, %1112, %1084 in 1 : vector<8x32xf32>, vector<8x32xf32>, vector<8x32xf32> -> vector<8x96xf32>
    %cst_256 = arith.constant dense<0.000000e+00> : vector<8x128xf32>
    %1119 = tpu.matmul %1118, %14, %cst_256 {dimension_numbers = #tpu.dot_dimension_numbers<[1], [0], [0], [1], [0, 0, 1, 1], [], []>} : vector<8x96xf32>, vector<96x128xf32>, vector<8x128xf32> -> vector<8x128xf32>
    %1120 = arith.addf %1119, %8 : vector<8x128xf32>
    %1121 = vector.extract_strided_slice %1120 {offsets = [0, 0], sizes = [8, 32], strides = [1, 1]} : vector<8x128xf32> to vector<8x32xf32>
    %1122 = arith.negf %1121 : vector<8x32xf32>
    %1123 = math.exp %1122 : vector<8x32xf32>
    %cst_257 = arith.constant 1.000000e+00 : f32
    %1124 = vector.broadcast %cst_257 : f32 to vector<8x32xf32>
    %1125 = arith.addf %1124, %1123 : vector<8x32xf32>
    %1126 = arith.divf %1124, %1125 : vector<8x32xf32>
    %1127 = vector.extract_strided_slice %1120 {offsets = [0, 32], sizes = [8, 32], strides = [1, 1]} : vector<8x128xf32> to vector<8x32xf32>
    %1128 = arith.negf %1127 : vector<8x32xf32>
    %1129 = math.exp %1128 : vector<8x32xf32>
    %cst_258 = arith.constant 1.000000e+00 : f32
    %1130 = vector.broadcast %cst_258 : f32 to vector<8x32xf32>
    %1131 = arith.addf %1130, %1129 : vector<8x32xf32>
    %1132 = arith.divf %1130, %1131 : vector<8x32xf32>
    %1133 = vector.extract_strided_slice %1120 {offsets = [0, 64], sizes = [8, 32], strides = [1, 1]} : vector<8x128xf32> to vector<8x32xf32>
    %1134 = math.tanh %1133 : vector<8x32xf32>
    %1135 = vector.extract_strided_slice %1120 {offsets = [0, 96], sizes = [8, 32], strides = [1, 1]} : vector<8x128xf32> to vector<8x32xf32>
    %1136 = arith.negf %1135 : vector<8x32xf32>
    %1137 = math.exp %1136 : vector<8x32xf32>
    %cst_259 = arith.constant 1.000000e+00 : f32
    %1138 = vector.broadcast %cst_259 : f32 to vector<8x32xf32>
    %1139 = arith.addf %1138, %1137 : vector<8x32xf32>
    %1140 = arith.divf %1138, %1139 : vector<8x32xf32>
    %1141 = arith.mulf %1132, %1082 : vector<8x32xf32>
    %1142 = arith.mulf %1126, %1134 : vector<8x32xf32>
    %1143 = arith.addf %1141, %1142 : vector<8x32xf32>
    %1144 = math.tanh %1143 : vector<8x32xf32>
    %1145 = arith.mulf %1140, %1144 : vector<8x32xf32>
    %1146 = tpu.concatenate %1145, %1112 in 1 : vector<8x32xf32>, vector<8x32xf32> -> vector<8x64xf32>
    %cst_260 = arith.constant dense<0.000000e+00> : vector<8x128xf32>
    %1147 = tpu.matmul %1146, %15, %cst_260 {dimension_numbers = #tpu.dot_dimension_numbers<[1], [0], [0], [1], [0, 0, 1, 1], [], []>} : vector<8x64xf32>, vector<64x128xf32>, vector<8x128xf32> -> vector<8x128xf32>
    %1148 = arith.addf %1147, %13 : vector<8x128xf32>
    %1149 = vector.extract_strided_slice %1148 {offsets = [0, 0], sizes = [8, 32], strides = [1, 1]} : vector<8x128xf32> to vector<8x32xf32>
    %1150 = arith.negf %1149 : vector<8x32xf32>
    %1151 = math.exp %1150 : vector<8x32xf32>
    %cst_261 = arith.constant 1.000000e+00 : f32
    %1152 = vector.broadcast %cst_261 : f32 to vector<8x32xf32>
    %1153 = arith.addf %1152, %1151 : vector<8x32xf32>
    %1154 = arith.divf %1152, %1153 : vector<8x32xf32>
    %1155 = vector.extract_strided_slice %1148 {offsets = [0, 32], sizes = [8, 32], strides = [1, 1]} : vector<8x128xf32> to vector<8x32xf32>
    %1156 = arith.negf %1155 : vector<8x32xf32>
    %1157 = math.exp %1156 : vector<8x32xf32>
    %cst_262 = arith.constant 1.000000e+00 : f32
    %1158 = vector.broadcast %cst_262 : f32 to vector<8x32xf32>
    %1159 = arith.addf %1158, %1157 : vector<8x32xf32>
    %1160 = arith.divf %1158, %1159 : vector<8x32xf32>
    %1161 = vector.extract_strided_slice %1148 {offsets = [0, 64], sizes = [8, 32], strides = [1, 1]} : vector<8x128xf32> to vector<8x32xf32>
    %1162 = math.tanh %1161 : vector<8x32xf32>
    %1163 = vector.extract_strided_slice %1148 {offsets = [0, 96], sizes = [8, 32], strides = [1, 1]} : vector<8x128xf32> to vector<8x32xf32>
    %1164 = arith.negf %1163 : vector<8x32xf32>
    %1165 = math.exp %1164 : vector<8x32xf32>
    %cst_263 = arith.constant 1.000000e+00 : f32
    %1166 = vector.broadcast %cst_263 : f32 to vector<8x32xf32>
    %1167 = arith.addf %1166, %1165 : vector<8x32xf32>
    %1168 = arith.divf %1166, %1167 : vector<8x32xf32>
    %1169 = arith.mulf %1160, %1110 : vector<8x32xf32>
    %1170 = arith.mulf %1154, %1162 : vector<8x32xf32>
    %1171 = arith.addf %1169, %1170 : vector<8x32xf32>
    %1172 = math.tanh %1171 : vector<8x32xf32>
    %1173 = arith.mulf %1168, %1172 : vector<8x32xf32>
    %c18 = arith.constant 18 : index
    %c0_264 = arith.constant 0 : index
    %c0_265 = arith.constant 0 : index
    %1174 = vector.load %arg9[%c18, %c0_264, %c0_265] : memref<20x8x32xf32, #tpu.memory_space<vmem>>, vector<1x8x32xf32>
    %1175 = vector.shape_cast %1174 : vector<1x8x32xf32> to vector<8x32xf32>
    %1176 = vector.shape_cast %1173 : vector<8x32xf32> to vector<1x8x32xf32>
    tpu.vector_store %arg9[%c18, %c0_264, %c0_265], %1176 {strides = array<i32>} : memref<20x8x32xf32, #tpu.memory_space<vmem>>, vector<1x8x32xf32>,
    %c18_266 = arith.constant 18 : index
    %c0_267 = arith.constant 0 : index
    %c0_268 = arith.constant 0 : index
    %1177 = vector.load %arg2[%c18_266, %c0_267, %c0_268] : memref<19x8x32xf32, #tpu.memory_space<vmem>>, vector<1x8x32xf32>
    %1178 = vector.shape_cast %1177 : vector<1x8x32xf32> to vector<8x32xf32>
    %1179 = tpu.concatenate %1178, %1173, %1145 in 1 : vector<8x32xf32>, vector<8x32xf32>, vector<8x32xf32> -> vector<8x96xf32>
    %cst_269 = arith.constant dense<0.000000e+00> : vector<8x128xf32>
    %1180 = tpu.matmul %1179, %14, %cst_269 {dimension_numbers = #tpu.dot_dimension_numbers<[1], [0], [0], [1], [0, 0, 1, 1], [], []>} : vector<8x96xf32>, vector<96x128xf32>, vector<8x128xf32> -> vector<8x128xf32>
    %1181 = arith.addf %1180, %8 : vector<8x128xf32>
    %1182 = vector.extract_strided_slice %1181 {offsets = [0, 0], sizes = [8, 32], strides = [1, 1]} : vector<8x128xf32> to vector<8x32xf32>
    %1183 = arith.negf %1182 : vector<8x32xf32>
    %1184 = math.exp %1183 : vector<8x32xf32>
    %cst_270 = arith.constant 1.000000e+00 : f32
    %1185 = vector.broadcast %cst_270 : f32 to vector<8x32xf32>
    %1186 = arith.addf %1185, %1184 : vector<8x32xf32>
    %1187 = arith.divf %1185, %1186 : vector<8x32xf32>
    %1188 = vector.extract_strided_slice %1181 {offsets = [0, 32], sizes = [8, 32], strides = [1, 1]} : vector<8x128xf32> to vector<8x32xf32>
    %1189 = arith.negf %1188 : vector<8x32xf32>
    %1190 = math.exp %1189 : vector<8x32xf32>
    %cst_271 = arith.constant 1.000000e+00 : f32
    %1191 = vector.broadcast %cst_271 : f32 to vector<8x32xf32>
    %1192 = arith.addf %1191, %1190 : vector<8x32xf32>
    %1193 = arith.divf %1191, %1192 : vector<8x32xf32>
    %1194 = vector.extract_strided_slice %1181 {offsets = [0, 64], sizes = [8, 32], strides = [1, 1]} : vector<8x128xf32> to vector<8x32xf32>
    %1195 = math.tanh %1194 : vector<8x32xf32>
    %1196 = vector.extract_strided_slice %1181 {offsets = [0, 96], sizes = [8, 32], strides = [1, 1]} : vector<8x128xf32> to vector<8x32xf32>
    %1197 = arith.negf %1196 : vector<8x32xf32>
    %1198 = math.exp %1197 : vector<8x32xf32>
    %cst_272 = arith.constant 1.000000e+00 : f32
    %1199 = vector.broadcast %cst_272 : f32 to vector<8x32xf32>
    %1200 = arith.addf %1199, %1198 : vector<8x32xf32>
    %1201 = arith.divf %1199, %1200 : vector<8x32xf32>
    %1202 = arith.mulf %1193, %1143 : vector<8x32xf32>
    %1203 = arith.mulf %1187, %1195 : vector<8x32xf32>
    %1204 = arith.addf %1202, %1203 : vector<8x32xf32>
    %1205 = math.tanh %1204 : vector<8x32xf32>
    %1206 = arith.mulf %1201, %1205 : vector<8x32xf32>
    %1207 = tpu.concatenate %1206, %1173 in 1 : vector<8x32xf32>, vector<8x32xf32> -> vector<8x64xf32>
    %cst_273 = arith.constant dense<0.000000e+00> : vector<8x128xf32>
    %1208 = tpu.matmul %1207, %15, %cst_273 {dimension_numbers = #tpu.dot_dimension_numbers<[1], [0], [0], [1], [0, 0, 1, 1], [], []>} : vector<8x64xf32>, vector<64x128xf32>, vector<8x128xf32> -> vector<8x128xf32>
    %1209 = arith.addf %1208, %13 : vector<8x128xf32>
    %1210 = vector.extract_strided_slice %1209 {offsets = [0, 0], sizes = [8, 32], strides = [1, 1]} : vector<8x128xf32> to vector<8x32xf32>
    %1211 = arith.negf %1210 : vector<8x32xf32>
    %1212 = math.exp %1211 : vector<8x32xf32>
    %cst_274 = arith.constant 1.000000e+00 : f32
    %1213 = vector.broadcast %cst_274 : f32 to vector<8x32xf32>
    %1214 = arith.addf %1213, %1212 : vector<8x32xf32>
    %1215 = arith.divf %1213, %1214 : vector<8x32xf32>
    %1216 = vector.extract_strided_slice %1209 {offsets = [0, 32], sizes = [8, 32], strides = [1, 1]} : vector<8x128xf32> to vector<8x32xf32>
    %1217 = arith.negf %1216 : vector<8x32xf32>
    %1218 = math.exp %1217 : vector<8x32xf32>
    %cst_275 = arith.constant 1.000000e+00 : f32
    %1219 = vector.broadcast %cst_275 : f32 to vector<8x32xf32>
    %1220 = arith.addf %1219, %1218 : vector<8x32xf32>
    %1221 = arith.divf %1219, %1220 : vector<8x32xf32>
    %1222 = vector.extract_strided_slice %1209 {offsets = [0, 64], sizes = [8, 32], strides = [1, 1]} : vector<8x128xf32> to vector<8x32xf32>
    %1223 = math.tanh %1222 : vector<8x32xf32>
    %1224 = vector.extract_strided_slice %1209 {offsets = [0, 96], sizes = [8, 32], strides = [1, 1]} : vector<8x128xf32> to vector<8x32xf32>
    %1225 = arith.negf %1224 : vector<8x32xf32>
    %1226 = math.exp %1225 : vector<8x32xf32>
    %cst_276 = arith.constant 1.000000e+00 : f32
    %1227 = vector.broadcast %cst_276 : f32 to vector<8x32xf32>
    %1228 = arith.addf %1227, %1226 : vector<8x32xf32>
    %1229 = arith.divf %1227, %1228 : vector<8x32xf32>
    %1230 = arith.mulf %1221, %1171 : vector<8x32xf32>
    %1231 = arith.mulf %1215, %1223 : vector<8x32xf32>
    %1232 = arith.addf %1230, %1231 : vector<8x32xf32>
    %1233 = math.tanh %1232 : vector<8x32xf32>
    %1234 = arith.mulf %1229, %1233 : vector<8x32xf32>
    %c19 = arith.constant 19 : index
    %c0_277 = arith.constant 0 : index
    %c0_278 = arith.constant 0 : index
    %1235 = vector.load %arg9[%c19, %c0_277, %c0_278] : memref<20x8x32xf32, #tpu.memory_space<vmem>>, vector<1x8x32xf32>
    %1236 = vector.shape_cast %1235 : vector<1x8x32xf32> to vector<8x32xf32>
    %1237 = vector.shape_cast %1234 : vector<8x32xf32> to vector<1x8x32xf32>
    tpu.vector_store %arg9[%c19, %c0_277, %c0_278], %1237 {strides = array<i32>} : memref<20x8x32xf32, #tpu.memory_space<vmem>>, vector<1x8x32xf32>,
    return
  }
  func.func @transform_0(%arg0: i32) -> (i32, i32, i32) {
    %c0_i32 = arith.constant 0 : i32
    %c0_i32_0 = arith.constant 0 : i32
    %c0_i32_1 = arith.constant 0 : i32
    %c0_i32_2 = arith.constant 0 : i32
    return %c0_i32, %c0_i32_0, %c0_i32_1 : i32, i32, i32
  }
  func.func @transform_1(%arg0: i32) -> (i32, i32, i32) {
    %c0_i32 = arith.constant 0 : i32
    %c0_i32_0 = arith.constant 0 : i32
    %c0_i32_1 = arith.constant 0 : i32
    %c0_i32_2 = arith.constant 0 : i32
    return %c0_i32, %c0_i32_0, %c0_i32_1 : i32, i32, i32
  }
  func.func @transform_2(%arg0: i32) -> (i32, i32) {
    %c0_i32 = arith.constant 0 : i32
    %c0_i32_0 = arith.constant 0 : i32
    %c0_i32_1 = arith.constant 0 : i32
    return %c0_i32, %c0_i32_0 : i32, i32
  }
  func.func @transform_3(%arg0: i32) -> (i32, i32) {
    %c0_i32 = arith.constant 0 : i32
    %c0_i32_0 = arith.constant 0 : i32
    %c0_i32_1 = arith.constant 0 : i32
    return %c0_i32, %c0_i32_0 : i32, i32
  }
  func.func @transform_4(%arg0: i32) -> (i32, i32) {
    %c0_i32 = arith.constant 0 : i32
    %c0_i32_0 = arith.constant 0 : i32
    %c0_i32_1 = arith.constant 0 : i32
    return %c0_i32, %c0_i32_0 : i32, i32
  }
  func.func @transform_5(%arg0: i32) -> (i32, i32) {
    %c0_i32 = arith.constant 0 : i32
    %c0_i32_0 = arith.constant 0 : i32
    %c0_i32_1 = arith.constant 0 : i32
    return %c0_i32, %c0_i32_0 : i32, i32
  }
  func.func @transform_6(%arg0: i32) -> (i32, i32) {
    %c0_i32 = arith.constant 0 : i32
    %c0_i32_0 = arith.constant 0 : i32
    %c0_i32_1 = arith.constant 0 : i32
    return %c0_i32, %c0_i32_0 : i32, i32
  }
  func.func @transform_7(%arg0: i32) -> (i32, i32) {
    %c0_i32 = arith.constant 0 : i32
    %c0_i32_0 = arith.constant 0 : i32
    %c0_i32_1 = arith.constant 0 : i32
    return %c0_i32, %c0_i32_0 : i32, i32
  }
  func.func @transform_8(%arg0: i32) -> (i32, i32, i32) {
    %c0_i32 = arith.constant 0 : i32
    %c0_i32_0 = arith.constant 0 : i32
    %c0_i32_1 = arith.constant 0 : i32
    %c0_i32_2 = arith.constant 0 : i32
    return %c0_i32, %c0_i32_0, %c0_i32_1 : i32, i32, i32
  }
}

</mosaic_0001>

<llo_original>
// kernel: tpu_custom_call.1
$region0: #{tpu_custom_call.1}
  #allocation0 [shape = 'u32[]', space=smem, size = 0x4, offset = 0x4, fixed_abs, tag = 'smem constant byte address 0x4 - core index']
  #allocation1 [shape = 'u32[144,128]{1,0:T(1,128)}', space=vmem, size = 0x12000, scoped, tag = 'internal scratch']
  %s0 = inlined_call_operand.vmem [shape: f32[8,36,32], index: 0, kind: input, shape index: {}]
  %s1 = inlined_call_operand.vmem [shape: f32[19,8,32], index: 1, kind: input, shape index: {}]
  %s2 = inlined_call_operand.vmem [shape: f32[32,128], index: 2, kind: input, shape index: {}]
  %s3 = inlined_call_operand.vmem [shape: f32[96,128], index: 3, kind: input, shape index: {}]
  %s4 = inlined_call_operand.vmem [shape: f32[1,128], index: 4, kind: input, shape index: {}]
  %s5 = inlined_call_operand.vmem [shape: f32[32,128], index: 5, kind: input, shape index: {}]
  %s6 = inlined_call_operand.vmem [shape: f32[64,128], index: 6, kind: input, shape index: {}]
  %s7 = inlined_call_operand.vmem [shape: f32[1,128], index: 7, kind: input, shape index: {}]
  %s8 = inlined_call_operand.hbm [shape: f32[20,8,32], index: 8, kind: output, shape index: {}]
  %s9 = sld [smem:[#allocation0]]
  $region42: #{tpu_custom_call.1} parent=0
    _
  %s11 = ssub.s32 1, %s9
  %s12 = scalar_select 0, %s11, %s9
  $region1: #{tpu_custom_call.1} parent=0
    #allocation2 [shape = 'u8[81920]{0}', space=vmem, size = 0x14000, scoped, tag = 'output window, operand 0, single buffered']
    #allocation3 [shape = 's32[1]{0}', space=sflag, size = 0x4, scoped, tag = 'scoped memory for tpu_custom_call.1']
    %13 = vsyncpa [#allocation3], 0
    // Predicated region
    $region2: #{tpu_custom_call.1} parent=1 // pred_check
      _
    $region3: #{tpu_custom_call.1} parent=1 // pred_check_branch
      %15 = sbr.rel (0) target = $region5
    $region4: #{tpu_custom_call.1} parent=1 // pred_region
      _
    $region5: #{tpu_custom_call.1} parent=1 // pred_fallthru
      _
    // Predicated region
    $region6: #{tpu_custom_call.1} parent=1 // pred_check
      _
    $region7: #{tpu_custom_call.1} parent=1 // pred_check_branch
      %17 = sbr.rel (0) target = $region9
    $region8: #{tpu_custom_call.1} parent=1 // pred_region
      _
    $region9: #{tpu_custom_call.1} parent=1 // pred_fallthru
      _
    // Predicated region
    $region10: #{tpu_custom_call.1} parent=1 // pred_check
      _
    $region11: #{tpu_custom_call.1} parent=1 // pred_check_branch
      %19 = sbr.rel (0) target = $region13
    $region12: #{tpu_custom_call.1} parent=1 // pred_region
      _
    $region13: #{tpu_custom_call.1} parent=1 // pred_fallthru
      _
    // Predicated region
    $region14: #{tpu_custom_call.1} parent=1 // pred_check
      _
    $region15: #{tpu_custom_call.1} parent=1 // pred_check_branch
      %21 = sbr.rel (0) target = $region17
    $region16: #{tpu_custom_call.1} parent=1 // pred_region
      _
    $region17: #{tpu_custom_call.1} parent=1 // pred_fallthru
      _
    // Predicated region
    $region18: #{tpu_custom_call.1} parent=1 // pred_check
      _
    $region19: #{tpu_custom_call.1} parent=1 // pred_check_branch
      %23 = sbr.rel (0) target = $region21
    $region20: #{tpu_custom_call.1} parent=1 // pred_region
      _
    $region21: #{tpu_custom_call.1} parent=1 // pred_fallthru
      _
    // Predicated region
    $region22: #{tpu_custom_call.1} parent=1 // pred_check
      _
    $region23: #{tpu_custom_call.1} parent=1 // pred_check_branch
      %25 = sbr.rel (0) target = $region25
    $region24: #{tpu_custom_call.1} parent=1 // pred_region
      _
    $region25: #{tpu_custom_call.1} parent=1 // pred_fallthru
      _
    // Predicated region
    $region26: #{tpu_custom_call.1} parent=1 // pred_check
      _
    $region27: #{tpu_custom_call.1} parent=1 // pred_check_branch
      %27 = sbr.rel (0) target = $region29
    $region28: #{tpu_custom_call.1} parent=1 // pred_region
      _
    $region29: #{tpu_custom_call.1} parent=1 // pred_fallthru
      _
    // Predicated region
    $region30: #{tpu_custom_call.1} parent=1 // pred_check
      _
    $region31: #{tpu_custom_call.1} parent=1 // pred_check_branch
      %29 = sbr.rel (0) target = $region33
    $region32: #{tpu_custom_call.1} parent=1 // pred_region
      _
    $region33: #{tpu_custom_call.1} parent=1 // pred_fallthru
      _
    %v30 = vld [vmem:[%s0] sm:$0xff]
    %v31 = vld [vmem:[%s0 + $0x8] sm:$0xff]
    %v32 = vld [vmem:[%s0 + $0x10] sm:$0xff]
    %v33 = vld [vmem:[%s0 + $0x18] sm:$0xff]
    %v34 = vld [vmem:[%s0 + $0x20] sm:$0xf]
    %v35 = vld [vmem:[%s0 + $0x28] sm:$0xff]
    %v36 = vld [vmem:[%s0 + $0x30] sm:$0xff]
    %v37 = vld [vmem:[%s0 + $0x38] sm:$0xff]
    %v38 = vld [vmem:[%s0 + $0x40] sm:$0xff]
    %v39 = vld [vmem:[%s0 + $0x48] sm:$0xf]
    %v40 = vld [vmem:[%s0 + $0x50] sm:$0xff]
    %v41 = vld [vmem:[%s0 + $0x58] sm:$0xff]
    %v42 = vld [vmem:[%s0 + $0x60] sm:$0xff]
    %v43 = vld [vmem:[%s0 + $0x68] sm:$0xff]
    %v44 = vld [vmem:[%s0 + $0x70] sm:$0xf]
    %v45 = vld [vmem:[%s0 + $0x78] sm:$0xff]
    %v46 = vld [vmem:[%s0 + $0x80] sm:$0xff]
    %v47 = vld [vmem:[%s0 + $0x88] sm:$0xff]
    %v48 = vld [vmem:[%s0 + $0x90] sm:$0xff]
    %v49 = vld [vmem:[%s0 + $0x98] sm:$0xf]
    %v50 = vld [vmem:[%s0 + $0xa0] sm:$0xff]
    %v51 = vld [vmem:[%s0 + $0xa8] sm:$0xff]
    %v52 = vld [vmem:[%s0 + $0xb0] sm:$0xff]
    %v53 = vld [vmem:[%s0 + $0xb8] sm:$0xff]
    %v54 = vld [vmem:[%s0 + $0xc0] sm:$0xf]
    %v55 = vld [vmem:[%s0 + $0xc8] sm:$0xff]
    %v56 = vld [vmem:[%s0 + $0xd0] sm:$0xff]
    %v57 = vld [vmem:[%s0 + $0xd8] sm:$0xff]
    %v58 = vld [vmem:[%s0 + $0xe0] sm:$0xff]
    %v59 = vld [vmem:[%s0 + $0xe8] sm:$0xf]
    %v60 = vld [vmem:[%s0 + $0xf0] sm:$0xff]
    %v61 = vld [vmem:[%s0 + $0xf8] sm:$0xff]
    %v62 = vld [vmem:[%s0 + $0x100] sm:$0xff]
    %v63 = vld [vmem:[%s0 + $0x108] sm:$0xff]
    %v64 = vld [vmem:[%s0 + $0x110] sm:$0xf]
    %v65 = vld [vmem:[%s0 + $0x118] sm:$0xff]
    %v66 = vld [vmem:[%s0 + $0x120] sm:$0xff]
    %v67 = vld [vmem:[%s0 + $0x128] sm:$0xff]
    %v68 = vld [vmem:[%s0 + $0x130] sm:$0xff]
    %v69 = vld [vmem:[%s0 + $0x138] sm:$0xf]
    %vm70 = vcmask 261120
    %v71 = vsel %vm70, %v30, 0.0
    %v72 = vsel %vm70, %v31, 0.0
    %v73 = vadd.f32 %v71, %v72
    %v74 = vsel %vm70, %v32, 0.0
    %v75 = vadd.f32 %v73, %v74
    %v76 = vsel %vm70, %v33, 0.0
    %v77 = vadd.f32 %v75, %v76
    %vm78 = vcmask 257024
    %v79 = vsel %vm78, %v34, 0.0
    %v80 = vadd.f32 %v77, %v79
    %v81 = vrot.slane %v80, 4
    %v82 = vadd.f32 %v80, %v81
    %v83 = vrot.slane %v82, 2
    %v84 = vadd.f32 %v82, %v83
    %v85 = vrot.slane %v84, 1
    %v86 = vadd.f32 %v84, %v85
    %v87 = vsel %vm70, %v35, 0.0
    %v88 = vsel %vm70, %v36, 0.0
    %v89 = vadd.f32 %v87, %v88
    %v90 = vsel %vm70, %v37, 0.0
    %v91 = vadd.f32 %v89, %v90
    %v92 = vsel %vm70, %v38, 0.0
    %v93 = vadd.f32 %v91, %v92
    %v94 = vsel %vm78, %v39, 0.0
    %v95 = vadd.f32 %v93, %v94
    %v96 = vrot.slane %v95, 4
    %v97 = vadd.f32 %v95, %v96
    %v98 = vrot.slane %v97, 2
    %v99 = vadd.f32 %v97, %v98
    %v100 = vrot.slane %v99, 1
    %v101 = vadd.f32 %v99, %v100
    %v102 = vsel %vm70, %v40, 0.0
    %v103 = vsel %vm70, %v41, 0.0
    %v104 = vadd.f32 %v102, %v103
    %v105 = vsel %vm70, %v42, 0.0
    %v106 = vadd.f32 %v104, %v105
    %v107 = vsel %vm70, %v43, 0.0
    %v108 = vadd.f32 %v106, %v107
    %v109 = vsel %vm78, %v44, 0.0
    %v110 = vadd.f32 %v108, %v109
    %v111 = vrot.slane %v110, 4
    %v112 = vadd.f32 %v110, %v111
    %v113 = vrot.slane %v112, 2
    %v114 = vadd.f32 %v112, %v113
    %v115 = vrot.slane %v114, 1
    %v116 = vadd.f32 %v114, %v115
    %v117 = vsel %vm70, %v45, 0.0
    %v118 = vsel %vm70, %v46, 0.0
    %v119 = vadd.f32 %v117, %v118
    %v120 = vsel %vm70, %v47, 0.0
    %v121 = vadd.f32 %v119, %v120
    %v122 = vsel %vm70, %v48, 0.0
    %v123 = vadd.f32 %v121, %v122
    %v124 = vsel %vm78, %v49, 0.0
    %v125 = vadd.f32 %v123, %v124
    %v126 = vrot.slane %v125, 4
    %v127 = vadd.f32 %v125, %v126
    %v128 = vrot.slane %v127, 2
    %v129 = vadd.f32 %v127, %v128
    %v130 = vrot.slane %v129, 1
    %v131 = vadd.f32 %v129, %v130
    %v132 = vsel %vm70, %v50, 0.0
    %v133 = vsel %vm70, %v51, 0.0
    %v134 = vadd.f32 %v132, %v133
    %v135 = vsel %vm70, %v52, 0.0
    %v136 = vadd.f32 %v134, %v135
    %v137 = vsel %vm70, %v53, 0.0
    %v138 = vadd.f32 %v136, %v137
    %v139 = vsel %vm78, %v54, 0.0
    %v140 = vadd.f32 %v138, %v139
    %v141 = vrot.slane %v140, 4
    %v142 = vadd.f32 %v140, %v141
    %v143 = vrot.slane %v142, 2
    %v144 = vadd.f32 %v142, %v143
    %v145 = vrot.slane %v144, 1
    %v146 = vadd.f32 %v144, %v145
    %v147 = vsel %vm70, %v55, 0.0
    %v148 = vsel %vm70, %v56, 0.0
    %v149 = vadd.f32 %v147, %v148
    %v150 = vsel %vm70, %v57, 0.0
    %v151 = vadd.f32 %v149, %v150
    %v152 = vsel %vm70, %v58, 0.0
    %v153 = vadd.f32 %v151, %v152
    %v154 = vsel %vm78, %v59, 0.0
    %v155 = vadd.f32 %v153, %v154
    %v156 = vrot.slane %v155, 4
    %v157 = vadd.f32 %v155, %v156
    %v158 = vrot.slane %v157, 2
    %v159 = vadd.f32 %v157, %v158
    %v160 = vrot.slane %v159, 1
    %v161 = vadd.f32 %v159, %v160
    %v162 = vsel %vm70, %v60, 0.0
    %v163 = vsel %vm70, %v61, 0.0
    %v164 = vadd.f32 %v162, %v163
    %v165 = vsel %vm70, %v62, 0.0
    %v166 = vadd.f32 %v164, %v165
    %v167 = vsel %vm70, %v63, 0.0
    %v168 = vadd.f32 %v166, %v167
    %v169 = vsel %vm78, %v64, 0.0
    %v170 = vadd.f32 %v168, %v169
    %v171 = vrot.slane %v170, 4
    %v172 = vadd.f32 %v170, %v171
    %v173 = vrot.slane %v172, 2
    %v174 = vadd.f32 %v172, %v173
    %v175 = vrot.slane %v174, 1
    %v176 = vadd.f32 %v174, %v175
    %v177 = vsel %vm70, %v65, 0.0
    %v178 = vsel %vm70, %v66, 0.0
    %v179 = vadd.f32 %v177, %v178
    %v180 = vsel %vm70, %v67, 0.0
    %v181 = vadd.f32 %v179, %v180
    %v182 = vsel %vm70, %v68, 0.0
    %v183 = vadd.f32 %v181, %v182
    %v184 = vsel %vm78, %v69, 0.0
    %v185 = vadd.f32 %v183, %v184
    %v186 = vrot.slane %v185, 4
    %v187 = vadd.f32 %v185, %v186
    %v188 = vrot.slane %v187, 2
    %v189 = vadd.f32 %v187, %v188
    %v190 = vrot.slane %v189, 1
    %v191 = vadd.f32 %v189, %v190
    %v192 = vrcp.pop 36.0
    %v193 = vmul.f32 %v86, %v192
    %v194 = vmul.f32 %v101, %v192
    %v195 = vmul.f32 %v116, %v192
    %v196 = vmul.f32 %v131, %v192
    %v197 = vmul.f32 %v146, %v192
    %v198 = vmul.f32 %v161, %v192
    %v199 = vmul.f32 %v176, %v192
    %v200 = vmul.f32 %v191, %v192
    %v201 = vld [vmem:[%s2] sm:$0xff]
    %v202 = vld [vmem:[%s2 + $0x8] sm:$0xff]
    %v203 = vld [vmem:[%s2 + $0x10] sm:$0xff]
    %v204 = vld [vmem:[%s2 + $0x18] sm:$0xff]
    %v205 = vld [vmem:[%s4] sm:$0x1]
    %v207 = vlaneseq
    %v208 = vshrl.u32 %v207, 7
    %v209 = vsub.s32 0, %v208
    %v210 = vrot.slane %v205, %v209
    %vm220 = vcmask 1041409
    %v221 = vsel %vm220, %v194, %v193
    %vm222 = vcmask 1042434
    %v223 = vsel %vm222, %v195, %v221
    %vm224 = vcmask 1043459
    %v225 = vsel %vm224, %v196, %v223
    %vm226 = vcmask 1044484
    %v227 = vsel %vm226, %v197, %v225
    %vm228 = vcmask 1045509
    %v229 = vsel %vm228, %v198, %v227
    %vm230 = vcmask 1046534
    %v231 = vsel %vm230, %v199, %v229
    %vm232 = vcmask 1047559
    %v233 = vsel %vm232, %v200, %v231
    %v234 = vsel %vm70, %v233, 0
    %236 = vmatprep.subr.mxu0 0.0
    %237 = vmatpush1.msra.mxu0 0.0
    %238 = vmatprep.subr.mxu0 0.0
    %239 = vmatpush1.msra.mxu0 0.0
    %240 = vmatprep.subr.mxu0 0.0
    %241 = vmatpush1.msra.mxu0 0.0
    %242 = vmatprep.subr.mxu0 0.0
    %243 = vmatpush1.msra.mxu0 0.0
    %244 = vmatprep.subr.mxu0 0.0
    %245 = vmatpush1.msra.mxu0 0.0
    %246 = vmatprep.subr.mxu0 0.0
    %247 = vmatpush1.msra.mxu0 0.0
    %248 = vmatprep.subr.mxu0 0.0
    %249 = vmatpush1.msra.mxu0 0.0
    %250 = vmatprep.subr.mxu0 0.0
    %251 = vmatpush1.msra.mxu0 0.0
    %252 = vmatprep.subr.mxu0 0.0
    %253 = vmatpush1.msra.mxu0 0.0
    %254 = vmatprep.subr.mxu0 0.0
    %255 = vmatpush1.msra.mxu0 0.0
    %256 = vmatprep.subr.mxu0 0.0
    %257 = vmatpush1.msra.mxu0 0.0
    %258 = vmatprep.subr.mxu0 0.0
    %259 = vmatpush1.msra.mxu0 0.0
    %260 = vmatprep.subr.mxu0 0.0
    %261 = vmatpush1.msra.mxu0 %v204
    %262 = vmatprep.subr.mxu0 0.0
    %263 = vmatpush1.msra.mxu0 %v203
    %264 = vmatprep.subr.mxu0 0.0
    %265 = vmatpush1.msra.mxu0 %v202
    %266 = vmatprep.subr.mxu0 0.0
    %267 = vmatpush1.msra.mxu0 %v201
    %268 = vmatprep.subr.mxu0 0.0
    %269 = vmatpush2.msra.mxu0 0.0
    %270 = vmatprep.subr.mxu0 0.0
    %271 = vmatpush2.msra.mxu0 0.0
    %272 = vmatprep.subr.mxu0 0.0
    %273 = vmatpush2.msra.mxu0 0.0
    %274 = vmatprep.subr.mxu0 0.0
    %275 = vmatpush2.msra.mxu0 0.0
    %276 = vmatprep.subr.mxu0 0.0
    %277 = vmatpush2.msra.mxu0 0.0
    %278 = vmatprep.subr.mxu0 0.0
    %279 = vmatpush2.msra.mxu0 0.0
    %280 = vmatprep.subr.mxu0 0.0
    %281 = vmatpush2.msra.mxu0 0.0
    %282 = vmatprep.subr.mxu0 0.0
    %283 = vmatpush2.msra.mxu0 0.0
    %284 = vmatprep.subr.mxu0 0.0
    %285 = vmatpush2.msra.mxu0 0.0
    %286 = vmatprep.subr.mxu0 0.0
    %287 = vmatpush2.msra.mxu0 0.0
    %288 = vmatprep.subr.mxu0 0.0
    %289 = vmatpush2.msra.mxu0 0.0
    %290 = vmatprep.subr.mxu0 0.0
    %291 = vmatpush2.msra.mxu0 0.0
    %292 = vmatprep.subr.mxu0 0.0
    %293 = vmatpush2.msra.mxu0 0.0
    %294 = vmatprep.subr.mxu0 0.0
    %295 = vmatpush2.msra.mxu0 0.0
    %296 = vmatprep.subr.mxu0 0.0
    %297 = vmatpush2.msra.mxu0 0.0
    %298 = vmatprep.subr.mxu0 0.0
    %299 = vmatpush2.msra.mxu0 0.0
    %300 = vmatprep.mubr.f32.mxu0 0.0
    %301 = vmatmul.mubr.f32.gmra.mxu0 %v234
    %v302 = vpop.f32.mrf.mxu0
    %v303 = vadd.f32 %v210, %v302
    %v304 = vpop.f32.mrf.mxu0
    %305 = vdwg.mxu0
    %v306 = vld [vmem:[%s5] sm:$0xff]
    %v307 = vld [vmem:[%s5 + $0x8] sm:$0xff]
    %v308 = vld [vmem:[%s5 + $0x10] sm:$0xff]
    %v309 = vld [vmem:[%s5 + $0x18] sm:$0xff]
    %v310 = vld [vmem:[%s7] sm:$0x1]
    %v312 = vlaneseq
    %v313 = vshrl.u32 %v312, 7
    %v314 = vsub.s32 0, %v313
    %v315 = vrot.slane %v310, %v314
    %317 = vmatprep.subr.mxu0 0.0
    %318 = vmatpush1.msra.mxu0 0.0
    %319 = vmatprep.subr.mxu0 0.0
    %320 = vmatpush1.msra.mxu0 0.0
    %321 = vmatprep.subr.mxu0 0.0
    %322 = vmatpush1.msra.mxu0 0.0
    %323 = vmatprep.subr.mxu0 0.0
    %324 = vmatpush1.msra.mxu0 0.0
    %325 = vmatprep.subr.mxu0 0.0
    %326 = vmatpush1.msra.mxu0 0.0
    %327 = vmatprep.subr.mxu0 0.0
    %328 = vmatpush1.msra.mxu0 0.0
    %329 = vmatprep.subr.mxu0 0.0
    %330 = vmatpush1.msra.mxu0 0.0
    %331 = vmatprep.subr.mxu0 0.0
    %332 = vmatpush1.msra.mxu0 0.0
    %333 = vmatprep.subr.mxu0 0.0
    %334 = vmatpush1.msra.mxu0 0.0
    %335 = vmatprep.subr.mxu0 0.0
    %336 = vmatpush1.msra.mxu0 0.0
    %337 = vmatprep.subr.mxu0 0.0
    %338 = vmatpush1.msra.mxu0 0.0
    %339 = vmatprep.subr.mxu0 0.0
    %340 = vmatpush1.msra.mxu0 0.0
    %341 = vmatprep.subr.mxu0 0.0
    %342 = vmatpush1.msra.mxu0 %v309
    %343 = vmatprep.subr.mxu0 0.0
    %344 = vmatpush1.msra.mxu0 %v308
    %345 = vmatprep.subr.mxu0 0.0
    %346 = vmatpush1.msra.mxu0 %v307
    %347 = vmatprep.subr.mxu0 0.0
    %348 = vmatpush1.msra.mxu0 %v306
    %349 = vmatprep.subr.mxu0 0.0
    %350 = vmatpush2.msra.mxu0 0.0
    %351 = vmatprep.subr.mxu0 0.0
    %352 = vmatpush2.msra.mxu0 0.0
    %353 = vmatprep.subr.mxu0 0.0
    %354 = vmatpush2.msra.mxu0 0.0
    %355 = vmatprep.subr.mxu0 0.0
    %356 = vmatpush2.msra.mxu0 0.0
    %357 = vmatprep.subr.mxu0 0.0
    %358 = vmatpush2.msra.mxu0 0.0
    %359 = vmatprep.subr.mxu0 0.0
    %360 = vmatpush2.msra.mxu0 0.0
    %361 = vmatprep.subr.mxu0 0.0
    %362 = vmatpush2.msra.mxu0 0.0
    %363 = vmatprep.subr.mxu0 0.0
    %364 = vmatpush2.msra.mxu0 0.0
    %365 = vmatprep.subr.mxu0 0.0
    %366 = vmatpush2.msra.mxu0 0.0
    %367 = vmatprep.subr.mxu0 0.0
    %368 = vmatpush2.msra.mxu0 0.0
    %369 = vmatprep.subr.mxu0 0.0
    %370 = vmatpush2.msra.mxu0 0.0
    %371 = vmatprep.subr.mxu0 0.0
    %372 = vmatpush2.msra.mxu0 0.0
    %373 = vmatprep.subr.mxu0 0.0
    %374 = vmatpush2.msra.mxu0 0.0
    %375 = vmatprep.subr.mxu0 0.0
    %376 = vmatpush2.msra.mxu0 0.0
    %377 = vmatprep.subr.mxu0 0.0
    %378 = vmatpush2.msra.mxu0 0.0
    %379 = vmatprep.subr.mxu0 0.0
    %380 = vmatpush2.msra.mxu0 0.0
    %381 = vmatprep.mubr.f32.mxu0 0.0
    %382 = vmatmul.mubr.f32.gmra.mxu0 %v234
    %v383 = vpop.f32.mrf.mxu0
    %v384 = vadd.f32 %v315, %v383
    %v385 = vpop.f32.mrf.mxu0
    %386 = vdwg.mxu0
    %v387 = vld [vmem:[%s3] sm:$0xff]
    %v388 = vld [vmem:[%s3 + $0x8] sm:$0xff]
    %v389 = vld [vmem:[%s3 + $0x10] sm:$0xff]
    %v390 = vld [vmem:[%s3 + $0x18] sm:$0xff]
    %v391 = vld [vmem:[%s3 + $0x20] sm:$0xff]
    %v392 = vld [vmem:[%s3 + $0x28] sm:$0xff]
    %v393 = vld [vmem:[%s3 + $0x30] sm:$0xff]
    %v394 = vld [vmem:[%s3 + $0x38] sm:$0xff]
    %v395 = vld [vmem:[%s3 + $0x40] sm:$0xff]
    %v396 = vld [vmem:[%s3 + $0x48] sm:$0xff]
    %v397 = vld [vmem:[%s3 + $0x50] sm:$0xff]
    %v398 = vld [vmem:[%s3 + $0x58] sm:$0xff]
    %v399 = vld [vmem:[%s6] sm:$0xff]
    %v400 = vld [vmem:[%s6 + $0x8] sm:$0xff]
    %v401 = vld [vmem:[%s6 + $0x10] sm:$0xff]
    %v402 = vld [vmem:[%s6 + $0x18] sm:$0xff]
    %v403 = vld [vmem:[%s6 + $0x20] sm:$0xff]
    %v404 = vld [vmem:[%s6 + $0x28] sm:$0xff]
    %v405 = vld [vmem:[%s6 + $0x30] sm:$0xff]
    %v406 = vld [vmem:[%s6 + $0x38] sm:$0xff]
    %v408 = vsel %vm70, %v233, 0.0
    %vm409 = vcmask 523264
    %v410 = vsel %vm409, %v408, 0.0
    %vm411 = vcmask 785408
    %v413 = vsel %vm411, %v410, 0
    %415 = vmatprep.subr.mxu0 0.0
    %416 = vmatpush1.msra.mxu0 0.0
    %417 = vmatprep.subr.mxu0 0.0
    %418 = vmatpush1.msra.mxu0 0.0
    %419 = vmatprep.subr.mxu0 0.0
    %420 = vmatpush1.msra.mxu0 0.0
    %421 = vmatprep.subr.mxu0 0.0
    %422 = vmatpush1.msra.mxu0 0.0
    %423 = vmatprep.subr.mxu0 0.0
    %424 = vmatpush1.msra.mxu0 %v398
    %425 = vmatprep.subr.mxu0 0.0
    %426 = vmatpush1.msra.mxu0 %v397
    %427 = vmatprep.subr.mxu0 0.0
    %428 = vmatpush1.msra.mxu0 %v396
    %429 = vmatprep.subr.mxu0 0.0
    %430 = vmatpush1.msra.mxu0 %v395
    %431 = vmatprep.subr.mxu0 0.0
    %432 = vmatpush1.msra.mxu0 %v394
    %433 = vmatprep.subr.mxu0 0.0
    %434 = vmatpush1.msra.mxu0 %v393
    %435 = vmatprep.subr.mxu0 0.0
    %436 = vmatpush1.msra.mxu0 %v392
    %437 = vmatprep.subr.mxu0 0.0
    %438 = vmatpush1.msra.mxu0 %v391
    %439 = vmatprep.subr.mxu0 0.0
    %440 = vmatpush1.msra.mxu0 %v390
    %441 = vmatprep.subr.mxu0 0.0
    %442 = vmatpush1.msra.mxu0 %v389
    %443 = vmatprep.subr.mxu0 0.0
    %444 = vmatpush1.msra.mxu0 %v388
    %445 = vmatprep.subr.mxu0 0.0
    %446 = vmatpush1.msra.mxu0 %v387
    %447 = vmatprep.subr.mxu0 0.0
    %448 = vmatpush2.msra.mxu0 0.0
    %449 = vmatprep.subr.mxu0 0.0
    %450 = vmatpush2.msra.mxu0 0.0
    %451 = vmatprep.subr.mxu0 0.0
    %452 = vmatpush2.msra.mxu0 0.0
    %453 = vmatprep.subr.mxu0 0.0
    %454 = vmatpush2.msra.mxu0 0.0
    %455 = vmatprep.subr.mxu0 0.0
    %456 = vmatpush2.msra.mxu0 0.0
    %457 = vmatprep.subr.mxu0 0.0
    %458 = vmatpush2.msra.mxu0 0.0
    %459 = vmatprep.subr.mxu0 0.0
    %460 = vmatpush2.msra.mxu0 0.0
    %461 = vmatprep.subr.mxu0 0.0
    %462 = vmatpush2.msra.mxu0 0.0
    %463 = vmatprep.subr.mxu0 0.0
    %464 = vmatpush2.msra.mxu0 0.0
    %465 = vmatprep.subr.mxu0 0.0
    %466 = vmatpush2.msra.mxu0 0.0
    %467 = vmatprep.subr.mxu0 0.0
    %468 = vmatpush2.msra.mxu0 0.0
    %469 = vmatprep.subr.mxu0 0.0
    %470 = vmatpush2.msra.mxu0 0.0
    %471 = vmatprep.subr.mxu0 0.0
    %472 = vmatpush2.msra.mxu0 0.0
    %473 = vmatprep.subr.mxu0 0.0
    %474 = vmatpush2.msra.mxu0 0.0
    %475 = vmatprep.subr.mxu0 0.0
    %476 = vmatpush2.msra.mxu0 0.0
    %477 = vmatprep.subr.mxu0 0.0
    %478 = vmatpush2.msra.mxu0 0.0
    %479 = vmatprep.mubr.f32.mxu0 0.0
    %480 = vmatmul.mubr.f32.gmra.mxu0 %v413
    %v481 = vpop.f32.mrf.mxu0
    %v482 = vadd.f32 %v303, %v481
    %v483 = vpop.f32.mrf.mxu0
    %484 = vdwg.mxu0
    %v485 = vxor.u32 %v482, 2147483648
    %v486 = vmul.f32 %v485, 1.442695
    %v487 = vpow.pop %v486
    %v488 = vadd.f32 %v487, 1.0
    %v489 = vrcp.pop %v488
    %v490 = vmul.f32 1.0, %v489
    %v491 = vtanh.pop %v482
    %v492 = vmul.f32 %v490, 0.0
    %494 = vrot.lane.b32.xlu0 %v491, 64
    %v495 = vpop.permute.xlu0 %494
    %v497 = vmul.f32 %v490, %v495
    %499 = vrot.lane.b32.xlu0 %v497, 32
    %v500 = vpop.permute.xlu0 %499
    %v502 = vadd.f32 %v492, %v500
    %v503 = vtanh.pop %v502
    %505 = vrot.lane.b32.xlu0 %v503, 64
    %v506 = vpop.permute.xlu0 %505
    %v508 = vmul.f32 %v490, %v506
    %510 = vrot.lane.b32.xlu0 %v508, 32
    %v511 = vpop.permute.xlu0 %510
    %v513 = vsel %vm70, %v511, 0.0
    %v515 = vsel %vm409, %v513, 0
    %517 = vmatprep.subr.mxu0 0.0
    %518 = vmatpush1.msra.mxu0 0.0
    %519 = vmatprep.subr.mxu0 0.0
    %520 = vmatpush1.msra.mxu0 0.0
    %521 = vmatprep.subr.mxu0 0.0
    %522 = vmatpush1.msra.mxu0 0.0
    %523 = vmatprep.subr.mxu0 0.0
    %524 = vmatpush1.msra.mxu0 0.0
    %525 = vmatprep.subr.mxu0 0.0
    %526 = vmatpush1.msra.mxu0 0.0
    %527 = vmatprep.subr.mxu0 0.0
    %528 = vmatpush1.msra.mxu0 0.0
    %529 = vmatprep.subr.mxu0 0.0
    %530 = vmatpush1.msra.mxu0 0.0
    %531 = vmatprep.subr.mxu0 0.0
    %532 = vmatpush1.msra.mxu0 0.0
    %533 = vmatprep.subr.mxu0 0.0
    %534 = vmatpush1.msra.mxu0 %v406
    %535 = vmatprep.subr.mxu0 0.0
    %536 = vmatpush1.msra.mxu0 %v405
    %537 = vmatprep.subr.mxu0 0.0
    %538 = vmatpush1.msra.mxu0 %v404
    %539 = vmatprep.subr.mxu0 0.0
    %540 = vmatpush1.msra.mxu0 %v403
    %541 = vmatprep.subr.mxu0 0.0
    %542 = vmatpush1.msra.mxu0 %v402
    %543 = vmatprep.subr.mxu0 0.0
    %544 = vmatpush1.msra.mxu0 %v401
    %545 = vmatprep.subr.mxu0 0.0
    %546 = vmatpush1.msra.mxu0 %v400
    %547 = vmatprep.subr.mxu0 0.0
    %548 = vmatpush1.msra.mxu0 %v399
    %549 = vmatprep.subr.mxu0 0.0
    %550 = vmatpush2.msra.mxu0 0.0
    %551 = vmatprep.subr.mxu0 0.0
    %552 = vmatpush2.msra.mxu0 0.0
    %553 = vmatprep.subr.mxu0 0.0
    %554 = vmatpush2.msra.mxu0 0.0
    %555 = vmatprep.subr.mxu0 0.0
    %556 = vmatpush2.msra.mxu0 0.0
    %557 = vmatprep.subr.mxu0 0.0
    %558 = vmatpush2.msra.mxu0 0.0
    %559 = vmatprep.subr.mxu0 0.0
    %560 = vmatpush2.msra.mxu0 0.0
    %561 = vmatprep.subr.mxu0 0.0
    %562 = vmatpush2.msra.mxu0 0.0
    %563 = vmatprep.subr.mxu0 0.0
    %564 = vmatpush2.msra.mxu0 0.0
    %565 = vmatprep.subr.mxu0 0.0
    %566 = vmatpush2.msra.mxu0 0.0
    %567 = vmatprep.subr.mxu0 0.0
    %568 = vmatpush2.msra.mxu0 0.0
    %569 = vmatprep.subr.mxu0 0.0
    %570 = vmatpush2.msra.mxu0 0.0
    %571 = vmatprep.subr.mxu0 0.0
    %572 = vmatpush2.msra.mxu0 0.0
    %573 = vmatprep.subr.mxu0 0.0
    %574 = vmatpush2.msra.mxu0 0.0
    %575 = vmatprep.subr.mxu0 0.0
    %576 = vmatpush2.msra.mxu0 0.0
    %577 = vmatprep.subr.mxu0 0.0
    %578 = vmatpush2.msra.mxu0 0.0
    %579 = vmatprep.subr.mxu0 0.0
    %580 = vmatpush2.msra.mxu0 0.0
    %581 = vmatprep.mubr.f32.mxu0 0.0
    %582 = vmatmul.mubr.f32.gmra.mxu0 %v515
    %v583 = vpop.f32.mrf.mxu0
    %v584 = vadd.f32 %v384, %v583
    %v585 = vpop.f32.mrf.mxu0
    %586 = vdwg.mxu0
    %v587 = vxor.u32 %v584, 2147483648
    %v588 = vmul.f32 %v587, 1.442695
    %v589 = vpow.pop %v588
    %v590 = vadd.f32 %v589, 1.0
    %v591 = vrcp.pop %v590
    %v592 = vmul.f32 1.0, %v591
    %v593 = vtanh.pop %v584
    %v594 = vmul.f32 %v592, 0.0
    %596 = vrot.lane.b32.xlu0 %v593, 64
    %v597 = vpop.permute.xlu0 %596
    %v599 = vmul.f32 %v592, %v597
    %601 = vrot.lane.b32.xlu0 %v599, 32
    %v602 = vpop.permute.xlu0 %601
    %v604 = vadd.f32 %v594, %v602
    %v605 = vtanh.pop %v604
    %607 = vrot.lane.b32.xlu0 %v605, 64
    %v608 = vpop.permute.xlu0 %607
    %v610 = vmul.f32 %v592, %v608
    %612 = vrot.lane.b32.xlu0 %v610, 32
    %v613 = vpop.permute.xlu0 %612
    %615 = vst.msk [vmem:[#allocation2] sm:$0xff] %vm70, %v613
    %v616 = vld [vmem:[%s1] sm:$0xff]
    %617 = vrot.lane.b32.xlu0 %v610, 64
    %v618 = vpop.permute.xlu0 %617
    %620 = vrot.lane.b32.xlu0 %v508, 96
    %v621 = vpop.permute.xlu0 %620
    %v623 = vsel %vm70, %v616, %v618
    %v624 = vsel %vm409, %v623, %v621
    %v626 = vsel %vm411, %v624, 0
    %628 = vmatprep.subr.mxu0 0.0
    %629 = vmatpush1.msra.mxu0 0.0
    %630 = vmatprep.subr.mxu0 0.0
    %631 = vmatpush1.msra.mxu0 0.0
    %632 = vmatprep.subr.mxu0 0.0
    %633 = vmatpush1.msra.mxu0 0.0
    %634 = vmatprep.subr.mxu0 0.0
    %635 = vmatpush1.msra.mxu0 0.0
    %636 = vmatprep.subr.mxu0 0.0
    %637 = vmatpush1.msra.mxu0 %v398
    %638 = vmatprep.subr.mxu0 0.0
    %639 = vmatpush1.msra.mxu0 %v397
    %640 = vmatprep.subr.mxu0 0.0
    %641 = vmatpush1.msra.mxu0 %v396
    %642 = vmatprep.subr.mxu0 0.0
    %643 = vmatpush1.msra.mxu0 %v395
    %644 = vmatprep.subr.mxu0 0.0
    %645 = vmatpush1.msra.mxu0 %v394
    %646 = vmatprep.subr.mxu0 0.0
    %647 = vmatpush1.msra.mxu0 %v393
    %648 = vmatprep.subr.mxu0 0.0
    %649 = vmatpush1.msra.mxu0 %v392
    %650 = vmatprep.subr.mxu0 0.0
    %651 = vmatpush1.msra.mxu0 %v391
    %652 = vmatprep.subr.mxu0 0.0
    %653 = vmatpush1.msra.mxu0 %v390
    %654 = vmatprep.subr.mxu0 0.0
    %655 = vmatpush1.msra.mxu0 %v389
    %656 = vmatprep.subr.mxu0 0.0
    %657 = vmatpush1.msra.mxu0 %v388
    %658 = vmatprep.subr.mxu0 0.0
    %659 = vmatpush1.msra.mxu0 %v387
    %660 = vmatprep.subr.mxu0 0.0
    %661 = vmatpush2.msra.mxu0 0.0
    %662 = vmatprep.subr.mxu0 0.0
    %663 = vmatpush2.msra.mxu0 0.0
    %664 = vmatprep.subr.mxu0 0.0
    %665 = vmatpush2.msra.mxu0 0.0
    %666 = vmatprep.subr.mxu0 0.0
    %667 = vmatpush2.msra.mxu0 0.0
    %668 = vmatprep.subr.mxu0 0.0
    %669 = vmatpush2.msra.mxu0 0.0
    %670 = vmatprep.subr.mxu0 0.0
    %671 = vmatpush2.msra.mxu0 0.0
    %672 = vmatprep.subr.mxu0 0.0
    %673 = vmatpush2.msra.mxu0 0.0
    %674 = vmatprep.subr.mxu0 0.0
    %675 = vmatpush2.msra.mxu0 0.0
    %676 = vmatprep.subr.mxu0 0.0
    %677 = vmatpush2.msra.mxu0 0.0
    %678 = vmatprep.subr.mxu0 0.0
    %679 = vmatpush2.msra.mxu0 0.0
    %680 = vmatprep.subr.mxu0 0.0
    %681 = vmatpush2.msra.mxu0 0.0
    %682 = vmatprep.subr.mxu0 0.0
    %683 = vmatpush2.msra.mxu0 0.0
    %684 = vmatprep.subr.mxu0 0.0
    %685 = vmatpush2.msra.mxu0 0.0
    %686 = vmatprep.subr.mxu0 0.0
    %687 = vmatpush2.msra.mxu0 0.0
    %688 = vmatprep.subr.mxu0 0.0
    %689 = vmatpush2.msra.mxu0 0.0
    %690 = vmatprep.subr.mxu0 0.0
    %691 = vmatpush2.msra.mxu0 0.0
    %692 = vmatprep.mubr.f32.mxu0 0.0
    %693 = vmatmul.mubr.f32.gmra.mxu0 %v626
    %v694 = vpop.f32.mrf.mxu0
    %v695 = vadd.f32 %v303, %v694
    %v696 = vpop.f32.mrf.mxu0
    %697 = vdwg.mxu0
    %v698 = vxor.u32 %v695, 2147483648
    %v699 = vmul.f32 %v698, 1.442695
    %v700 = vpow.pop %v699
    %v701 = vadd.f32 %v700, 1.0
    %v702 = vrcp.pop %v701
    %v703 = vmul.f32 1.0, %v702
    %v704 = vtanh.pop %v695
    %v705 = vmul.f32 %v703, %v502
    %707 = vrot.lane.b32.xlu0 %v704, 64
    %v708 = vpop.permute.xlu0 %707
    %v710 = vmul.f32 %v703, %v708
    %712 = vrot.lane.b32.xlu0 %v710, 32
    %v713 = vpop.permute.xlu0 %712
    %v715 = vadd.f32 %v705, %v713
    %v716 = vtanh.pop %v715
    %718 = vrot.lane.b32.xlu0 %v716, 64
    %v719 = vpop.permute.xlu0 %718
    %v721 = vmul.f32 %v703, %v719
    %723 = vrot.lane.b32.xlu0 %v721, 32
    %v724 = vpop.permute.xlu0 %723
    %v726 = vsel %vm70, %v724, %v618
    %v728 = vsel %vm409, %v726, 0
    %730 = vmatprep.subr.mxu0 0.0
    %731 = vmatpush1.msra.mxu0 0.0
    %732 = vmatprep.subr.mxu0 0.0
    %733 = vmatpush1.msra.mxu0 0.0
    %734 = vmatprep.subr.mxu0 0.0
    %735 = vmatpush1.msra.mxu0 0.0
    %736 = vmatprep.subr.mxu0 0.0
    %737 = vmatpush1.msra.mxu0 0.0
    %738 = vmatprep.subr.mxu0 0.0
    %739 = vmatpush1.msra.mxu0 0.0
    %740 = vmatprep.subr.mxu0 0.0
    %741 = vmatpush1.msra.mxu0 0.0
    %742 = vmatprep.subr.mxu0 0.0
    %743 = vmatpush1.msra.mxu0 0.0
    %744 = vmatprep.subr.mxu0 0.0
    %745 = vmatpush1.msra.mxu0 0.0
    %746 = vmatprep.subr.mxu0 0.0
    %747 = vmatpush1.msra.mxu0 %v406
    %748 = vmatprep.subr.mxu0 0.0
    %749 = vmatpush1.msra.mxu0 %v405
    %750 = vmatprep.subr.mxu0 0.0
    %751 = vmatpush1.msra.mxu0 %v404
    %752 = vmatprep.subr.mxu0 0.0
    %753 = vmatpush1.msra.mxu0 %v403
    %754 = vmatprep.subr.mxu0 0.0
    %755 = vmatpush1.msra.mxu0 %v402
    %756 = vmatprep.subr.mxu0 0.0
    %757 = vmatpush1.msra.mxu0 %v401
    %758 = vmatprep.subr.mxu0 0.0
    %759 = vmatpush1.msra.mxu0 %v400
    %760 = vmatprep.subr.mxu0 0.0
    %761 = vmatpush1.msra.mxu0 %v399
    %762 = vmatprep.subr.mxu0 0.0
    %763 = vmatpush2.msra.mxu0 0.0
    %764 = vmatprep.subr.mxu0 0.0
    %765 = vmatpush2.msra.mxu0 0.0
    %766 = vmatprep.subr.mxu0 0.0
    %767 = vmatpush2.msra.mxu0 0.0
    %768 = vmatprep.subr.mxu0 0.0
    %769 = vmatpush2.msra.mxu0 0.0
    %770 = vmatprep.subr.mxu0 0.0
    %771 = vmatpush2.msra.mxu0 0.0
    %772 = vmatprep.subr.mxu0 0.0
    %773 = vmatpush2.msra.mxu0 0.0
    %774 = vmatprep.subr.mxu0 0.0
    %775 = vmatpush2.msra.mxu0 0.0
    %776 = vmatprep.subr.mxu0 0.0
    %777 = vmatpush2.msra.mxu0 0.0
    %778 = vmatprep.subr.mxu0 0.0
    %779 = vmatpush2.msra.mxu0 0.0
    %780 = vmatprep.subr.mxu0 0.0
    %781 = vmatpush2.msra.mxu0 0.0
    %782 = vmatprep.subr.mxu0 0.0
    %783 = vmatpush2.msra.mxu0 0.0
    %784 = vmatprep.subr.mxu0 0.0
    %785 = vmatpush2.msra.mxu0 0.0
    %786 = vmatprep.subr.mxu0 0.0
    %787 = vmatpush2.msra.mxu0 0.0
    %788 = vmatprep.subr.mxu0 0.0
    %789 = vmatpush2.msra.mxu0 0.0
    %790 = vmatprep.subr.mxu0 0.0
    %791 = vmatpush2.msra.mxu0 0.0
    %792 = vmatprep.subr.mxu0 0.0
    %793 = vmatpush2.msra.mxu0 0.0
    %794 = vmatprep.mubr.f32.mxu0 0.0
    %795 = vmatmul.mubr.f32.gmra.mxu0 %v728
    %v796 = vpop.f32.mrf.mxu0
    %v797 = vadd.f32 %v384, %v796
    %v798 = vpop.f32.mrf.mxu0
    %799 = vdwg.mxu0
    %v800 = vxor.u32 %v797, 2147483648
    %v801 = vmul.f32 %v800, 1.442695
    %v802 = vpow.pop %v801
    %v803 = vadd.f32 %v802, 1.0
    %v804 = vrcp.pop %v803
    %v805 = vmul.f32 1.0, %v804
    %v806 = vtanh.pop %v797
    %v807 = vmul.f32 %v805, %v604
    %809 = vrot.lane.b32.xlu0 %v806, 64
    %v810 = vpop.permute.xlu0 %809
    %v812 = vmul.f32 %v805, %v810
    %814 = vrot.lane.b32.xlu0 %v812, 32
    %v815 = vpop.permute.xlu0 %814
    %v817 = vadd.f32 %v807, %v815
    %v818 = vtanh.pop %v817
    %820 = vrot.lane.b32.xlu0 %v818, 64
    %v821 = vpop.permute.xlu0 %820
    %v823 = vmul.f32 %v805, %v821
    %825 = vrot.lane.b32.xlu0 %v823, 32
    %v826 = vpop.permute.xlu0 %825
    %s828 = scalar_lea.vmem [#allocation2], 8
    %829 = vst.msk [vmem:[%s828] sm:$0xff] %vm70, %v826
    %s830 = scalar_lea.vmem %s1, 8
    %v831 = vld [vmem:[%s830] sm:$0xff]
    %832 = vrot.lane.b32.xlu0 %v823, 64
    %v833 = vpop.permute.xlu0 %832
    %835 = vrot.lane.b32.xlu0 %v721, 96
    %v836 = vpop.permute.xlu0 %835
    %v838 = vsel %vm70, %v831, %v833
    %v839 = vsel %vm409, %v838, %v836
    %v841 = vsel %vm411, %v839, 0
    %843 = vmatprep.subr.mxu0 0.0
    %844 = vmatpush1.msra.mxu0 0.0
    %845 = vmatprep.subr.mxu0 0.0
    %846 = vmatpush1.msra.mxu0 0.0
    %847 = vmatprep.subr.mxu0 0.0
    %848 = vmatpush1.msra.mxu0 0.0
    %849 = vmatprep.subr.mxu0 0.0
    %850 = vmatpush1.msra.mxu0 0.0
    %851 = vmatprep.subr.mxu0 0.0
    %852 = vmatpush1.msra.mxu0 %v398
    %853 = vmatprep.subr.mxu0 0.0
    %854 = vmatpush1.msra.mxu0 %v397
    %855 = vmatprep.subr.mxu0 0.0
    %856 = vmatpush1.msra.mxu0 %v396
    %857 = vmatprep.subr.mxu0 0.0
    %858 = vmatpush1.msra.mxu0 %v395
    %859 = vmatprep.subr.mxu0 0.0
    %860 = vmatpush1.msra.mxu0 %v394
    %861 = vmatprep.subr.mxu0 0.0
    %862 = vmatpush1.msra.mxu0 %v393
    %863 = vmatprep.subr.mxu0 0.0
    %864 = vmatpush1.msra.mxu0 %v392
    %865 = vmatprep.subr.mxu0 0.0
    %866 = vmatpush1.msra.mxu0 %v391
    %867 = vmatprep.subr.mxu0 0.0
    %868 = vmatpush1.msra.mxu0 %v390
    %869 = vmatprep.subr.mxu0 0.0
    %870 = vmatpush1.msra.mxu0 %v389
    %871 = vmatprep.subr.mxu0 0.0
    %872 = vmatpush1.msra.mxu0 %v388
    %873 = vmatprep.subr.mxu0 0.0
    %874 = vmatpush1.msra.mxu0 %v387
    %875 = vmatprep.subr.mxu0 0.0
    %876 = vmatpush2.msra.mxu0 0.0
    %877 = vmatprep.subr.mxu0 0.0
    %878 = vmatpush2.msra.mxu0 0.0
    %879 = vmatprep.subr.mxu0 0.0
    %880 = vmatpush2.msra.mxu0 0.0
    %881 = vmatprep.subr.mxu0 0.0
    %882 = vmatpush2.msra.mxu0 0.0
    %883 = vmatprep.subr.mxu0 0.0
    %884 = vmatpush2.msra.mxu0 0.0
    %885 = vmatprep.subr.mxu0 0.0
    %886 = vmatpush2.msra.mxu0 0.0
    %887 = vmatprep.subr.mxu0 0.0
    %888 = vmatpush2.msra.mxu0 0.0
    %889 = vmatprep.subr.mxu0 0.0
    %890 = vmatpush2.msra.mxu0 0.0
    %891 = vmatprep.subr.mxu0 0.0
    %892 = vmatpush2.msra.mxu0 0.0
    %893 = vmatprep.subr.mxu0 0.0
    %894 = vmatpush2.msra.mxu0 0.0
    %895 = vmatprep.subr.mxu0 0.0
    %896 = vmatpush2.msra.mxu0 0.0
    %897 = vmatprep.subr.mxu0 0.0
    %898 = vmatpush2.msra.mxu0 0.0
    %899 = vmatprep.subr.mxu0 0.0
    %900 = vmatpush2.msra.mxu0 0.0
    %901 = vmatprep.subr.mxu0 0.0
    %902 = vmatpush2.msra.mxu0 0.0
    %903 = vmatprep.subr.mxu0 0.0
    %904 = vmatpush2.msra.mxu0 0.0
    %905 = vmatprep.subr.mxu0 0.0
    %906 = vmatpush2.msra.mxu0 0.0
    %907 = vmatprep.mubr.f32.mxu0 0.0
    %908 = vmatmul.mubr.f32.gmra.mxu0 %v841
    %v909 = vpop.f32.mrf.mxu0
    %v910 = vadd.f32 %v303, %v909
    %v911 = vpop.f32.mrf.mxu0
    %912 = vdwg.mxu0
    %v913 = vxor.u32 %v910, 2147483648
    %v914 = vmul.f32 %v913, 1.442695
    %v915 = vpow.pop %v914
    %v916 = vadd.f32 %v915, 1.0
    %v917 = vrcp.pop %v916
    %v918 = vmul.f32 1.0, %v917
    %v919 = vtanh.pop %v910
    %v920 = vmul.f32 %v918, %v715
    %922 = vrot.lane.b32.xlu0 %v919, 64
    %v923 = vpop.permute.xlu0 %922
    %v925 = vmul.f32 %v918, %v923
    %927 = vrot.lane.b32.xlu0 %v925, 32
    %v928 = vpop.permute.xlu0 %927
    %v930 = vadd.f32 %v920, %v928
    %v931 = vtanh.pop %v930
    %933 = vrot.lane.b32.xlu0 %v931, 64
    %v934 = vpop.permute.xlu0 %933
    %v936 = vmul.f32 %v918, %v934
    %938 = vrot.lane.b32.xlu0 %v936, 32
    %v939 = vpop.permute.xlu0 %938
    %v941 = vsel %vm70, %v939, %v833
    %v943 = vsel %vm409, %v941, 0
    %945 = vmatprep.subr.mxu0 0.0
    %946 = vmatpush1.msra.mxu0 0.0
    %947 = vmatprep.subr.mxu0 0.0
    %948 = vmatpush1.msra.mxu0 0.0
    %949 = vmatprep.subr.mxu0 0.0
    %950 = vmatpush1.msra.mxu0 0.0
    %951 = vmatprep.subr.mxu0 0.0
    %952 = vmatpush1.msra.mxu0 0.0
    %953 = vmatprep.subr.mxu0 0.0
    %954 = vmatpush1.msra.mxu0 0.0
    %955 = vmatprep.subr.mxu0 0.0
    %956 = vmatpush1.msra.mxu0 0.0
    %957 = vmatprep.subr.mxu0 0.0
    %958 = vmatpush1.msra.mxu0 0.0
    %959 = vmatprep.subr.mxu0 0.0
    %960 = vmatpush1.msra.mxu0 0.0
    %961 = vmatprep.subr.mxu0 0.0
    %962 = vmatpush1.msra.mxu0 %v406
    %963 = vmatprep.subr.mxu0 0.0
    %964 = vmatpush1.msra.mxu0 %v405
    %965 = vmatprep.subr.mxu0 0.0
    %966 = vmatpush1.msra.mxu0 %v404
    %967 = vmatprep.subr.mxu0 0.0
    %968 = vmatpush1.msra.mxu0 %v403
    %969 = vmatprep.subr.mxu0 0.0
    %970 = vmatpush1.msra.mxu0 %v402
    %971 = vmatprep.subr.mxu0 0.0
    %972 = vmatpush1.msra.mxu0 %v401
    %973 = vmatprep.subr.mxu0 0.0
    %974 = vmatpush1.msra.mxu0 %v400
    %975 = vmatprep.subr.mxu0 0.0
    %976 = vmatpush1.msra.mxu0 %v399
    %977 = vmatprep.subr.mxu0 0.0
    %978 = vmatpush2.msra.mxu0 0.0
    %979 = vmatprep.subr.mxu0 0.0
    %980 = vmatpush2.msra.mxu0 0.0
    %981 = vmatprep.subr.mxu0 0.0
    %982 = vmatpush2.msra.mxu0 0.0
    %983 = vmatprep.subr.mxu0 0.0
    %984 = vmatpush2.msra.mxu0 0.0
    %985 = vmatprep.subr.mxu0 0.0
    %986 = vmatpush2.msra.mxu0 0.0
    %987 = vmatprep.subr.mxu0 0.0
    %988 = vmatpush2.msra.mxu0 0.0
    %989 = vmatprep.subr.mxu0 0.0
    %990 = vmatpush2.msra.mxu0 0.0
    %991 = vmatprep.subr.mxu0 0.0
    %992 = vmatpush2.msra.mxu0 0.0
    %993 = vmatprep.subr.mxu0 0.0
    %994 = vmatpush2.msra.mxu0 0.0
    %995 = vmatprep.subr.mxu0 0.0
    %996 = vmatpush2.msra.mxu0 0.0
    %997 = vmatprep.subr.mxu0 0.0
    %998 = vmatpush2.msra.mxu0 0.0
    %999 = vmatprep.subr.mxu0 0.0
    %1000 = vmatpush2.msra.mxu0 0.0
    %1001 = vmatprep.subr.mxu0 0.0
    %1002 = vmatpush2.msra.mxu0 0.0
    %1003 = vmatprep.subr.mxu0 0.0
    %1004 = vmatpush2.msra.mxu0 0.0
    %1005 = vmatprep.subr.mxu0 0.0
    %1006 = vmatpush2.msra.mxu0 0.0
    %1007 = vmatprep.subr.mxu0 0.0
    %1008 = vmatpush2.msra.mxu0 0.0
    %1009 = vmatprep.mubr.f32.mxu0 0.0
    %1010 = vmatmul.mubr.f32.gmra.mxu0 %v943
    %v1011 = vpop.f32.mrf.mxu0
    %v1012 = vadd.f32 %v384, %v1011
    %v1013 = vpop.f32.mrf.mxu0
    %1014 = vdwg.mxu0
    %v1015 = vxor.u32 %v1012, 2147483648
    %v1016 = vmul.f32 %v1015, 1.442695
    %v1017 = vpow.pop %v1016
    %v1018 = vadd.f32 %v1017, 1.0
    %v1019 = vrcp.pop %v1018
    %v1020 = vmul.f32 1.0, %v1019
    %v1021 = vtanh.pop %v1012
    %v1022 = vmul.f32 %v1020, %v817
    %1024 = vrot.lane.b32.xlu0 %v1021, 64
    %v1025 = vpop.permute.xlu0 %1024
    %v1027 = vmul.f32 %v1020, %v1025
    %1029 = vrot.lane.b32.xlu0 %v1027, 32
    %v1030 = vpop.permute.xlu0 %1029
    %v1032 = vadd.f32 %v1022, %v1030
    %v1033 = vtanh.pop %v1032
    %1035 = vrot.lane.b32.xlu0 %v1033, 64
    %v1036 = vpop.permute.xlu0 %1035
    %v1038 = vmul.f32 %v1020, %v1036
    %1040 = vrot.lane.b32.xlu0 %v1038, 32
    %v1041 = vpop.permute.xlu0 %1040
    %s1043 = scalar_lea.vmem [#allocation2], 16
    %1044 = vst.msk [vmem:[%s1043] sm:$0xff] %vm70, %v1041
    %s1045 = scalar_lea.vmem %s1, 16
    %v1046 = vld [vmem:[%s1045] sm:$0xff]
    %1047 = vrot.lane.b32.xlu0 %v1038, 64
    %v1048 = vpop.permute.xlu0 %1047
    %1050 = vrot.lane.b32.xlu0 %v936, 96
    %v1051 = vpop.permute.xlu0 %1050
    %v1053 = vsel %vm70, %v1046, %v1048
    %v1054 = vsel %vm409, %v1053, %v1051
    %v1056 = vsel %vm411, %v1054, 0
    %1058 = vmatprep.subr.mxu0 0.0
    %1059 = vmatpush1.msra.mxu0 0.0
    %1060 = vmatprep.subr.mxu0 0.0
    %1061 = vmatpush1.msra.mxu0 0.0
    %1062 = vmatprep.subr.mxu0 0.0
    %1063 = vmatpush1.msra.mxu0 0.0
    %1064 = vmatprep.subr.mxu0 0.0
    %1065 = vmatpush1.msra.mxu0 0.0
    %1066 = vmatprep.subr.mxu0 0.0
    %1067 = vmatpush1.msra.mxu0 %v398
    %1068 = vmatprep.subr.mxu0 0.0
    %1069 = vmatpush1.msra.mxu0 %v397
    %1070 = vmatprep.subr.mxu0 0.0
    %1071 = vmatpush1.msra.mxu0 %v396
    %1072 = vmatprep.subr.mxu0 0.0
    %1073 = vmatpush1.msra.mxu0 %v395
    %1074 = vmatprep.subr.mxu0 0.0
    %1075 = vmatpush1.msra.mxu0 %v394
    %1076 = vmatprep.subr.mxu0 0.0
    %1077 = vmatpush1.msra.mxu0 %v393
    %1078 = vmatprep.subr.mxu0 0.0
    %1079 = vmatpush1.msra.mxu0 %v392
    %1080 = vmatprep.subr.mxu0 0.0
    %1081 = vmatpush1.msra.mxu0 %v391
    %1082 = vmatprep.subr.mxu0 0.0
    %1083 = vmatpush1.msra.mxu0 %v390
    %1084 = vmatprep.subr.mxu0 0.0
    %1085 = vmatpush1.msra.mxu0 %v389
    %1086 = vmatprep.subr.mxu0 0.0
    %1087 = vmatpush1.msra.mxu0 %v388
    %1088 = vmatprep.subr.mxu0 0.0
    %1089 = vmatpush1.msra.mxu0 %v387
    %1090 = vmatprep.subr.mxu0 0.0
    %1091 = vmatpush2.msra.mxu0 0.0
    %1092 = vmatprep.subr.mxu0 0.0
    %1093 = vmatpush2.msra.mxu0 0.0
    %1094 = vmatprep.subr.mxu0 0.0
    %1095 = vmatpush2.msra.mxu0 0.0
    %1096 = vmatprep.subr.mxu0 0.0
    %1097 = vmatpush2.msra.mxu0 0.0
    %1098 = vmatprep.subr.mxu0 0.0
    %1099 = vmatpush2.msra.mxu0 0.0
    %1100 = vmatprep.subr.mxu0 0.0
    %1101 = vmatpush2.msra.mxu0 0.0
    %1102 = vmatprep.subr.mxu0 0.0
    %1103 = vmatpush2.msra.mxu0 0.0
    %1104 = vmatprep.subr.mxu0 0.0
    %1105 = vmatpush2.msra.mxu0 0.0
    %1106 = vmatprep.subr.mxu0 0.0
    %1107 = vmatpush2.msra.mxu0 0.0
    %1108 = vmatprep.subr.mxu0 0.0
    %1109 = vmatpush2.msra.mxu0 0.0
    %1110 = vmatprep.subr.mxu0 0.0
    %1111 = vmatpush2.msra.mxu0 0.0
    %1112 = vmatprep.subr.mxu0 0.0
    %1113 = vmatpush2.msra.mxu0 0.0
    %1114 = vmatprep.subr.mxu0 0.0
    %1115 = vmatpush2.msra.mxu0 0.0
    %1116 = vmatprep.subr.mxu0 0.0
    %1117 = vmatpush2.msra.mxu0 0.0
    %1118 = vmatprep.subr.mxu0 0.0
    %1119 = vmatpush2.msra.mxu0 0.0
    %1120 = vmatprep.subr.mxu0 0.0
    %1121 = vmatpush2.msra.mxu0 0.0
    %1122 = vmatprep.mubr.f32.mxu0 0.0
    %1123 = vmatmul.mubr.f32.gmra.mxu0 %v1056
    %v1124 = vpop.f32.mrf.mxu0
    %v1125 = vadd.f32 %v303, %v1124
    %v1126 = vpop.f32.mrf.mxu0
    %1127 = vdwg.mxu0
    %v1128 = vxor.u32 %v1125, 2147483648
    %v1129 = vmul.f32 %v1128, 1.442695
    %v1130 = vpow.pop %v1129
    %v1131 = vadd.f32 %v1130, 1.0
    %v1132 = vrcp.pop %v1131
    %v1133 = vmul.f32 1.0, %v1132
    %v1134 = vtanh.pop %v1125
    %v1135 = vmul.f32 %v1133, %v930
    %1137 = vrot.lane.b32.xlu0 %v1134, 64
    %v1138 = vpop.permute.xlu0 %1137
    %v1140 = vmul.f32 %v1133, %v1138
    %1142 = vrot.lane.b32.xlu0 %v1140, 32
    %v1143 = vpop.permute.xlu0 %1142
    %v1145 = vadd.f32 %v1135, %v1143
    %v1146 = vtanh.pop %v1145
    %1148 = vrot.lane.b32.xlu0 %v1146, 64
    %v1149 = vpop.permute.xlu0 %1148
    %v1151 = vmul.f32 %v1133, %v1149
    %1153 = vrot.lane.b32.xlu0 %v1151, 32
    %v1154 = vpop.permute.xlu0 %1153
    %v1156 = vsel %vm70, %v1154, %v1048
    %v1158 = vsel %vm409, %v1156, 0
    %1160 = vmatprep.subr.mxu0 0.0
    %1161 = vmatpush1.msra.mxu0 0.0
    %1162 = vmatprep.subr.mxu0 0.0
    %1163 = vmatpush1.msra.mxu0 0.0
    %1164 = vmatprep.subr.mxu0 0.0
    %1165 = vmatpush1.msra.mxu0 0.0
    %1166 = vmatprep.subr.mxu0 0.0
    %1167 = vmatpush1.msra.mxu0 0.0
    %1168 = vmatprep.subr.mxu0 0.0
    %1169 = vmatpush1.msra.mxu0 0.0
    %1170 = vmatprep.subr.mxu0 0.0
    %1171 = vmatpush1.msra.mxu0 0.0
    %1172 = vmatprep.subr.mxu0 0.0
    %1173 = vmatpush1.msra.mxu0 0.0
    %1174 = vmatprep.subr.mxu0 0.0
    %1175 = vmatpush1.msra.mxu0 0.0
    %1176 = vmatprep.subr.mxu0 0.0
    %1177 = vmatpush1.msra.mxu0 %v406
    %1178 = vmatprep.subr.mxu0 0.0
    %1179 = vmatpush1.msra.mxu0 %v405
    %1180 = vmatprep.subr.mxu0 0.0
    %1181 = vmatpush1.msra.mxu0 %v404
    %1182 = vmatprep.subr.mxu0 0.0
    %1183 = vmatpush1.msra.mxu0 %v403
    %1184 = vmatprep.subr.mxu0 0.0
    %1185 = vmatpush1.msra.mxu0 %v402
    %1186 = vmatprep.subr.mxu0 0.0
    %1187 = vmatpush1.msra.mxu0 %v401
    %1188 = vmatprep.subr.mxu0 0.0
    %1189 = vmatpush1.msra.mxu0 %v400
    %1190 = vmatprep.subr.mxu0 0.0
    %1191 = vmatpush1.msra.mxu0 %v399
    %1192 = vmatprep.subr.mxu0 0.0
    %1193 = vmatpush2.msra.mxu0 0.0
    %1194 = vmatprep.subr.mxu0 0.0
    %1195 = vmatpush2.msra.mxu0 0.0
    %1196 = vmatprep.subr.mxu0 0.0
    %1197 = vmatpush2.msra.mxu0 0.0
    %1198 = vmatprep.subr.mxu0 0.0
    %1199 = vmatpush2.msra.mxu0 0.0
    %1200 = vmatprep.subr.mxu0 0.0
    %1201 = vmatpush2.msra.mxu0 0.0
    %1202 = vmatprep.subr.mxu0 0.0
    %1203 = vmatpush2.msra.mxu0 0.0
    %1204 = vmatprep.subr.mxu0 0.0
    %1205 = vmatpush2.msra.mxu0 0.0
    %1206 = vmatprep.subr.mxu0 0.0
    %1207 = vmatpush2.msra.mxu0 0.0
    %1208 = vmatprep.subr.mxu0 0.0
    %1209 = vmatpush2.msra.mxu0 0.0
    %1210 = vmatprep.subr.mxu0 0.0
    %1211 = vmatpush2.msra.mxu0 0.0
    %1212 = vmatprep.subr.mxu0 0.0
    %1213 = vmatpush2.msra.mxu0 0.0
    %1214 = vmatprep.subr.mxu0 0.0
    %1215 = vmatpush2.msra.mxu0 0.0
    %1216 = vmatprep.subr.mxu0 0.0
    %1217 = vmatpush2.msra.mxu0 0.0
    %1218 = vmatprep.subr.mxu0 0.0
    %1219 = vmatpush2.msra.mxu0 0.0
    %1220 = vmatprep.subr.mxu0 0.0
    %1221 = vmatpush2.msra.mxu0 0.0
    %1222 = vmatprep.subr.mxu0 0.0
    %1223 = vmatpush2.msra.mxu0 0.0
    %1224 = vmatprep.mubr.f32.mxu0 0.0
    %1225 = vmatmul.mubr.f32.gmra.mxu0 %v1158
    %v1226 = vpop.f32.mrf.mxu0
    %v1227 = vadd.f32 %v384, %v1226
    %v1228 = vpop.f32.mrf.mxu0
    %1229 = vdwg.mxu0
    %v1230 = vxor.u32 %v1227, 2147483648
    %v1231 = vmul.f32 %v1230, 1.442695
    %v1232 = vpow.pop %v1231
    %v1233 = vadd.f32 %v1232, 1.0
    %v1234 = vrcp.pop %v1233
    %v1235 = vmul.f32 1.0, %v1234
    %v1236 = vtanh.pop %v1227
    %v1237 = vmul.f32 %v1235, %v1032
    %1239 = vrot.lane.b32.xlu0 %v1236, 64
    %v1240 = vpop.permute.xlu0 %1239
    %v1242 = vmul.f32 %v1235, %v1240
    %1244 = vrot.lane.b32.xlu0 %v1242, 32
    %v1245 = vpop.permute.xlu0 %1244
    %v1247 = vadd.f32 %v1237, %v1245
    %v1248 = vtanh.pop %v1247
    %1250 = vrot.lane.b32.xlu0 %v1248, 64
    %v1251 = vpop.permute.xlu0 %1250
    %v1253 = vmul.f32 %v1235, %v1251
    %1255 = vrot.lane.b32.xlu0 %v1253, 32
    %v1256 = vpop.permute.xlu0 %1255
    %s1258 = scalar_lea.vmem [#allocation2], 24
    %1259 = vst.msk [vmem:[%s1258] sm:$0xff] %vm70, %v1256
    %s1260 = scalar_lea.vmem %s1, 24
    %v1261 = vld [vmem:[%s1260] sm:$0xff]
    %1262 = vrot.lane.b32.xlu0 %v1253, 64
    %v1263 = vpop.permute.xlu0 %1262
    %1265 = vrot.lane.b32.xlu0 %v1151, 96
    %v1266 = vpop.permute.xlu0 %1265
    %v1268 = vsel %vm70, %v1261, %v1263
    %v1269 = vsel %vm409, %v1268, %v1266
    %v1271 = vsel %vm411, %v1269, 0
    %1273 = vmatprep.subr.mxu0 0.0
    %1274 = vmatpush1.msra.mxu0 0.0
    %1275 = vmatprep.subr.mxu0 0.0
    %1276 = vmatpush1.msra.mxu0 0.0
    %1277 = vmatprep.subr.mxu0 0.0
    %1278 = vmatpush1.msra.mxu0 0.0
    %1279 = vmatprep.subr.mxu0 0.0
    %1280 = vmatpush1.msra.mxu0 0.0
    %1281 = vmatprep.subr.mxu0 0.0
    %1282 = vmatpush1.msra.mxu0 %v398
    %1283 = vmatprep.subr.mxu0 0.0
    %1284 = vmatpush1.msra.mxu0 %v397
    %1285 = vmatprep.subr.mxu0 0.0
    %1286 = vmatpush1.msra.mxu0 %v396
    %1287 = vmatprep.subr.mxu0 0.0
    %1288 = vmatpush1.msra.mxu0 %v395
    %1289 = vmatprep.subr.mxu0 0.0
    %1290 = vmatpush1.msra.mxu0 %v394
    %1291 = vmatprep.subr.mxu0 0.0
    %1292 = vmatpush1.msra.mxu0 %v393
    %1293 = vmatprep.subr.mxu0 0.0
    %1294 = vmatpush1.msra.mxu0 %v392
    %1295 = vmatprep.subr.mxu0 0.0
    %1296 = vmatpush1.msra.mxu0 %v391
    %1297 = vmatprep.subr.mxu0 0.0
    %1298 = vmatpush1.msra.mxu0 %v390
    %1299 = vmatprep.subr.mxu0 0.0
    %1300 = vmatpush1.msra.mxu0 %v389
    %1301 = vmatprep.subr.mxu0 0.0
    %1302 = vmatpush1.msra.mxu0 %v388
    %1303 = vmatprep.subr.mxu0 0.0
    %1304 = vmatpush1.msra.mxu0 %v387
    %1305 = vmatprep.subr.mxu0 0.0
    %1306 = vmatpush2.msra.mxu0 0.0
    %1307 = vmatprep.subr.mxu0 0.0
    %1308 = vmatpush2.msra.mxu0 0.0
    %1309 = vmatprep.subr.mxu0 0.0
    %1310 = vmatpush2.msra.mxu0 0.0
    %1311 = vmatprep.subr.mxu0 0.0
    %1312 = vmatpush2.msra.mxu0 0.0
    %1313 = vmatprep.subr.mxu0 0.0
    %1314 = vmatpush2.msra.mxu0 0.0
    %1315 = vmatprep.subr.mxu0 0.0
    %1316 = vmatpush2.msra.mxu0 0.0
    %1317 = vmatprep.subr.mxu0 0.0
    %1318 = vmatpush2.msra.mxu0 0.0
    %1319 = vmatprep.subr.mxu0 0.0
    %1320 = vmatpush2.msra.mxu0 0.0
    %1321 = vmatprep.subr.mxu0 0.0
    %1322 = vmatpush2.msra.mxu0 0.0
    %1323 = vmatprep.subr.mxu0 0.0
    %1324 = vmatpush2.msra.mxu0 0.0
    %1325 = vmatprep.subr.mxu0 0.0
    %1326 = vmatpush2.msra.mxu0 0.0
    %1327 = vmatprep.subr.mxu0 0.0
    %1328 = vmatpush2.msra.mxu0 0.0
    %1329 = vmatprep.subr.mxu0 0.0
    %1330 = vmatpush2.msra.mxu0 0.0
    %1331 = vmatprep.subr.mxu0 0.0
    %1332 = vmatpush2.msra.mxu0 0.0
    %1333 = vmatprep.subr.mxu0 0.0
    %1334 = vmatpush2.msra.mxu0 0.0
    %1335 = vmatprep.subr.mxu0 0.0
    %1336 = vmatpush2.msra.mxu0 0.0
    %1337 = vmatprep.mubr.f32.mxu0 0.0
    %1338 = vmatmul.mubr.f32.gmra.mxu0 %v1271
    %v1339 = vpop.f32.mrf.mxu0
    %v1340 = vadd.f32 %v303, %v1339
    %v1341 = vpop.f32.mrf.mxu0
    %1342 = vdwg.mxu0
    %v1343 = vxor.u32 %v1340, 2147483648
    %v1344 = vmul.f32 %v1343, 1.442695
    %v1345 = vpow.pop %v1344
    %v1346 = vadd.f32 %v1345, 1.0
    %v1347 = vrcp.pop %v1346
    %v1348 = vmul.f32 1.0, %v1347
    %v1349 = vtanh.pop %v1340
    %v1350 = vmul.f32 %v1348, %v1145
    %1352 = vrot.lane.b32.xlu0 %v1349, 64
    %v1353 = vpop.permute.xlu0 %1352
    %v1355 = vmul.f32 %v1348, %v1353
    %1357 = vrot.lane.b32.xlu0 %v1355, 32
    %v1358 = vpop.permute.xlu0 %1357
    %v1360 = vadd.f32 %v1350, %v1358
    %v1361 = vtanh.pop %v1360
    %1363 = vrot.lane.b32.xlu0 %v1361, 64
    %v1364 = vpop.permute.xlu0 %1363
    %v1366 = vmul.f32 %v1348, %v1364
    %1368 = vrot.lane.b32.xlu0 %v1366, 32
    %v1369 = vpop.permute.xlu0 %1368
    %v1371 = vsel %vm70, %v1369, %v1263
    %v1373 = vsel %vm409, %v1371, 0
    %1375 = vmatprep.subr.mxu0 0.0
    %1376 = vmatpush1.msra.mxu0 0.0
    %1377 = vmatprep.subr.mxu0 0.0
    %1378 = vmatpush1.msra.mxu0 0.0
    %1379 = vmatprep.subr.mxu0 0.0
    %1380 = vmatpush1.msra.mxu0 0.0
    %1381 = vmatprep.subr.mxu0 0.0
    %1382 = vmatpush1.msra.mxu0 0.0
    %1383 = vmatprep.subr.mxu0 0.0
    %1384 = vmatpush1.msra.mxu0 0.0
    %1385 = vmatprep.subr.mxu0 0.0
    %1386 = vmatpush1.msra.mxu0 0.0
    %1387 = vmatprep.subr.mxu0 0.0
    %1388 = vmatpush1.msra.mxu0 0.0
    %1389 = vmatprep.subr.mxu0 0.0
    %1390 = vmatpush1.msra.mxu0 0.0
    %1391 = vmatprep.subr.mxu0 0.0
    %1392 = vmatpush1.msra.mxu0 %v406
    %1393 = vmatprep.subr.mxu0 0.0
    %1394 = vmatpush1.msra.mxu0 %v405
    %1395 = vmatprep.subr.mxu0 0.0
    %1396 = vmatpush1.msra.mxu0 %v404
    %1397 = vmatprep.subr.mxu0 0.0
    %1398 = vmatpush1.msra.mxu0 %v403
    %1399 = vmatprep.subr.mxu0 0.0
    %1400 = vmatpush1.msra.mxu0 %v402
    %1401 = vmatprep.subr.mxu0 0.0
    %1402 = vmatpush1.msra.mxu0 %v401
    %1403 = vmatprep.subr.mxu0 0.0
    %1404 = vmatpush1.msra.mxu0 %v400
    %1405 = vmatprep.subr.mxu0 0.0
    %1406 = vmatpush1.msra.mxu0 %v399
    %1407 = vmatprep.subr.mxu0 0.0
    %1408 = vmatpush2.msra.mxu0 0.0
    %1409 = vmatprep.subr.mxu0 0.0
    %1410 = vmatpush2.msra.mxu0 0.0
    %1411 = vmatprep.subr.mxu0 0.0
    %1412 = vmatpush2.msra.mxu0 0.0
    %1413 = vmatprep.subr.mxu0 0.0
    %1414 = vmatpush2.msra.mxu0 0.0
    %1415 = vmatprep.subr.mxu0 0.0
    %1416 = vmatpush2.msra.mxu0 0.0
    %1417 = vmatprep.subr.mxu0 0.0
    %1418 = vmatpush2.msra.mxu0 0.0
    %1419 = vmatprep.subr.mxu0 0.0
    %1420 = vmatpush2.msra.mxu0 0.0
    %1421 = vmatprep.subr.mxu0 0.0
    %1422 = vmatpush2.msra.mxu0 0.0
    %1423 = vmatprep.subr.mxu0 0.0
    %1424 = vmatpush2.msra.mxu0 0.0
    %1425 = vmatprep.subr.mxu0 0.0
    %1426 = vmatpush2.msra.mxu0 0.0
    %1427 = vmatprep.subr.mxu0 0.0
    %1428 = vmatpush2.msra.mxu0 0.0
    %1429 = vmatprep.subr.mxu0 0.0
    %1430 = vmatpush2.msra.mxu0 0.0
    %1431 = vmatprep.subr.mxu0 0.0
    %1432 = vmatpush2.msra.mxu0 0.0
    %1433 = vmatprep.subr.mxu0 0.0
    %1434 = vmatpush2.msra.mxu0 0.0
    %1435 = vmatprep.subr.mxu0 0.0
    %1436 = vmatpush2.msra.mxu0 0.0
    %1437 = vmatprep.subr.mxu0 0.0
    %1438 = vmatpush2.msra.mxu0 0.0
    %1439 = vmatprep.mubr.f32.mxu0 0.0
    %1440 = vmatmul.mubr.f32.gmra.mxu0 %v1373
    %v1441 = vpop.f32.mrf.mxu0
    %v1442 = vadd.f32 %v384, %v1441
    %v1443 = vpop.f32.mrf.mxu0
    %1444 = vdwg.mxu0
    %v1445 = vxor.u32 %v1442, 2147483648
    %v1446 = vmul.f32 %v1445, 1.442695
    %v1447 = vpow.pop %v1446
    %v1448 = vadd.f32 %v1447, 1.0
    %v1449 = vrcp.pop %v1448
    %v1450 = vmul.f32 1.0, %v1449
    %v1451 = vtanh.pop %v1442
    %v1452 = vmul.f32 %v1450, %v1247
    %1454 = vrot.lane.b32.xlu0 %v1451, 64
    %v1455 = vpop.permute.xlu0 %1454
    %v1457 = vmul.f32 %v1450, %v1455
    %1459 = vrot.lane.b32.xlu0 %v1457, 32
    %v1460 = vpop.permute.xlu0 %1459
    %v1462 = vadd.f32 %v1452, %v1460
    %v1463 = vtanh.pop %v1462
    %1465 = vrot.lane.b32.xlu0 %v1463, 64
    %v1466 = vpop.permute.xlu0 %1465
    %v1468 = vmul.f32 %v1450, %v1466
    %1470 = vrot.lane.b32.xlu0 %v1468, 32
    %v1471 = vpop.permute.xlu0 %1470
    %s1473 = scalar_lea.vmem [#allocation2], 32
    %1474 = vst.msk [vmem:[%s1473] sm:$0xff] %vm70, %v1471
    %s1475 = scalar_lea.vmem %s1, 32
    %v1476 = vld [vmem:[%s1475] sm:$0xff]
    %1477 = vrot.lane.b32.xlu0 %v1468, 64
    %v1478 = vpop.permute.xlu0 %1477
    %1480 = vrot.lane.b32.xlu0 %v1366, 96
    %v1481 = vpop.permute.xlu0 %1480
    %v1483 = vsel %vm70, %v1476, %v1478
    %v1484 = vsel %vm409, %v1483, %v1481
    %v1486 = vsel %vm411, %v1484, 0
    %1488 = vmatprep.subr.mxu0 0.0
    %1489 = vmatpush1.msra.mxu0 0.0
    %1490 = vmatprep.subr.mxu0 0.0
    %1491 = vmatpush1.msra.mxu0 0.0
    %1492 = vmatprep.subr.mxu0 0.0
    %1493 = vmatpush1.msra.mxu0 0.0
    %1494 = vmatprep.subr.mxu0 0.0
    %1495 = vmatpush1.msra.mxu0 0.0
    %1496 = vmatprep.subr.mxu0 0.0
    %1497 = vmatpush1.msra.mxu0 %v398
    %1498 = vmatprep.subr.mxu0 0.0
    %1499 = vmatpush1.msra.mxu0 %v397
    %1500 = vmatprep.subr.mxu0 0.0
    %1501 = vmatpush1.msra.mxu0 %v396
    %1502 = vmatprep.subr.mxu0 0.0
    %1503 = vmatpush1.msra.mxu0 %v395
    %1504 = vmatprep.subr.mxu0 0.0
    %1505 = vmatpush1.msra.mxu0 %v394
    %1506 = vmatprep.subr.mxu0 0.0
    %1507 = vmatpush1.msra.mxu0 %v393
    %1508 = vmatprep.subr.mxu0 0.0
    %1509 = vmatpush1.msra.mxu0 %v392
    %1510 = vmatprep.subr.mxu0 0.0
    %1511 = vmatpush1.msra.mxu0 %v391
    %1512 = vmatprep.subr.mxu0 0.0
    %1513 = vmatpush1.msra.mxu0 %v390
    %1514 = vmatprep.subr.mxu0 0.0
    %1515 = vmatpush1.msra.mxu0 %v389
    %1516 = vmatprep.subr.mxu0 0.0
    %1517 = vmatpush1.msra.mxu0 %v388
    %1518 = vmatprep.subr.mxu0 0.0
    %1519 = vmatpush1.msra.mxu0 %v387
    %1520 = vmatprep.subr.mxu0 0.0
    %1521 = vmatpush2.msra.mxu0 0.0
    %1522 = vmatprep.subr.mxu0 0.0
    %1523 = vmatpush2.msra.mxu0 0.0
    %1524 = vmatprep.subr.mxu0 0.0
    %1525 = vmatpush2.msra.mxu0 0.0
    %1526 = vmatprep.subr.mxu0 0.0
    %1527 = vmatpush2.msra.mxu0 0.0
    %1528 = vmatprep.subr.mxu0 0.0
    %1529 = vmatpush2.msra.mxu0 0.0
    %1530 = vmatprep.subr.mxu0 0.0
    %1531 = vmatpush2.msra.mxu0 0.0
    %1532 = vmatprep.subr.mxu0 0.0
    %1533 = vmatpush2.msra.mxu0 0.0
    %1534 = vmatprep.subr.mxu0 0.0
    %1535 = vmatpush2.msra.mxu0 0.0
    %1536 = vmatprep.subr.mxu0 0.0
    %1537 = vmatpush2.msra.mxu0 0.0
    %1538 = vmatprep.subr.mxu0 0.0
    %1539 = vmatpush2.msra.mxu0 0.0
    %1540 = vmatprep.subr.mxu0 0.0
    %1541 = vmatpush2.msra.mxu0 0.0
    %1542 = vmatprep.subr.mxu0 0.0
    %1543 = vmatpush2.msra.mxu0 0.0
    %1544 = vmatprep.subr.mxu0 0.0
    %1545 = vmatpush2.msra.mxu0 0.0
    %1546 = vmatprep.subr.mxu0 0.0
    %1547 = vmatpush2.msra.mxu0 0.0
    %1548 = vmatprep.subr.mxu0 0.0
    %1549 = vmatpush2.msra.mxu0 0.0
    %1550 = vmatprep.subr.mxu0 0.0
    %1551 = vmatpush2.msra.mxu0 0.0
    %1552 = vmatprep.mubr.f32.mxu0 0.0
    %1553 = vmatmul.mubr.f32.gmra.mxu0 %v1486
    %v1554 = vpop.f32.mrf.mxu0
    %v1555 = vadd.f32 %v303, %v1554
    %v1556 = vpop.f32.mrf.mxu0
    %1557 = vdwg.mxu0
    %v1558 = vxor.u32 %v1555, 2147483648
    %v1559 = vmul.f32 %v1558, 1.442695
    %v1560 = vpow.pop %v1559
    %v1561 = vadd.f32 %v1560, 1.0
    %v1562 = vrcp.pop %v1561
    %v1563 = vmul.f32 1.0, %v1562
    %v1564 = vtanh.pop %v1555
    %v1565 = vmul.f32 %v1563, %v1360
    %1567 = vrot.lane.b32.xlu0 %v1564, 64
    %v1568 = vpop.permute.xlu0 %1567
    %v1570 = vmul.f32 %v1563, %v1568
    %1572 = vrot.lane.b32.xlu0 %v1570, 32
    %v1573 = vpop.permute.xlu0 %1572
    %v1575 = vadd.f32 %v1565, %v1573
    %v1576 = vtanh.pop %v1575
    %1578 = vrot.lane.b32.xlu0 %v1576, 64
    %v1579 = vpop.permute.xlu0 %1578
    %v1581 = vmul.f32 %v1563, %v1579
    %1583 = vrot.lane.b32.xlu0 %v1581, 32
    %v1584 = vpop.permute.xlu0 %1583
    %v1586 = vsel %vm70, %v1584, %v1478
    %v1588 = vsel %vm409, %v1586, 0
    %1590 = vmatprep.subr.mxu0 0.0
    %1591 = vmatpush1.msra.mxu0 0.0
    %1592 = vmatprep.subr.mxu0 0.0
    %1593 = vmatpush1.msra.mxu0 0.0
    %1594 = vmatprep.subr.mxu0 0.0
    %1595 = vmatpush1.msra.mxu0 0.0
    %1596 = vmatprep.subr.mxu0 0.0
    %1597 = vmatpush1.msra.mxu0 0.0
    %1598 = vmatprep.subr.mxu0 0.0
    %1599 = vmatpush1.msra.mxu0 0.0
    %1600 = vmatprep.subr.mxu0 0.0
    %1601 = vmatpush1.msra.mxu0 0.0
    %1602 = vmatprep.subr.mxu0 0.0
    %1603 = vmatpush1.msra.mxu0 0.0
    %1604 = vmatprep.subr.mxu0 0.0
    %1605 = vmatpush1.msra.mxu0 0.0
    %1606 = vmatprep.subr.mxu0 0.0
    %1607 = vmatpush1.msra.mxu0 %v406
    %1608 = vmatprep.subr.mxu0 0.0
    %1609 = vmatpush1.msra.mxu0 %v405
    %1610 = vmatprep.subr.mxu0 0.0
    %1611 = vmatpush1.msra.mxu0 %v404
    %1612 = vmatprep.subr.mxu0 0.0
    %1613 = vmatpush1.msra.mxu0 %v403
    %1614 = vmatprep.subr.mxu0 0.0
    %1615 = vmatpush1.msra.mxu0 %v402
    %1616 = vmatprep.subr.mxu0 0.0
    %1617 = vmatpush1.msra.mxu0 %v401
    %1618 = vmatprep.subr.mxu0 0.0
    %1619 = vmatpush1.msra.mxu0 %v400
    %1620 = vmatprep.subr.mxu0 0.0
    %1621 = vmatpush1.msra.mxu0 %v399
    %1622 = vmatprep.subr.mxu0 0.0
    %1623 = vmatpush2.msra.mxu0 0.0
    %1624 = vmatprep.subr.mxu0 0.0
    %1625 = vmatpush2.msra.mxu0 0.0
    %1626 = vmatprep.subr.mxu0 0.0
    %1627 = vmatpush2.msra.mxu0 0.0
    %1628 = vmatprep.subr.mxu0 0.0
    %1629 = vmatpush2.msra.mxu0 0.0
    %1630 = vmatprep.subr.mxu0 0.0
    %1631 = vmatpush2.msra.mxu0 0.0
    %1632 = vmatprep.subr.mxu0 0.0
    %1633 = vmatpush2.msra.mxu0 0.0
    %1634 = vmatprep.subr.mxu0 0.0
    %1635 = vmatpush2.msra.mxu0 0.0
    %1636 = vmatprep.subr.mxu0 0.0
    %1637 = vmatpush2.msra.mxu0 0.0
    %1638 = vmatprep.subr.mxu0 0.0
    %1639 = vmatpush2.msra.mxu0 0.0
    %1640 = vmatprep.subr.mxu0 0.0
    %1641 = vmatpush2.msra.mxu0 0.0
    %1642 = vmatprep.subr.mxu0 0.0
    %1643 = vmatpush2.msra.mxu0 0.0
    %1644 = vmatprep.subr.mxu0 0.0
    %1645 = vmatpush2.msra.mxu0 0.0
    %1646 = vmatprep.subr.mxu0 0.0
    %1647 = vmatpush2.msra.mxu0 0.0
    %1648 = vmatprep.subr.mxu0 0.0
    %1649 = vmatpush2.msra.mxu0 0.0
    %1650 = vmatprep.subr.mxu0 0.0
    %1651 = vmatpush2.msra.mxu0 0.0
    %1652 = vmatprep.subr.mxu0 0.0
    %1653 = vmatpush2.msra.mxu0 0.0
    %1654 = vmatprep.mubr.f32.mxu0 0.0
    %1655 = vmatmul.mubr.f32.gmra.mxu0 %v1588
    %v1656 = vpop.f32.mrf.mxu0
    %v1657 = vadd.f32 %v384, %v1656
    %v1658 = vpop.f32.mrf.mxu0
    %1659 = vdwg.mxu0
    %v1660 = vxor.u32 %v1657, 2147483648
    %v1661 = vmul.f32 %v1660, 1.442695
    %v1662 = vpow.pop %v1661
    %v1663 = vadd.f32 %v1662, 1.0
    %v1664 = vrcp.pop %v1663
    %v1665 = vmul.f32 1.0, %v1664
    %v1666 = vtanh.pop %v1657
    %v1667 = vmul.f32 %v1665, %v1462
    %1669 = vrot.lane.b32.xlu0 %v1666, 64
    %v1670 = vpop.permute.xlu0 %1669
    %v1672 = vmul.f32 %v1665, %v1670
    %1674 = vrot.lane.b32.xlu0 %v1672, 32
    %v1675 = vpop.permute.xlu0 %1674
    %v1677 = vadd.f32 %v1667, %v1675
    %v1678 = vtanh.pop %v1677
    %1680 = vrot.lane.b32.xlu0 %v1678, 64
    %v1681 = vpop.permute.xlu0 %1680
    %v1683 = vmul.f32 %v1665, %v1681
    %1685 = vrot.lane.b32.xlu0 %v1683, 32
    %v1686 = vpop.permute.xlu0 %1685
    %s1688 = scalar_lea.vmem [#allocation2], 40
    %1689 = vst.msk [vmem:[%s1688] sm:$0xff] %vm70, %v1686
    %s1690 = scalar_lea.vmem %s1, 40
    %v1691 = vld [vmem:[%s1690] sm:$0xff]
    %1692 = vrot.lane.b32.xlu0 %v1683, 64
    %v1693 = vpop.permute.xlu0 %1692
    %1695 = vrot.lane.b32.xlu0 %v1581, 96
    %v1696 = vpop.permute.xlu0 %1695
    %v1698 = vsel %vm70, %v1691, %v1693
    %v1699 = vsel %vm409, %v1698, %v1696
    %v1701 = vsel %vm411, %v1699, 0
    %1703 = vmatprep.subr.mxu0 0.0
    %1704 = vmatpush1.msra.mxu0 0.0
    %1705 = vmatprep.subr.mxu0 0.0
    %1706 = vmatpush1.msra.mxu0 0.0
    %1707 = vmatprep.subr.mxu0 0.0
    %1708 = vmatpush1.msra.mxu0 0.0
    %1709 = vmatprep.subr.mxu0 0.0
    %1710 = vmatpush1.msra.mxu0 0.0
    %1711 = vmatprep.subr.mxu0 0.0
    %1712 = vmatpush1.msra.mxu0 %v398
    %1713 = vmatprep.subr.mxu0 0.0
    %1714 = vmatpush1.msra.mxu0 %v397
    %1715 = vmatprep.subr.mxu0 0.0
    %1716 = vmatpush1.msra.mxu0 %v396
    %1717 = vmatprep.subr.mxu0 0.0
    %1718 = vmatpush1.msra.mxu0 %v395
    %1719 = vmatprep.subr.mxu0 0.0
    %1720 = vmatpush1.msra.mxu0 %v394
    %1721 = vmatprep.subr.mxu0 0.0
    %1722 = vmatpush1.msra.mxu0 %v393
    %1723 = vmatprep.subr.mxu0 0.0
    %1724 = vmatpush1.msra.mxu0 %v392
    %1725 = vmatprep.subr.mxu0 0.0
    %1726 = vmatpush1.msra.mxu0 %v391
    %1727 = vmatprep.subr.mxu0 0.0
    %1728 = vmatpush1.msra.mxu0 %v390
    %1729 = vmatprep.subr.mxu0 0.0
    %1730 = vmatpush1.msra.mxu0 %v389
    %1731 = vmatprep.subr.mxu0 0.0
    %1732 = vmatpush1.msra.mxu0 %v388
    %1733 = vmatprep.subr.mxu0 0.0
    %1734 = vmatpush1.msra.mxu0 %v387
    %1735 = vmatprep.subr.mxu0 0.0
    %1736 = vmatpush2.msra.mxu0 0.0
    %1737 = vmatprep.subr.mxu0 0.0
    %1738 = vmatpush2.msra.mxu0 0.0
    %1739 = vmatprep.subr.mxu0 0.0
    %1740 = vmatpush2.msra.mxu0 0.0
    %1741 = vmatprep.subr.mxu0 0.0
    %1742 = vmatpush2.msra.mxu0 0.0
    %1743 = vmatprep.subr.mxu0 0.0
    %1744 = vmatpush2.msra.mxu0 0.0
    %1745 = vmatprep.subr.mxu0 0.0
    %1746 = vmatpush2.msra.mxu0 0.0
    %1747 = vmatprep.subr.mxu0 0.0
    %1748 = vmatpush2.msra.mxu0 0.0
    %1749 = vmatprep.subr.mxu0 0.0
    %1750 = vmatpush2.msra.mxu0 0.0
    %1751 = vmatprep.subr.mxu0 0.0
    %1752 = vmatpush2.msra.mxu0 0.0
    %1753 = vmatprep.subr.mxu0 0.0
    %1754 = vmatpush2.msra.mxu0 0.0
    %1755 = vmatprep.subr.mxu0 0.0
    %1756 = vmatpush2.msra.mxu0 0.0
    %1757 = vmatprep.subr.mxu0 0.0
    %1758 = vmatpush2.msra.mxu0 0.0
    %1759 = vmatprep.subr.mxu0 0.0
    %1760 = vmatpush2.msra.mxu0 0.0
    %1761 = vmatprep.subr.mxu0 0.0
    %1762 = vmatpush2.msra.mxu0 0.0
    %1763 = vmatprep.subr.mxu0 0.0
    %1764 = vmatpush2.msra.mxu0 0.0
    %1765 = vmatprep.subr.mxu0 0.0
    %1766 = vmatpush2.msra.mxu0 0.0
    %1767 = vmatprep.mubr.f32.mxu0 0.0
    %1768 = vmatmul.mubr.f32.gmra.mxu0 %v1701
    %v1769 = vpop.f32.mrf.mxu0
    %v1770 = vadd.f32 %v303, %v1769
    %v1771 = vpop.f32.mrf.mxu0
    %1772 = vdwg.mxu0
    %v1773 = vxor.u32 %v1770, 2147483648
    %v1774 = vmul.f32 %v1773, 1.442695
    %v1775 = vpow.pop %v1774
    %v1776 = vadd.f32 %v1775, 1.0
    %v1777 = vrcp.pop %v1776
    %v1778 = vmul.f32 1.0, %v1777
    %v1779 = vtanh.pop %v1770
    %v1780 = vmul.f32 %v1778, %v1575
    %1782 = vrot.lane.b32.xlu0 %v1779, 64
    %v1783 = vpop.permute.xlu0 %1782
    %v1785 = vmul.f32 %v1778, %v1783
    %1787 = vrot.lane.b32.xlu0 %v1785, 32
    %v1788 = vpop.permute.xlu0 %1787
    %v1790 = vadd.f32 %v1780, %v1788
    %v1791 = vtanh.pop %v1790
    %1793 = vrot.lane.b32.xlu0 %v1791, 64
    %v1794 = vpop.permute.xlu0 %1793
    %v1796 = vmul.f32 %v1778, %v1794
    %1798 = vrot.lane.b32.xlu0 %v1796, 32
    %v1799 = vpop.permute.xlu0 %1798
    %v1801 = vsel %vm70, %v1799, %v1693
    %v1803 = vsel %vm409, %v1801, 0
    %1805 = vmatprep.subr.mxu0 0.0
    %1806 = vmatpush1.msra.mxu0 0.0
    %1807 = vmatprep.subr.mxu0 0.0
    %1808 = vmatpush1.msra.mxu0 0.0
    %1809 = vmatprep.subr.mxu0 0.0
    %1810 = vmatpush1.msra.mxu0 0.0
    %1811 = vmatprep.subr.mxu0 0.0
    %1812 = vmatpush1.msra.mxu0 0.0
    %1813 = vmatprep.subr.mxu0 0.0
    %1814 = vmatpush1.msra.mxu0 0.0
    %1815 = vmatprep.subr.mxu0 0.0
    %1816 = vmatpush1.msra.mxu0 0.0
    %1817 = vmatprep.subr.mxu0 0.0
    %1818 = vmatpush1.msra.mxu0 0.0
    %1819 = vmatprep.subr.mxu0 0.0
    %1820 = vmatpush1.msra.mxu0 0.0
    %1821 = vmatprep.subr.mxu0 0.0
    %1822 = vmatpush1.msra.mxu0 %v406
    %1823 = vmatprep.subr.mxu0 0.0
    %1824 = vmatpush1.msra.mxu0 %v405
    %1825 = vmatprep.subr.mxu0 0.0
    %1826 = vmatpush1.msra.mxu0 %v404
    %1827 = vmatprep.subr.mxu0 0.0
    %1828 = vmatpush1.msra.mxu0 %v403
    %1829 = vmatprep.subr.mxu0 0.0
    %1830 = vmatpush1.msra.mxu0 %v402
    %1831 = vmatprep.subr.mxu0 0.0
    %1832 = vmatpush1.msra.mxu0 %v401
    %1833 = vmatprep.subr.mxu0 0.0
    %1834 = vmatpush1.msra.mxu0 %v400
    %1835 = vmatprep.subr.mxu0 0.0
    %1836 = vmatpush1.msra.mxu0 %v399
    %1837 = vmatprep.subr.mxu0 0.0
    %1838 = vmatpush2.msra.mxu0 0.0
    %1839 = vmatprep.subr.mxu0 0.0
    %1840 = vmatpush2.msra.mxu0 0.0
    %1841 = vmatprep.subr.mxu0 0.0
    %1842 = vmatpush2.msra.mxu0 0.0
    %1843 = vmatprep.subr.mxu0 0.0
    %1844 = vmatpush2.msra.mxu0 0.0
    %1845 = vmatprep.subr.mxu0 0.0
    %1846 = vmatpush2.msra.mxu0 0.0
    %1847 = vmatprep.subr.mxu0 0.0
    %1848 = vmatpush2.msra.mxu0 0.0
    %1849 = vmatprep.subr.mxu0 0.0
    %1850 = vmatpush2.msra.mxu0 0.0
    %1851 = vmatprep.subr.mxu0 0.0
    %1852 = vmatpush2.msra.mxu0 0.0
    %1853 = vmatprep.subr.mxu0 0.0
    %1854 = vmatpush2.msra.mxu0 0.0
    %1855 = vmatprep.subr.mxu0 0.0
    %1856 = vmatpush2.msra.mxu0 0.0
    %1857 = vmatprep.subr.mxu0 0.0
    %1858 = vmatpush2.msra.mxu0 0.0
    %1859 = vmatprep.subr.mxu0 0.0
    %1860 = vmatpush2.msra.mxu0 0.0
    %1861 = vmatprep.subr.mxu0 0.0
    %1862 = vmatpush2.msra.mxu0 0.0
    %1863 = vmatprep.subr.mxu0 0.0
    %1864 = vmatpush2.msra.mxu0 0.0
    %1865 = vmatprep.subr.mxu0 0.0
    %1866 = vmatpush2.msra.mxu0 0.0
    %1867 = vmatprep.subr.mxu0 0.0
    %1868 = vmatpush2.msra.mxu0 0.0
    %1869 = vmatprep.mubr.f32.mxu0 0.0
    %1870 = vmatmul.mubr.f32.gmra.mxu0 %v1803
    %v1871 = vpop.f32.mrf.mxu0
    %v1872 = vadd.f32 %v384, %v1871
    %v1873 = vpop.f32.mrf.mxu0
    %1874 = vdwg.mxu0
    %v1875 = vxor.u32 %v1872, 2147483648
    %v1876 = vmul.f32 %v1875, 1.442695
    %v1877 = vpow.pop %v1876
    %v1878 = vadd.f32 %v1877, 1.0
    %v1879 = vrcp.pop %v1878
    %v1880 = vmul.f32 1.0, %v1879
    %v1881 = vtanh.pop %v1872
    %v1882 = vmul.f32 %v1880, %v1677
    %1884 = vrot.lane.b32.xlu0 %v1881, 64
    %v1885 = vpop.permute.xlu0 %1884
    %v1887 = vmul.f32 %v1880, %v1885
    %1889 = vrot.lane.b32.xlu0 %v1887, 32
    %v1890 = vpop.permute.xlu0 %1889
    %v1892 = vadd.f32 %v1882, %v1890
    %v1893 = vtanh.pop %v1892
    %1895 = vrot.lane.b32.xlu0 %v1893, 64
    %v1896 = vpop.permute.xlu0 %1895
    %v1898 = vmul.f32 %v1880, %v1896
    %1900 = vrot.lane.b32.xlu0 %v1898, 32
    %v1901 = vpop.permute.xlu0 %1900
    %s1903 = scalar_lea.vmem [#allocation2], 48
    %1904 = vst.msk [vmem:[%s1903] sm:$0xff] %vm70, %v1901
    %s1905 = scalar_lea.vmem %s1, 48
    %v1906 = vld [vmem:[%s1905] sm:$0xff]
    %1907 = vrot.lane.b32.xlu0 %v1898, 64
    %v1908 = vpop.permute.xlu0 %1907
    %1910 = vrot.lane.b32.xlu0 %v1796, 96
    %v1911 = vpop.permute.xlu0 %1910
    %v1913 = vsel %vm70, %v1906, %v1908
    %v1914 = vsel %vm409, %v1913, %v1911
    %v1916 = vsel %vm411, %v1914, 0
    %1918 = vmatprep.subr.mxu0 0.0
    %1919 = vmatpush1.msra.mxu0 0.0
    %1920 = vmatprep.subr.mxu0 0.0
    %1921 = vmatpush1.msra.mxu0 0.0
    %1922 = vmatprep.subr.mxu0 0.0
    %1923 = vmatpush1.msra.mxu0 0.0
    %1924 = vmatprep.subr.mxu0 0.0
    %1925 = vmatpush1.msra.mxu0 0.0
    %1926 = vmatprep.subr.mxu0 0.0
    %1927 = vmatpush1.msra.mxu0 %v398
    %1928 = vmatprep.subr.mxu0 0.0
    %1929 = vmatpush1.msra.mxu0 %v397
    %1930 = vmatprep.subr.mxu0 0.0
    %1931 = vmatpush1.msra.mxu0 %v396
    %1932 = vmatprep.subr.mxu0 0.0
    %1933 = vmatpush1.msra.mxu0 %v395
    %1934 = vmatprep.subr.mxu0 0.0
    %1935 = vmatpush1.msra.mxu0 %v394
    %1936 = vmatprep.subr.mxu0 0.0
    %1937 = vmatpush1.msra.mxu0 %v393
    %1938 = vmatprep.subr.mxu0 0.0
    %1939 = vmatpush1.msra.mxu0 %v392
    %1940 = vmatprep.subr.mxu0 0.0
    %1941 = vmatpush1.msra.mxu0 %v391
    %1942 = vmatprep.subr.mxu0 0.0
    %1943 = vmatpush1.msra.mxu0 %v390
    %1944 = vmatprep.subr.mxu0 0.0
    %1945 = vmatpush1.msra.mxu0 %v389
    %1946 = vmatprep.subr.mxu0 0.0
    %1947 = vmatpush1.msra.mxu0 %v388
    %1948 = vmatprep.subr.mxu0 0.0
    %1949 = vmatpush1.msra.mxu0 %v387
    %1950 = vmatprep.subr.mxu0 0.0
    %1951 = vmatpush2.msra.mxu0 0.0
    %1952 = vmatprep.subr.mxu0 0.0
    %1953 = vmatpush2.msra.mxu0 0.0
    %1954 = vmatprep.subr.mxu0 0.0
    %1955 = vmatpush2.msra.mxu0 0.0
    %1956 = vmatprep.subr.mxu0 0.0
    %1957 = vmatpush2.msra.mxu0 0.0
    %1958 = vmatprep.subr.mxu0 0.0
    %1959 = vmatpush2.msra.mxu0 0.0
    %1960 = vmatprep.subr.mxu0 0.0
    %1961 = vmatpush2.msra.mxu0 0.0
    %1962 = vmatprep.subr.mxu0 0.0
    %1963 = vmatpush2.msra.mxu0 0.0
    %1964 = vmatprep.subr.mxu0 0.0
    %1965 = vmatpush2.msra.mxu0 0.0
    %1966 = vmatprep.subr.mxu0 0.0
    %1967 = vmatpush2.msra.mxu0 0.0
    %1968 = vmatprep.subr.mxu0 0.0
    %1969 = vmatpush2.msra.mxu0 0.0
    %1970 = vmatprep.subr.mxu0 0.0
    %1971 = vmatpush2.msra.mxu0 0.0
    %1972 = vmatprep.subr.mxu0 0.0
    %1973 = vmatpush2.msra.mxu0 0.0
    %1974 = vmatprep.subr.mxu0 0.0
    %1975 = vmatpush2.msra.mxu0 0.0
    %1976 = vmatprep.subr.mxu0 0.0
    %1977 = vmatpush2.msra.mxu0 0.0
    %1978 = vmatprep.subr.mxu0 0.0
    %1979 = vmatpush2.msra.mxu0 0.0
    %1980 = vmatprep.subr.mxu0 0.0
    %1981 = vmatpush2.msra.mxu0 0.0
    %1982 = vmatprep.mubr.f32.mxu0 0.0
    %1983 = vmatmul.mubr.f32.gmra.mxu0 %v1916
    %v1984 = vpop.f32.mrf.mxu0
    %v1985 = vadd.f32 %v303, %v1984
    %v1986 = vpop.f32.mrf.mxu0
    %1987 = vdwg.mxu0
    %v1988 = vxor.u32 %v1985, 2147483648
    %v1989 = vmul.f32 %v1988, 1.442695
    %v1990 = vpow.pop %v1989
    %v1991 = vadd.f32 %v1990, 1.0
    %v1992 = vrcp.pop %v1991
    %v1993 = vmul.f32 1.0, %v1992
    %v1994 = vtanh.pop %v1985
    %v1995 = vmul.f32 %v1993, %v1790
    %1997 = vrot.lane.b32.xlu0 %v1994, 64
    %v1998 = vpop.permute.xlu0 %1997
    %v2000 = vmul.f32 %v1993, %v1998
    %2002 = vrot.lane.b32.xlu0 %v2000, 32
    %v2003 = vpop.permute.xlu0 %2002
    %v2005 = vadd.f32 %v1995, %v2003
    %v2006 = vtanh.pop %v2005
    %2008 = vrot.lane.b32.xlu0 %v2006, 64
    %v2009 = vpop.permute.xlu0 %2008
    %v2011 = vmul.f32 %v1993, %v2009
    %2013 = vrot.lane.b32.xlu0 %v2011, 32
    %v2014 = vpop.permute.xlu0 %2013
    %v2016 = vsel %vm70, %v2014, %v1908
    %v2018 = vsel %vm409, %v2016, 0
    %2020 = vmatprep.subr.mxu0 0.0
    %2021 = vmatpush1.msra.mxu0 0.0
    %2022 = vmatprep.subr.mxu0 0.0
    %2023 = vmatpush1.msra.mxu0 0.0
    %2024 = vmatprep.subr.mxu0 0.0
    %2025 = vmatpush1.msra.mxu0 0.0
    %2026 = vmatprep.subr.mxu0 0.0
    %2027 = vmatpush1.msra.mxu0 0.0
    %2028 = vmatprep.subr.mxu0 0.0
    %2029 = vmatpush1.msra.mxu0 0.0
    %2030 = vmatprep.subr.mxu0 0.0
    %2031 = vmatpush1.msra.mxu0 0.0
    %2032 = vmatprep.subr.mxu0 0.0
    %2033 = vmatpush1.msra.mxu0 0.0
    %2034 = vmatprep.subr.mxu0 0.0
    %2035 = vmatpush1.msra.mxu0 0.0
    %2036 = vmatprep.subr.mxu0 0.0
    %2037 = vmatpush1.msra.mxu0 %v406
    %2038 = vmatprep.subr.mxu0 0.0
    %2039 = vmatpush1.msra.mxu0 %v405
    %2040 = vmatprep.subr.mxu0 0.0
    %2041 = vmatpush1.msra.mxu0 %v404
    %2042 = vmatprep.subr.mxu0 0.0
    %2043 = vmatpush1.msra.mxu0 %v403
    %2044 = vmatprep.subr.mxu0 0.0
    %2045 = vmatpush1.msra.mxu0 %v402
    %2046 = vmatprep.subr.mxu0 0.0
    %2047 = vmatpush1.msra.mxu0 %v401
    %2048 = vmatprep.subr.mxu0 0.0
    %2049 = vmatpush1.msra.mxu0 %v400
    %2050 = vmatprep.subr.mxu0 0.0
    %2051 = vmatpush1.msra.mxu0 %v399
    %2052 = vmatprep.subr.mxu0 0.0
    %2053 = vmatpush2.msra.mxu0 0.0
    %2054 = vmatprep.subr.mxu0 0.0
    %2055 = vmatpush2.msra.mxu0 0.0
    %2056 = vmatprep.subr.mxu0 0.0
    %2057 = vmatpush2.msra.mxu0 0.0
    %2058 = vmatprep.subr.mxu0 0.0
    %2059 = vmatpush2.msra.mxu0 0.0
    %2060 = vmatprep.subr.mxu0 0.0
    %2061 = vmatpush2.msra.mxu0 0.0
    %2062 = vmatprep.subr.mxu0 0.0
    %2063 = vmatpush2.msra.mxu0 0.0
    %2064 = vmatprep.subr.mxu0 0.0
    %2065 = vmatpush2.msra.mxu0 0.0
    %2066 = vmatprep.subr.mxu0 0.0
    %2067 = vmatpush2.msra.mxu0 0.0
    %2068 = vmatprep.subr.mxu0 0.0
    %2069 = vmatpush2.msra.mxu0 0.0
    %2070 = vmatprep.subr.mxu0 0.0
    %2071 = vmatpush2.msra.mxu0 0.0
    %2072 = vmatprep.subr.mxu0 0.0
    %2073 = vmatpush2.msra.mxu0 0.0
    %2074 = vmatprep.subr.mxu0 0.0
    %2075 = vmatpush2.msra.mxu0 0.0
    %2076 = vmatprep.subr.mxu0 0.0
    %2077 = vmatpush2.msra.mxu0 0.0
    %2078 = vmatprep.subr.mxu0 0.0
    %2079 = vmatpush2.msra.mxu0 0.0
    %2080 = vmatprep.subr.mxu0 0.0
    %2081 = vmatpush2.msra.mxu0 0.0
    %2082 = vmatprep.subr.mxu0 0.0
    %2083 = vmatpush2.msra.mxu0 0.0
    %2084 = vmatprep.mubr.f32.mxu0 0.0
    %2085 = vmatmul.mubr.f32.gmra.mxu0 %v2018
    %v2086 = vpop.f32.mrf.mxu0
    %v2087 = vadd.f32 %v384, %v2086
    %v2088 = vpop.f32.mrf.mxu0
    %2089 = vdwg.mxu0
    %v2090 = vxor.u32 %v2087, 2147483648
    %v2091 = vmul.f32 %v2090, 1.442695
    %v2092 = vpow.pop %v2091
    %v2093 = vadd.f32 %v2092, 1.0
    %v2094 = vrcp.pop %v2093
    %v2095 = vmul.f32 1.0, %v2094
    %v2096 = vtanh.pop %v2087
    %v2097 = vmul.f32 %v2095, %v1892
    %2099 = vrot.lane.b32.xlu0 %v2096, 64
    %v2100 = vpop.permute.xlu0 %2099
    %v2102 = vmul.f32 %v2095, %v2100
    %2104 = vrot.lane.b32.xlu0 %v2102, 32
    %v2105 = vpop.permute.xlu0 %2104
    %v2107 = vadd.f32 %v2097, %v2105
    %v2108 = vtanh.pop %v2107
    %2110 = vrot.lane.b32.xlu0 %v2108, 64
    %v2111 = vpop.permute.xlu0 %2110
    %v2113 = vmul.f32 %v2095, %v2111
    %2115 = vrot.lane.b32.xlu0 %v2113, 32
    %v2116 = vpop.permute.xlu0 %2115
    %s2118 = scalar_lea.vmem [#allocation2], 56
    %2119 = vst.msk [vmem:[%s2118] sm:$0xff] %vm70, %v2116
    %s2120 = scalar_lea.vmem %s1, 56
    %v2121 = vld [vmem:[%s2120] sm:$0xff]
    %2122 = vrot.lane.b32.xlu0 %v2113, 64
    %v2123 = vpop.permute.xlu0 %2122
    %2125 = vrot.lane.b32.xlu0 %v2011, 96
    %v2126 = vpop.permute.xlu0 %2125
    %v2128 = vsel %vm70, %v2121, %v2123
    %v2129 = vsel %vm409, %v2128, %v2126
    %v2131 = vsel %vm411, %v2129, 0
    %2133 = vmatprep.subr.mxu0 0.0
    %2134 = vmatpush1.msra.mxu0 0.0
    %2135 = vmatprep.subr.mxu0 0.0
    %2136 = vmatpush1.msra.mxu0 0.0
    %2137 = vmatprep.subr.mxu0 0.0
    %2138 = vmatpush1.msra.mxu0 0.0
    %2139 = vmatprep.subr.mxu0 0.0
    %2140 = vmatpush1.msra.mxu0 0.0
    %2141 = vmatprep.subr.mxu0 0.0
    %2142 = vmatpush1.msra.mxu0 %v398
    %2143 = vmatprep.subr.mxu0 0.0
    %2144 = vmatpush1.msra.mxu0 %v397
    %2145 = vmatprep.subr.mxu0 0.0
    %2146 = vmatpush1.msra.mxu0 %v396
    %2147 = vmatprep.subr.mxu0 0.0
    %2148 = vmatpush1.msra.mxu0 %v395
    %2149 = vmatprep.subr.mxu0 0.0
    %2150 = vmatpush1.msra.mxu0 %v394
    %2151 = vmatprep.subr.mxu0 0.0
    %2152 = vmatpush1.msra.mxu0 %v393
    %2153 = vmatprep.subr.mxu0 0.0
    %2154 = vmatpush1.msra.mxu0 %v392
    %2155 = vmatprep.subr.mxu0 0.0
    %2156 = vmatpush1.msra.mxu0 %v391
    %2157 = vmatprep.subr.mxu0 0.0
    %2158 = vmatpush1.msra.mxu0 %v390
    %2159 = vmatprep.subr.mxu0 0.0
    %2160 = vmatpush1.msra.mxu0 %v389
    %2161 = vmatprep.subr.mxu0 0.0
    %2162 = vmatpush1.msra.mxu0 %v388
    %2163 = vmatprep.subr.mxu0 0.0
    %2164 = vmatpush1.msra.mxu0 %v387
    %2165 = vmatprep.subr.mxu0 0.0
    %2166 = vmatpush2.msra.mxu0 0.0
    %2167 = vmatprep.subr.mxu0 0.0
    %2168 = vmatpush2.msra.mxu0 0.0
    %2169 = vmatprep.subr.mxu0 0.0
    %2170 = vmatpush2.msra.mxu0 0.0
    %2171 = vmatprep.subr.mxu0 0.0
    %2172 = vmatpush2.msra.mxu0 0.0
    %2173 = vmatprep.subr.mxu0 0.0
    %2174 = vmatpush2.msra.mxu0 0.0
    %2175 = vmatprep.subr.mxu0 0.0
    %2176 = vmatpush2.msra.mxu0 0.0
    %2177 = vmatprep.subr.mxu0 0.0
    %2178 = vmatpush2.msra.mxu0 0.0
    %2179 = vmatprep.subr.mxu0 0.0
    %2180 = vmatpush2.msra.mxu0 0.0
    %2181 = vmatprep.subr.mxu0 0.0
    %2182 = vmatpush2.msra.mxu0 0.0
    %2183 = vmatprep.subr.mxu0 0.0
    %2184 = vmatpush2.msra.mxu0 0.0
    %2185 = vmatprep.subr.mxu0 0.0
    %2186 = vmatpush2.msra.mxu0 0.0
    %2187 = vmatprep.subr.mxu0 0.0
    %2188 = vmatpush2.msra.mxu0 0.0
    %2189 = vmatprep.subr.mxu0 0.0
    %2190 = vmatpush2.msra.mxu0 0.0
    %2191 = vmatprep.subr.mxu0 0.0
    %2192 = vmatpush2.msra.mxu0 0.0
    %2193 = vmatprep.subr.mxu0 0.0
    %2194 = vmatpush2.msra.mxu0 0.0
    %2195 = vmatprep.subr.mxu0 0.0
    %2196 = vmatpush2.msra.mxu0 0.0
    %2197 = vmatprep.mubr.f32.mxu0 0.0
    %2198 = vmatmul.mubr.f32.gmra.mxu0 %v2131
    %v2199 = vpop.f32.mrf.mxu0
    %v2200 = vadd.f32 %v303, %v2199
    %v2201 = vpop.f32.mrf.mxu0
    %2202 = vdwg.mxu0
    %v2203 = vxor.u32 %v2200, 2147483648
    %v2204 = vmul.f32 %v2203, 1.442695
    %v2205 = vpow.pop %v2204
    %v2206 = vadd.f32 %v2205, 1.0
    %v2207 = vrcp.pop %v2206
    %v2208 = vmul.f32 1.0, %v2207
    %v2209 = vtanh.pop %v2200
    %v2210 = vmul.f32 %v2208, %v2005
    %2212 = vrot.lane.b32.xlu0 %v2209, 64
    %v2213 = vpop.permute.xlu0 %2212
    %v2215 = vmul.f32 %v2208, %v2213
    %2217 = vrot.lane.b32.xlu0 %v2215, 32
    %v2218 = vpop.permute.xlu0 %2217
    %v2220 = vadd.f32 %v2210, %v2218
    %v2221 = vtanh.pop %v2220
    %2223 = vrot.lane.b32.xlu0 %v2221, 64
    %v2224 = vpop.permute.xlu0 %2223
    %v2226 = vmul.f32 %v2208, %v2224
    %2228 = vrot.lane.b32.xlu0 %v2226, 32
    %v2229 = vpop.permute.xlu0 %2228
    %v2231 = vsel %vm70, %v2229, %v2123
    %v2233 = vsel %vm409, %v2231, 0
    %2235 = vmatprep.subr.mxu0 0.0
    %2236 = vmatpush1.msra.mxu0 0.0
    %2237 = vmatprep.subr.mxu0 0.0
    %2238 = vmatpush1.msra.mxu0 0.0
    %2239 = vmatprep.subr.mxu0 0.0
    %2240 = vmatpush1.msra.mxu0 0.0
    %2241 = vmatprep.subr.mxu0 0.0
    %2242 = vmatpush1.msra.mxu0 0.0
    %2243 = vmatprep.subr.mxu0 0.0
    %2244 = vmatpush1.msra.mxu0 0.0
    %2245 = vmatprep.subr.mxu0 0.0
    %2246 = vmatpush1.msra.mxu0 0.0
    %2247 = vmatprep.subr.mxu0 0.0
    %2248 = vmatpush1.msra.mxu0 0.0
    %2249 = vmatprep.subr.mxu0 0.0
    %2250 = vmatpush1.msra.mxu0 0.0
    %2251 = vmatprep.subr.mxu0 0.0
    %2252 = vmatpush1.msra.mxu0 %v406
    %2253 = vmatprep.subr.mxu0 0.0
    %2254 = vmatpush1.msra.mxu0 %v405
    %2255 = vmatprep.subr.mxu0 0.0
    %2256 = vmatpush1.msra.mxu0 %v404
    %2257 = vmatprep.subr.mxu0 0.0
    %2258 = vmatpush1.msra.mxu0 %v403
    %2259 = vmatprep.subr.mxu0 0.0
    %2260 = vmatpush1.msra.mxu0 %v402
    %2261 = vmatprep.subr.mxu0 0.0
    %2262 = vmatpush1.msra.mxu0 %v401
    %2263 = vmatprep.subr.mxu0 0.0
    %2264 = vmatpush1.msra.mxu0 %v400
    %2265 = vmatprep.subr.mxu0 0.0
    %2266 = vmatpush1.msra.mxu0 %v399
    %2267 = vmatprep.subr.mxu0 0.0
    %2268 = vmatpush2.msra.mxu0 0.0
    %2269 = vmatprep.subr.mxu0 0.0
    %2270 = vmatpush2.msra.mxu0 0.0
    %2271 = vmatprep.subr.mxu0 0.0
    %2272 = vmatpush2.msra.mxu0 0.0
    %2273 = vmatprep.subr.mxu0 0.0
    %2274 = vmatpush2.msra.mxu0 0.0
    %2275 = vmatprep.subr.mxu0 0.0
    %2276 = vmatpush2.msra.mxu0 0.0
    %2277 = vmatprep.subr.mxu0 0.0
    %2278 = vmatpush2.msra.mxu0 0.0
    %2279 = vmatprep.subr.mxu0 0.0
    %2280 = vmatpush2.msra.mxu0 0.0
    %2281 = vmatprep.subr.mxu0 0.0
    %2282 = vmatpush2.msra.mxu0 0.0
    %2283 = vmatprep.subr.mxu0 0.0
    %2284 = vmatpush2.msra.mxu0 0.0
    %2285 = vmatprep.subr.mxu0 0.0
    %2286 = vmatpush2.msra.mxu0 0.0
    %2287 = vmatprep.subr.mxu0 0.0
    %2288 = vmatpush2.msra.mxu0 0.0
    %2289 = vmatprep.subr.mxu0 0.0
    %2290 = vmatpush2.msra.mxu0 0.0
    %2291 = vmatprep.subr.mxu0 0.0
    %2292 = vmatpush2.msra.mxu0 0.0
    %2293 = vmatprep.subr.mxu0 0.0
    %2294 = vmatpush2.msra.mxu0 0.0
    %2295 = vmatprep.subr.mxu0 0.0
    %2296 = vmatpush2.msra.mxu0 0.0
    %2297 = vmatprep.subr.mxu0 0.0
    %2298 = vmatpush2.msra.mxu0 0.0
    %2299 = vmatprep.mubr.f32.mxu0 0.0
    %2300 = vmatmul.mubr.f32.gmra.mxu0 %v2233
    %v2301 = vpop.f32.mrf.mxu0
    %v2302 = vadd.f32 %v384, %v2301
    %v2303 = vpop.f32.mrf.mxu0
    %2304 = vdwg.mxu0
    %v2305 = vxor.u32 %v2302, 2147483648
    %v2306 = vmul.f32 %v2305, 1.442695
    %v2307 = vpow.pop %v2306
    %v2308 = vadd.f32 %v2307, 1.0
    %v2309 = vrcp.pop %v2308
    %v2310 = vmul.f32 1.0, %v2309
    %v2311 = vtanh.pop %v2302
    %v2312 = vmul.f32 %v2310, %v2107
    %2314 = vrot.lane.b32.xlu0 %v2311, 64
    %v2315 = vpop.permute.xlu0 %2314
    %v2317 = vmul.f32 %v2310, %v2315
    %2319 = vrot.lane.b32.xlu0 %v2317, 32
    %v2320 = vpop.permute.xlu0 %2319
    %v2322 = vadd.f32 %v2312, %v2320
    %v2323 = vtanh.pop %v2322
    %2325 = vrot.lane.b32.xlu0 %v2323, 64
    %v2326 = vpop.permute.xlu0 %2325
    %v2328 = vmul.f32 %v2310, %v2326
    %2330 = vrot.lane.b32.xlu0 %v2328, 32
    %v2331 = vpop.permute.xlu0 %2330
    %s2333 = scalar_lea.vmem [#allocation2], 64
    %2334 = vst.msk [vmem:[%s2333] sm:$0xff] %vm70, %v2331
    %s2335 = scalar_lea.vmem %s1, 64
    %v2336 = vld [vmem:[%s2335] sm:$0xff]
    %2337 = vrot.lane.b32.xlu0 %v2328, 64
    %v2338 = vpop.permute.xlu0 %2337
    %2340 = vrot.lane.b32.xlu0 %v2226, 96
    %v2341 = vpop.permute.xlu0 %2340
    %v2343 = vsel %vm70, %v2336, %v2338
    %v2344 = vsel %vm409, %v2343, %v2341
    %v2346 = vsel %vm411, %v2344, 0
    %2348 = vmatprep.subr.mxu0 0.0
    %2349 = vmatpush1.msra.mxu0 0.0
    %2350 = vmatprep.subr.mxu0 0.0
    %2351 = vmatpush1.msra.mxu0 0.0
    %2352 = vmatprep.subr.mxu0 0.0
    %2353 = vmatpush1.msra.mxu0 0.0
    %2354 = vmatprep.subr.mxu0 0.0
    %2355 = vmatpush1.msra.mxu0 0.0
    %2356 = vmatprep.subr.mxu0 0.0
    %2357 = vmatpush1.msra.mxu0 %v398
    %2358 = vmatprep.subr.mxu0 0.0
    %2359 = vmatpush1.msra.mxu0 %v397
    %2360 = vmatprep.subr.mxu0 0.0
    %2361 = vmatpush1.msra.mxu0 %v396
    %2362 = vmatprep.subr.mxu0 0.0
    %2363 = vmatpush1.msra.mxu0 %v395
    %2364 = vmatprep.subr.mxu0 0.0
    %2365 = vmatpush1.msra.mxu0 %v394
    %2366 = vmatprep.subr.mxu0 0.0
    %2367 = vmatpush1.msra.mxu0 %v393
    %2368 = vmatprep.subr.mxu0 0.0
    %2369 = vmatpush1.msra.mxu0 %v392
    %2370 = vmatprep.subr.mxu0 0.0
    %2371 = vmatpush1.msra.mxu0 %v391
    %2372 = vmatprep.subr.mxu0 0.0
    %2373 = vmatpush1.msra.mxu0 %v390
    %2374 = vmatprep.subr.mxu0 0.0
    %2375 = vmatpush1.msra.mxu0 %v389
    %2376 = vmatprep.subr.mxu0 0.0
    %2377 = vmatpush1.msra.mxu0 %v388
    %2378 = vmatprep.subr.mxu0 0.0
    %2379 = vmatpush1.msra.mxu0 %v387
    %2380 = vmatprep.subr.mxu0 0.0
    %2381 = vmatpush2.msra.mxu0 0.0
    %2382 = vmatprep.subr.mxu0 0.0
    %2383 = vmatpush2.msra.mxu0 0.0
    %2384 = vmatprep.subr.mxu0 0.0
    %2385 = vmatpush2.msra.mxu0 0.0
    %2386 = vmatprep.subr.mxu0 0.0
    %2387 = vmatpush2.msra.mxu0 0.0
    %2388 = vmatprep.subr.mxu0 0.0
    %2389 = vmatpush2.msra.mxu0 0.0
    %2390 = vmatprep.subr.mxu0 0.0
    %2391 = vmatpush2.msra.mxu0 0.0
    %2392 = vmatprep.subr.mxu0 0.0
    %2393 = vmatpush2.msra.mxu0 0.0
    %2394 = vmatprep.subr.mxu0 0.0
    %2395 = vmatpush2.msra.mxu0 0.0
    %2396 = vmatprep.subr.mxu0 0.0
    %2397 = vmatpush2.msra.mxu0 0.0
    %2398 = vmatprep.subr.mxu0 0.0
    %2399 = vmatpush2.msra.mxu0 0.0
    %2400 = vmatprep.subr.mxu0 0.0
    %2401 = vmatpush2.msra.mxu0 0.0
    %2402 = vmatprep.subr.mxu0 0.0
    %2403 = vmatpush2.msra.mxu0 0.0
    %2404 = vmatprep.subr.mxu0 0.0
    %2405 = vmatpush2.msra.mxu0 0.0
    %2406 = vmatprep.subr.mxu0 0.0
    %2407 = vmatpush2.msra.mxu0 0.0
    %2408 = vmatprep.subr.mxu0 0.0
    %2409 = vmatpush2.msra.mxu0 0.0
    %2410 = vmatprep.subr.mxu0 0.0
    %2411 = vmatpush2.msra.mxu0 0.0
    %2412 = vmatprep.mubr.f32.mxu0 0.0
    %2413 = vmatmul.mubr.f32.gmra.mxu0 %v2346
    %v2414 = vpop.f32.mrf.mxu0
    %v2415 = vadd.f32 %v303, %v2414
    %v2416 = vpop.f32.mrf.mxu0
    %2417 = vdwg.mxu0
    %v2418 = vxor.u32 %v2415, 2147483648
    %v2419 = vmul.f32 %v2418, 1.442695
    %v2420 = vpow.pop %v2419
    %v2421 = vadd.f32 %v2420, 1.0
    %v2422 = vrcp.pop %v2421
    %v2423 = vmul.f32 1.0, %v2422
    %v2424 = vtanh.pop %v2415
    %v2425 = vmul.f32 %v2423, %v2220
    %2427 = vrot.lane.b32.xlu0 %v2424, 64
    %v2428 = vpop.permute.xlu0 %2427
    %v2430 = vmul.f32 %v2423, %v2428
    %2432 = vrot.lane.b32.xlu0 %v2430, 32
    %v2433 = vpop.permute.xlu0 %2432
    %v2435 = vadd.f32 %v2425, %v2433
    %v2436 = vtanh.pop %v2435
    %2438 = vrot.lane.b32.xlu0 %v2436, 64
    %v2439 = vpop.permute.xlu0 %2438
    %v2441 = vmul.f32 %v2423, %v2439
    %2443 = vrot.lane.b32.xlu0 %v2441, 32
    %v2444 = vpop.permute.xlu0 %2443
    %v2446 = vsel %vm70, %v2444, %v2338
    %v2448 = vsel %vm409, %v2446, 0
    %2450 = vmatprep.subr.mxu0 0.0
    %2451 = vmatpush1.msra.mxu0 0.0
    %2452 = vmatprep.subr.mxu0 0.0
    %2453 = vmatpush1.msra.mxu0 0.0
    %2454 = vmatprep.subr.mxu0 0.0
    %2455 = vmatpush1.msra.mxu0 0.0
    %2456 = vmatprep.subr.mxu0 0.0
    %2457 = vmatpush1.msra.mxu0 0.0
    %2458 = vmatprep.subr.mxu0 0.0
    %2459 = vmatpush1.msra.mxu0 0.0
    %2460 = vmatprep.subr.mxu0 0.0
    %2461 = vmatpush1.msra.mxu0 0.0
    %2462 = vmatprep.subr.mxu0 0.0
    %2463 = vmatpush1.msra.mxu0 0.0
    %2464 = vmatprep.subr.mxu0 0.0
    %2465 = vmatpush1.msra.mxu0 0.0
    %2466 = vmatprep.subr.mxu0 0.0
    %2467 = vmatpush1.msra.mxu0 %v406
    %2468 = vmatprep.subr.mxu0 0.0
    %2469 = vmatpush1.msra.mxu0 %v405
    %2470 = vmatprep.subr.mxu0 0.0
    %2471 = vmatpush1.msra.mxu0 %v404
    %2472 = vmatprep.subr.mxu0 0.0
    %2473 = vmatpush1.msra.mxu0 %v403
    %2474 = vmatprep.subr.mxu0 0.0
    %2475 = vmatpush1.msra.mxu0 %v402
    %2476 = vmatprep.subr.mxu0 0.0
    %2477 = vmatpush1.msra.mxu0 %v401
    %2478 = vmatprep.subr.mxu0 0.0
    %2479 = vmatpush1.msra.mxu0 %v400
    %2480 = vmatprep.subr.mxu0 0.0
    %2481 = vmatpush1.msra.mxu0 %v399
    %2482 = vmatprep.subr.mxu0 0.0
    %2483 = vmatpush2.msra.mxu0 0.0
    %2484 = vmatprep.subr.mxu0 0.0
    %2485 = vmatpush2.msra.mxu0 0.0
    %2486 = vmatprep.subr.mxu0 0.0
    %2487 = vmatpush2.msra.mxu0 0.0
    %2488 = vmatprep.subr.mxu0 0.0
    %2489 = vmatpush2.msra.mxu0 0.0
    %2490 = vmatprep.subr.mxu0 0.0
    %2491 = vmatpush2.msra.mxu0 0.0
    %2492 = vmatprep.subr.mxu0 0.0
    %2493 = vmatpush2.msra.mxu0 0.0
    %2494 = vmatprep.subr.mxu0 0.0
    %2495 = vmatpush2.msra.mxu0 0.0
    %2496 = vmatprep.subr.mxu0 0.0
    %2497 = vmatpush2.msra.mxu0 0.0
    %2498 = vmatprep.subr.mxu0 0.0
    %2499 = vmatpush2.msra.mxu0 0.0
    %2500 = vmatprep.subr.mxu0 0.0
    %2501 = vmatpush2.msra.mxu0 0.0
    %2502 = vmatprep.subr.mxu0 0.0
    %2503 = vmatpush2.msra.mxu0 0.0
    %2504 = vmatprep.subr.mxu0 0.0
    %2505 = vmatpush2.msra.mxu0 0.0
    %2506 = vmatprep.subr.mxu0 0.0
    %2507 = vmatpush2.msra.mxu0 0.0
    %2508 = vmatprep.subr.mxu0 0.0
    %2509 = vmatpush2.msra.mxu0 0.0
    %2510 = vmatprep.subr.mxu0 0.0
    %2511 = vmatpush2.msra.mxu0 0.0
    %2512 = vmatprep.subr.mxu0 0.0
    %2513 = vmatpush2.msra.mxu0 0.0
    %2514 = vmatprep.mubr.f32.mxu0 0.0
    %2515 = vmatmul.mubr.f32.gmra.mxu0 %v2448
    %v2516 = vpop.f32.mrf.mxu0
    %v2517 = vadd.f32 %v384, %v2516
    %v2518 = vpop.f32.mrf.mxu0
    %2519 = vdwg.mxu0
    %v2520 = vxor.u32 %v2517, 2147483648
    %v2521 = vmul.f32 %v2520, 1.442695
    %v2522 = vpow.pop %v2521
    %v2523 = vadd.f32 %v2522, 1.0
    %v2524 = vrcp.pop %v2523
    %v2525 = vmul.f32 1.0, %v2524
    %v2526 = vtanh.pop %v2517
    %v2527 = vmul.f32 %v2525, %v2322
    %2529 = vrot.lane.b32.xlu0 %v2526, 64
    %v2530 = vpop.permute.xlu0 %2529
    %v2532 = vmul.f32 %v2525, %v2530
    %2534 = vrot.lane.b32.xlu0 %v2532, 32
    %v2535 = vpop.permute.xlu0 %2534
    %v2537 = vadd.f32 %v2527, %v2535
    %v2538 = vtanh.pop %v2537
    %2540 = vrot.lane.b32.xlu0 %v2538, 64
    %v2541 = vpop.permute.xlu0 %2540
    %v2543 = vmul.f32 %v2525, %v2541
    %2545 = vrot.lane.b32.xlu0 %v2543, 32
    %v2546 = vpop.permute.xlu0 %2545
    %s2548 = scalar_lea.vmem [#allocation2], 72
    %2549 = vst.msk [vmem:[%s2548] sm:$0xff] %vm70, %v2546
    %s2550 = scalar_lea.vmem %s1, 72
    %v2551 = vld [vmem:[%s2550] sm:$0xff]
    %2552 = vrot.lane.b32.xlu0 %v2543, 64
    %v2553 = vpop.permute.xlu0 %2552
    %2555 = vrot.lane.b32.xlu0 %v2441, 96
    %v2556 = vpop.permute.xlu0 %2555
    %v2558 = vsel %vm70, %v2551, %v2553
    %v2559 = vsel %vm409, %v2558, %v2556
    %v2561 = vsel %vm411, %v2559, 0
    %2563 = vmatprep.subr.mxu0 0.0
    %2564 = vmatpush1.msra.mxu0 0.0
    %2565 = vmatprep.subr.mxu0 0.0
    %2566 = vmatpush1.msra.mxu0 0.0
    %2567 = vmatprep.subr.mxu0 0.0
    %2568 = vmatpush1.msra.mxu0 0.0
    %2569 = vmatprep.subr.mxu0 0.0
    %2570 = vmatpush1.msra.mxu0 0.0
    %2571 = vmatprep.subr.mxu0 0.0
    %2572 = vmatpush1.msra.mxu0 %v398
    %2573 = vmatprep.subr.mxu0 0.0
    %2574 = vmatpush1.msra.mxu0 %v397
    %2575 = vmatprep.subr.mxu0 0.0
    %2576 = vmatpush1.msra.mxu0 %v396
    %2577 = vmatprep.subr.mxu0 0.0
    %2578 = vmatpush1.msra.mxu0 %v395
    %2579 = vmatprep.subr.mxu0 0.0
    %2580 = vmatpush1.msra.mxu0 %v394
    %2581 = vmatprep.subr.mxu0 0.0
    %2582 = vmatpush1.msra.mxu0 %v393
    %2583 = vmatprep.subr.mxu0 0.0
    %2584 = vmatpush1.msra.mxu0 %v392
    %2585 = vmatprep.subr.mxu0 0.0
    %2586 = vmatpush1.msra.mxu0 %v391
    %2587 = vmatprep.subr.mxu0 0.0
    %2588 = vmatpush1.msra.mxu0 %v390
    %2589 = vmatprep.subr.mxu0 0.0
    %2590 = vmatpush1.msra.mxu0 %v389
    %2591 = vmatprep.subr.mxu0 0.0
    %2592 = vmatpush1.msra.mxu0 %v388
    %2593 = vmatprep.subr.mxu0 0.0
    %2594 = vmatpush1.msra.mxu0 %v387
    %2595 = vmatprep.subr.mxu0 0.0
    %2596 = vmatpush2.msra.mxu0 0.0
    %2597 = vmatprep.subr.mxu0 0.0
    %2598 = vmatpush2.msra.mxu0 0.0
    %2599 = vmatprep.subr.mxu0 0.0
    %2600 = vmatpush2.msra.mxu0 0.0
    %2601 = vmatprep.subr.mxu0 0.0
    %2602 = vmatpush2.msra.mxu0 0.0
    %2603 = vmatprep.subr.mxu0 0.0
    %2604 = vmatpush2.msra.mxu0 0.0
    %2605 = vmatprep.subr.mxu0 0.0
    %2606 = vmatpush2.msra.mxu0 0.0
    %2607 = vmatprep.subr.mxu0 0.0
    %2608 = vmatpush2.msra.mxu0 0.0
    %2609 = vmatprep.subr.mxu0 0.0
    %2610 = vmatpush2.msra.mxu0 0.0
    %2611 = vmatprep.subr.mxu0 0.0
    %2612 = vmatpush2.msra.mxu0 0.0
    %2613 = vmatprep.subr.mxu0 0.0
    %2614 = vmatpush2.msra.mxu0 0.0
    %2615 = vmatprep.subr.mxu0 0.0
    %2616 = vmatpush2.msra.mxu0 0.0
    %2617 = vmatprep.subr.mxu0 0.0
    %2618 = vmatpush2.msra.mxu0 0.0
    %2619 = vmatprep.subr.mxu0 0.0
    %2620 = vmatpush2.msra.mxu0 0.0
    %2621 = vmatprep.subr.mxu0 0.0
    %2622 = vmatpush2.msra.mxu0 0.0
    %2623 = vmatprep.subr.mxu0 0.0
    %2624 = vmatpush2.msra.mxu0 0.0
    %2625 = vmatprep.subr.mxu0 0.0
    %2626 = vmatpush2.msra.mxu0 0.0
    %2627 = vmatprep.mubr.f32.mxu0 0.0
    %2628 = vmatmul.mubr.f32.gmra.mxu0 %v2561
    %v2629 = vpop.f32.mrf.mxu0
    %v2630 = vadd.f32 %v303, %v2629
    %v2631 = vpop.f32.mrf.mxu0
    %2632 = vdwg.mxu0
    %v2633 = vxor.u32 %v2630, 2147483648
    %v2634 = vmul.f32 %v2633, 1.442695
    %v2635 = vpow.pop %v2634
    %v2636 = vadd.f32 %v2635, 1.0
    %v2637 = vrcp.pop %v2636
    %v2638 = vmul.f32 1.0, %v2637
    %v2639 = vtanh.pop %v2630
    %v2640 = vmul.f32 %v2638, %v2435
    %2642 = vrot.lane.b32.xlu0 %v2639, 64
    %v2643 = vpop.permute.xlu0 %2642
    %v2645 = vmul.f32 %v2638, %v2643
    %2647 = vrot.lane.b32.xlu0 %v2645, 32
    %v2648 = vpop.permute.xlu0 %2647
    %v2650 = vadd.f32 %v2640, %v2648
    %v2651 = vtanh.pop %v2650
    %2653 = vrot.lane.b32.xlu0 %v2651, 64
    %v2654 = vpop.permute.xlu0 %2653
    %v2656 = vmul.f32 %v2638, %v2654
    %2658 = vrot.lane.b32.xlu0 %v2656, 32
    %v2659 = vpop.permute.xlu0 %2658
    %v2661 = vsel %vm70, %v2659, %v2553
    %v2663 = vsel %vm409, %v2661, 0
    %2665 = vmatprep.subr.mxu0 0.0
    %2666 = vmatpush1.msra.mxu0 0.0
    %2667 = vmatprep.subr.mxu0 0.0
    %2668 = vmatpush1.msra.mxu0 0.0
    %2669 = vmatprep.subr.mxu0 0.0
    %2670 = vmatpush1.msra.mxu0 0.0
    %2671 = vmatprep.subr.mxu0 0.0
    %2672 = vmatpush1.msra.mxu0 0.0
    %2673 = vmatprep.subr.mxu0 0.0
    %2674 = vmatpush1.msra.mxu0 0.0
    %2675 = vmatprep.subr.mxu0 0.0
    %2676 = vmatpush1.msra.mxu0 0.0
    %2677 = vmatprep.subr.mxu0 0.0
    %2678 = vmatpush1.msra.mxu0 0.0
    %2679 = vmatprep.subr.mxu0 0.0
    %2680 = vmatpush1.msra.mxu0 0.0
    %2681 = vmatprep.subr.mxu0 0.0
    %2682 = vmatpush1.msra.mxu0 %v406
    %2683 = vmatprep.subr.mxu0 0.0
    %2684 = vmatpush1.msra.mxu0 %v405
    %2685 = vmatprep.subr.mxu0 0.0
    %2686 = vmatpush1.msra.mxu0 %v404
    %2687 = vmatprep.subr.mxu0 0.0
    %2688 = vmatpush1.msra.mxu0 %v403
    %2689 = vmatprep.subr.mxu0 0.0
    %2690 = vmatpush1.msra.mxu0 %v402
    %2691 = vmatprep.subr.mxu0 0.0
    %2692 = vmatpush1.msra.mxu0 %v401
    %2693 = vmatprep.subr.mxu0 0.0
    %2694 = vmatpush1.msra.mxu0 %v400
    %2695 = vmatprep.subr.mxu0 0.0
    %2696 = vmatpush1.msra.mxu0 %v399
    %2697 = vmatprep.subr.mxu0 0.0
    %2698 = vmatpush2.msra.mxu0 0.0
    %2699 = vmatprep.subr.mxu0 0.0
    %2700 = vmatpush2.msra.mxu0 0.0
    %2701 = vmatprep.subr.mxu0 0.0
    %2702 = vmatpush2.msra.mxu0 0.0
    %2703 = vmatprep.subr.mxu0 0.0
    %2704 = vmatpush2.msra.mxu0 0.0
    %2705 = vmatprep.subr.mxu0 0.0
    %2706 = vmatpush2.msra.mxu0 0.0
    %2707 = vmatprep.subr.mxu0 0.0
    %2708 = vmatpush2.msra.mxu0 0.0
    %2709 = vmatprep.subr.mxu0 0.0
    %2710 = vmatpush2.msra.mxu0 0.0
    %2711 = vmatprep.subr.mxu0 0.0
    %2712 = vmatpush2.msra.mxu0 0.0
    %2713 = vmatprep.subr.mxu0 0.0
    %2714 = vmatpush2.msra.mxu0 0.0
    %2715 = vmatprep.subr.mxu0 0.0
    %2716 = vmatpush2.msra.mxu0 0.0
    %2717 = vmatprep.subr.mxu0 0.0
    %2718 = vmatpush2.msra.mxu0 0.0
    %2719 = vmatprep.subr.mxu0 0.0
    %2720 = vmatpush2.msra.mxu0 0.0
    %2721 = vmatprep.subr.mxu0 0.0
    %2722 = vmatpush2.msra.mxu0 0.0
    %2723 = vmatprep.subr.mxu0 0.0
    %2724 = vmatpush2.msra.mxu0 0.0
    %2725 = vmatprep.subr.mxu0 0.0
    %2726 = vmatpush2.msra.mxu0 0.0
    %2727 = vmatprep.subr.mxu0 0.0
    %2728 = vmatpush2.msra.mxu0 0.0
    %2729 = vmatprep.mubr.f32.mxu0 0.0
    %2730 = vmatmul.mubr.f32.gmra.mxu0 %v2663
    %v2731 = vpop.f32.mrf.mxu0
    %v2732 = vadd.f32 %v384, %v2731
    %v2733 = vpop.f32.mrf.mxu0
    %2734 = vdwg.mxu0
    %v2735 = vxor.u32 %v2732, 2147483648
    %v2736 = vmul.f32 %v2735, 1.442695
    %v2737 = vpow.pop %v2736
    %v2738 = vadd.f32 %v2737, 1.0
    %v2739 = vrcp.pop %v2738
    %v2740 = vmul.f32 1.0, %v2739
    %v2741 = vtanh.pop %v2732
    %v2742 = vmul.f32 %v2740, %v2537
    %2744 = vrot.lane.b32.xlu0 %v2741, 64
    %v2745 = vpop.permute.xlu0 %2744
    %v2747 = vmul.f32 %v2740, %v2745
    %2749 = vrot.lane.b32.xlu0 %v2747, 32
    %v2750 = vpop.permute.xlu0 %2749
    %v2752 = vadd.f32 %v2742, %v2750
    %v2753 = vtanh.pop %v2752
    %2755 = vrot.lane.b32.xlu0 %v2753, 64
    %v2756 = vpop.permute.xlu0 %2755
    %v2758 = vmul.f32 %v2740, %v2756
    %2760 = vrot.lane.b32.xlu0 %v2758, 32
    %v2761 = vpop.permute.xlu0 %2760
    %s2763 = scalar_lea.vmem [#allocation2], 80
    %2764 = vst.msk [vmem:[%s2763] sm:$0xff] %vm70, %v2761
    %s2765 = scalar_lea.vmem %s1, 80
    %v2766 = vld [vmem:[%s2765] sm:$0xff]
    %2767 = vrot.lane.b32.xlu0 %v2758, 64
    %v2768 = vpop.permute.xlu0 %2767
    %2770 = vrot.lane.b32.xlu0 %v2656, 96
    %v2771 = vpop.permute.xlu0 %2770
    %v2773 = vsel %vm70, %v2766, %v2768
    %v2774 = vsel %vm409, %v2773, %v2771
    %v2776 = vsel %vm411, %v2774, 0
    %2778 = vmatprep.subr.mxu0 0.0
    %2779 = vmatpush1.msra.mxu0 0.0
    %2780 = vmatprep.subr.mxu0 0.0
    %2781 = vmatpush1.msra.mxu0 0.0
    %2782 = vmatprep.subr.mxu0 0.0
    %2783 = vmatpush1.msra.mxu0 0.0
    %2784 = vmatprep.subr.mxu0 0.0
    %2785 = vmatpush1.msra.mxu0 0.0
    %2786 = vmatprep.subr.mxu0 0.0
    %2787 = vmatpush1.msra.mxu0 %v398
    %2788 = vmatprep.subr.mxu0 0.0
    %2789 = vmatpush1.msra.mxu0 %v397
    %2790 = vmatprep.subr.mxu0 0.0
    %2791 = vmatpush1.msra.mxu0 %v396
    %2792 = vmatprep.subr.mxu0 0.0
    %2793 = vmatpush1.msra.mxu0 %v395
    %2794 = vmatprep.subr.mxu0 0.0
    %2795 = vmatpush1.msra.mxu0 %v394
    %2796 = vmatprep.subr.mxu0 0.0
    %2797 = vmatpush1.msra.mxu0 %v393
    %2798 = vmatprep.subr.mxu0 0.0
    %2799 = vmatpush1.msra.mxu0 %v392
    %2800 = vmatprep.subr.mxu0 0.0
    %2801 = vmatpush1.msra.mxu0 %v391
    %2802 = vmatprep.subr.mxu0 0.0
    %2803 = vmatpush1.msra.mxu0 %v390
    %2804 = vmatprep.subr.mxu0 0.0
    %2805 = vmatpush1.msra.mxu0 %v389
    %2806 = vmatprep.subr.mxu0 0.0
    %2807 = vmatpush1.msra.mxu0 %v388
    %2808 = vmatprep.subr.mxu0 0.0
    %2809 = vmatpush1.msra.mxu0 %v387
    %2810 = vmatprep.subr.mxu0 0.0
    %2811 = vmatpush2.msra.mxu0 0.0
    %2812 = vmatprep.subr.mxu0 0.0
    %2813 = vmatpush2.msra.mxu0 0.0
    %2814 = vmatprep.subr.mxu0 0.0
    %2815 = vmatpush2.msra.mxu0 0.0
    %2816 = vmatprep.subr.mxu0 0.0
    %2817 = vmatpush2.msra.mxu0 0.0
    %2818 = vmatprep.subr.mxu0 0.0
    %2819 = vmatpush2.msra.mxu0 0.0
    %2820 = vmatprep.subr.mxu0 0.0
    %2821 = vmatpush2.msra.mxu0 0.0
    %2822 = vmatprep.subr.mxu0 0.0
    %2823 = vmatpush2.msra.mxu0 0.0
    %2824 = vmatprep.subr.mxu0 0.0
    %2825 = vmatpush2.msra.mxu0 0.0
    %2826 = vmatprep.subr.mxu0 0.0
    %2827 = vmatpush2.msra.mxu0 0.0
    %2828 = vmatprep.subr.mxu0 0.0
    %2829 = vmatpush2.msra.mxu0 0.0
    %2830 = vmatprep.subr.mxu0 0.0
    %2831 = vmatpush2.msra.mxu0 0.0
    %2832 = vmatprep.subr.mxu0 0.0
    %2833 = vmatpush2.msra.mxu0 0.0
    %2834 = vmatprep.subr.mxu0 0.0
    %2835 = vmatpush2.msra.mxu0 0.0
    %2836 = vmatprep.subr.mxu0 0.0
    %2837 = vmatpush2.msra.mxu0 0.0
    %2838 = vmatprep.subr.mxu0 0.0
    %2839 = vmatpush2.msra.mxu0 0.0
    %2840 = vmatprep.subr.mxu0 0.0
    %2841 = vmatpush2.msra.mxu0 0.0
    %2842 = vmatprep.mubr.f32.mxu0 0.0
    %2843 = vmatmul.mubr.f32.gmra.mxu0 %v2776
    %v2844 = vpop.f32.mrf.mxu0
    %v2845 = vadd.f32 %v303, %v2844
    %v2846 = vpop.f32.mrf.mxu0
    %2847 = vdwg.mxu0
    %v2848 = vxor.u32 %v2845, 2147483648
    %v2849 = vmul.f32 %v2848, 1.442695
    %v2850 = vpow.pop %v2849
    %v2851 = vadd.f32 %v2850, 1.0
    %v2852 = vrcp.pop %v2851
    %v2853 = vmul.f32 1.0, %v2852
    %v2854 = vtanh.pop %v2845
    %v2855 = vmul.f32 %v2853, %v2650
    %2857 = vrot.lane.b32.xlu0 %v2854, 64
    %v2858 = vpop.permute.xlu0 %2857
    %v2860 = vmul.f32 %v2853, %v2858
    %2862 = vrot.lane.b32.xlu0 %v2860, 32
    %v2863 = vpop.permute.xlu0 %2862
    %v2865 = vadd.f32 %v2855, %v2863
    %v2866 = vtanh.pop %v2865
    %2868 = vrot.lane.b32.xlu0 %v2866, 64
    %v2869 = vpop.permute.xlu0 %2868
    %v2871 = vmul.f32 %v2853, %v2869
    %2873 = vrot.lane.b32.xlu0 %v2871, 32
    %v2874 = vpop.permute.xlu0 %2873
    %v2876 = vsel %vm70, %v2874, %v2768
    %v2878 = vsel %vm409, %v2876, 0
    %2880 = vmatprep.subr.mxu0 0.0
    %2881 = vmatpush1.msra.mxu0 0.0
    %2882 = vmatprep.subr.mxu0 0.0
    %2883 = vmatpush1.msra.mxu0 0.0
    %2884 = vmatprep.subr.mxu0 0.0
    %2885 = vmatpush1.msra.mxu0 0.0
    %2886 = vmatprep.subr.mxu0 0.0
    %2887 = vmatpush1.msra.mxu0 0.0
    %2888 = vmatprep.subr.mxu0 0.0
    %2889 = vmatpush1.msra.mxu0 0.0
    %2890 = vmatprep.subr.mxu0 0.0
    %2891 = vmatpush1.msra.mxu0 0.0
    %2892 = vmatprep.subr.mxu0 0.0
    %2893 = vmatpush1.msra.mxu0 0.0
    %2894 = vmatprep.subr.mxu0 0.0
    %2895 = vmatpush1.msra.mxu0 0.0
    %2896 = vmatprep.subr.mxu0 0.0
    %2897 = vmatpush1.msra.mxu0 %v406
    %2898 = vmatprep.subr.mxu0 0.0
    %2899 = vmatpush1.msra.mxu0 %v405
    %2900 = vmatprep.subr.mxu0 0.0
    %2901 = vmatpush1.msra.mxu0 %v404
    %2902 = vmatprep.subr.mxu0 0.0
    %2903 = vmatpush1.msra.mxu0 %v403
    %2904 = vmatprep.subr.mxu0 0.0
    %2905 = vmatpush1.msra.mxu0 %v402
    %2906 = vmatprep.subr.mxu0 0.0
    %2907 = vmatpush1.msra.mxu0 %v401
    %2908 = vmatprep.subr.mxu0 0.0
    %2909 = vmatpush1.msra.mxu0 %v400
    %2910 = vmatprep.subr.mxu0 0.0
    %2911 = vmatpush1.msra.mxu0 %v399
    %2912 = vmatprep.subr.mxu0 0.0
    %2913 = vmatpush2.msra.mxu0 0.0
    %2914 = vmatprep.subr.mxu0 0.0
    %2915 = vmatpush2.msra.mxu0 0.0
    %2916 = vmatprep.subr.mxu0 0.0
    %2917 = vmatpush2.msra.mxu0 0.0
    %2918 = vmatprep.subr.mxu0 0.0
    %2919 = vmatpush2.msra.mxu0 0.0
    %2920 = vmatprep.subr.mxu0 0.0
    %2921 = vmatpush2.msra.mxu0 0.0
    %2922 = vmatprep.subr.mxu0 0.0
    %2923 = vmatpush2.msra.mxu0 0.0
    %2924 = vmatprep.subr.mxu0 0.0
    %2925 = vmatpush2.msra.mxu0 0.0
    %2926 = vmatprep.subr.mxu0 0.0
    %2927 = vmatpush2.msra.mxu0 0.0
    %2928 = vmatprep.subr.mxu0 0.0
    %2929 = vmatpush2.msra.mxu0 0.0
    %2930 = vmatprep.subr.mxu0 0.0
    %2931 = vmatpush2.msra.mxu0 0.0
    %2932 = vmatprep.subr.mxu0 0.0
    %2933 = vmatpush2.msra.mxu0 0.0
    %2934 = vmatprep.subr.mxu0 0.0
    %2935 = vmatpush2.msra.mxu0 0.0
    %2936 = vmatprep.subr.mxu0 0.0
    %2937 = vmatpush2.msra.mxu0 0.0
    %2938 = vmatprep.subr.mxu0 0.0
    %2939 = vmatpush2.msra.mxu0 0.0
    %2940 = vmatprep.subr.mxu0 0.0
    %2941 = vmatpush2.msra.mxu0 0.0
    %2942 = vmatprep.subr.mxu0 0.0
    %2943 = vmatpush2.msra.mxu0 0.0
    %2944 = vmatprep.mubr.f32.mxu0 0.0
    %2945 = vmatmul.mubr.f32.gmra.mxu0 %v2878
    %v2946 = vpop.f32.mrf.mxu0
    %v2947 = vadd.f32 %v384, %v2946
    %v2948 = vpop.f32.mrf.mxu0
    %2949 = vdwg.mxu0
    %v2950 = vxor.u32 %v2947, 2147483648
    %v2951 = vmul.f32 %v2950, 1.442695
    %v2952 = vpow.pop %v2951
    %v2953 = vadd.f32 %v2952, 1.0
    %v2954 = vrcp.pop %v2953
    %v2955 = vmul.f32 1.0, %v2954
    %v2956 = vtanh.pop %v2947
    %v2957 = vmul.f32 %v2955, %v2752
    %2959 = vrot.lane.b32.xlu0 %v2956, 64
    %v2960 = vpop.permute.xlu0 %2959
    %v2962 = vmul.f32 %v2955, %v2960
    %2964 = vrot.lane.b32.xlu0 %v2962, 32
    %v2965 = vpop.permute.xlu0 %2964
    %v2967 = vadd.f32 %v2957, %v2965
    %v2968 = vtanh.pop %v2967
    %2970 = vrot.lane.b32.xlu0 %v2968, 64
    %v2971 = vpop.permute.xlu0 %2970
    %v2973 = vmul.f32 %v2955, %v2971
    %2975 = vrot.lane.b32.xlu0 %v2973, 32
    %v2976 = vpop.permute.xlu0 %2975
    %s2978 = scalar_lea.vmem [#allocation2], 88
    %2979 = vst.msk [vmem:[%s2978] sm:$0xff] %vm70, %v2976
    %s2980 = scalar_lea.vmem %s1, 88
    %v2981 = vld [vmem:[%s2980] sm:$0xff]
    %2982 = vrot.lane.b32.xlu0 %v2973, 64
    %v2983 = vpop.permute.xlu0 %2982
    %2985 = vrot.lane.b32.xlu0 %v2871, 96
    %v2986 = vpop.permute.xlu0 %2985
    %v2988 = vsel %vm70, %v2981, %v2983
    %v2989 = vsel %vm409, %v2988, %v2986
    %v2991 = vsel %vm411, %v2989, 0
    %2993 = vmatprep.subr.mxu0 0.0
    %2994 = vmatpush1.msra.mxu0 0.0
    %2995 = vmatprep.subr.mxu0 0.0
    %2996 = vmatpush1.msra.mxu0 0.0
    %2997 = vmatprep.subr.mxu0 0.0
    %2998 = vmatpush1.msra.mxu0 0.0
    %2999 = vmatprep.subr.mxu0 0.0
    %3000 = vmatpush1.msra.mxu0 0.0
    %3001 = vmatprep.subr.mxu0 0.0
    %3002 = vmatpush1.msra.mxu0 %v398
    %3003 = vmatprep.subr.mxu0 0.0
    %3004 = vmatpush1.msra.mxu0 %v397
    %3005 = vmatprep.subr.mxu0 0.0
    %3006 = vmatpush1.msra.mxu0 %v396
    %3007 = vmatprep.subr.mxu0 0.0
    %3008 = vmatpush1.msra.mxu0 %v395
    %3009 = vmatprep.subr.mxu0 0.0
    %3010 = vmatpush1.msra.mxu0 %v394
    %3011 = vmatprep.subr.mxu0 0.0
    %3012 = vmatpush1.msra.mxu0 %v393
    %3013 = vmatprep.subr.mxu0 0.0
    %3014 = vmatpush1.msra.mxu0 %v392
    %3015 = vmatprep.subr.mxu0 0.0
    %3016 = vmatpush1.msra.mxu0 %v391
    %3017 = vmatprep.subr.mxu0 0.0
    %3018 = vmatpush1.msra.mxu0 %v390
    %3019 = vmatprep.subr.mxu0 0.0
    %3020 = vmatpush1.msra.mxu0 %v389
    %3021 = vmatprep.subr.mxu0 0.0
    %3022 = vmatpush1.msra.mxu0 %v388
    %3023 = vmatprep.subr.mxu0 0.0
    %3024 = vmatpush1.msra.mxu0 %v387
    %3025 = vmatprep.subr.mxu0 0.0
    %3026 = vmatpush2.msra.mxu0 0.0
    %3027 = vmatprep.subr.mxu0 0.0
    %3028 = vmatpush2.msra.mxu0 0.0
    %3029 = vmatprep.subr.mxu0 0.0
    %3030 = vmatpush2.msra.mxu0 0.0
    %3031 = vmatprep.subr.mxu0 0.0
    %3032 = vmatpush2.msra.mxu0 0.0
    %3033 = vmatprep.subr.mxu0 0.0
    %3034 = vmatpush2.msra.mxu0 0.0
    %3035 = vmatprep.subr.mxu0 0.0
    %3036 = vmatpush2.msra.mxu0 0.0
    %3037 = vmatprep.subr.mxu0 0.0
    %3038 = vmatpush2.msra.mxu0 0.0
    %3039 = vmatprep.subr.mxu0 0.0
    %3040 = vmatpush2.msra.mxu0 0.0
    %3041 = vmatprep.subr.mxu0 0.0
    %3042 = vmatpush2.msra.mxu0 0.0
    %3043 = vmatprep.subr.mxu0 0.0
    %3044 = vmatpush2.msra.mxu0 0.0
    %3045 = vmatprep.subr.mxu0 0.0
    %3046 = vmatpush2.msra.mxu0 0.0
    %3047 = vmatprep.subr.mxu0 0.0
    %3048 = vmatpush2.msra.mxu0 0.0
    %3049 = vmatprep.subr.mxu0 0.0
    %3050 = vmatpush2.msra.mxu0 0.0
    %3051 = vmatprep.subr.mxu0 0.0
    %3052 = vmatpush2.msra.mxu0 0.0
    %3053 = vmatprep.subr.mxu0 0.0
    %3054 = vmatpush2.msra.mxu0 0.0
    %3055 = vmatprep.subr.mxu0 0.0
    %3056 = vmatpush2.msra.mxu0 0.0
    %3057 = vmatprep.mubr.f32.mxu0 0.0
    %3058 = vmatmul.mubr.f32.gmra.mxu0 %v2991
    %v3059 = vpop.f32.mrf.mxu0
    %v3060 = vadd.f32 %v303, %v3059
    %v3061 = vpop.f32.mrf.mxu0
    %3062 = vdwg.mxu0
    %v3063 = vxor.u32 %v3060, 2147483648
    %v3064 = vmul.f32 %v3063, 1.442695
    %v3065 = vpow.pop %v3064
    %v3066 = vadd.f32 %v3065, 1.0
    %v3067 = vrcp.pop %v3066
    %v3068 = vmul.f32 1.0, %v3067
    %v3069 = vtanh.pop %v3060
    %v3070 = vmul.f32 %v3068, %v2865
    %3072 = vrot.lane.b32.xlu0 %v3069, 64
    %v3073 = vpop.permute.xlu0 %3072
    %v3075 = vmul.f32 %v3068, %v3073
    %3077 = vrot.lane.b32.xlu0 %v3075, 32
    %v3078 = vpop.permute.xlu0 %3077
    %v3080 = vadd.f32 %v3070, %v3078
    %v3081 = vtanh.pop %v3080
    %3083 = vrot.lane.b32.xlu0 %v3081, 64
    %v3084 = vpop.permute.xlu0 %3083
    %v3086 = vmul.f32 %v3068, %v3084
    %3088 = vrot.lane.b32.xlu0 %v3086, 32
    %v3089 = vpop.permute.xlu0 %3088
    %v3091 = vsel %vm70, %v3089, %v2983
    %v3093 = vsel %vm409, %v3091, 0
    %3095 = vmatprep.subr.mxu0 0.0
    %3096 = vmatpush1.msra.mxu0 0.0
    %3097 = vmatprep.subr.mxu0 0.0
    %3098 = vmatpush1.msra.mxu0 0.0
    %3099 = vmatprep.subr.mxu0 0.0
    %3100 = vmatpush1.msra.mxu0 0.0
    %3101 = vmatprep.subr.mxu0 0.0
    %3102 = vmatpush1.msra.mxu0 0.0
    %3103 = vmatprep.subr.mxu0 0.0
    %3104 = vmatpush1.msra.mxu0 0.0
    %3105 = vmatprep.subr.mxu0 0.0
    %3106 = vmatpush1.msra.mxu0 0.0
    %3107 = vmatprep.subr.mxu0 0.0
    %3108 = vmatpush1.msra.mxu0 0.0
    %3109 = vmatprep.subr.mxu0 0.0
    %3110 = vmatpush1.msra.mxu0 0.0
    %3111 = vmatprep.subr.mxu0 0.0
    %3112 = vmatpush1.msra.mxu0 %v406
    %3113 = vmatprep.subr.mxu0 0.0
    %3114 = vmatpush1.msra.mxu0 %v405
    %3115 = vmatprep.subr.mxu0 0.0
    %3116 = vmatpush1.msra.mxu0 %v404
    %3117 = vmatprep.subr.mxu0 0.0
    %3118 = vmatpush1.msra.mxu0 %v403
    %3119 = vmatprep.subr.mxu0 0.0
    %3120 = vmatpush1.msra.mxu0 %v402
    %3121 = vmatprep.subr.mxu0 0.0
    %3122 = vmatpush1.msra.mxu0 %v401
    %3123 = vmatprep.subr.mxu0 0.0
    %3124 = vmatpush1.msra.mxu0 %v400
    %3125 = vmatprep.subr.mxu0 0.0
    %3126 = vmatpush1.msra.mxu0 %v399
    %3127 = vmatprep.subr.mxu0 0.0
    %3128 = vmatpush2.msra.mxu0 0.0
    %3129 = vmatprep.subr.mxu0 0.0
    %3130 = vmatpush2.msra.mxu0 0.0
    %3131 = vmatprep.subr.mxu0 0.0
    %3132 = vmatpush2.msra.mxu0 0.0
    %3133 = vmatprep.subr.mxu0 0.0
    %3134 = vmatpush2.msra.mxu0 0.0
    %3135 = vmatprep.subr.mxu0 0.0
    %3136 = vmatpush2.msra.mxu0 0.0
    %3137 = vmatprep.subr.mxu0 0.0
    %3138 = vmatpush2.msra.mxu0 0.0
    %3139 = vmatprep.subr.mxu0 0.0
    %3140 = vmatpush2.msra.mxu0 0.0
    %3141 = vmatprep.subr.mxu0 0.0
    %3142 = vmatpush2.msra.mxu0 0.0
    %3143 = vmatprep.subr.mxu0 0.0
    %3144 = vmatpush2.msra.mxu0 0.0
    %3145 = vmatprep.subr.mxu0 0.0
    %3146 = vmatpush2.msra.mxu0 0.0
    %3147 = vmatprep.subr.mxu0 0.0
    %3148 = vmatpush2.msra.mxu0 0.0
    %3149 = vmatprep.subr.mxu0 0.0
    %3150 = vmatpush2.msra.mxu0 0.0
    %3151 = vmatprep.subr.mxu0 0.0
    %3152 = vmatpush2.msra.mxu0 0.0
    %3153 = vmatprep.subr.mxu0 0.0
    %3154 = vmatpush2.msra.mxu0 0.0
    %3155 = vmatprep.subr.mxu0 0.0
    %3156 = vmatpush2.msra.mxu0 0.0
    %3157 = vmatprep.subr.mxu0 0.0
    %3158 = vmatpush2.msra.mxu0 0.0
    %3159 = vmatprep.mubr.f32.mxu0 0.0
    %3160 = vmatmul.mubr.f32.gmra.mxu0 %v3093
    %v3161 = vpop.f32.mrf.mxu0
    %v3162 = vadd.f32 %v384, %v3161
    %v3163 = vpop.f32.mrf.mxu0
    %3164 = vdwg.mxu0
    %v3165 = vxor.u32 %v3162, 2147483648
    %v3166 = vmul.f32 %v3165, 1.442695
    %v3167 = vpow.pop %v3166
    %v3168 = vadd.f32 %v3167, 1.0
    %v3169 = vrcp.pop %v3168
    %v3170 = vmul.f32 1.0, %v3169
    %v3171 = vtanh.pop %v3162
    %v3172 = vmul.f32 %v3170, %v2967
    %3174 = vrot.lane.b32.xlu0 %v3171, 64
    %v3175 = vpop.permute.xlu0 %3174
    %v3177 = vmul.f32 %v3170, %v3175
    %3179 = vrot.lane.b32.xlu0 %v3177, 32
    %v3180 = vpop.permute.xlu0 %3179
    %v3182 = vadd.f32 %v3172, %v3180
    %v3183 = vtanh.pop %v3182
    %3185 = vrot.lane.b32.xlu0 %v3183, 64
    %v3186 = vpop.permute.xlu0 %3185
    %v3188 = vmul.f32 %v3170, %v3186
    %3190 = vrot.lane.b32.xlu0 %v3188, 32
    %v3191 = vpop.permute.xlu0 %3190
    %s3193 = scalar_lea.vmem [#allocation2], 96
    %3194 = vst.msk [vmem:[%s3193] sm:$0xff] %vm70, %v3191
    %s3195 = scalar_lea.vmem %s1, 96
    %v3196 = vld [vmem:[%s3195] sm:$0xff]
    %3197 = vrot.lane.b32.xlu0 %v3188, 64
    %v3198 = vpop.permute.xlu0 %3197
    %3200 = vrot.lane.b32.xlu0 %v3086, 96
    %v3201 = vpop.permute.xlu0 %3200
    %v3203 = vsel %vm70, %v3196, %v3198
    %v3204 = vsel %vm409, %v3203, %v3201
    %v3206 = vsel %vm411, %v3204, 0
    %3208 = vmatprep.subr.mxu0 0.0
    %3209 = vmatpush1.msra.mxu0 0.0
    %3210 = vmatprep.subr.mxu0 0.0
    %3211 = vmatpush1.msra.mxu0 0.0
    %3212 = vmatprep.subr.mxu0 0.0
    %3213 = vmatpush1.msra.mxu0 0.0
    %3214 = vmatprep.subr.mxu0 0.0
    %3215 = vmatpush1.msra.mxu0 0.0
    %3216 = vmatprep.subr.mxu0 0.0
    %3217 = vmatpush1.msra.mxu0 %v398
    %3218 = vmatprep.subr.mxu0 0.0
    %3219 = vmatpush1.msra.mxu0 %v397
    %3220 = vmatprep.subr.mxu0 0.0
    %3221 = vmatpush1.msra.mxu0 %v396
    %3222 = vmatprep.subr.mxu0 0.0
    %3223 = vmatpush1.msra.mxu0 %v395
    %3224 = vmatprep.subr.mxu0 0.0
    %3225 = vmatpush1.msra.mxu0 %v394
    %3226 = vmatprep.subr.mxu0 0.0
    %3227 = vmatpush1.msra.mxu0 %v393
    %3228 = vmatprep.subr.mxu0 0.0
    %3229 = vmatpush1.msra.mxu0 %v392
    %3230 = vmatprep.subr.mxu0 0.0
    %3231 = vmatpush1.msra.mxu0 %v391
    %3232 = vmatprep.subr.mxu0 0.0
    %3233 = vmatpush1.msra.mxu0 %v390
    %3234 = vmatprep.subr.mxu0 0.0
    %3235 = vmatpush1.msra.mxu0 %v389
    %3236 = vmatprep.subr.mxu0 0.0
    %3237 = vmatpush1.msra.mxu0 %v388
    %3238 = vmatprep.subr.mxu0 0.0
    %3239 = vmatpush1.msra.mxu0 %v387
    %3240 = vmatprep.subr.mxu0 0.0
    %3241 = vmatpush2.msra.mxu0 0.0
    %3242 = vmatprep.subr.mxu0 0.0
    %3243 = vmatpush2.msra.mxu0 0.0
    %3244 = vmatprep.subr.mxu0 0.0
    %3245 = vmatpush2.msra.mxu0 0.0
    %3246 = vmatprep.subr.mxu0 0.0
    %3247 = vmatpush2.msra.mxu0 0.0
    %3248 = vmatprep.subr.mxu0 0.0
    %3249 = vmatpush2.msra.mxu0 0.0
    %3250 = vmatprep.subr.mxu0 0.0
    %3251 = vmatpush2.msra.mxu0 0.0
    %3252 = vmatprep.subr.mxu0 0.0
    %3253 = vmatpush2.msra.mxu0 0.0
    %3254 = vmatprep.subr.mxu0 0.0
    %3255 = vmatpush2.msra.mxu0 0.0
    %3256 = vmatprep.subr.mxu0 0.0
    %3257 = vmatpush2.msra.mxu0 0.0
    %3258 = vmatprep.subr.mxu0 0.0
    %3259 = vmatpush2.msra.mxu0 0.0
    %3260 = vmatprep.subr.mxu0 0.0
    %3261 = vmatpush2.msra.mxu0 0.0
    %3262 = vmatprep.subr.mxu0 0.0
    %3263 = vmatpush2.msra.mxu0 0.0
    %3264 = vmatprep.subr.mxu0 0.0
    %3265 = vmatpush2.msra.mxu0 0.0
    %3266 = vmatprep.subr.mxu0 0.0
    %3267 = vmatpush2.msra.mxu0 0.0
    %3268 = vmatprep.subr.mxu0 0.0
    %3269 = vmatpush2.msra.mxu0 0.0
    %3270 = vmatprep.subr.mxu0 0.0
    %3271 = vmatpush2.msra.mxu0 0.0
    %3272 = vmatprep.mubr.f32.mxu0 0.0
    %3273 = vmatmul.mubr.f32.gmra.mxu0 %v3206
    %v3274 = vpop.f32.mrf.mxu0
    %v3275 = vadd.f32 %v303, %v3274
    %v3276 = vpop.f32.mrf.mxu0
    %3277 = vdwg.mxu0
    %v3278 = vxor.u32 %v3275, 2147483648
    %v3279 = vmul.f32 %v3278, 1.442695
    %v3280 = vpow.pop %v3279
    %v3281 = vadd.f32 %v3280, 1.0
    %v3282 = vrcp.pop %v3281
    %v3283 = vmul.f32 1.0, %v3282
    %v3284 = vtanh.pop %v3275
    %v3285 = vmul.f32 %v3283, %v3080
    %3287 = vrot.lane.b32.xlu0 %v3284, 64
    %v3288 = vpop.permute.xlu0 %3287
    %v3290 = vmul.f32 %v3283, %v3288
    %3292 = vrot.lane.b32.xlu0 %v3290, 32
    %v3293 = vpop.permute.xlu0 %3292
    %v3295 = vadd.f32 %v3285, %v3293
    %v3296 = vtanh.pop %v3295
    %3298 = vrot.lane.b32.xlu0 %v3296, 64
    %v3299 = vpop.permute.xlu0 %3298
    %v3301 = vmul.f32 %v3283, %v3299
    %3303 = vrot.lane.b32.xlu0 %v3301, 32
    %v3304 = vpop.permute.xlu0 %3303
    %v3306 = vsel %vm70, %v3304, %v3198
    %v3308 = vsel %vm409, %v3306, 0
    %3310 = vmatprep.subr.mxu0 0.0
    %3311 = vmatpush1.msra.mxu0 0.0
    %3312 = vmatprep.subr.mxu0 0.0
    %3313 = vmatpush1.msra.mxu0 0.0
    %3314 = vmatprep.subr.mxu0 0.0
    %3315 = vmatpush1.msra.mxu0 0.0
    %3316 = vmatprep.subr.mxu0 0.0
    %3317 = vmatpush1.msra.mxu0 0.0
    %3318 = vmatprep.subr.mxu0 0.0
    %3319 = vmatpush1.msra.mxu0 0.0
    %3320 = vmatprep.subr.mxu0 0.0
    %3321 = vmatpush1.msra.mxu0 0.0
    %3322 = vmatprep.subr.mxu0 0.0
    %3323 = vmatpush1.msra.mxu0 0.0
    %3324 = vmatprep.subr.mxu0 0.0
    %3325 = vmatpush1.msra.mxu0 0.0
    %3326 = vmatprep.subr.mxu0 0.0
    %3327 = vmatpush1.msra.mxu0 %v406
    %3328 = vmatprep.subr.mxu0 0.0
    %3329 = vmatpush1.msra.mxu0 %v405
    %3330 = vmatprep.subr.mxu0 0.0
    %3331 = vmatpush1.msra.mxu0 %v404
    %3332 = vmatprep.subr.mxu0 0.0
    %3333 = vmatpush1.msra.mxu0 %v403
    %3334 = vmatprep.subr.mxu0 0.0
    %3335 = vmatpush1.msra.mxu0 %v402
    %3336 = vmatprep.subr.mxu0 0.0
    %3337 = vmatpush1.msra.mxu0 %v401
    %3338 = vmatprep.subr.mxu0 0.0
    %3339 = vmatpush1.msra.mxu0 %v400
    %3340 = vmatprep.subr.mxu0 0.0
    %3341 = vmatpush1.msra.mxu0 %v399
    %3342 = vmatprep.subr.mxu0 0.0
    %3343 = vmatpush2.msra.mxu0 0.0
    %3344 = vmatprep.subr.mxu0 0.0
    %3345 = vmatpush2.msra.mxu0 0.0
    %3346 = vmatprep.subr.mxu0 0.0
    %3347 = vmatpush2.msra.mxu0 0.0
    %3348 = vmatprep.subr.mxu0 0.0
    %3349 = vmatpush2.msra.mxu0 0.0
    %3350 = vmatprep.subr.mxu0 0.0
    %3351 = vmatpush2.msra.mxu0 0.0
    %3352 = vmatprep.subr.mxu0 0.0
    %3353 = vmatpush2.msra.mxu0 0.0
    %3354 = vmatprep.subr.mxu0 0.0
    %3355 = vmatpush2.msra.mxu0 0.0
    %3356 = vmatprep.subr.mxu0 0.0
    %3357 = vmatpush2.msra.mxu0 0.0
    %3358 = vmatprep.subr.mxu0 0.0
    %3359 = vmatpush2.msra.mxu0 0.0
    %3360 = vmatprep.subr.mxu0 0.0
    %3361 = vmatpush2.msra.mxu0 0.0
    %3362 = vmatprep.subr.mxu0 0.0
    %3363 = vmatpush2.msra.mxu0 0.0
    %3364 = vmatprep.subr.mxu0 0.0
    %3365 = vmatpush2.msra.mxu0 0.0
    %3366 = vmatprep.subr.mxu0 0.0
    %3367 = vmatpush2.msra.mxu0 0.0
    %3368 = vmatprep.subr.mxu0 0.0
    %3369 = vmatpush2.msra.mxu0 0.0
    %3370 = vmatprep.subr.mxu0 0.0
    %3371 = vmatpush2.msra.mxu0 0.0
    %3372 = vmatprep.subr.mxu0 0.0
    %3373 = vmatpush2.msra.mxu0 0.0
    %3374 = vmatprep.mubr.f32.mxu0 0.0
    %3375 = vmatmul.mubr.f32.gmra.mxu0 %v3308
    %v3376 = vpop.f32.mrf.mxu0
    %v3377 = vadd.f32 %v384, %v3376
    %v3378 = vpop.f32.mrf.mxu0
    %3379 = vdwg.mxu0
    %v3380 = vxor.u32 %v3377, 2147483648
    %v3381 = vmul.f32 %v3380, 1.442695
    %v3382 = vpow.pop %v3381
    %v3383 = vadd.f32 %v3382, 1.0
    %v3384 = vrcp.pop %v3383
    %v3385 = vmul.f32 1.0, %v3384
    %v3386 = vtanh.pop %v3377
    %v3387 = vmul.f32 %v3385, %v3182
    %3389 = vrot.lane.b32.xlu0 %v3386, 64
    %v3390 = vpop.permute.xlu0 %3389
    %v3392 = vmul.f32 %v3385, %v3390
    %3394 = vrot.lane.b32.xlu0 %v3392, 32
    %v3395 = vpop.permute.xlu0 %3394
    %v3397 = vadd.f32 %v3387, %v3395
    %v3398 = vtanh.pop %v3397
    %3400 = vrot.lane.b32.xlu0 %v3398, 64
    %v3401 = vpop.permute.xlu0 %3400
    %v3403 = vmul.f32 %v3385, %v3401
    %3405 = vrot.lane.b32.xlu0 %v3403, 32
    %v3406 = vpop.permute.xlu0 %3405
    %s3408 = scalar_lea.vmem [#allocation2], 104
    %3409 = vst.msk [vmem:[%s3408] sm:$0xff] %vm70, %v3406
    %s3410 = scalar_lea.vmem %s1, 104
    %v3411 = vld [vmem:[%s3410] sm:$0xff]
    %3412 = vrot.lane.b32.xlu0 %v3403, 64
    %v3413 = vpop.permute.xlu0 %3412
    %3415 = vrot.lane.b32.xlu0 %v3301, 96
    %v3416 = vpop.permute.xlu0 %3415
    %v3418 = vsel %vm70, %v3411, %v3413
    %v3419 = vsel %vm409, %v3418, %v3416
    %v3421 = vsel %vm411, %v3419, 0
    %3423 = vmatprep.subr.mxu0 0.0
    %3424 = vmatpush1.msra.mxu0 0.0
    %3425 = vmatprep.subr.mxu0 0.0
    %3426 = vmatpush1.msra.mxu0 0.0
    %3427 = vmatprep.subr.mxu0 0.0
    %3428 = vmatpush1.msra.mxu0 0.0
    %3429 = vmatprep.subr.mxu0 0.0
    %3430 = vmatpush1.msra.mxu0 0.0
    %3431 = vmatprep.subr.mxu0 0.0
    %3432 = vmatpush1.msra.mxu0 %v398
    %3433 = vmatprep.subr.mxu0 0.0
    %3434 = vmatpush1.msra.mxu0 %v397
    %3435 = vmatprep.subr.mxu0 0.0
    %3436 = vmatpush1.msra.mxu0 %v396
    %3437 = vmatprep.subr.mxu0 0.0
    %3438 = vmatpush1.msra.mxu0 %v395
    %3439 = vmatprep.subr.mxu0 0.0
    %3440 = vmatpush1.msra.mxu0 %v394
    %3441 = vmatprep.subr.mxu0 0.0
    %3442 = vmatpush1.msra.mxu0 %v393
    %3443 = vmatprep.subr.mxu0 0.0
    %3444 = vmatpush1.msra.mxu0 %v392
    %3445 = vmatprep.subr.mxu0 0.0
    %3446 = vmatpush1.msra.mxu0 %v391
    %3447 = vmatprep.subr.mxu0 0.0
    %3448 = vmatpush1.msra.mxu0 %v390
    %3449 = vmatprep.subr.mxu0 0.0
    %3450 = vmatpush1.msra.mxu0 %v389
    %3451 = vmatprep.subr.mxu0 0.0
    %3452 = vmatpush1.msra.mxu0 %v388
    %3453 = vmatprep.subr.mxu0 0.0
    %3454 = vmatpush1.msra.mxu0 %v387
    %3455 = vmatprep.subr.mxu0 0.0
    %3456 = vmatpush2.msra.mxu0 0.0
    %3457 = vmatprep.subr.mxu0 0.0
    %3458 = vmatpush2.msra.mxu0 0.0
    %3459 = vmatprep.subr.mxu0 0.0
    %3460 = vmatpush2.msra.mxu0 0.0
    %3461 = vmatprep.subr.mxu0 0.0
    %3462 = vmatpush2.msra.mxu0 0.0
    %3463 = vmatprep.subr.mxu0 0.0
    %3464 = vmatpush2.msra.mxu0 0.0
    %3465 = vmatprep.subr.mxu0 0.0
    %3466 = vmatpush2.msra.mxu0 0.0
    %3467 = vmatprep.subr.mxu0 0.0
    %3468 = vmatpush2.msra.mxu0 0.0
    %3469 = vmatprep.subr.mxu0 0.0
    %3470 = vmatpush2.msra.mxu0 0.0
    %3471 = vmatprep.subr.mxu0 0.0
    %3472 = vmatpush2.msra.mxu0 0.0
    %3473 = vmatprep.subr.mxu0 0.0
    %3474 = vmatpush2.msra.mxu0 0.0
    %3475 = vmatprep.subr.mxu0 0.0
    %3476 = vmatpush2.msra.mxu0 0.0
    %3477 = vmatprep.subr.mxu0 0.0
    %3478 = vmatpush2.msra.mxu0 0.0
    %3479 = vmatprep.subr.mxu0 0.0
    %3480 = vmatpush2.msra.mxu0 0.0
    %3481 = vmatprep.subr.mxu0 0.0
    %3482 = vmatpush2.msra.mxu0 0.0
    %3483 = vmatprep.subr.mxu0 0.0
    %3484 = vmatpush2.msra.mxu0 0.0
    %3485 = vmatprep.subr.mxu0 0.0
    %3486 = vmatpush2.msra.mxu0 0.0
    %3487 = vmatprep.mubr.f32.mxu0 0.0
    %3488 = vmatmul.mubr.f32.gmra.mxu0 %v3421
    %v3489 = vpop.f32.mrf.mxu0
    %v3490 = vadd.f32 %v303, %v3489
    %v3491 = vpop.f32.mrf.mxu0
    %3492 = vdwg.mxu0
    %v3493 = vxor.u32 %v3490, 2147483648
    %v3494 = vmul.f32 %v3493, 1.442695
    %v3495 = vpow.pop %v3494
    %v3496 = vadd.f32 %v3495, 1.0
    %v3497 = vrcp.pop %v3496
    %v3498 = vmul.f32 1.0, %v3497
    %v3499 = vtanh.pop %v3490
    %v3500 = vmul.f32 %v3498, %v3295
    %3502 = vrot.lane.b32.xlu0 %v3499, 64
    %v3503 = vpop.permute.xlu0 %3502
    %v3505 = vmul.f32 %v3498, %v3503
    %3507 = vrot.lane.b32.xlu0 %v3505, 32
    %v3508 = vpop.permute.xlu0 %3507
    %v3510 = vadd.f32 %v3500, %v3508
    %v3511 = vtanh.pop %v3510
    %3513 = vrot.lane.b32.xlu0 %v3511, 64
    %v3514 = vpop.permute.xlu0 %3513
    %v3516 = vmul.f32 %v3498, %v3514
    %3518 = vrot.lane.b32.xlu0 %v3516, 32
    %v3519 = vpop.permute.xlu0 %3518
    %v3521 = vsel %vm70, %v3519, %v3413
    %v3523 = vsel %vm409, %v3521, 0
    %3525 = vmatprep.subr.mxu0 0.0
    %3526 = vmatpush1.msra.mxu0 0.0
    %3527 = vmatprep.subr.mxu0 0.0
    %3528 = vmatpush1.msra.mxu0 0.0
    %3529 = vmatprep.subr.mxu0 0.0
    %3530 = vmatpush1.msra.mxu0 0.0
    %3531 = vmatprep.subr.mxu0 0.0
    %3532 = vmatpush1.msra.mxu0 0.0
    %3533 = vmatprep.subr.mxu0 0.0
    %3534 = vmatpush1.msra.mxu0 0.0
    %3535 = vmatprep.subr.mxu0 0.0
    %3536 = vmatpush1.msra.mxu0 0.0
    %3537 = vmatprep.subr.mxu0 0.0
    %3538 = vmatpush1.msra.mxu0 0.0
    %3539 = vmatprep.subr.mxu0 0.0
    %3540 = vmatpush1.msra.mxu0 0.0
    %3541 = vmatprep.subr.mxu0 0.0
    %3542 = vmatpush1.msra.mxu0 %v406
    %3543 = vmatprep.subr.mxu0 0.0
    %3544 = vmatpush1.msra.mxu0 %v405
    %3545 = vmatprep.subr.mxu0 0.0
    %3546 = vmatpush1.msra.mxu0 %v404
    %3547 = vmatprep.subr.mxu0 0.0
    %3548 = vmatpush1.msra.mxu0 %v403
    %3549 = vmatprep.subr.mxu0 0.0
    %3550 = vmatpush1.msra.mxu0 %v402
    %3551 = vmatprep.subr.mxu0 0.0
    %3552 = vmatpush1.msra.mxu0 %v401
    %3553 = vmatprep.subr.mxu0 0.0
    %3554 = vmatpush1.msra.mxu0 %v400
    %3555 = vmatprep.subr.mxu0 0.0
    %3556 = vmatpush1.msra.mxu0 %v399
    %3557 = vmatprep.subr.mxu0 0.0
    %3558 = vmatpush2.msra.mxu0 0.0
    %3559 = vmatprep.subr.mxu0 0.0
    %3560 = vmatpush2.msra.mxu0 0.0
    %3561 = vmatprep.subr.mxu0 0.0
    %3562 = vmatpush2.msra.mxu0 0.0
    %3563 = vmatprep.subr.mxu0 0.0
    %3564 = vmatpush2.msra.mxu0 0.0
    %3565 = vmatprep.subr.mxu0 0.0
    %3566 = vmatpush2.msra.mxu0 0.0
    %3567 = vmatprep.subr.mxu0 0.0
    %3568 = vmatpush2.msra.mxu0 0.0
    %3569 = vmatprep.subr.mxu0 0.0
    %3570 = vmatpush2.msra.mxu0 0.0
    %3571 = vmatprep.subr.mxu0 0.0
    %3572 = vmatpush2.msra.mxu0 0.0
    %3573 = vmatprep.subr.mxu0 0.0
    %3574 = vmatpush2.msra.mxu0 0.0
    %3575 = vmatprep.subr.mxu0 0.0
    %3576 = vmatpush2.msra.mxu0 0.0
    %3577 = vmatprep.subr.mxu0 0.0
    %3578 = vmatpush2.msra.mxu0 0.0
    %3579 = vmatprep.subr.mxu0 0.0
    %3580 = vmatpush2.msra.mxu0 0.0
    %3581 = vmatprep.subr.mxu0 0.0
    %3582 = vmatpush2.msra.mxu0 0.0
    %3583 = vmatprep.subr.mxu0 0.0
    %3584 = vmatpush2.msra.mxu0 0.0
    %3585 = vmatprep.subr.mxu0 0.0
    %3586 = vmatpush2.msra.mxu0 0.0
    %3587 = vmatprep.subr.mxu0 0.0
    %3588 = vmatpush2.msra.mxu0 0.0
    %3589 = vmatprep.mubr.f32.mxu0 0.0
    %3590 = vmatmul.mubr.f32.gmra.mxu0 %v3523
    %v3591 = vpop.f32.mrf.mxu0
    %v3592 = vadd.f32 %v384, %v3591
    %v3593 = vpop.f32.mrf.mxu0
    %3594 = vdwg.mxu0
    %v3595 = vxor.u32 %v3592, 2147483648
    %v3596 = vmul.f32 %v3595, 1.442695
    %v3597 = vpow.pop %v3596
    %v3598 = vadd.f32 %v3597, 1.0
    %v3599 = vrcp.pop %v3598
    %v3600 = vmul.f32 1.0, %v3599
    %v3601 = vtanh.pop %v3592
    %v3602 = vmul.f32 %v3600, %v3397
    %3604 = vrot.lane.b32.xlu0 %v3601, 64
    %v3605 = vpop.permute.xlu0 %3604
    %v3607 = vmul.f32 %v3600, %v3605
    %3609 = vrot.lane.b32.xlu0 %v3607, 32
    %v3610 = vpop.permute.xlu0 %3609
    %v3612 = vadd.f32 %v3602, %v3610
    %v3613 = vtanh.pop %v3612
    %3615 = vrot.lane.b32.xlu0 %v3613, 64
    %v3616 = vpop.permute.xlu0 %3615
    %v3618 = vmul.f32 %v3600, %v3616
    %3620 = vrot.lane.b32.xlu0 %v3618, 32
    %v3621 = vpop.permute.xlu0 %3620
    %s3623 = scalar_lea.vmem [#allocation2], 112
    %3624 = vst.msk [vmem:[%s3623] sm:$0xff] %vm70, %v3621
    %s3625 = scalar_lea.vmem %s1, 112
    %v3626 = vld [vmem:[%s3625] sm:$0xff]
    %3627 = vrot.lane.b32.xlu0 %v3618, 64
    %v3628 = vpop.permute.xlu0 %3627
    %3630 = vrot.lane.b32.xlu0 %v3516, 96
    %v3631 = vpop.permute.xlu0 %3630
    %v3633 = vsel %vm70, %v3626, %v3628
    %v3634 = vsel %vm409, %v3633, %v3631
    %v3636 = vsel %vm411, %v3634, 0
    %3638 = vmatprep.subr.mxu0 0.0
    %3639 = vmatpush1.msra.mxu0 0.0
    %3640 = vmatprep.subr.mxu0 0.0
    %3641 = vmatpush1.msra.mxu0 0.0
    %3642 = vmatprep.subr.mxu0 0.0
    %3643 = vmatpush1.msra.mxu0 0.0
    %3644 = vmatprep.subr.mxu0 0.0
    %3645 = vmatpush1.msra.mxu0 0.0
    %3646 = vmatprep.subr.mxu0 0.0
    %3647 = vmatpush1.msra.mxu0 %v398
    %3648 = vmatprep.subr.mxu0 0.0
    %3649 = vmatpush1.msra.mxu0 %v397
    %3650 = vmatprep.subr.mxu0 0.0
    %3651 = vmatpush1.msra.mxu0 %v396
    %3652 = vmatprep.subr.mxu0 0.0
    %3653 = vmatpush1.msra.mxu0 %v395
    %3654 = vmatprep.subr.mxu0 0.0
    %3655 = vmatpush1.msra.mxu0 %v394
    %3656 = vmatprep.subr.mxu0 0.0
    %3657 = vmatpush1.msra.mxu0 %v393
    %3658 = vmatprep.subr.mxu0 0.0
    %3659 = vmatpush1.msra.mxu0 %v392
    %3660 = vmatprep.subr.mxu0 0.0
    %3661 = vmatpush1.msra.mxu0 %v391
    %3662 = vmatprep.subr.mxu0 0.0
    %3663 = vmatpush1.msra.mxu0 %v390
    %3664 = vmatprep.subr.mxu0 0.0
    %3665 = vmatpush1.msra.mxu0 %v389
    %3666 = vmatprep.subr.mxu0 0.0
    %3667 = vmatpush1.msra.mxu0 %v388
    %3668 = vmatprep.subr.mxu0 0.0
    %3669 = vmatpush1.msra.mxu0 %v387
    %3670 = vmatprep.subr.mxu0 0.0
    %3671 = vmatpush2.msra.mxu0 0.0
    %3672 = vmatprep.subr.mxu0 0.0
    %3673 = vmatpush2.msra.mxu0 0.0
    %3674 = vmatprep.subr.mxu0 0.0
    %3675 = vmatpush2.msra.mxu0 0.0
    %3676 = vmatprep.subr.mxu0 0.0
    %3677 = vmatpush2.msra.mxu0 0.0
    %3678 = vmatprep.subr.mxu0 0.0
    %3679 = vmatpush2.msra.mxu0 0.0
    %3680 = vmatprep.subr.mxu0 0.0
    %3681 = vmatpush2.msra.mxu0 0.0
    %3682 = vmatprep.subr.mxu0 0.0
    %3683 = vmatpush2.msra.mxu0 0.0
    %3684 = vmatprep.subr.mxu0 0.0
    %3685 = vmatpush2.msra.mxu0 0.0
    %3686 = vmatprep.subr.mxu0 0.0
    %3687 = vmatpush2.msra.mxu0 0.0
    %3688 = vmatprep.subr.mxu0 0.0
    %3689 = vmatpush2.msra.mxu0 0.0
    %3690 = vmatprep.subr.mxu0 0.0
    %3691 = vmatpush2.msra.mxu0 0.0
    %3692 = vmatprep.subr.mxu0 0.0
    %3693 = vmatpush2.msra.mxu0 0.0
    %3694 = vmatprep.subr.mxu0 0.0
    %3695 = vmatpush2.msra.mxu0 0.0
    %3696 = vmatprep.subr.mxu0 0.0
    %3697 = vmatpush2.msra.mxu0 0.0
    %3698 = vmatprep.subr.mxu0 0.0
    %3699 = vmatpush2.msra.mxu0 0.0
    %3700 = vmatprep.subr.mxu0 0.0
    %3701 = vmatpush2.msra.mxu0 0.0
    %3702 = vmatprep.mubr.f32.mxu0 0.0
    %3703 = vmatmul.mubr.f32.gmra.mxu0 %v3636
    %v3704 = vpop.f32.mrf.mxu0
    %v3705 = vadd.f32 %v303, %v3704
    %v3706 = vpop.f32.mrf.mxu0
    %3707 = vdwg.mxu0
    %v3708 = vxor.u32 %v3705, 2147483648
    %v3709 = vmul.f32 %v3708, 1.442695
    %v3710 = vpow.pop %v3709
    %v3711 = vadd.f32 %v3710, 1.0
    %v3712 = vrcp.pop %v3711
    %v3713 = vmul.f32 1.0, %v3712
    %v3714 = vtanh.pop %v3705
    %v3715 = vmul.f32 %v3713, %v3510
    %3717 = vrot.lane.b32.xlu0 %v3714, 64
    %v3718 = vpop.permute.xlu0 %3717
    %v3720 = vmul.f32 %v3713, %v3718
    %3722 = vrot.lane.b32.xlu0 %v3720, 32
    %v3723 = vpop.permute.xlu0 %3722
    %v3725 = vadd.f32 %v3715, %v3723
    %v3726 = vtanh.pop %v3725
    %3728 = vrot.lane.b32.xlu0 %v3726, 64
    %v3729 = vpop.permute.xlu0 %3728
    %v3731 = vmul.f32 %v3713, %v3729
    %3733 = vrot.lane.b32.xlu0 %v3731, 32
    %v3734 = vpop.permute.xlu0 %3733
    %v3736 = vsel %vm70, %v3734, %v3628
    %v3738 = vsel %vm409, %v3736, 0
    %3740 = vmatprep.subr.mxu0 0.0
    %3741 = vmatpush1.msra.mxu0 0.0
    %3742 = vmatprep.subr.mxu0 0.0
    %3743 = vmatpush1.msra.mxu0 0.0
    %3744 = vmatprep.subr.mxu0 0.0
    %3745 = vmatpush1.msra.mxu0 0.0
    %3746 = vmatprep.subr.mxu0 0.0
    %3747 = vmatpush1.msra.mxu0 0.0
    %3748 = vmatprep.subr.mxu0 0.0
    %3749 = vmatpush1.msra.mxu0 0.0
    %3750 = vmatprep.subr.mxu0 0.0
    %3751 = vmatpush1.msra.mxu0 0.0
    %3752 = vmatprep.subr.mxu0 0.0
    %3753 = vmatpush1.msra.mxu0 0.0
    %3754 = vmatprep.subr.mxu0 0.0
    %3755 = vmatpush1.msra.mxu0 0.0
    %3756 = vmatprep.subr.mxu0 0.0
    %3757 = vmatpush1.msra.mxu0 %v406
    %3758 = vmatprep.subr.mxu0 0.0
    %3759 = vmatpush1.msra.mxu0 %v405
    %3760 = vmatprep.subr.mxu0 0.0
    %3761 = vmatpush1.msra.mxu0 %v404
    %3762 = vmatprep.subr.mxu0 0.0
    %3763 = vmatpush1.msra.mxu0 %v403
    %3764 = vmatprep.subr.mxu0 0.0
    %3765 = vmatpush1.msra.mxu0 %v402
    %3766 = vmatprep.subr.mxu0 0.0
    %3767 = vmatpush1.msra.mxu0 %v401
    %3768 = vmatprep.subr.mxu0 0.0
    %3769 = vmatpush1.msra.mxu0 %v400
    %3770 = vmatprep.subr.mxu0 0.0
    %3771 = vmatpush1.msra.mxu0 %v399
    %3772 = vmatprep.subr.mxu0 0.0
    %3773 = vmatpush2.msra.mxu0 0.0
    %3774 = vmatprep.subr.mxu0 0.0
    %3775 = vmatpush2.msra.mxu0 0.0
    %3776 = vmatprep.subr.mxu0 0.0
    %3777 = vmatpush2.msra.mxu0 0.0
    %3778 = vmatprep.subr.mxu0 0.0
    %3779 = vmatpush2.msra.mxu0 0.0
    %3780 = vmatprep.subr.mxu0 0.0
    %3781 = vmatpush2.msra.mxu0 0.0
    %3782 = vmatprep.subr.mxu0 0.0
    %3783 = vmatpush2.msra.mxu0 0.0
    %3784 = vmatprep.subr.mxu0 0.0
    %3785 = vmatpush2.msra.mxu0 0.0
    %3786 = vmatprep.subr.mxu0 0.0
    %3787 = vmatpush2.msra.mxu0 0.0
    %3788 = vmatprep.subr.mxu0 0.0
    %3789 = vmatpush2.msra.mxu0 0.0
    %3790 = vmatprep.subr.mxu0 0.0
    %3791 = vmatpush2.msra.mxu0 0.0
    %3792 = vmatprep.subr.mxu0 0.0
    %3793 = vmatpush2.msra.mxu0 0.0
    %3794 = vmatprep.subr.mxu0 0.0
    %3795 = vmatpush2.msra.mxu0 0.0
    %3796 = vmatprep.subr.mxu0 0.0
    %3797 = vmatpush2.msra.mxu0 0.0
    %3798 = vmatprep.subr.mxu0 0.0
    %3799 = vmatpush2.msra.mxu0 0.0
    %3800 = vmatprep.subr.mxu0 0.0
    %3801 = vmatpush2.msra.mxu0 0.0
    %3802 = vmatprep.subr.mxu0 0.0
    %3803 = vmatpush2.msra.mxu0 0.0
    %3804 = vmatprep.mubr.f32.mxu0 0.0
    %3805 = vmatmul.mubr.f32.gmra.mxu0 %v3738
    %v3806 = vpop.f32.mrf.mxu0
    %v3807 = vadd.f32 %v384, %v3806
    %v3808 = vpop.f32.mrf.mxu0
    %3809 = vdwg.mxu0
    %v3810 = vxor.u32 %v3807, 2147483648
    %v3811 = vmul.f32 %v3810, 1.442695
    %v3812 = vpow.pop %v3811
    %v3813 = vadd.f32 %v3812, 1.0
    %v3814 = vrcp.pop %v3813
    %v3815 = vmul.f32 1.0, %v3814
    %v3816 = vtanh.pop %v3807
    %v3817 = vmul.f32 %v3815, %v3612
    %3819 = vrot.lane.b32.xlu0 %v3816, 64
    %v3820 = vpop.permute.xlu0 %3819
    %v3822 = vmul.f32 %v3815, %v3820
    %3824 = vrot.lane.b32.xlu0 %v3822, 32
    %v3825 = vpop.permute.xlu0 %3824
    %v3827 = vadd.f32 %v3817, %v3825
    %v3828 = vtanh.pop %v3827
    %3830 = vrot.lane.b32.xlu0 %v3828, 64
    %v3831 = vpop.permute.xlu0 %3830
    %v3833 = vmul.f32 %v3815, %v3831
    %3835 = vrot.lane.b32.xlu0 %v3833, 32
    %v3836 = vpop.permute.xlu0 %3835
    %s3838 = scalar_lea.vmem [#allocation2], 120
    %3839 = vst.msk [vmem:[%s3838] sm:$0xff] %vm70, %v3836
    %s3840 = scalar_lea.vmem %s1, 120
    %v3841 = vld [vmem:[%s3840] sm:$0xff]
    %3842 = vrot.lane.b32.xlu0 %v3833, 64
    %v3843 = vpop.permute.xlu0 %3842
    %3845 = vrot.lane.b32.xlu0 %v3731, 96
    %v3846 = vpop.permute.xlu0 %3845
    %v3848 = vsel %vm70, %v3841, %v3843
    %v3849 = vsel %vm409, %v3848, %v3846
    %v3851 = vsel %vm411, %v3849, 0
    %3853 = vmatprep.subr.mxu0 0.0
    %3854 = vmatpush1.msra.mxu0 0.0
    %3855 = vmatprep.subr.mxu0 0.0
    %3856 = vmatpush1.msra.mxu0 0.0
    %3857 = vmatprep.subr.mxu0 0.0
    %3858 = vmatpush1.msra.mxu0 0.0
    %3859 = vmatprep.subr.mxu0 0.0
    %3860 = vmatpush1.msra.mxu0 0.0
    %3861 = vmatprep.subr.mxu0 0.0
    %3862 = vmatpush1.msra.mxu0 %v398
    %3863 = vmatprep.subr.mxu0 0.0
    %3864 = vmatpush1.msra.mxu0 %v397
    %3865 = vmatprep.subr.mxu0 0.0
    %3866 = vmatpush1.msra.mxu0 %v396
    %3867 = vmatprep.subr.mxu0 0.0
    %3868 = vmatpush1.msra.mxu0 %v395
    %3869 = vmatprep.subr.mxu0 0.0
    %3870 = vmatpush1.msra.mxu0 %v394
    %3871 = vmatprep.subr.mxu0 0.0
    %3872 = vmatpush1.msra.mxu0 %v393
    %3873 = vmatprep.subr.mxu0 0.0
    %3874 = vmatpush1.msra.mxu0 %v392
    %3875 = vmatprep.subr.mxu0 0.0
    %3876 = vmatpush1.msra.mxu0 %v391
    %3877 = vmatprep.subr.mxu0 0.0
    %3878 = vmatpush1.msra.mxu0 %v390
    %3879 = vmatprep.subr.mxu0 0.0
    %3880 = vmatpush1.msra.mxu0 %v389
    %3881 = vmatprep.subr.mxu0 0.0
    %3882 = vmatpush1.msra.mxu0 %v388
    %3883 = vmatprep.subr.mxu0 0.0
    %3884 = vmatpush1.msra.mxu0 %v387
    %3885 = vmatprep.subr.mxu0 0.0
    %3886 = vmatpush2.msra.mxu0 0.0
    %3887 = vmatprep.subr.mxu0 0.0
    %3888 = vmatpush2.msra.mxu0 0.0
    %3889 = vmatprep.subr.mxu0 0.0
    %3890 = vmatpush2.msra.mxu0 0.0
    %3891 = vmatprep.subr.mxu0 0.0
    %3892 = vmatpush2.msra.mxu0 0.0
    %3893 = vmatprep.subr.mxu0 0.0
    %3894 = vmatpush2.msra.mxu0 0.0
    %3895 = vmatprep.subr.mxu0 0.0
    %3896 = vmatpush2.msra.mxu0 0.0
    %3897 = vmatprep.subr.mxu0 0.0
    %3898 = vmatpush2.msra.mxu0 0.0
    %3899 = vmatprep.subr.mxu0 0.0
    %3900 = vmatpush2.msra.mxu0 0.0
    %3901 = vmatprep.subr.mxu0 0.0
    %3902 = vmatpush2.msra.mxu0 0.0
    %3903 = vmatprep.subr.mxu0 0.0
    %3904 = vmatpush2.msra.mxu0 0.0
    %3905 = vmatprep.subr.mxu0 0.0
    %3906 = vmatpush2.msra.mxu0 0.0
    %3907 = vmatprep.subr.mxu0 0.0
    %3908 = vmatpush2.msra.mxu0 0.0
    %3909 = vmatprep.subr.mxu0 0.0
    %3910 = vmatpush2.msra.mxu0 0.0
    %3911 = vmatprep.subr.mxu0 0.0
    %3912 = vmatpush2.msra.mxu0 0.0
    %3913 = vmatprep.subr.mxu0 0.0
    %3914 = vmatpush2.msra.mxu0 0.0
    %3915 = vmatprep.subr.mxu0 0.0
    %3916 = vmatpush2.msra.mxu0 0.0
    %3917 = vmatprep.mubr.f32.mxu0 0.0
    %3918 = vmatmul.mubr.f32.gmra.mxu0 %v3851
    %v3919 = vpop.f32.mrf.mxu0
    %v3920 = vadd.f32 %v303, %v3919
    %v3921 = vpop.f32.mrf.mxu0
    %3922 = vdwg.mxu0
    %v3923 = vxor.u32 %v3920, 2147483648
    %v3924 = vmul.f32 %v3923, 1.442695
    %v3925 = vpow.pop %v3924
    %v3926 = vadd.f32 %v3925, 1.0
    %v3927 = vrcp.pop %v3926
    %v3928 = vmul.f32 1.0, %v3927
    %v3929 = vtanh.pop %v3920
    %v3930 = vmul.f32 %v3928, %v3725
    %3932 = vrot.lane.b32.xlu0 %v3929, 64
    %v3933 = vpop.permute.xlu0 %3932
    %v3935 = vmul.f32 %v3928, %v3933
    %3937 = vrot.lane.b32.xlu0 %v3935, 32
    %v3938 = vpop.permute.xlu0 %3937
    %v3940 = vadd.f32 %v3930, %v3938
    %v3941 = vtanh.pop %v3940
    %3943 = vrot.lane.b32.xlu0 %v3941, 64
    %v3944 = vpop.permute.xlu0 %3943
    %v3946 = vmul.f32 %v3928, %v3944
    %3948 = vrot.lane.b32.xlu0 %v3946, 32
    %v3949 = vpop.permute.xlu0 %3948
    %v3951 = vsel %vm70, %v3949, %v3843
    %v3953 = vsel %vm409, %v3951, 0
    %3955 = vmatprep.subr.mxu0 0.0
    %3956 = vmatpush1.msra.mxu0 0.0
    %3957 = vmatprep.subr.mxu0 0.0
    %3958 = vmatpush1.msra.mxu0 0.0
    %3959 = vmatprep.subr.mxu0 0.0
    %3960 = vmatpush1.msra.mxu0 0.0
    %3961 = vmatprep.subr.mxu0 0.0
    %3962 = vmatpush1.msra.mxu0 0.0
    %3963 = vmatprep.subr.mxu0 0.0
    %3964 = vmatpush1.msra.mxu0 0.0
    %3965 = vmatprep.subr.mxu0 0.0
    %3966 = vmatpush1.msra.mxu0 0.0
    %3967 = vmatprep.subr.mxu0 0.0
    %3968 = vmatpush1.msra.mxu0 0.0
    %3969 = vmatprep.subr.mxu0 0.0
    %3970 = vmatpush1.msra.mxu0 0.0
    %3971 = vmatprep.subr.mxu0 0.0
    %3972 = vmatpush1.msra.mxu0 %v406
    %3973 = vmatprep.subr.mxu0 0.0
    %3974 = vmatpush1.msra.mxu0 %v405
    %3975 = vmatprep.subr.mxu0 0.0
    %3976 = vmatpush1.msra.mxu0 %v404
    %3977 = vmatprep.subr.mxu0 0.0
    %3978 = vmatpush1.msra.mxu0 %v403
    %3979 = vmatprep.subr.mxu0 0.0
    %3980 = vmatpush1.msra.mxu0 %v402
    %3981 = vmatprep.subr.mxu0 0.0
    %3982 = vmatpush1.msra.mxu0 %v401
    %3983 = vmatprep.subr.mxu0 0.0
    %3984 = vmatpush1.msra.mxu0 %v400
    %3985 = vmatprep.subr.mxu0 0.0
    %3986 = vmatpush1.msra.mxu0 %v399
    %3987 = vmatprep.subr.mxu0 0.0
    %3988 = vmatpush2.msra.mxu0 0.0
    %3989 = vmatprep.subr.mxu0 0.0
    %3990 = vmatpush2.msra.mxu0 0.0
    %3991 = vmatprep.subr.mxu0 0.0
    %3992 = vmatpush2.msra.mxu0 0.0
    %3993 = vmatprep.subr.mxu0 0.0
    %3994 = vmatpush2.msra.mxu0 0.0
    %3995 = vmatprep.subr.mxu0 0.0
    %3996 = vmatpush2.msra.mxu0 0.0
    %3997 = vmatprep.subr.mxu0 0.0
    %3998 = vmatpush2.msra.mxu0 0.0
    %3999 = vmatprep.subr.mxu0 0.0
    %4000 = vmatpush2.msra.mxu0 0.0
    %4001 = vmatprep.subr.mxu0 0.0
    %4002 = vmatpush2.msra.mxu0 0.0
    %4003 = vmatprep.subr.mxu0 0.0
    %4004 = vmatpush2.msra.mxu0 0.0
    %4005 = vmatprep.subr.mxu0 0.0
    %4006 = vmatpush2.msra.mxu0 0.0
    %4007 = vmatprep.subr.mxu0 0.0
    %4008 = vmatpush2.msra.mxu0 0.0
    %4009 = vmatprep.subr.mxu0 0.0
    %4010 = vmatpush2.msra.mxu0 0.0
    %4011 = vmatprep.subr.mxu0 0.0
    %4012 = vmatpush2.msra.mxu0 0.0
    %4013 = vmatprep.subr.mxu0 0.0
    %4014 = vmatpush2.msra.mxu0 0.0
    %4015 = vmatprep.subr.mxu0 0.0
    %4016 = vmatpush2.msra.mxu0 0.0
    %4017 = vmatprep.subr.mxu0 0.0
    %4018 = vmatpush2.msra.mxu0 0.0
    %4019 = vmatprep.mubr.f32.mxu0 0.0
    %4020 = vmatmul.mubr.f32.gmra.mxu0 %v3953
    %v4021 = vpop.f32.mrf.mxu0
    %v4022 = vadd.f32 %v384, %v4021
    %v4023 = vpop.f32.mrf.mxu0
    %4024 = vdwg.mxu0
    %v4025 = vxor.u32 %v4022, 2147483648
    %v4026 = vmul.f32 %v4025, 1.442695
    %v4027 = vpow.pop %v4026
    %v4028 = vadd.f32 %v4027, 1.0
    %v4029 = vrcp.pop %v4028
    %v4030 = vmul.f32 1.0, %v4029
    %v4031 = vtanh.pop %v4022
    %v4032 = vmul.f32 %v4030, %v3827
    %4034 = vrot.lane.b32.xlu0 %v4031, 64
    %v4035 = vpop.permute.xlu0 %4034
    %v4037 = vmul.f32 %v4030, %v4035
    %4039 = vrot.lane.b32.xlu0 %v4037, 32
    %v4040 = vpop.permute.xlu0 %4039
    %v4042 = vadd.f32 %v4032, %v4040
    %v4043 = vtanh.pop %v4042
    %4045 = vrot.lane.b32.xlu0 %v4043, 64
    %v4046 = vpop.permute.xlu0 %4045
    %v4048 = vmul.f32 %v4030, %v4046
    %4050 = vrot.lane.b32.xlu0 %v4048, 32
    %v4051 = vpop.permute.xlu0 %4050
    %s4053 = scalar_lea.vmem [#allocation2], 128
    %4054 = vst.msk [vmem:[%s4053] sm:$0xff] %vm70, %v4051
    %s4055 = scalar_lea.vmem %s1, 128
    %v4056 = vld [vmem:[%s4055] sm:$0xff]
    %4057 = vrot.lane.b32.xlu0 %v4048, 64
    %v4058 = vpop.permute.xlu0 %4057
    %4060 = vrot.lane.b32.xlu0 %v3946, 96
    %v4061 = vpop.permute.xlu0 %4060
    %v4063 = vsel %vm70, %v4056, %v4058
    %v4064 = vsel %vm409, %v4063, %v4061
    %v4066 = vsel %vm411, %v4064, 0
    %4068 = vmatprep.subr.mxu0 0.0
    %4069 = vmatpush1.msra.mxu0 0.0
    %4070 = vmatprep.subr.mxu0 0.0
    %4071 = vmatpush1.msra.mxu0 0.0
    %4072 = vmatprep.subr.mxu0 0.0
    %4073 = vmatpush1.msra.mxu0 0.0
    %4074 = vmatprep.subr.mxu0 0.0
    %4075 = vmatpush1.msra.mxu0 0.0
    %4076 = vmatprep.subr.mxu0 0.0
    %4077 = vmatpush1.msra.mxu0 %v398
    %4078 = vmatprep.subr.mxu0 0.0
    %4079 = vmatpush1.msra.mxu0 %v397
    %4080 = vmatprep.subr.mxu0 0.0
    %4081 = vmatpush1.msra.mxu0 %v396
    %4082 = vmatprep.subr.mxu0 0.0
    %4083 = vmatpush1.msra.mxu0 %v395
    %4084 = vmatprep.subr.mxu0 0.0
    %4085 = vmatpush1.msra.mxu0 %v394
    %4086 = vmatprep.subr.mxu0 0.0
    %4087 = vmatpush1.msra.mxu0 %v393
    %4088 = vmatprep.subr.mxu0 0.0
    %4089 = vmatpush1.msra.mxu0 %v392
    %4090 = vmatprep.subr.mxu0 0.0
    %4091 = vmatpush1.msra.mxu0 %v391
    %4092 = vmatprep.subr.mxu0 0.0
    %4093 = vmatpush1.msra.mxu0 %v390
    %4094 = vmatprep.subr.mxu0 0.0
    %4095 = vmatpush1.msra.mxu0 %v389
    %4096 = vmatprep.subr.mxu0 0.0
    %4097 = vmatpush1.msra.mxu0 %v388
    %4098 = vmatprep.subr.mxu0 0.0
    %4099 = vmatpush1.msra.mxu0 %v387
    %4100 = vmatprep.subr.mxu0 0.0
    %4101 = vmatpush2.msra.mxu0 0.0
    %4102 = vmatprep.subr.mxu0 0.0
    %4103 = vmatpush2.msra.mxu0 0.0
    %4104 = vmatprep.subr.mxu0 0.0
    %4105 = vmatpush2.msra.mxu0 0.0
    %4106 = vmatprep.subr.mxu0 0.0
    %4107 = vmatpush2.msra.mxu0 0.0
    %4108 = vmatprep.subr.mxu0 0.0
    %4109 = vmatpush2.msra.mxu0 0.0
    %4110 = vmatprep.subr.mxu0 0.0
    %4111 = vmatpush2.msra.mxu0 0.0
    %4112 = vmatprep.subr.mxu0 0.0
    %4113 = vmatpush2.msra.mxu0 0.0
    %4114 = vmatprep.subr.mxu0 0.0
    %4115 = vmatpush2.msra.mxu0 0.0
    %4116 = vmatprep.subr.mxu0 0.0
    %4117 = vmatpush2.msra.mxu0 0.0
    %4118 = vmatprep.subr.mxu0 0.0
    %4119 = vmatpush2.msra.mxu0 0.0
    %4120 = vmatprep.subr.mxu0 0.0
    %4121 = vmatpush2.msra.mxu0 0.0
    %4122 = vmatprep.subr.mxu0 0.0
    %4123 = vmatpush2.msra.mxu0 0.0
    %4124 = vmatprep.subr.mxu0 0.0
    %4125 = vmatpush2.msra.mxu0 0.0
    %4126 = vmatprep.subr.mxu0 0.0
    %4127 = vmatpush2.msra.mxu0 0.0
    %4128 = vmatprep.subr.mxu0 0.0
    %4129 = vmatpush2.msra.mxu0 0.0
    %4130 = vmatprep.subr.mxu0 0.0
    %4131 = vmatpush2.msra.mxu0 0.0
    %4132 = vmatprep.mubr.f32.mxu0 0.0
    %4133 = vmatmul.mubr.f32.gmra.mxu0 %v4066
    %v4134 = vpop.f32.mrf.mxu0
    %v4135 = vadd.f32 %v303, %v4134
    %v4136 = vpop.f32.mrf.mxu0
    %4137 = vdwg.mxu0
    %v4138 = vxor.u32 %v4135, 2147483648
    %v4139 = vmul.f32 %v4138, 1.442695
    %v4140 = vpow.pop %v4139
    %v4141 = vadd.f32 %v4140, 1.0
    %v4142 = vrcp.pop %v4141
    %v4143 = vmul.f32 1.0, %v4142
    %v4144 = vtanh.pop %v4135
    %v4145 = vmul.f32 %v4143, %v3940
    %4147 = vrot.lane.b32.xlu0 %v4144, 64
    %v4148 = vpop.permute.xlu0 %4147
    %v4150 = vmul.f32 %v4143, %v4148
    %4152 = vrot.lane.b32.xlu0 %v4150, 32
    %v4153 = vpop.permute.xlu0 %4152
    %v4155 = vadd.f32 %v4145, %v4153
    %v4156 = vtanh.pop %v4155
    %4158 = vrot.lane.b32.xlu0 %v4156, 64
    %v4159 = vpop.permute.xlu0 %4158
    %v4161 = vmul.f32 %v4143, %v4159
    %4163 = vrot.lane.b32.xlu0 %v4161, 32
    %v4164 = vpop.permute.xlu0 %4163
    %v4166 = vsel %vm70, %v4164, %v4058
    %v4168 = vsel %vm409, %v4166, 0
    %4170 = vmatprep.subr.mxu0 0.0
    %4171 = vmatpush1.msra.mxu0 0.0
    %4172 = vmatprep.subr.mxu0 0.0
    %4173 = vmatpush1.msra.mxu0 0.0
    %4174 = vmatprep.subr.mxu0 0.0
    %4175 = vmatpush1.msra.mxu0 0.0
    %4176 = vmatprep.subr.mxu0 0.0
    %4177 = vmatpush1.msra.mxu0 0.0
    %4178 = vmatprep.subr.mxu0 0.0
    %4179 = vmatpush1.msra.mxu0 0.0
    %4180 = vmatprep.subr.mxu0 0.0
    %4181 = vmatpush1.msra.mxu0 0.0
    %4182 = vmatprep.subr.mxu0 0.0
    %4183 = vmatpush1.msra.mxu0 0.0
    %4184 = vmatprep.subr.mxu0 0.0
    %4185 = vmatpush1.msra.mxu0 0.0
    %4186 = vmatprep.subr.mxu0 0.0
    %4187 = vmatpush1.msra.mxu0 %v406
    %4188 = vmatprep.subr.mxu0 0.0
    %4189 = vmatpush1.msra.mxu0 %v405
    %4190 = vmatprep.subr.mxu0 0.0
    %4191 = vmatpush1.msra.mxu0 %v404
    %4192 = vmatprep.subr.mxu0 0.0
    %4193 = vmatpush1.msra.mxu0 %v403
    %4194 = vmatprep.subr.mxu0 0.0
    %4195 = vmatpush1.msra.mxu0 %v402
    %4196 = vmatprep.subr.mxu0 0.0
    %4197 = vmatpush1.msra.mxu0 %v401
    %4198 = vmatprep.subr.mxu0 0.0
    %4199 = vmatpush1.msra.mxu0 %v400
    %4200 = vmatprep.subr.mxu0 0.0
    %4201 = vmatpush1.msra.mxu0 %v399
    %4202 = vmatprep.subr.mxu0 0.0
    %4203 = vmatpush2.msra.mxu0 0.0
    %4204 = vmatprep.subr.mxu0 0.0
    %4205 = vmatpush2.msra.mxu0 0.0
    %4206 = vmatprep.subr.mxu0 0.0
    %4207 = vmatpush2.msra.mxu0 0.0
    %4208 = vmatprep.subr.mxu0 0.0
    %4209 = vmatpush2.msra.mxu0 0.0
    %4210 = vmatprep.subr.mxu0 0.0
    %4211 = vmatpush2.msra.mxu0 0.0
    %4212 = vmatprep.subr.mxu0 0.0
    %4213 = vmatpush2.msra.mxu0 0.0
    %4214 = vmatprep.subr.mxu0 0.0
    %4215 = vmatpush2.msra.mxu0 0.0
    %4216 = vmatprep.subr.mxu0 0.0
    %4217 = vmatpush2.msra.mxu0 0.0
    %4218 = vmatprep.subr.mxu0 0.0
    %4219 = vmatpush2.msra.mxu0 0.0
    %4220 = vmatprep.subr.mxu0 0.0
    %4221 = vmatpush2.msra.mxu0 0.0
    %4222 = vmatprep.subr.mxu0 0.0
    %4223 = vmatpush2.msra.mxu0 0.0
    %4224 = vmatprep.subr.mxu0 0.0
    %4225 = vmatpush2.msra.mxu0 0.0
    %4226 = vmatprep.subr.mxu0 0.0
    %4227 = vmatpush2.msra.mxu0 0.0
    %4228 = vmatprep.subr.mxu0 0.0
    %4229 = vmatpush2.msra.mxu0 0.0
    %4230 = vmatprep.subr.mxu0 0.0
    %4231 = vmatpush2.msra.mxu0 0.0
    %4232 = vmatprep.subr.mxu0 0.0
    %4233 = vmatpush2.msra.mxu0 0.0
    %4234 = vmatprep.mubr.f32.mxu0 0.0
    %4235 = vmatmul.mubr.f32.gmra.mxu0 %v4168
    %v4236 = vpop.f32.mrf.mxu0
    %v4237 = vadd.f32 %v384, %v4236
    %v4238 = vpop.f32.mrf.mxu0
    %4239 = vdwg.mxu0
    %v4240 = vxor.u32 %v4237, 2147483648
    %v4241 = vmul.f32 %v4240, 1.442695
    %v4242 = vpow.pop %v4241
    %v4243 = vadd.f32 %v4242, 1.0
    %v4244 = vrcp.pop %v4243
    %v4245 = vmul.f32 1.0, %v4244
    %v4246 = vtanh.pop %v4237
    %v4247 = vmul.f32 %v4245, %v4042
    %4249 = vrot.lane.b32.xlu0 %v4246, 64
    %v4250 = vpop.permute.xlu0 %4249
    %v4252 = vmul.f32 %v4245, %v4250
    %4254 = vrot.lane.b32.xlu0 %v4252, 32
    %v4255 = vpop.permute.xlu0 %4254
    %v4257 = vadd.f32 %v4247, %v4255
    %v4258 = vtanh.pop %v4257
    %4260 = vrot.lane.b32.xlu0 %v4258, 64
    %v4261 = vpop.permute.xlu0 %4260
    %v4263 = vmul.f32 %v4245, %v4261
    %4265 = vrot.lane.b32.xlu0 %v4263, 32
    %v4266 = vpop.permute.xlu0 %4265
    %s4268 = scalar_lea.vmem [#allocation2], 136
    %4269 = vst.msk [vmem:[%s4268] sm:$0xff] %vm70, %v4266
    %s4270 = scalar_lea.vmem %s1, 136
    %v4271 = vld [vmem:[%s4270] sm:$0xff]
    %4272 = vrot.lane.b32.xlu0 %v4263, 64
    %v4273 = vpop.permute.xlu0 %4272
    %4275 = vrot.lane.b32.xlu0 %v4161, 96
    %v4276 = vpop.permute.xlu0 %4275
    %v4278 = vsel %vm70, %v4271, %v4273
    %v4279 = vsel %vm409, %v4278, %v4276
    %v4281 = vsel %vm411, %v4279, 0
    %4283 = vmatprep.subr.mxu0 0.0
    %4284 = vmatpush1.msra.mxu0 0.0
    %4285 = vmatprep.subr.mxu0 0.0
    %4286 = vmatpush1.msra.mxu0 0.0
    %4287 = vmatprep.subr.mxu0 0.0
    %4288 = vmatpush1.msra.mxu0 0.0
    %4289 = vmatprep.subr.mxu0 0.0
    %4290 = vmatpush1.msra.mxu0 0.0
    %4291 = vmatprep.subr.mxu0 0.0
    %4292 = vmatpush1.msra.mxu0 %v398
    %4293 = vmatprep.subr.mxu0 0.0
    %4294 = vmatpush1.msra.mxu0 %v397
    %4295 = vmatprep.subr.mxu0 0.0
    %4296 = vmatpush1.msra.mxu0 %v396
    %4297 = vmatprep.subr.mxu0 0.0
    %4298 = vmatpush1.msra.mxu0 %v395
    %4299 = vmatprep.subr.mxu0 0.0
    %4300 = vmatpush1.msra.mxu0 %v394
    %4301 = vmatprep.subr.mxu0 0.0
    %4302 = vmatpush1.msra.mxu0 %v393
    %4303 = vmatprep.subr.mxu0 0.0
    %4304 = vmatpush1.msra.mxu0 %v392
    %4305 = vmatprep.subr.mxu0 0.0
    %4306 = vmatpush1.msra.mxu0 %v391
    %4307 = vmatprep.subr.mxu0 0.0
    %4308 = vmatpush1.msra.mxu0 %v390
    %4309 = vmatprep.subr.mxu0 0.0
    %4310 = vmatpush1.msra.mxu0 %v389
    %4311 = vmatprep.subr.mxu0 0.0
    %4312 = vmatpush1.msra.mxu0 %v388
    %4313 = vmatprep.subr.mxu0 0.0
    %4314 = vmatpush1.msra.mxu0 %v387
    %4315 = vmatprep.subr.mxu0 0.0
    %4316 = vmatpush2.msra.mxu0 0.0
    %4317 = vmatprep.subr.mxu0 0.0
    %4318 = vmatpush2.msra.mxu0 0.0
    %4319 = vmatprep.subr.mxu0 0.0
    %4320 = vmatpush2.msra.mxu0 0.0
    %4321 = vmatprep.subr.mxu0 0.0
    %4322 = vmatpush2.msra.mxu0 0.0
    %4323 = vmatprep.subr.mxu0 0.0
    %4324 = vmatpush2.msra.mxu0 0.0
    %4325 = vmatprep.subr.mxu0 0.0
    %4326 = vmatpush2.msra.mxu0 0.0
    %4327 = vmatprep.subr.mxu0 0.0
    %4328 = vmatpush2.msra.mxu0 0.0
    %4329 = vmatprep.subr.mxu0 0.0
    %4330 = vmatpush2.msra.mxu0 0.0
    %4331 = vmatprep.subr.mxu0 0.0
    %4332 = vmatpush2.msra.mxu0 0.0
    %4333 = vmatprep.subr.mxu0 0.0
    %4334 = vmatpush2.msra.mxu0 0.0
    %4335 = vmatprep.subr.mxu0 0.0
    %4336 = vmatpush2.msra.mxu0 0.0
    %4337 = vmatprep.subr.mxu0 0.0
    %4338 = vmatpush2.msra.mxu0 0.0
    %4339 = vmatprep.subr.mxu0 0.0
    %4340 = vmatpush2.msra.mxu0 0.0
    %4341 = vmatprep.subr.mxu0 0.0
    %4342 = vmatpush2.msra.mxu0 0.0
    %4343 = vmatprep.subr.mxu0 0.0
    %4344 = vmatpush2.msra.mxu0 0.0
    %4345 = vmatprep.subr.mxu0 0.0
    %4346 = vmatpush2.msra.mxu0 0.0
    %4347 = vmatprep.mubr.f32.mxu0 0.0
    %4348 = vmatmul.mubr.f32.gmra.mxu0 %v4281
    %v4349 = vpop.f32.mrf.mxu0
    %v4350 = vadd.f32 %v303, %v4349
    %v4351 = vpop.f32.mrf.mxu0
    %4352 = vdwg.mxu0
    %v4353 = vxor.u32 %v4350, 2147483648
    %v4354 = vmul.f32 %v4353, 1.442695
    %v4355 = vpow.pop %v4354
    %v4356 = vadd.f32 %v4355, 1.0
    %v4357 = vrcp.pop %v4356
    %v4358 = vmul.f32 1.0, %v4357
    %v4359 = vtanh.pop %v4350
    %v4360 = vmul.f32 %v4358, %v4155
    %4362 = vrot.lane.b32.xlu0 %v4359, 64
    %v4363 = vpop.permute.xlu0 %4362
    %v4365 = vmul.f32 %v4358, %v4363
    %4367 = vrot.lane.b32.xlu0 %v4365, 32
    %v4368 = vpop.permute.xlu0 %4367
    %v4370 = vadd.f32 %v4360, %v4368
    %v4371 = vtanh.pop %v4370
    %4373 = vrot.lane.b32.xlu0 %v4371, 64
    %v4374 = vpop.permute.xlu0 %4373
    %v4376 = vmul.f32 %v4358, %v4374
    %4378 = vrot.lane.b32.xlu0 %v4376, 32
    %v4379 = vpop.permute.xlu0 %4378
    %v4381 = vsel %vm70, %v4379, %v4273
    %v4383 = vsel %vm409, %v4381, 0
    %4385 = vmatprep.subr.mxu0 0.0
    %4386 = vmatpush1.msra.mxu0 0.0
    %4387 = vmatprep.subr.mxu0 0.0
    %4388 = vmatpush1.msra.mxu0 0.0
    %4389 = vmatprep.subr.mxu0 0.0
    %4390 = vmatpush1.msra.mxu0 0.0
    %4391 = vmatprep.subr.mxu0 0.0
    %4392 = vmatpush1.msra.mxu0 0.0
    %4393 = vmatprep.subr.mxu0 0.0
    %4394 = vmatpush1.msra.mxu0 0.0
    %4395 = vmatprep.subr.mxu0 0.0
    %4396 = vmatpush1.msra.mxu0 0.0
    %4397 = vmatprep.subr.mxu0 0.0
    %4398 = vmatpush1.msra.mxu0 0.0
    %4399 = vmatprep.subr.mxu0 0.0
    %4400 = vmatpush1.msra.mxu0 0.0
    %4401 = vmatprep.subr.mxu0 0.0
    %4402 = vmatpush1.msra.mxu0 %v406
    %4403 = vmatprep.subr.mxu0 0.0
    %4404 = vmatpush1.msra.mxu0 %v405
    %4405 = vmatprep.subr.mxu0 0.0
    %4406 = vmatpush1.msra.mxu0 %v404
    %4407 = vmatprep.subr.mxu0 0.0
    %4408 = vmatpush1.msra.mxu0 %v403
    %4409 = vmatprep.subr.mxu0 0.0
    %4410 = vmatpush1.msra.mxu0 %v402
    %4411 = vmatprep.subr.mxu0 0.0
    %4412 = vmatpush1.msra.mxu0 %v401
    %4413 = vmatprep.subr.mxu0 0.0
    %4414 = vmatpush1.msra.mxu0 %v400
    %4415 = vmatprep.subr.mxu0 0.0
    %4416 = vmatpush1.msra.mxu0 %v399
    %4417 = vmatprep.subr.mxu0 0.0
    %4418 = vmatpush2.msra.mxu0 0.0
    %4419 = vmatprep.subr.mxu0 0.0
    %4420 = vmatpush2.msra.mxu0 0.0
    %4421 = vmatprep.subr.mxu0 0.0
    %4422 = vmatpush2.msra.mxu0 0.0
    %4423 = vmatprep.subr.mxu0 0.0
    %4424 = vmatpush2.msra.mxu0 0.0
    %4425 = vmatprep.subr.mxu0 0.0
    %4426 = vmatpush2.msra.mxu0 0.0
    %4427 = vmatprep.subr.mxu0 0.0
    %4428 = vmatpush2.msra.mxu0 0.0
    %4429 = vmatprep.subr.mxu0 0.0
    %4430 = vmatpush2.msra.mxu0 0.0
    %4431 = vmatprep.subr.mxu0 0.0
    %4432 = vmatpush2.msra.mxu0 0.0
    %4433 = vmatprep.subr.mxu0 0.0
    %4434 = vmatpush2.msra.mxu0 0.0
    %4435 = vmatprep.subr.mxu0 0.0
    %4436 = vmatpush2.msra.mxu0 0.0
    %4437 = vmatprep.subr.mxu0 0.0
    %4438 = vmatpush2.msra.mxu0 0.0
    %4439 = vmatprep.subr.mxu0 0.0
    %4440 = vmatpush2.msra.mxu0 0.0
    %4441 = vmatprep.subr.mxu0 0.0
    %4442 = vmatpush2.msra.mxu0 0.0
    %4443 = vmatprep.subr.mxu0 0.0
    %4444 = vmatpush2.msra.mxu0 0.0
    %4445 = vmatprep.subr.mxu0 0.0
    %4446 = vmatpush2.msra.mxu0 0.0
    %4447 = vmatprep.subr.mxu0 0.0
    %4448 = vmatpush2.msra.mxu0 0.0
    %4449 = vmatprep.mubr.f32.mxu0 0.0
    %4450 = vmatmul.mubr.f32.gmra.mxu0 %v4383
    %v4451 = vpop.f32.mrf.mxu0
    %v4452 = vadd.f32 %v384, %v4451
    %v4453 = vpop.f32.mrf.mxu0
    %4454 = vdwg.mxu0
    %v4455 = vxor.u32 %v4452, 2147483648
    %v4456 = vmul.f32 %v4455, 1.442695
    %v4457 = vpow.pop %v4456
    %v4458 = vadd.f32 %v4457, 1.0
    %v4459 = vrcp.pop %v4458
    %v4460 = vmul.f32 1.0, %v4459
    %v4461 = vtanh.pop %v4452
    %v4462 = vmul.f32 %v4460, %v4257
    %4464 = vrot.lane.b32.xlu0 %v4461, 64
    %v4465 = vpop.permute.xlu0 %4464
    %v4467 = vmul.f32 %v4460, %v4465
    %4469 = vrot.lane.b32.xlu0 %v4467, 32
    %v4470 = vpop.permute.xlu0 %4469
    %v4472 = vadd.f32 %v4462, %v4470
    %v4473 = vtanh.pop %v4472
    %4475 = vrot.lane.b32.xlu0 %v4473, 64
    %v4476 = vpop.permute.xlu0 %4475
    %v4478 = vmul.f32 %v4460, %v4476
    %4480 = vrot.lane.b32.xlu0 %v4478, 32
    %v4481 = vpop.permute.xlu0 %4480
    %s4483 = scalar_lea.vmem [#allocation2], 144
    %4484 = vst.msk [vmem:[%s4483] sm:$0xff] %vm70, %v4481
    %s4485 = scalar_lea.vmem %s1, 144
    %v4486 = vld [vmem:[%s4485] sm:$0xff]
    %4487 = vrot.lane.b32.xlu0 %v4478, 64
    %v4488 = vpop.permute.xlu0 %4487
    %4490 = vrot.lane.b32.xlu0 %v4376, 96
    %v4491 = vpop.permute.xlu0 %4490
    %v4493 = vsel %vm70, %v4486, %v4488
    %v4494 = vsel %vm409, %v4493, %v4491
    %v4496 = vsel %vm411, %v4494, 0
    %4498 = vmatprep.subr.mxu0 0.0
    %4499 = vmatpush1.msra.mxu0 0.0
    %4500 = vmatprep.subr.mxu0 0.0
    %4501 = vmatpush1.msra.mxu0 0.0
    %4502 = vmatprep.subr.mxu0 0.0
    %4503 = vmatpush1.msra.mxu0 0.0
    %4504 = vmatprep.subr.mxu0 0.0
    %4505 = vmatpush1.msra.mxu0 0.0
    %4506 = vmatprep.subr.mxu0 0.0
    %4507 = vmatpush1.msra.mxu0 %v398
    %4508 = vmatprep.subr.mxu0 0.0
    %4509 = vmatpush1.msra.mxu0 %v397
    %4510 = vmatprep.subr.mxu0 0.0
    %4511 = vmatpush1.msra.mxu0 %v396
    %4512 = vmatprep.subr.mxu0 0.0
    %4513 = vmatpush1.msra.mxu0 %v395
    %4514 = vmatprep.subr.mxu0 0.0
    %4515 = vmatpush1.msra.mxu0 %v394
    %4516 = vmatprep.subr.mxu0 0.0
    %4517 = vmatpush1.msra.mxu0 %v393
    %4518 = vmatprep.subr.mxu0 0.0
    %4519 = vmatpush1.msra.mxu0 %v392
    %4520 = vmatprep.subr.mxu0 0.0
    %4521 = vmatpush1.msra.mxu0 %v391
    %4522 = vmatprep.subr.mxu0 0.0
    %4523 = vmatpush1.msra.mxu0 %v390
    %4524 = vmatprep.subr.mxu0 0.0
    %4525 = vmatpush1.msra.mxu0 %v389
    %4526 = vmatprep.subr.mxu0 0.0
    %4527 = vmatpush1.msra.mxu0 %v388
    %4528 = vmatprep.subr.mxu0 0.0
    %4529 = vmatpush1.msra.mxu0 %v387
    %4530 = vmatprep.subr.mxu0 0.0
    %4531 = vmatpush2.msra.mxu0 0.0
    %4532 = vmatprep.subr.mxu0 0.0
    %4533 = vmatpush2.msra.mxu0 0.0
    %4534 = vmatprep.subr.mxu0 0.0
    %4535 = vmatpush2.msra.mxu0 0.0
    %4536 = vmatprep.subr.mxu0 0.0
    %4537 = vmatpush2.msra.mxu0 0.0
    %4538 = vmatprep.subr.mxu0 0.0
    %4539 = vmatpush2.msra.mxu0 0.0
    %4540 = vmatprep.subr.mxu0 0.0
    %4541 = vmatpush2.msra.mxu0 0.0
    %4542 = vmatprep.subr.mxu0 0.0
    %4543 = vmatpush2.msra.mxu0 0.0
    %4544 = vmatprep.subr.mxu0 0.0
    %4545 = vmatpush2.msra.mxu0 0.0
    %4546 = vmatprep.subr.mxu0 0.0
    %4547 = vmatpush2.msra.mxu0 0.0
    %4548 = vmatprep.subr.mxu0 0.0
    %4549 = vmatpush2.msra.mxu0 0.0
    %4550 = vmatprep.subr.mxu0 0.0
    %4551 = vmatpush2.msra.mxu0 0.0
    %4552 = vmatprep.subr.mxu0 0.0
    %4553 = vmatpush2.msra.mxu0 0.0
    %4554 = vmatprep.subr.mxu0 0.0
    %4555 = vmatpush2.msra.mxu0 0.0
    %4556 = vmatprep.subr.mxu0 0.0
    %4557 = vmatpush2.msra.mxu0 0.0
    %4558 = vmatprep.subr.mxu0 0.0
    %4559 = vmatpush2.msra.mxu0 0.0
    %4560 = vmatprep.subr.mxu0 0.0
    %4561 = vmatpush2.msra.mxu0 0.0
    %4562 = vmatprep.mubr.f32.mxu0 0.0
    %4563 = vmatmul.mubr.f32.gmra.mxu0 %v4496
    %v4564 = vpop.f32.mrf.mxu0
    %v4565 = vadd.f32 %v303, %v4564
    %v4566 = vpop.f32.mrf.mxu0
    %4567 = vdwg.mxu0
    %v4568 = vxor.u32 %v4565, 2147483648
    %v4569 = vmul.f32 %v4568, 1.442695
    %v4570 = vpow.pop %v4569
    %v4571 = vadd.f32 %v4570, 1.0
    %v4572 = vrcp.pop %v4571
    %v4573 = vmul.f32 1.0, %v4572
    %v4574 = vtanh.pop %v4565
    %v4575 = vmul.f32 %v4573, %v4370
    %4577 = vrot.lane.b32.xlu0 %v4574, 64
    %v4578 = vpop.permute.xlu0 %4577
    %v4580 = vmul.f32 %v4573, %v4578
    %4582 = vrot.lane.b32.xlu0 %v4580, 32
    %v4583 = vpop.permute.xlu0 %4582
    %v4585 = vadd.f32 %v4575, %v4583
    %v4586 = vtanh.pop %v4585
    %4588 = vrot.lane.b32.xlu0 %v4586, 64
    %v4589 = vpop.permute.xlu0 %4588
    %v4591 = vmul.f32 %v4573, %v4589
    %4593 = vrot.lane.b32.xlu0 %v4591, 32
    %v4594 = vpop.permute.xlu0 %4593
    %v4596 = vsel %vm70, %v4594, %v4488
    %v4598 = vsel %vm409, %v4596, 0
    %4600 = vmatprep.subr.mxu0 0.0
    %4601 = vmatpush1.msra.mxu0 0.0
    %4602 = vmatprep.subr.mxu0 0.0
    %4603 = vmatpush1.msra.mxu0 0.0
    %4604 = vmatprep.subr.mxu0 0.0
    %4605 = vmatpush1.msra.mxu0 0.0
    %4606 = vmatprep.subr.mxu0 0.0
    %4607 = vmatpush1.msra.mxu0 0.0
    %4608 = vmatprep.subr.mxu0 0.0
    %4609 = vmatpush1.msra.mxu0 0.0
    %4610 = vmatprep.subr.mxu0 0.0
    %4611 = vmatpush1.msra.mxu0 0.0
    %4612 = vmatprep.subr.mxu0 0.0
    %4613 = vmatpush1.msra.mxu0 0.0
    %4614 = vmatprep.subr.mxu0 0.0
    %4615 = vmatpush1.msra.mxu0 0.0
    %4616 = vmatprep.subr.mxu0 0.0
    %4617 = vmatpush1.msra.mxu0 %v406
    %4618 = vmatprep.subr.mxu0 0.0
    %4619 = vmatpush1.msra.mxu0 %v405
    %4620 = vmatprep.subr.mxu0 0.0
    %4621 = vmatpush1.msra.mxu0 %v404
    %4622 = vmatprep.subr.mxu0 0.0
    %4623 = vmatpush1.msra.mxu0 %v403
    %4624 = vmatprep.subr.mxu0 0.0
    %4625 = vmatpush1.msra.mxu0 %v402
    %4626 = vmatprep.subr.mxu0 0.0
    %4627 = vmatpush1.msra.mxu0 %v401
    %4628 = vmatprep.subr.mxu0 0.0
    %4629 = vmatpush1.msra.mxu0 %v400
    %4630 = vmatprep.subr.mxu0 0.0
    %4631 = vmatpush1.msra.mxu0 %v399
    %4632 = vmatprep.subr.mxu0 0.0
    %4633 = vmatpush2.msra.mxu0 0.0
    %4634 = vmatprep.subr.mxu0 0.0
    %4635 = vmatpush2.msra.mxu0 0.0
    %4636 = vmatprep.subr.mxu0 0.0
    %4637 = vmatpush2.msra.mxu0 0.0
    %4638 = vmatprep.subr.mxu0 0.0
    %4639 = vmatpush2.msra.mxu0 0.0
    %4640 = vmatprep.subr.mxu0 0.0
    %4641 = vmatpush2.msra.mxu0 0.0
    %4642 = vmatprep.subr.mxu0 0.0
    %4643 = vmatpush2.msra.mxu0 0.0
    %4644 = vmatprep.subr.mxu0 0.0
    %4645 = vmatpush2.msra.mxu0 0.0
    %4646 = vmatprep.subr.mxu0 0.0
    %4647 = vmatpush2.msra.mxu0 0.0
    %4648 = vmatprep.subr.mxu0 0.0
    %4649 = vmatpush2.msra.mxu0 0.0
    %4650 = vmatprep.subr.mxu0 0.0
    %4651 = vmatpush2.msra.mxu0 0.0
    %4652 = vmatprep.subr.mxu0 0.0
    %4653 = vmatpush2.msra.mxu0 0.0
    %4654 = vmatprep.subr.mxu0 0.0
    %4655 = vmatpush2.msra.mxu0 0.0
    %4656 = vmatprep.subr.mxu0 0.0
    %4657 = vmatpush2.msra.mxu0 0.0
    %4658 = vmatprep.subr.mxu0 0.0
    %4659 = vmatpush2.msra.mxu0 0.0
    %4660 = vmatprep.subr.mxu0 0.0
    %4661 = vmatpush2.msra.mxu0 0.0
    %4662 = vmatprep.subr.mxu0 0.0
    %4663 = vmatpush2.msra.mxu0 0.0
    %4664 = vmatprep.mubr.f32.mxu0 0.0
    %4665 = vmatmul.mubr.f32.gmra.mxu0 %v4598
    %v4666 = vpop.f32.mrf.mxu0
    %v4667 = vadd.f32 %v384, %v4666
    %v4668 = vpop.f32.mrf.mxu0
    %4669 = vdwg.mxu0
    %v4670 = vxor.u32 %v4667, 2147483648
    %v4671 = vmul.f32 %v4670, 1.442695
    %v4672 = vpow.pop %v4671
    %v4673 = vadd.f32 %v4672, 1.0
    %v4674 = vrcp.pop %v4673
    %v4675 = vmul.f32 1.0, %v4674
    %v4676 = vtanh.pop %v4667
    %v4677 = vmul.f32 %v4675, %v4472
    %4679 = vrot.lane.b32.xlu0 %v4676, 64
    %v4680 = vpop.permute.xlu0 %4679
    %v4682 = vmul.f32 %v4675, %v4680
    %4684 = vrot.lane.b32.xlu0 %v4682, 32
    %v4685 = vpop.permute.xlu0 %4684
    %v4687 = vadd.f32 %v4677, %v4685
    %v4688 = vtanh.pop %v4687
    %4690 = vrot.lane.b32.xlu0 %v4688, 64
    %v4691 = vpop.permute.xlu0 %4690
    %v4693 = vmul.f32 %v4675, %v4691
    %4695 = vrot.lane.b32.xlu0 %v4693, 32
    %v4696 = vpop.permute.xlu0 %4695
    %s4698 = scalar_lea.vmem [#allocation2], 152
    %4699 = vst.msk [vmem:[%s4698] sm:$0xff] %vm70, %v4696
    // Predicated region
    $region34: #{tpu_custom_call.1} parent=1 // pred_check
      _
    $region35: #{tpu_custom_call.1} parent=1 // pred_check_branch
      %4701 = sbr.rel (0) target = $region37
    $region36: #{tpu_custom_call.1} parent=1 // pred_region
      %s4703 = ssub.s32 2560, 2560
      %4704 = vsyncadd [#allocation3], %s4703
      %s4705 = sshll.u32 [#allocation2], 4
      %s4706 = int_to_ptr.vmem [resolvable:$true] %s4705
      %4711 = dma.vmem_to_hbm [thread:$0]  %s4706, 2560, %s8, [#allocation3], 128, 128, 8
    $region37: #{tpu_custom_call.1} parent=1 // pred_fallthru
      _
    // Predicated region
    $region38: #{tpu_custom_call.1} parent=1 // pred_check
      _
    $region39: #{tpu_custom_call.1} parent=1 // pred_check_branch
      %4713 = sbr.rel (0) target = $region41
    $region40: #{tpu_custom_call.1} parent=1 // pred_region
      %4714 = dma.done [#allocation3], 2560
    $region41: #{tpu_custom_call.1} parent=1 // pred_fallthru
      _
    %4715 = vsyncpa [#allocation3], 1

</llo_original>
